<compile_context>
chip_gen: v7x
topology: tpu7x:2x2x1
jax: 0.10.0
libtpu: 0.0.40
codegen_flags: <defaults>
</compile_context>

<pallas_src>
import jax
import jax.numpy as jnp
from jax.experimental import pallas as pl
from jax.experimental.pallas import tpu as pltpu

# ------------------------- model hyper-parameters -------------------------
B = 2            # batch
C = 4            # image channels
H = W = 16       # image spatial size
PATCH = 8        # patch size -> 4 patches / image
NP = (H // PATCH) * (W // PATCH)
PATCH_DIM = C * PATCH * PATCH
HIDDEN = 32      # shared hidden size (vision / q-former / LM)
NUM_HEADS = 2
HEAD_DIM = HIDDEN // NUM_HEADS
MLP = 64
NUM_QUERY = 8    # q-former query tokens
VOCAB = 64
TEXT_LEN = 6
ENC_LEN = NUM_QUERY + TEXT_LEN
MAX_NEW_TOKENS = 3

CDT = jnp.bfloat16   # MXU input dtype (accumulation stays f32)


# --------------------------- in-kernel helpers ---------------------------
def _ln(x, g, b):
    mu = jnp.mean(x, axis=-1, keepdims=True)
    var = jnp.mean((x - mu) ** 2, axis=-1, keepdims=True)
    return (x - mu) * jax.lax.rsqrt(var + 1e-6) * g + b


def _dot(a, w):
    """MXU matmul: bf16 inputs, f32 accumulation."""
    return jnp.dot(a.astype(CDT), w.astype(CDT), preferred_element_type=jnp.float32)


def _mha(q, k, v, wo):
    """Multi-head attention for one batch element, heads statically unrolled.

    q: [Sq, H] f32, k/v: [Sk, H] f32, wo: [H, H] bf16.
    Per-head softmax(q_h k_h^T / sqrt(Dh)) v_h is accumulated directly through
    the corresponding rows of W_O (identical to concat(heads) @ W_O without any
    concat / relayout glue). Returns [Sq, H] f32 (output bias NOT applied).
    """
    scale = 1.0 / (HEAD_DIM ** 0.5)
    qc = q.astype(CDT)
    kc = k.astype(CDT)
    vc = v.astype(CDT)
    woc = wo.astype(CDT)
    out = None
    for hi in range(NUM_HEADS):
        sl = slice(hi * HEAD_DIM, (hi + 1) * HEAD_DIM)
        s = jnp.einsum('qd,kd->qk', qc[:, sl], kc[:, sl],
                       preferred_element_type=jnp.float32) * scale
        m = jnp.max(s, axis=-1, keepdims=True)
        e = jnp.exp(s - m)
        p = e * pl.reciprocal(jnp.sum(e, axis=-1, keepdims=True), approx=True)
        ctx = jnp.dot(p.astype(CDT), vc[:, sl],
                      preferred_element_type=jnp.float32)              # [Sq, Dh]
        contrib = jnp.dot(ctx.astype(CDT), woc[sl, :],
                          preferred_element_type=jnp.float32)          # [Sq, H]
        out = contrib if out is None else out + contrib
    return out


# ------------------------------ fused kernel ------------------------------
def _fused_vqa_kernel(
        # per-batch inputs
        patches_ref, ids_ref,
        # vision block
        pw_ref, pb_ref, pos_ref,
        vln1g_ref, vln1b_ref, vwqkv_ref, vbqkv_ref, vwo_ref, vbo_ref,
        vln2g_ref, vln2b_ref, vw1_ref, vb1_ref, vw2_ref, vb2_ref,
        vlnfg_ref, vlnfb_ref,
        # q-former block + language projection
        qtok_ref, qwq_ref, qbq_ref, qwkv_ref, qbkv_ref, qwo_ref, qbo_ref,
        qlng_ref, qlnb_ref, qw1_ref, qb1_ref, qw2_ref, qb2_ref,
        lpw_ref, lpb_ref,
        # decoder
        temb_ref, tembT_ref,
        dwq_ref, dbq_ref, dwkv_ref, dbkv_ref, dwo_ref, dbo_ref,
        dlng_ref, dlnb_ref,
        # output
        out_ref):
    # ===================== ViT block (one image) =====================
    patches = patches_ref[0]                                   # [NP, PATCH_DIM]
    x = _dot(patches, pw_ref[...]) + pb_ref[...]               # patch embed
    x = x + pos_ref[...]                                       # + positional

    h1 = _ln(x, vln1g_ref[...], vln1b_ref[...])
    qkv = _dot(h1, vwqkv_ref[...]) + vbqkv_ref[...]            # fused QKV [NP, 3H]
    attn = _mha(qkv[:, :HIDDEN], qkv[:, HIDDEN:2 * HIDDEN],
                qkv[:, 2 * HIDDEN:], vwo_ref[...]) + vbo_ref[...]
    x = x + attn                                               # residual

    h2 = _ln(x, vln2g_ref[...], vln2b_ref[...])
    m = _dot(h2, vw1_ref[...]) + vb1_ref[...]
    m = jax.nn.gelu(m, approximate=True)
    m = _dot(m, vw2_ref[...]) + vb2_ref[...]
    x = x + m                                                  # residual
    vis = _ln(x, vlnfg_ref[...], vlnfb_ref[...])               # [NP, H]

    # ============ Q-Former cross-attention + language projection ============
    qtok = qtok_ref[...]                                       # [NQ, H]
    qproj = _dot(qtok, qwq_ref[...]) + qbq_ref[...]
    kv = _dot(vis, qwkv_ref[...]) + qbkv_ref[...]              # fused K/V [NP, 2H]
    attn = _mha(qproj, kv[:, :HIDDEN], kv[:, HIDDEN:], qwo_ref[...]) + qbo_ref[...]
    qh = qtok + attn                                           # residual
    hm = _ln(qh, qlng_ref[...], qlnb_ref[...])
    m = _dot(hm, qw1_ref[...]) + qb1_ref[...]
    m = jax.nn.gelu(m, approximate=True)
    m = _dot(m, qw2_ref[...]) + qb2_ref[...]
    qh = qh + m                                                # residual
    lang = _dot(qh, lpw_ref[...]) + lpb_ref[...]               # [NQ, H]

    # ===== encoder states: [lang queries ; text embeddings] (in-kernel) =====
    ids = ids_ref[0]                                           # [TEXT_LEN, 1] int32
    iota_tv = jax.lax.broadcasted_iota(jnp.int32, (TEXT_LEN, VOCAB), 1)
    text_onehot = (iota_tv == ids).astype(jnp.float32)
    text_emb = _dot(text_onehot, temb_ref[...])                # [TEXT_LEN, H]
    enc = jnp.concatenate([lang, text_emb], axis=0)            # [ENC_LEN, H]

    # ============ greedy decode (cross-attn K/V computed once) ============
    dkv = _dot(enc, dwkv_ref[...]) + dbkv_ref[...]             # [ENC_LEN, 2H]
    dk = dkv[:, :HIDDEN]
    dv = dkv[:, HIDDEN:]

    iota_v = jax.lax.broadcasted_iota(jnp.int32, (1, VOCAB), 1)
    step_iota = jax.lax.broadcasted_iota(jnp.int32, (1, MAX_NEW_TOKENS), 1)
    onehot = (iota_v == 0).astype(jnp.float32)                 # BOS token id = 0
    result = jnp.zeros((1, MAX_NEW_TOKENS), jnp.int32)

    for step in range(MAX_NEW_TOKENS):
        hdec = _dot(onehot, temb_ref[...])                     # embedding lookup [1, H]
        q = _dot(hdec, dwq_ref[...]) + dbq_ref[...]
        attn = _mha(q, dk, dv, dwo_ref[...]) + dbo_ref[...]
        hdec = _ln(hdec + attn, dlng_ref[...], dlnb_ref[...])  # residual + LN
        logits = _dot(hdec, tembT_ref[...])                    # tied LM head [1, VOCAB]
        mx = jnp.max(logits, axis=-1, keepdims=True)
        tok = jnp.min(jnp.where(logits == mx, iota_v, VOCAB),
                      axis=-1, keepdims=True)                  # [1, 1] int32 argmax
        onehot = (iota_v == tok).astype(jnp.float32)
        result = jnp.where(step_iota == step, tok, result)     # register accumulate

    out_ref[0] = result                                        # single dense store


# ------------------------------ wrapper / specs ------------------------------
def _w_spec(arr):
    """Batch-invariant operand: full-array block, constant index map (fetched once)."""
    nd = arr.ndim
    return pl.BlockSpec(arr.shape, lambda b, nd=nd: (0,) * nd)


def flan_super_xl_vqa_forward(image, text_ids, weights):
    """Mini BLIP-2 forward: vision encoder -> Q-Former -> LM greedy generate.

    One fused pallas_call, grid over the batch (parallel -> both v7x cores busy).
    """
    Bn, Cn, Hn, Wn = image.shape
    P = PATCH
    nh, nw = Hn // P, Wn // P

    # glue: unfold image into patches (layout only, no compute)
    patches = image.reshape(Bn, Cn, nh, P, nw, P).transpose(0, 2, 4, 1, 3, 5)
    patches = patches.reshape(Bn, NP, PATCH_DIM)
    ids3 = text_ids.reshape(Bn, TEXT_LEN, 1).astype(jnp.int32)

    in_arrays = (patches, ids3) + tuple(weights)
    in_specs = [
        pl.BlockSpec((1, NP, PATCH_DIM), lambda b: (b, 0, 0)),
        pl.BlockSpec((1, TEXT_LEN, 1), lambda b: (b, 0, 0)),
    ] + [_w_spec(a) for a in weights]

    out = pl.pallas_call(
        _fused_vqa_kernel,
        out_shape=jax.ShapeDtypeStruct((Bn, 1, MAX_NEW_TOKENS), jnp.int32),
        grid=(Bn,),
        in_specs=in_specs,
        out_specs=pl.BlockSpec((1, 1, MAX_NEW_TOKENS), lambda b: (b, 0, 0)),
        compiler_params=pltpu.CompilerParams(dimension_semantics=("parallel",)),
    )(*in_arrays)
    return out.reshape(Bn, MAX_NEW_TOKENS)


# ------------------------- one-time parameter prep -------------------------
def prepare_params(p):
    """Hoisted out of the traced forward: fuse QKV/KV weights, transpose the
    tied LM head, cast matmul weights to bf16, keep biases/LN params in f32."""
    wm = lambda a: a.astype(CDT)                                # MXU weight
    row = lambda a: a.reshape(1, -1).astype(jnp.float32)        # bias / LN row

    va, qa, da = p['vit_attn'], p['qf_cross'], p['dec_cross']
    vit_wqkv = wm(jnp.concatenate([va['wq'], va['wk'], va['wv']], axis=1))
    vit_bqkv = row(jnp.concatenate([va['bq'], va['bk'], va['bv']], axis=0))
    qf_wkv = wm(jnp.concatenate([qa['wk'], qa['wv']], axis=1))
    qf_bkv = row(jnp.concatenate([qa['bk'], qa['bv']], axis=0))
    dec_wkv = wm(jnp.concatenate([da['wk'], da['wv']], axis=1))
    dec_bkv = row(jnp.concatenate([da['bk'], da['bv']], axis=0))

    return (
        # vision
        wm(p['patch_w']), row(p['patch_b']),
        p['pos_emb'].reshape(NP, HIDDEN).astype(jnp.float32),
        row(p['vit_ln1_g']), row(p['vit_ln1_b']),
        vit_wqkv, vit_bqkv, wm(va['wo']), row(va['bo']),
        row(p['vit_ln2_g']), row(p['vit_ln2_b']),
        wm(p['vit_mlp']['w1']), row(p['vit_mlp']['b1']),
        wm(p['vit_mlp']['w2']), row(p['vit_mlp']['b2']),
        row(p['vit_lnf_g']), row(p['vit_lnf_b']),
        # q-former
        p['query_tokens'].reshape(NUM_QUERY, HIDDEN).astype(jnp.float32),
        wm(qa['wq']), row(qa['bq']), qf_wkv, qf_bkv, wm(qa['wo']), row(qa['bo']),
        row(p['qf_ln_g']), row(p['qf_ln_b']),
        wm(p['qf_mlp']['w1']), row(p['qf_mlp']['b1']),
        wm(p['qf_mlp']['w2']), row(p['qf_mlp']['b2']),
        wm(p['lang_proj_w']), row(p['lang_proj_b']),
        # decoder (tied embedding + transposed LM head hoisted here)
        wm(p['tok_emb']), wm(p['tok_emb'].T),
        wm(da['wq']), row(da['bq']), dec_wkv, dec_bkv, wm(da['wo']), row(da['bo']),
        row(p['dec_ln_g']), row(p['dec_ln_b']),
    )


# ------------------------------ parameter init ------------------------------
def init_params(key):
    keys = iter(jax.random.split(key, 80))
    nk = lambda: next(keys)
    dense = lambda shape: 0.02 * jax.random.normal(nk(), shape, dtype=jnp.float32)
    zeros = lambda n: jnp.zeros((n,), jnp.float32)
    ones = lambda n: jnp.ones((n,), jnp.float32)

    def attn_p():
        return dict(wq=dense((HIDDEN, HIDDEN)), bq=zeros(HIDDEN),
                    wk=dense((HIDDEN, HIDDEN)), bk=zeros(HIDDEN),
                    wv=dense((HIDDEN, HIDDEN)), bv=zeros(HIDDEN),
                    wo=dense((HIDDEN, HIDDEN)), bo=zeros(HIDDEN))

    def mlp_p():
        return dict(w1=dense((HIDDEN, MLP)), b1=zeros(MLP),
                    w2=dense((MLP, HIDDEN)), b2=zeros(HIDDEN))

    return dict(
        patch_w=dense((PATCH_DIM, HIDDEN)), patch_b=zeros(HIDDEN),
        pos_emb=dense((1, NP, HIDDEN)),
        vit_ln1_g=ones(HIDDEN), vit_ln1_b=zeros(HIDDEN),
        vit_attn=attn_p(),
        vit_ln2_g=ones(HIDDEN), vit_ln2_b=zeros(HIDDEN),
        vit_mlp=mlp_p(),
        vit_lnf_g=ones(HIDDEN), vit_lnf_b=zeros(HIDDEN),
        query_tokens=dense((1, NUM_QUERY, HIDDEN)),
        qf_cross=attn_p(),
        qf_ln_g=ones(HIDDEN), qf_ln_b=zeros(HIDDEN),
        qf_mlp=mlp_p(),
        lang_proj_w=dense((HIDDEN, HIDDEN)), lang_proj_b=zeros(HIDDEN),
        tok_emb=dense((VOCAB, HIDDEN)),
        dec_cross=attn_p(),
        dec_ln_g=ones(HIDDEN), dec_ln_b=zeros(HIDDEN),
    )


# ----------------------------------- main -----------------------------------
if __name__ == "__main__":
    root = jax.random.PRNGKey(0)
    k_img, k_txt, k_par = jax.random.split(root, 3)

    image = jax.random.normal(k_img, (B, C, H, W), dtype=jnp.float32)   # NCHW
    text_ids = jax.random.randint(k_txt, (B, TEXT_LEN), 0, VOCAB, dtype=jnp.int32)
    params = init_params(k_par)
    weights = prepare_params(params)          # weight fusion done ONCE, outside jit

    fwd = jax.jit(flan_super_xl_vqa_forward)
    generated = fwd(image, text_ids, weights)
    jax.block_until_ready(generated)
    assert generated.shape == (B, MAX_NEW_TOKENS)
    assert generated.dtype == jnp.int32
    print("KERNEL_OK")
</pallas_src>

<mosaic_0001>
module attributes {stable_mosaic.version = 11 : i64} {
  func.func @_fused_vqa_kernel(%arg0: i32, %arg1: memref<1x4x256xf32, #tpu.memory_space<vmem>>, %arg2: memref<1x6x1xi32, #tpu.memory_space<vmem>>, %arg3: memref<256x32xbf16, #tpu.memory_space<vmem>>, %arg4: memref<1x32xf32, #tpu.memory_space<vmem>>, %arg5: memref<4x32xf32, #tpu.memory_space<vmem>>, %arg6: memref<1x32xf32, #tpu.memory_space<vmem>>, %arg7: memref<1x32xf32, #tpu.memory_space<vmem>>, %arg8: memref<32x96xbf16, #tpu.memory_space<vmem>>, %arg9: memref<1x96xf32, #tpu.memory_space<vmem>>, %arg10: memref<32x32xbf16, #tpu.memory_space<vmem>>, %arg11: memref<1x32xf32, #tpu.memory_space<vmem>>, %arg12: memref<1x32xf32, #tpu.memory_space<vmem>>, %arg13: memref<1x32xf32, #tpu.memory_space<vmem>>, %arg14: memref<32x64xbf16, #tpu.memory_space<vmem>>, %arg15: memref<1x64xf32, #tpu.memory_space<vmem>>, %arg16: memref<64x32xbf16, #tpu.memory_space<vmem>>, %arg17: memref<1x32xf32, #tpu.memory_space<vmem>>, %arg18: memref<1x32xf32, #tpu.memory_space<vmem>>, %arg19: memref<1x32xf32, #tpu.memory_space<vmem>>, %arg20: memref<8x32xf32, #tpu.memory_space<vmem>>, %arg21: memref<32x32xbf16, #tpu.memory_space<vmem>>, %arg22: memref<1x32xf32, #tpu.memory_space<vmem>>, %arg23: memref<32x64xbf16, #tpu.memory_space<vmem>>, %arg24: memref<1x64xf32, #tpu.memory_space<vmem>>, %arg25: memref<32x32xbf16, #tpu.memory_space<vmem>>, %arg26: memref<1x32xf32, #tpu.memory_space<vmem>>, %arg27: memref<1x32xf32, #tpu.memory_space<vmem>>, %arg28: memref<1x32xf32, #tpu.memory_space<vmem>>, %arg29: memref<32x64xbf16, #tpu.memory_space<vmem>>, %arg30: memref<1x64xf32, #tpu.memory_space<vmem>>, %arg31: memref<64x32xbf16, #tpu.memory_space<vmem>>, %arg32: memref<1x32xf32, #tpu.memory_space<vmem>>, %arg33: memref<32x32xbf16, #tpu.memory_space<vmem>>, %arg34: memref<1x32xf32, #tpu.memory_space<vmem>>, %arg35: memref<64x32xbf16, #tpu.memory_space<vmem>>, %arg36: memref<32x64xbf16, #tpu.memory_space<vmem>>, %arg37: memref<32x32xbf16, #tpu.memory_space<vmem>>, %arg38: memref<1x32xf32, #tpu.memory_space<vmem>>, %arg39: memref<32x64xbf16, #tpu.memory_space<vmem>>, %arg40: memref<1x64xf32, #tpu.memory_space<vmem>>, %arg41: memref<32x32xbf16, #tpu.memory_space<vmem>>, %arg42: memref<1x32xf32, #tpu.memory_space<vmem>>, %arg43: memref<1x32xf32, #tpu.memory_space<vmem>>, %arg44: memref<1x32xf32, #tpu.memory_space<vmem>>, %arg45: memref<1x1x3xi32, #tpu.memory_space<vmem>>) attributes {dimension_semantics = [#tpu.dimension_semantics<parallel>], iteration_bounds = array<i64: 2>, scalar_prefetch = 0 : i64, scratch_operands = 0 : i64, tpu.core_type = #tpu.core_type<tc>, window_params = [{transform_indices = @transform_0, window_bounds = array<i64: 1, 4, 256>}, {transform_indices = @transform_1, window_bounds = array<i64: 1, 6, 1>}, {pipeline_mode = #tpu.pipeline_mode<synchronous>, transform_indices = @transform_2, window_bounds = array<i64: 256, 32>}, {pipeline_mode = #tpu.pipeline_mode<synchronous>, transform_indices = @transform_3, window_bounds = array<i64: 1, 32>}, {pipeline_mode = #tpu.pipeline_mode<synchronous>, transform_indices = @transform_4, window_bounds = array<i64: 4, 32>}, {pipeline_mode = #tpu.pipeline_mode<synchronous>, transform_indices = @transform_5, window_bounds = array<i64: 1, 32>}, {pipeline_mode = #tpu.pipeline_mode<synchronous>, transform_indices = @transform_6, window_bounds = array<i64: 1, 32>}, {pipeline_mode = #tpu.pipeline_mode<synchronous>, transform_indices = @transform_7, window_bounds = array<i64: 32, 96>}, {pipeline_mode = #tpu.pipeline_mode<synchronous>, transform_indices = @transform_8, window_bounds = array<i64: 1, 96>}, {pipeline_mode = #tpu.pipeline_mode<synchronous>, transform_indices = @transform_9, window_bounds = array<i64: 32, 32>}, {pipeline_mode = #tpu.pipeline_mode<synchronous>, transform_indices = @transform_10, window_bounds = array<i64: 1, 32>}, {pipeline_mode = #tpu.pipeline_mode<synchronous>, transform_indices = @transform_11, window_bounds = array<i64: 1, 32>}, {pipeline_mode = #tpu.pipeline_mode<synchronous>, transform_indices = @transform_12, window_bounds = array<i64: 1, 32>}, {pipeline_mode = #tpu.pipeline_mode<synchronous>, transform_indices = @transform_13, window_bounds = array<i64: 32, 64>}, {pipeline_mode = #tpu.pipeline_mode<synchronous>, transform_indices = @transform_14, window_bounds = array<i64: 1, 64>}, {pipeline_mode = #tpu.pipeline_mode<synchronous>, transform_indices = @transform_15, window_bounds = array<i64: 64, 32>}, {pipeline_mode = #tpu.pipeline_mode<synchronous>, transform_indices = @transform_16, window_bounds = array<i64: 1, 32>}, {pipeline_mode = #tpu.pipeline_mode<synchronous>, transform_indices = @transform_17, window_bounds = array<i64: 1, 32>}, {pipeline_mode = #tpu.pipeline_mode<synchronous>, transform_indices = @transform_18, window_bounds = array<i64: 1, 32>}, {pipeline_mode = #tpu.pipeline_mode<synchronous>, transform_indices = @transform_19, window_bounds = array<i64: 8, 32>}, {pipeline_mode = #tpu.pipeline_mode<synchronous>, transform_indices = @transform_20, window_bounds = array<i64: 32, 32>}, {pipeline_mode = #tpu.pipeline_mode<synchronous>, transform_indices = @transform_21, window_bounds = array<i64: 1, 32>}, {pipeline_mode = #tpu.pipeline_mode<synchronous>, transform_indices = @transform_22, window_bounds = array<i64: 32, 64>}, {pipeline_mode = #tpu.pipeline_mode<synchronous>, transform_indices = @transform_23, window_bounds = array<i64: 1, 64>}, {pipeline_mode = #tpu.pipeline_mode<synchronous>, transform_indices = @transform_24, window_bounds = array<i64: 32, 32>}, {pipeline_mode = #tpu.pipeline_mode<synchronous>, transform_indices = @transform_25, window_bounds = array<i64: 1, 32>}, {pipeline_mode = #tpu.pipeline_mode<synchronous>, transform_indices = @transform_26, window_bounds = array<i64: 1, 32>}, {pipeline_mode = #tpu.pipeline_mode<synchronous>, transform_indices = @transform_27, window_bounds = array<i64: 1, 32>}, {pipeline_mode = #tpu.pipeline_mode<synchronous>, transform_indices = @transform_28, window_bounds = array<i64: 32, 64>}, {pipeline_mode = #tpu.pipeline_mode<synchronous>, transform_indices = @transform_29, window_bounds = array<i64: 1, 64>}, {pipeline_mode = #tpu.pipeline_mode<synchronous>, transform_indices = @transform_30, window_bounds = array<i64: 64, 32>}, {pipeline_mode = #tpu.pipeline_mode<synchronous>, transform_indices = @transform_31, window_bounds = array<i64: 1, 32>}, {pipeline_mode = #tpu.pipeline_mode<synchronous>, transform_indices = @transform_32, window_bounds = array<i64: 32, 32>}, {pipeline_mode = #tpu.pipeline_mode<synchronous>, transform_indices = @transform_33, window_bounds = array<i64: 1, 32>}, {pipeline_mode = #tpu.pipeline_mode<synchronous>, transform_indices = @transform_34, window_bounds = array<i64: 64, 32>}, {pipeline_mode = #tpu.pipeline_mode<synchronous>, transform_indices = @transform_35, window_bounds = array<i64: 32, 64>}, {pipeline_mode = #tpu.pipeline_mode<synchronous>, transform_indices = @transform_36, window_bounds = array<i64: 32, 32>}, {pipeline_mode = #tpu.pipeline_mode<synchronous>, transform_indices = @transform_37, window_bounds = array<i64: 1, 32>}, {pipeline_mode = #tpu.pipeline_mode<synchronous>, transform_indices = @transform_38, window_bounds = array<i64: 32, 64>}, {pipeline_mode = #tpu.pipeline_mode<synchronous>, transform_indices = @transform_39, window_bounds = array<i64: 1, 64>}, {pipeline_mode = #tpu.pipeline_mode<synchronous>, transform_indices = @transform_40, window_bounds = array<i64: 32, 32>}, {pipeline_mode = #tpu.pipeline_mode<synchronous>, transform_indices = @transform_41, window_bounds = array<i64: 1, 32>}, {pipeline_mode = #tpu.pipeline_mode<synchronous>, transform_indices = @transform_42, window_bounds = array<i64: 1, 32>}, {pipeline_mode = #tpu.pipeline_mode<synchronous>, transform_indices = @transform_43, window_bounds = array<i64: 1, 32>}, {transform_indices = @transform_44, window_bounds = array<i64: 1, 1, 3>}]} {
    %c0 = arith.constant 0 : index
    %c0_0 = arith.constant 0 : index
    %c0_1 = arith.constant 0 : index
    %0 = vector.load %arg1[%c0, %c0_0, %c0_1] : memref<1x4x256xf32, #tpu.memory_space<vmem>>, vector<1x4x256xf32>
    %1 = vector.shape_cast %0 : vector<1x4x256xf32> to vector<4x256xf32>
    %c0_2 = arith.constant 0 : index
    %c0_3 = arith.constant 0 : index
    %2 = vector.load %arg3[%c0_2, %c0_3] : memref<256x32xbf16, #tpu.memory_space<vmem>>, vector<256x32xbf16>
    %3 = arith.truncf %1 : vector<4x256xf32> to vector<4x256xbf16>
    %cst = arith.constant dense<0.000000e+00> : vector<4x32xf32>
    %4 = tpu.matmul %3, %2, %cst {dimension_numbers = #tpu.dot_dimension_numbers<[1], [0], [0], [1], [0, 0, 1, 1], [], []>} : vector<4x256xbf16>, vector<256x32xbf16>, vector<4x32xf32> -> vector<4x32xf32>
    %c0_4 = arith.constant 0 : index
    %c0_5 = arith.constant 0 : index
    %5 = vector.load %arg4[%c0_4, %c0_5] : memref<1x32xf32, #tpu.memory_space<vmem>>, vector<1x32xf32>
    %6 = vector.broadcast %5 : vector<1x32xf32> to vector<4x32xf32>
    %7 = arith.addf %4, %6 : vector<4x32xf32>
    %c0_6 = arith.constant 0 : index
    %c0_7 = arith.constant 0 : index
    %8 = vector.load %arg5[%c0_6, %c0_7] : memref<4x32xf32, #tpu.memory_space<vmem>>, vector<4x32xf32>
    %9 = arith.addf %7, %8 : vector<4x32xf32>
    %c0_8 = arith.constant 0 : index
    %c0_9 = arith.constant 0 : index
    %10 = vector.load %arg6[%c0_8, %c0_9] : memref<1x32xf32, #tpu.memory_space<vmem>>, vector<1x32xf32>
    %c0_10 = arith.constant 0 : index
    %c0_11 = arith.constant 0 : index
    %11 = vector.load %arg7[%c0_10, %c0_11] : memref<1x32xf32, #tpu.memory_space<vmem>>, vector<1x32xf32>
    %cst_12 = arith.constant dense<0.000000e+00> : vector<4xf32>
    %12 = vector.multi_reduction <add>, %9, %cst_12 [1] : vector<4x32xf32> to vector<4xf32>
    %13 = vector.shape_cast %12 : vector<4xf32> to vector<4x1xf32>
    %cst_13 = arith.constant 3.200000e+01 : f32
    %14 = vector.broadcast %cst_13 : f32 to vector<4x1xf32>
    %15 = arith.divf %13, %14 : vector<4x1xf32>
    %16 = vector.broadcast %15 : vector<4x1xf32> to vector<4x32xf32>
    %17 = arith.subf %9, %16 : vector<4x32xf32>
    %18 = arith.mulf %17, %17 : vector<4x32xf32>
    %cst_14 = arith.constant dense<0.000000e+00> : vector<4xf32>
    %19 = vector.multi_reduction <add>, %18, %cst_14 [1] : vector<4x32xf32> to vector<4xf32>
    %20 = vector.shape_cast %19 : vector<4xf32> to vector<4x1xf32>
    %cst_15 = arith.constant 3.200000e+01 : f32
    %21 = vector.broadcast %cst_15 : f32 to vector<4x1xf32>
    %22 = arith.divf %20, %21 : vector<4x1xf32>
    %23 = vector.broadcast %15 : vector<4x1xf32> to vector<4x32xf32>
    %24 = arith.subf %9, %23 : vector<4x32xf32>
    %cst_16 = arith.constant 9.99999997E-7 : f32
    %25 = vector.broadcast %cst_16 : f32 to vector<4x1xf32>
    %26 = arith.addf %22, %25 : vector<4x1xf32>
    %27 = math.rsqrt %26 : vector<4x1xf32>
    %28 = vector.broadcast %27 : vector<4x1xf32> to vector<4x32xf32>
    %29 = arith.mulf %24, %28 : vector<4x32xf32>
    %30 = vector.broadcast %10 : vector<1x32xf32> to vector<4x32xf32>
    %31 = arith.mulf %29, %30 : vector<4x32xf32>
    %32 = vector.broadcast %11 : vector<1x32xf32> to vector<4x32xf32>
    %33 = arith.addf %31, %32 : vector<4x32xf32>
    %c0_17 = arith.constant 0 : index
    %c0_18 = arith.constant 0 : index
    %34 = vector.load %arg8[%c0_17, %c0_18] : memref<32x96xbf16, #tpu.memory_space<vmem>>, vector<32x96xbf16>
    %35 = arith.truncf %33 : vector<4x32xf32> to vector<4x32xbf16>
    %cst_19 = arith.constant dense<0.000000e+00> : vector<4x96xf32>
    %36 = tpu.matmul %35, %34, %cst_19 {dimension_numbers = #tpu.dot_dimension_numbers<[1], [0], [0], [1], [0, 0, 1, 1], [], []>} : vector<4x32xbf16>, vector<32x96xbf16>, vector<4x96xf32> -> vector<4x96xf32>
    %c0_20 = arith.constant 0 : index
    %c0_21 = arith.constant 0 : index
    %37 = vector.load %arg9[%c0_20, %c0_21] : memref<1x96xf32, #tpu.memory_space<vmem>>, vector<1x96xf32>
    %38 = vector.broadcast %37 : vector<1x96xf32> to vector<4x96xf32>
    %39 = arith.addf %36, %38 : vector<4x96xf32>
    %40 = vector.extract_strided_slice %39 {offsets = [0, 0], sizes = [4, 32], strides = [1, 1]} : vector<4x96xf32> to vector<4x32xf32>
    %41 = vector.extract_strided_slice %39 {offsets = [0, 32], sizes = [4, 32], strides = [1, 1]} : vector<4x96xf32> to vector<4x32xf32>
    %42 = vector.extract_strided_slice %39 {offsets = [0, 64], sizes = [4, 32], strides = [1, 1]} : vector<4x96xf32> to vector<4x32xf32>
    %c0_22 = arith.constant 0 : index
    %c0_23 = arith.constant 0 : index
    %43 = vector.load %arg10[%c0_22, %c0_23] : memref<32x32xbf16, #tpu.memory_space<vmem>>, vector<32x32xbf16>
    %44 = arith.truncf %40 : vector<4x32xf32> to vector<4x32xbf16>
    %45 = arith.truncf %41 : vector<4x32xf32> to vector<4x32xbf16>
    %46 = arith.truncf %42 : vector<4x32xf32> to vector<4x32xbf16>
    %47 = vector.extract_strided_slice %44 {offsets = [0, 0], sizes = [4, 16], strides = [1, 1]} : vector<4x32xbf16> to vector<4x16xbf16>
    %48 = vector.extract_strided_slice %45 {offsets = [0, 0], sizes = [4, 16], strides = [1, 1]} : vector<4x32xbf16> to vector<4x16xbf16>
    "tpu.trace_start"() <{level = 10 : i32, message = "qd,kd->qk"}> : () -> ()
    %cst_24 = arith.constant dense<0.000000e+00> : vector<4x4xf32>
    %49 = tpu.matmul %47, %48, %cst_24 {dimension_numbers = #tpu.dot_dimension_numbers<[1], [1], [0], [0], [0, 0, 1, 0], [], []>} : vector<4x16xbf16>, vector<4x16xbf16>, vector<4x4xf32> -> vector<4x4xf32>
    "tpu.trace_stop"() : () -> ()
    %cst_25 = arith.constant 2.500000e-01 : f32
    %50 = vector.broadcast %cst_25 : f32 to vector<4x4xf32>
    %51 = arith.mulf %49, %50 : vector<4x4xf32>
    %cst_26 = arith.constant dense<0xFF800000> : vector<4xf32>
    %52 = vector.multi_reduction <maximumf>, %51, %cst_26 [1] : vector<4x4xf32> to vector<4xf32>
    %53 = vector.shape_cast %52 : vector<4xf32> to vector<4x1xf32>
    %54 = vector.broadcast %53 : vector<4x1xf32> to vector<4x4xf32>
    %55 = arith.subf %51, %54 : vector<4x4xf32>
    %56 = math.exp %55 : vector<4x4xf32>
    %cst_27 = arith.constant dense<0.000000e+00> : vector<4xf32>
    %57 = vector.multi_reduction <add>, %56, %cst_27 [1] : vector<4x4xf32> to vector<4xf32>
    %58 = vector.shape_cast %57 : vector<4xf32> to vector<4x1xf32>
    %59 = tpu.reciprocal %58 {approx = true} : vector<4x1xf32> -> vector<4x1xf32>
    %60 = vector.broadcast %59 : vector<4x1xf32> to vector<4x4xf32>
    %61 = arith.mulf %56, %60 : vector<4x4xf32>
    %62 = arith.truncf %61 : vector<4x4xf32> to vector<4x4xbf16>
    %63 = vector.extract_strided_slice %46 {offsets = [0, 0], sizes = [4, 16], strides = [1, 1]} : vector<4x32xbf16> to vector<4x16xbf16>
    %cst_28 = arith.constant dense<0.000000e+00> : vector<4x16xf32>
    %64 = tpu.matmul %62, %63, %cst_28 {dimension_numbers = #tpu.dot_dimension_numbers<[1], [0], [0], [1], [0, 0, 1, 1], [], []>} : vector<4x4xbf16>, vector<4x16xbf16>, vector<4x16xf32> -> vector<4x16xf32>
    %65 = arith.truncf %64 : vector<4x16xf32> to vector<4x16xbf16>
    %66 = vector.extract_strided_slice %43 {offsets = [0, 0], sizes = [16, 32], strides = [1, 1]} : vector<32x32xbf16> to vector<16x32xbf16>
    %cst_29 = arith.constant dense<0.000000e+00> : vector<4x32xf32>
    %67 = tpu.matmul %65, %66, %cst_29 {dimension_numbers = #tpu.dot_dimension_numbers<[1], [0], [0], [1], [0, 0, 1, 1], [], []>} : vector<4x16xbf16>, vector<16x32xbf16>, vector<4x32xf32> -> vector<4x32xf32>
    %68 = vector.extract_strided_slice %44 {offsets = [0, 16], sizes = [4, 16], strides = [1, 1]} : vector<4x32xbf16> to vector<4x16xbf16>
    %69 = vector.extract_strided_slice %45 {offsets = [0, 16], sizes = [4, 16], strides = [1, 1]} : vector<4x32xbf16> to vector<4x16xbf16>
    "tpu.trace_start"() <{level = 10 : i32, message = "qd,kd->qk"}> : () -> ()
    %cst_30 = arith.constant dense<0.000000e+00> : vector<4x4xf32>
    %70 = tpu.matmul %68, %69, %cst_30 {dimension_numbers = #tpu.dot_dimension_numbers<[1], [1], [0], [0], [0, 0, 1, 0], [], []>} : vector<4x16xbf16>, vector<4x16xbf16>, vector<4x4xf32> -> vector<4x4xf32>
    "tpu.trace_stop"() : () -> ()
    %cst_31 = arith.constant 2.500000e-01 : f32
    %71 = vector.broadcast %cst_31 : f32 to vector<4x4xf32>
    %72 = arith.mulf %70, %71 : vector<4x4xf32>
    %cst_32 = arith.constant dense<0xFF800000> : vector<4xf32>
    %73 = vector.multi_reduction <maximumf>, %72, %cst_32 [1] : vector<4x4xf32> to vector<4xf32>
    %74 = vector.shape_cast %73 : vector<4xf32> to vector<4x1xf32>
    %75 = vector.broadcast %74 : vector<4x1xf32> to vector<4x4xf32>
    %76 = arith.subf %72, %75 : vector<4x4xf32>
    %77 = math.exp %76 : vector<4x4xf32>
    %cst_33 = arith.constant dense<0.000000e+00> : vector<4xf32>
    %78 = vector.multi_reduction <add>, %77, %cst_33 [1] : vector<4x4xf32> to vector<4xf32>
    %79 = vector.shape_cast %78 : vector<4xf32> to vector<4x1xf32>
    %80 = tpu.reciprocal %79 {approx = true} : vector<4x1xf32> -> vector<4x1xf32>
    %81 = vector.broadcast %80 : vector<4x1xf32> to vector<4x4xf32>
    %82 = arith.mulf %77, %81 : vector<4x4xf32>
    %83 = arith.truncf %82 : vector<4x4xf32> to vector<4x4xbf16>
    %84 = vector.extract_strided_slice %46 {offsets = [0, 16], sizes = [4, 16], strides = [1, 1]} : vector<4x32xbf16> to vector<4x16xbf16>
    %cst_34 = arith.constant dense<0.000000e+00> : vector<4x16xf32>
    %85 = tpu.matmul %83, %84, %cst_34 {dimension_numbers = #tpu.dot_dimension_numbers<[1], [0], [0], [1], [0, 0, 1, 1], [], []>} : vector<4x4xbf16>, vector<4x16xbf16>, vector<4x16xf32> -> vector<4x16xf32>
    %86 = arith.truncf %85 : vector<4x16xf32> to vector<4x16xbf16>
    %87 = vector.extract_strided_slice %43 {offsets = [16, 0], sizes = [16, 32], strides = [1, 1]} : vector<32x32xbf16> to vector<16x32xbf16>
    %cst_35 = arith.constant dense<0.000000e+00> : vector<4x32xf32>
    %88 = tpu.matmul %86, %87, %cst_35 {dimension_numbers = #tpu.dot_dimension_numbers<[1], [0], [0], [1], [0, 0, 1, 1], [], []>} : vector<4x16xbf16>, vector<16x32xbf16>, vector<4x32xf32> -> vector<4x32xf32>
    %89 = arith.addf %67, %88 : vector<4x32xf32>
    %c0_36 = arith.constant 0 : index
    %c0_37 = arith.constant 0 : index
    %90 = vector.load %arg11[%c0_36, %c0_37] : memref<1x32xf32, #tpu.memory_space<vmem>>, vector<1x32xf32>
    %91 = vector.broadcast %90 : vector<1x32xf32> to vector<4x32xf32>
    %92 = arith.addf %89, %91 : vector<4x32xf32>
    %93 = arith.addf %9, %92 : vector<4x32xf32>
    %c0_38 = arith.constant 0 : index
    %c0_39 = arith.constant 0 : index
    %94 = vector.load %arg12[%c0_38, %c0_39] : memref<1x32xf32, #tpu.memory_space<vmem>>, vector<1x32xf32>
    %c0_40 = arith.constant 0 : index
    %c0_41 = arith.constant 0 : index
    %95 = vector.load %arg13[%c0_40, %c0_41] : memref<1x32xf32, #tpu.memory_space<vmem>>, vector<1x32xf32>
    %cst_42 = arith.constant dense<0.000000e+00> : vector<4xf32>
    %96 = vector.multi_reduction <add>, %93, %cst_42 [1] : vector<4x32xf32> to vector<4xf32>
    %97 = vector.shape_cast %96 : vector<4xf32> to vector<4x1xf32>
    %cst_43 = arith.constant 3.200000e+01 : f32
    %98 = vector.broadcast %cst_43 : f32 to vector<4x1xf32>
    %99 = arith.divf %97, %98 : vector<4x1xf32>
    %100 = vector.broadcast %99 : vector<4x1xf32> to vector<4x32xf32>
    %101 = arith.subf %93, %100 : vector<4x32xf32>
    %102 = arith.mulf %101, %101 : vector<4x32xf32>
    %cst_44 = arith.constant dense<0.000000e+00> : vector<4xf32>
    %103 = vector.multi_reduction <add>, %102, %cst_44 [1] : vector<4x32xf32> to vector<4xf32>
    %104 = vector.shape_cast %103 : vector<4xf32> to vector<4x1xf32>
    %cst_45 = arith.constant 3.200000e+01 : f32
    %105 = vector.broadcast %cst_45 : f32 to vector<4x1xf32>
    %106 = arith.divf %104, %105 : vector<4x1xf32>
    %107 = vector.broadcast %99 : vector<4x1xf32> to vector<4x32xf32>
    %108 = arith.subf %93, %107 : vector<4x32xf32>
    %cst_46 = arith.constant 9.99999997E-7 : f32
    %109 = vector.broadcast %cst_46 : f32 to vector<4x1xf32>
    %110 = arith.addf %106, %109 : vector<4x1xf32>
    %111 = math.rsqrt %110 : vector<4x1xf32>
    %112 = vector.broadcast %111 : vector<4x1xf32> to vector<4x32xf32>
    %113 = arith.mulf %108, %112 : vector<4x32xf32>
    %114 = vector.broadcast %94 : vector<1x32xf32> to vector<4x32xf32>
    %115 = arith.mulf %113, %114 : vector<4x32xf32>
    %116 = vector.broadcast %95 : vector<1x32xf32> to vector<4x32xf32>
    %117 = arith.addf %115, %116 : vector<4x32xf32>
    %c0_47 = arith.constant 0 : index
    %c0_48 = arith.constant 0 : index
    %118 = vector.load %arg14[%c0_47, %c0_48] : memref<32x64xbf16, #tpu.memory_space<vmem>>, vector<32x64xbf16>
    %119 = arith.truncf %117 : vector<4x32xf32> to vector<4x32xbf16>
    %cst_49 = arith.constant dense<0.000000e+00> : vector<4x64xf32>
    %120 = tpu.matmul %119, %118, %cst_49 {dimension_numbers = #tpu.dot_dimension_numbers<[1], [0], [0], [1], [0, 0, 1, 1], [], []>} : vector<4x32xbf16>, vector<32x64xbf16>, vector<4x64xf32> -> vector<4x64xf32>
    %c0_50 = arith.constant 0 : index
    %c0_51 = arith.constant 0 : index
    %121 = vector.load %arg15[%c0_50, %c0_51] : memref<1x64xf32, #tpu.memory_space<vmem>>, vector<1x64xf32>
    %122 = vector.broadcast %121 : vector<1x64xf32> to vector<4x64xf32>
    %123 = arith.addf %120, %122 : vector<4x64xf32>
    %124 = arith.mulf %123, %123 : vector<4x64xf32>
    %125 = arith.mulf %123, %124 : vector<4x64xf32>
    %cst_52 = arith.constant 4.471500e-02 : f32
    %126 = vector.broadcast %cst_52 : f32 to vector<4x64xf32>
    %127 = arith.mulf %126, %125 : vector<4x64xf32>
    %128 = arith.addf %123, %127 : vector<4x64xf32>
    %cst_53 = arith.constant 0.797884583 : f32
    %129 = vector.broadcast %cst_53 : f32 to vector<4x64xf32>
    %130 = arith.mulf %129, %128 : vector<4x64xf32>
    %131 = math.tanh %130 : vector<4x64xf32>
    %cst_54 = arith.constant 1.000000e+00 : f32
    %132 = vector.broadcast %cst_54 : f32 to vector<4x64xf32>
    %133 = arith.addf %132, %131 : vector<4x64xf32>
    %cst_55 = arith.constant 5.000000e-01 : f32
    %134 = vector.broadcast %cst_55 : f32 to vector<4x64xf32>
    %135 = arith.mulf %134, %133 : vector<4x64xf32>
    %136 = arith.mulf %123, %135 : vector<4x64xf32>
    %c0_56 = arith.constant 0 : index
    %c0_57 = arith.constant 0 : index
    %137 = vector.load %arg16[%c0_56, %c0_57] : memref<64x32xbf16, #tpu.memory_space<vmem>>, vector<64x32xbf16>
    %138 = arith.truncf %136 : vector<4x64xf32> to vector<4x64xbf16>
    %cst_58 = arith.constant dense<0.000000e+00> : vector<4x32xf32>
    %139 = tpu.matmul %138, %137, %cst_58 {dimension_numbers = #tpu.dot_dimension_numbers<[1], [0], [0], [1], [0, 0, 1, 1], [], []>} : vector<4x64xbf16>, vector<64x32xbf16>, vector<4x32xf32> -> vector<4x32xf32>
    %c0_59 = arith.constant 0 : index
    %c0_60 = arith.constant 0 : index
    %140 = vector.load %arg17[%c0_59, %c0_60] : memref<1x32xf32, #tpu.memory_space<vmem>>, vector<1x32xf32>
    %141 = vector.broadcast %140 : vector<1x32xf32> to vector<4x32xf32>
    %142 = arith.addf %139, %141 : vector<4x32xf32>
    %143 = arith.addf %93, %142 : vector<4x32xf32>
    %c0_61 = arith.constant 0 : index
    %c0_62 = arith.constant 0 : index
    %144 = vector.load %arg18[%c0_61, %c0_62] : memref<1x32xf32, #tpu.memory_space<vmem>>, vector<1x32xf32>
    %c0_63 = arith.constant 0 : index
    %c0_64 = arith.constant 0 : index
    %145 = vector.load %arg19[%c0_63, %c0_64] : memref<1x32xf32, #tpu.memory_space<vmem>>, vector<1x32xf32>
    %cst_65 = arith.constant dense<0.000000e+00> : vector<4xf32>
    %146 = vector.multi_reduction <add>, %143, %cst_65 [1] : vector<4x32xf32> to vector<4xf32>
    %147 = vector.shape_cast %146 : vector<4xf32> to vector<4x1xf32>
    %cst_66 = arith.constant 3.200000e+01 : f32
    %148 = vector.broadcast %cst_66 : f32 to vector<4x1xf32>
    %149 = arith.divf %147, %148 : vector<4x1xf32>
    %150 = vector.broadcast %149 : vector<4x1xf32> to vector<4x32xf32>
    %151 = arith.subf %143, %150 : vector<4x32xf32>
    %152 = arith.mulf %151, %151 : vector<4x32xf32>
    %cst_67 = arith.constant dense<0.000000e+00> : vector<4xf32>
    %153 = vector.multi_reduction <add>, %152, %cst_67 [1] : vector<4x32xf32> to vector<4xf32>
    %154 = vector.shape_cast %153 : vector<4xf32> to vector<4x1xf32>
    %cst_68 = arith.constant 3.200000e+01 : f32
    %155 = vector.broadcast %cst_68 : f32 to vector<4x1xf32>
    %156 = arith.divf %154, %155 : vector<4x1xf32>
    %157 = vector.broadcast %149 : vector<4x1xf32> to vector<4x32xf32>
    %158 = arith.subf %143, %157 : vector<4x32xf32>
    %cst_69 = arith.constant 9.99999997E-7 : f32
    %159 = vector.broadcast %cst_69 : f32 to vector<4x1xf32>
    %160 = arith.addf %156, %159 : vector<4x1xf32>
    %161 = math.rsqrt %160 : vector<4x1xf32>
    %162 = vector.broadcast %161 : vector<4x1xf32> to vector<4x32xf32>
    %163 = arith.mulf %158, %162 : vector<4x32xf32>
    %164 = vector.broadcast %144 : vector<1x32xf32> to vector<4x32xf32>
    %165 = arith.mulf %163, %164 : vector<4x32xf32>
    %166 = vector.broadcast %145 : vector<1x32xf32> to vector<4x32xf32>
    %167 = arith.addf %165, %166 : vector<4x32xf32>
    %c0_70 = arith.constant 0 : index
    %c0_71 = arith.constant 0 : index
    %168 = vector.load %arg20[%c0_70, %c0_71] : memref<8x32xf32, #tpu.memory_space<vmem>>, vector<8x32xf32>
    %c0_72 = arith.constant 0 : index
    %c0_73 = arith.constant 0 : index
    %169 = vector.load %arg21[%c0_72, %c0_73] : memref<32x32xbf16, #tpu.memory_space<vmem>>, vector<32x32xbf16>
    %170 = arith.truncf %168 : vector<8x32xf32> to vector<8x32xbf16>
    %cst_74 = arith.constant dense<0.000000e+00> : vector<8x32xf32>
    %171 = tpu.matmul %170, %169, %cst_74 {dimension_numbers = #tpu.dot_dimension_numbers<[1], [0], [0], [1], [0, 0, 1, 1], [], []>} : vector<8x32xbf16>, vector<32x32xbf16>, vector<8x32xf32> -> vector<8x32xf32>
    %c0_75 = arith.constant 0 : index
    %c0_76 = arith.constant 0 : index
    %172 = vector.load %arg22[%c0_75, %c0_76] : memref<1x32xf32, #tpu.memory_space<vmem>>, vector<1x32xf32>
    %173 = vector.broadcast %172 : vector<1x32xf32> to vector<8x32xf32>
    %174 = arith.addf %171, %173 : vector<8x32xf32>
    %c0_77 = arith.constant 0 : index
    %c0_78 = arith.constant 0 : index
    %175 = vector.load %arg23[%c0_77, %c0_78] : memref<32x64xbf16, #tpu.memory_space<vmem>>, vector<32x64xbf16>
    %176 = arith.truncf %167 : vector<4x32xf32> to vector<4x32xbf16>
    %cst_79 = arith.constant dense<0.000000e+00> : vector<4x64xf32>
    %177 = tpu.matmul %176, %175, %cst_79 {dimension_numbers = #tpu.dot_dimension_numbers<[1], [0], [0], [1], [0, 0, 1, 1], [], []>} : vector<4x32xbf16>, vector<32x64xbf16>, vector<4x64xf32> -> vector<4x64xf32>
    %c0_80 = arith.constant 0 : index
    %c0_81 = arith.constant 0 : index
    %178 = vector.load %arg24[%c0_80, %c0_81] : memref<1x64xf32, #tpu.memory_space<vmem>>, vector<1x64xf32>
    %179 = vector.broadcast %178 : vector<1x64xf32> to vector<4x64xf32>
    %180 = arith.addf %177, %179 : vector<4x64xf32>
    %181 = vector.extract_strided_slice %180 {offsets = [0, 0], sizes = [4, 32], strides = [1, 1]} : vector<4x64xf32> to vector<4x32xf32>
    %182 = vector.extract_strided_slice %180 {offsets = [0, 32], sizes = [4, 32], strides = [1, 1]} : vector<4x64xf32> to vector<4x32xf32>
    %c0_82 = arith.constant 0 : index
    %c0_83 = arith.constant 0 : index
    %183 = vector.load %arg25[%c0_82, %c0_83] : memref<32x32xbf16, #tpu.memory_space<vmem>>, vector<32x32xbf16>
    %184 = arith.truncf %174 : vector<8x32xf32> to vector<8x32xbf16>
    %185 = arith.truncf %181 : vector<4x32xf32> to vector<4x32xbf16>
    %186 = arith.truncf %182 : vector<4x32xf32> to vector<4x32xbf16>
    %187 = vector.extract_strided_slice %184 {offsets = [0, 0], sizes = [8, 16], strides = [1, 1]} : vector<8x32xbf16> to vector<8x16xbf16>
    %188 = vector.extract_strided_slice %185 {offsets = [0, 0], sizes = [4, 16], strides = [1, 1]} : vector<4x32xbf16> to vector<4x16xbf16>
    "tpu.trace_start"() <{level = 10 : i32, message = "qd,kd->qk"}> : () -> ()
    %cst_84 = arith.constant dense<0.000000e+00> : vector<8x4xf32>
    %189 = tpu.matmul %187, %188, %cst_84 {dimension_numbers = #tpu.dot_dimension_numbers<[1], [1], [0], [0], [0, 0, 1, 0], [], []>} : vector<8x16xbf16>, vector<4x16xbf16>, vector<8x4xf32> -> vector<8x4xf32>
    "tpu.trace_stop"() : () -> ()
    %cst_85 = arith.constant 2.500000e-01 : f32
    %190 = vector.broadcast %cst_85 : f32 to vector<8x4xf32>
    %191 = arith.mulf %189, %190 : vector<8x4xf32>
    %cst_86 = arith.constant dense<0xFF800000> : vector<8xf32>
    %192 = vector.multi_reduction <maximumf>, %191, %cst_86 [1] : vector<8x4xf32> to vector<8xf32>
    %193 = vector.shape_cast %192 : vector<8xf32> to vector<8x1xf32>
    %194 = vector.broadcast %193 : vector<8x1xf32> to vector<8x4xf32>
    %195 = arith.subf %191, %194 : vector<8x4xf32>
    %196 = math.exp %195 : vector<8x4xf32>
    %cst_87 = arith.constant dense<0.000000e+00> : vector<8xf32>
    %197 = vector.multi_reduction <add>, %196, %cst_87 [1] : vector<8x4xf32> to vector<8xf32>
    %198 = vector.shape_cast %197 : vector<8xf32> to vector<8x1xf32>
    %199 = tpu.reciprocal %198 {approx = true} : vector<8x1xf32> -> vector<8x1xf32>
    %200 = vector.broadcast %199 : vector<8x1xf32> to vector<8x4xf32>
    %201 = arith.mulf %196, %200 : vector<8x4xf32>
    %202 = arith.truncf %201 : vector<8x4xf32> to vector<8x4xbf16>
    %203 = vector.extract_strided_slice %186 {offsets = [0, 0], sizes = [4, 16], strides = [1, 1]} : vector<4x32xbf16> to vector<4x16xbf16>
    %cst_88 = arith.constant dense<0.000000e+00> : vector<8x16xf32>
    %204 = tpu.matmul %202, %203, %cst_88 {dimension_numbers = #tpu.dot_dimension_numbers<[1], [0], [0], [1], [0, 0, 1, 1], [], []>} : vector<8x4xbf16>, vector<4x16xbf16>, vector<8x16xf32> -> vector<8x16xf32>
    %205 = arith.truncf %204 : vector<8x16xf32> to vector<8x16xbf16>
    %206 = vector.extract_strided_slice %183 {offsets = [0, 0], sizes = [16, 32], strides = [1, 1]} : vector<32x32xbf16> to vector<16x32xbf16>
    %cst_89 = arith.constant dense<0.000000e+00> : vector<8x32xf32>
    %207 = tpu.matmul %205, %206, %cst_89 {dimension_numbers = #tpu.dot_dimension_numbers<[1], [0], [0], [1], [0, 0, 1, 1], [], []>} : vector<8x16xbf16>, vector<16x32xbf16>, vector<8x32xf32> -> vector<8x32xf32>
    %208 = vector.extract_strided_slice %184 {offsets = [0, 16], sizes = [8, 16], strides = [1, 1]} : vector<8x32xbf16> to vector<8x16xbf16>
    %209 = vector.extract_strided_slice %185 {offsets = [0, 16], sizes = [4, 16], strides = [1, 1]} : vector<4x32xbf16> to vector<4x16xbf16>
    "tpu.trace_start"() <{level = 10 : i32, message = "qd,kd->qk"}> : () -> ()
    %cst_90 = arith.constant dense<0.000000e+00> : vector<8x4xf32>
    %210 = tpu.matmul %208, %209, %cst_90 {dimension_numbers = #tpu.dot_dimension_numbers<[1], [1], [0], [0], [0, 0, 1, 0], [], []>} : vector<8x16xbf16>, vector<4x16xbf16>, vector<8x4xf32> -> vector<8x4xf32>
    "tpu.trace_stop"() : () -> ()
    %cst_91 = arith.constant 2.500000e-01 : f32
    %211 = vector.broadcast %cst_91 : f32 to vector<8x4xf32>
    %212 = arith.mulf %210, %211 : vector<8x4xf32>
    %cst_92 = arith.constant dense<0xFF800000> : vector<8xf32>
    %213 = vector.multi_reduction <maximumf>, %212, %cst_92 [1] : vector<8x4xf32> to vector<8xf32>
    %214 = vector.shape_cast %213 : vector<8xf32> to vector<8x1xf32>
    %215 = vector.broadcast %214 : vector<8x1xf32> to vector<8x4xf32>
    %216 = arith.subf %212, %215 : vector<8x4xf32>
    %217 = math.exp %216 : vector<8x4xf32>
    %cst_93 = arith.constant dense<0.000000e+00> : vector<8xf32>
    %218 = vector.multi_reduction <add>, %217, %cst_93 [1] : vector<8x4xf32> to vector<8xf32>
    %219 = vector.shape_cast %218 : vector<8xf32> to vector<8x1xf32>
    %220 = tpu.reciprocal %219 {approx = true} : vector<8x1xf32> -> vector<8x1xf32>
    %221 = vector.broadcast %220 : vector<8x1xf32> to vector<8x4xf32>
    %222 = arith.mulf %217, %221 : vector<8x4xf32>
    %223 = arith.truncf %222 : vector<8x4xf32> to vector<8x4xbf16>
    %224 = vector.extract_strided_slice %186 {offsets = [0, 16], sizes = [4, 16], strides = [1, 1]} : vector<4x32xbf16> to vector<4x16xbf16>
    %cst_94 = arith.constant dense<0.000000e+00> : vector<8x16xf32>
    %225 = tpu.matmul %223, %224, %cst_94 {dimension_numbers = #tpu.dot_dimension_numbers<[1], [0], [0], [1], [0, 0, 1, 1], [], []>} : vector<8x4xbf16>, vector<4x16xbf16>, vector<8x16xf32> -> vector<8x16xf32>
    %226 = arith.truncf %225 : vector<8x16xf32> to vector<8x16xbf16>
    %227 = vector.extract_strided_slice %183 {offsets = [16, 0], sizes = [16, 32], strides = [1, 1]} : vector<32x32xbf16> to vector<16x32xbf16>
    %cst_95 = arith.constant dense<0.000000e+00> : vector<8x32xf32>
    %228 = tpu.matmul %226, %227, %cst_95 {dimension_numbers = #tpu.dot_dimension_numbers<[1], [0], [0], [1], [0, 0, 1, 1], [], []>} : vector<8x16xbf16>, vector<16x32xbf16>, vector<8x32xf32> -> vector<8x32xf32>
    %229 = arith.addf %207, %228 : vector<8x32xf32>
    %c0_96 = arith.constant 0 : index
    %c0_97 = arith.constant 0 : index
    %230 = vector.load %arg26[%c0_96, %c0_97] : memref<1x32xf32, #tpu.memory_space<vmem>>, vector<1x32xf32>
    %231 = vector.broadcast %230 : vector<1x32xf32> to vector<8x32xf32>
    %232 = arith.addf %229, %231 : vector<8x32xf32>
    %233 = arith.addf %168, %232 : vector<8x32xf32>
    %c0_98 = arith.constant 0 : index
    %c0_99 = arith.constant 0 : index
    %234 = vector.load %arg27[%c0_98, %c0_99] : memref<1x32xf32, #tpu.memory_space<vmem>>, vector<1x32xf32>
    %c0_100 = arith.constant 0 : index
    %c0_101 = arith.constant 0 : index
    %235 = vector.load %arg28[%c0_100, %c0_101] : memref<1x32xf32, #tpu.memory_space<vmem>>, vector<1x32xf32>
    %cst_102 = arith.constant dense<0.000000e+00> : vector<8xf32>
    %236 = vector.multi_reduction <add>, %233, %cst_102 [1] : vector<8x32xf32> to vector<8xf32>
    %237 = vector.shape_cast %236 : vector<8xf32> to vector<8x1xf32>
    %cst_103 = arith.constant 3.200000e+01 : f32
    %238 = vector.broadcast %cst_103 : f32 to vector<8x1xf32>
    %239 = arith.divf %237, %238 : vector<8x1xf32>
    %240 = vector.broadcast %239 : vector<8x1xf32> to vector<8x32xf32>
    %241 = arith.subf %233, %240 : vector<8x32xf32>
    %242 = arith.mulf %241, %241 : vector<8x32xf32>
    %cst_104 = arith.constant dense<0.000000e+00> : vector<8xf32>
    %243 = vector.multi_reduction <add>, %242, %cst_104 [1] : vector<8x32xf32> to vector<8xf32>
    %244 = vector.shape_cast %243 : vector<8xf32> to vector<8x1xf32>
    %cst_105 = arith.constant 3.200000e+01 : f32
    %245 = vector.broadcast %cst_105 : f32 to vector<8x1xf32>
    %246 = arith.divf %244, %245 : vector<8x1xf32>
    %247 = vector.broadcast %239 : vector<8x1xf32> to vector<8x32xf32>
    %248 = arith.subf %233, %247 : vector<8x32xf32>
    %cst_106 = arith.constant 9.99999997E-7 : f32
    %249 = vector.broadcast %cst_106 : f32 to vector<8x1xf32>
    %250 = arith.addf %246, %249 : vector<8x1xf32>
    %251 = math.rsqrt %250 : vector<8x1xf32>
    %252 = vector.broadcast %251 : vector<8x1xf32> to vector<8x32xf32>
    %253 = arith.mulf %248, %252 : vector<8x32xf32>
    %254 = vector.broadcast %234 : vector<1x32xf32> to vector<8x32xf32>
    %255 = arith.mulf %253, %254 : vector<8x32xf32>
    %256 = vector.broadcast %235 : vector<1x32xf32> to vector<8x32xf32>
    %257 = arith.addf %255, %256 : vector<8x32xf32>
    %c0_107 = arith.constant 0 : index
    %c0_108 = arith.constant 0 : index
    %258 = vector.load %arg29[%c0_107, %c0_108] : memref<32x64xbf16, #tpu.memory_space<vmem>>, vector<32x64xbf16>
    %259 = arith.truncf %257 : vector<8x32xf32> to vector<8x32xbf16>
    %cst_109 = arith.constant dense<0.000000e+00> : vector<8x64xf32>
    %260 = tpu.matmul %259, %258, %cst_109 {dimension_numbers = #tpu.dot_dimension_numbers<[1], [0], [0], [1], [0, 0, 1, 1], [], []>} : vector<8x32xbf16>, vector<32x64xbf16>, vector<8x64xf32> -> vector<8x64xf32>
    %c0_110 = arith.constant 0 : index
    %c0_111 = arith.constant 0 : index
    %261 = vector.load %arg30[%c0_110, %c0_111] : memref<1x64xf32, #tpu.memory_space<vmem>>, vector<1x64xf32>
    %262 = vector.broadcast %261 : vector<1x64xf32> to vector<8x64xf32>
    %263 = arith.addf %260, %262 : vector<8x64xf32>
    %264 = arith.mulf %263, %263 : vector<8x64xf32>
    %265 = arith.mulf %263, %264 : vector<8x64xf32>
    %cst_112 = arith.constant 4.471500e-02 : f32
    %266 = vector.broadcast %cst_112 : f32 to vector<8x64xf32>
    %267 = arith.mulf %266, %265 : vector<8x64xf32>
    %268 = arith.addf %263, %267 : vector<8x64xf32>
    %cst_113 = arith.constant 0.797884583 : f32
    %269 = vector.broadcast %cst_113 : f32 to vector<8x64xf32>
    %270 = arith.mulf %269, %268 : vector<8x64xf32>
    %271 = math.tanh %270 : vector<8x64xf32>
    %cst_114 = arith.constant 1.000000e+00 : f32
    %272 = vector.broadcast %cst_114 : f32 to vector<8x64xf32>
    %273 = arith.addf %272, %271 : vector<8x64xf32>
    %cst_115 = arith.constant 5.000000e-01 : f32
    %274 = vector.broadcast %cst_115 : f32 to vector<8x64xf32>
    %275 = arith.mulf %274, %273 : vector<8x64xf32>
    %276 = arith.mulf %263, %275 : vector<8x64xf32>
    %c0_116 = arith.constant 0 : index
    %c0_117 = arith.constant 0 : index
    %277 = vector.load %arg31[%c0_116, %c0_117] : memref<64x32xbf16, #tpu.memory_space<vmem>>, vector<64x32xbf16>
    %278 = arith.truncf %276 : vector<8x64xf32> to vector<8x64xbf16>
    %cst_118 = arith.constant dense<0.000000e+00> : vector<8x32xf32>
    %279 = tpu.matmul %278, %277, %cst_118 {dimension_numbers = #tpu.dot_dimension_numbers<[1], [0], [0], [1], [0, 0, 1, 1], [], []>} : vector<8x64xbf16>, vector<64x32xbf16>, vector<8x32xf32> -> vector<8x32xf32>
    %c0_119 = arith.constant 0 : index
    %c0_120 = arith.constant 0 : index
    %280 = vector.load %arg32[%c0_119, %c0_120] : memref<1x32xf32, #tpu.memory_space<vmem>>, vector<1x32xf32>
    %281 = vector.broadcast %280 : vector<1x32xf32> to vector<8x32xf32>
    %282 = arith.addf %279, %281 : vector<8x32xf32>
    %283 = arith.addf %233, %282 : vector<8x32xf32>
    %c0_121 = arith.constant 0 : index
    %c0_122 = arith.constant 0 : index
    %284 = vector.load %arg33[%c0_121, %c0_122] : memref<32x32xbf16, #tpu.memory_space<vmem>>, vector<32x32xbf16>
    %285 = arith.truncf %283 : vector<8x32xf32> to vector<8x32xbf16>
    %cst_123 = arith.constant dense<0.000000e+00> : vector<8x32xf32>
    %286 = tpu.matmul %285, %284, %cst_123 {dimension_numbers = #tpu.dot_dimension_numbers<[1], [0], [0], [1], [0, 0, 1, 1], [], []>} : vector<8x32xbf16>, vector<32x32xbf16>, vector<8x32xf32> -> vector<8x32xf32>
    %c0_124 = arith.constant 0 : index
    %c0_125 = arith.constant 0 : index
    %287 = vector.load %arg34[%c0_124, %c0_125] : memref<1x32xf32, #tpu.memory_space<vmem>>, vector<1x32xf32>
    %288 = vector.broadcast %287 : vector<1x32xf32> to vector<8x32xf32>
    %289 = arith.addf %286, %288 : vector<8x32xf32>
    %c0_126 = arith.constant 0 : index
    %c0_127 = arith.constant 0 : index
    %c0_128 = arith.constant 0 : index
    %290 = vector.load %arg2[%c0_126, %c0_127, %c0_128] : memref<1x6x1xi32, #tpu.memory_space<vmem>>, vector<1x6x1xi32>
    %291 = vector.shape_cast %290 : vector<1x6x1xi32> to vector<6x1xi32>
    %292 = tpu.iota {dimensions = array<i32: 1>} : vector<6x64xi32>
    %293 = vector.broadcast %291 : vector<6x1xi32> to vector<6x64xi32>
    %294 = arith.cmpi eq, %292, %293 : vector<6x64xi32>
    %295 = arith.extui %294 : vector<6x64xi1> to vector<6x64xi32>
    %296 = arith.sitofp %295 : vector<6x64xi32> to vector<6x64xf32>
    %c0_129 = arith.constant 0 : index
    %c0_130 = arith.constant 0 : index
    %297 = vector.load %arg35[%c0_129, %c0_130] : memref<64x32xbf16, #tpu.memory_space<vmem>>, vector<64x32xbf16>
    %298 = arith.truncf %296 : vector<6x64xf32> to vector<6x64xbf16>
    %cst_131 = arith.constant dense<0.000000e+00> : vector<6x32xf32>
    %299 = tpu.matmul %298, %297, %cst_131 {dimension_numbers = #tpu.dot_dimension_numbers<[1], [0], [0], [1], [0, 0, 1, 1], [], []>} : vector<6x64xbf16>, vector<64x32xbf16>, vector<6x32xf32> -> vector<6x32xf32>
    %300 = tpu.concatenate %289, %299 in 0 : vector<8x32xf32>, vector<6x32xf32> -> vector<14x32xf32>
    %c0_132 = arith.constant 0 : index
    %c0_133 = arith.constant 0 : index
    %301 = vector.load %arg39[%c0_132, %c0_133] : memref<32x64xbf16, #tpu.memory_space<vmem>>, vector<32x64xbf16>
    %302 = arith.truncf %300 : vector<14x32xf32> to vector<14x32xbf16>
    %cst_134 = arith.constant dense<0.000000e+00> : vector<14x64xf32>
    %303 = tpu.matmul %302, %301, %cst_134 {dimension_numbers = #tpu.dot_dimension_numbers<[1], [0], [0], [1], [0, 0, 1, 1], [], []>} : vector<14x32xbf16>, vector<32x64xbf16>, vector<14x64xf32> -> vector<14x64xf32>
    %c0_135 = arith.constant 0 : index
    %c0_136 = arith.constant 0 : index
    %304 = vector.load %arg40[%c0_135, %c0_136] : memref<1x64xf32, #tpu.memory_space<vmem>>, vector<1x64xf32>
    %305 = vector.broadcast %304 : vector<1x64xf32> to vector<14x64xf32>
    %306 = arith.addf %303, %305 : vector<14x64xf32>
    %307 = vector.extract_strided_slice %306 {offsets = [0, 0], sizes = [14, 32], strides = [1, 1]} : vector<14x64xf32> to vector<14x32xf32>
    %308 = vector.extract_strided_slice %306 {offsets = [0, 32], sizes = [14, 32], strides = [1, 1]} : vector<14x64xf32> to vector<14x32xf32>
    %309 = tpu.iota {dimensions = array<i32: 1>} : vector<1x64xi32>
    %310 = tpu.iota {dimensions = array<i32: 1>} : vector<1x3xi32>
    %c0_i32 = arith.constant 0 : i32
    %311 = vector.broadcast %c0_i32 : i32 to vector<1x64xi32>
    %312 = arith.cmpi eq, %309, %311 : vector<1x64xi32>
    %313 = arith.extui %312 : vector<1x64xi1> to vector<1x64xi32>
    %314 = arith.sitofp %313 : vector<1x64xi32> to vector<1x64xf32>
    %c0_i32_137 = arith.constant 0 : i32
    %315 = vector.broadcast %c0_i32_137 : i32 to vector<1x3xi32>
    %c0_138 = arith.constant 0 : index
    %c0_139 = arith.constant 0 : index
    %316 = vector.load %arg35[%c0_138, %c0_139] : memref<64x32xbf16, #tpu.memory_space<vmem>>, vector<64x32xbf16>
    %317 = arith.truncf %314 : vector<1x64xf32> to vector<1x64xbf16>
    %cst_140 = arith.constant dense<0.000000e+00> : vector<1x32xf32>
    %318 = tpu.matmul %317, %316, %cst_140 {dimension_numbers = #tpu.dot_dimension_numbers<[1], [0], [0], [1], [0, 0, 1, 1], [], []>} : vector<1x64xbf16>, vector<64x32xbf16>, vector<1x32xf32> -> vector<1x32xf32>
    %c0_141 = arith.constant 0 : index
    %c0_142 = arith.constant 0 : index
    %319 = vector.load %arg37[%c0_141, %c0_142] : memref<32x32xbf16, #tpu.memory_space<vmem>>, vector<32x32xbf16>
    %320 = arith.truncf %318 : vector<1x32xf32> to vector<1x32xbf16>
    %cst_143 = arith.constant dense<0.000000e+00> : vector<1x32xf32>
    %321 = tpu.matmul %320, %319, %cst_143 {dimension_numbers = #tpu.dot_dimension_numbers<[1], [0], [0], [1], [0, 0, 1, 1], [], []>} : vector<1x32xbf16>, vector<32x32xbf16>, vector<1x32xf32> -> vector<1x32xf32>
    %c0_144 = arith.constant 0 : index
    %c0_145 = arith.constant 0 : index
    %322 = vector.load %arg38[%c0_144, %c0_145] : memref<1x32xf32, #tpu.memory_space<vmem>>, vector<1x32xf32>
    %323 = arith.addf %321, %322 : vector<1x32xf32>
    %c0_146 = arith.constant 0 : index
    %c0_147 = arith.constant 0 : index
    %324 = vector.load %arg41[%c0_146, %c0_147] : memref<32x32xbf16, #tpu.memory_space<vmem>>, vector<32x32xbf16>
    %325 = arith.truncf %323 : vector<1x32xf32> to vector<1x32xbf16>
    %326 = arith.truncf %307 : vector<14x32xf32> to vector<14x32xbf16>
    %327 = arith.truncf %308 : vector<14x32xf32> to vector<14x32xbf16>
    %328 = vector.extract_strided_slice %325 {offsets = [0, 0], sizes = [1, 16], strides = [1, 1]} : vector<1x32xbf16> to vector<1x16xbf16>
    %329 = vector.extract_strided_slice %326 {offsets = [0, 0], sizes = [14, 16], strides = [1, 1]} : vector<14x32xbf16> to vector<14x16xbf16>
    "tpu.trace_start"() <{level = 10 : i32, message = "qd,kd->qk"}> : () -> ()
    %cst_148 = arith.constant dense<0.000000e+00> : vector<1x14xf32>
    %330 = tpu.matmul %328, %329, %cst_148 {dimension_numbers = #tpu.dot_dimension_numbers<[1], [1], [0], [0], [0, 0, 1, 0], [], []>} : vector<1x16xbf16>, vector<14x16xbf16>, vector<1x14xf32> -> vector<1x14xf32>
    "tpu.trace_stop"() : () -> ()
    %cst_149 = arith.constant 2.500000e-01 : f32
    %331 = vector.broadcast %cst_149 : f32 to vector<1x14xf32>
    %332 = arith.mulf %330, %331 : vector<1x14xf32>
    %cst_150 = arith.constant dense<0xFF800000> : vector<1xf32>
    %333 = vector.multi_reduction <maximumf>, %332, %cst_150 [1] : vector<1x14xf32> to vector<1xf32>
    %334 = vector.shape_cast %333 : vector<1xf32> to vector<1x1xf32>
    %335 = vector.broadcast %334 : vector<1x1xf32> to vector<1x14xf32>
    %336 = arith.subf %332, %335 : vector<1x14xf32>
    %337 = math.exp %336 : vector<1x14xf32>
    %cst_151 = arith.constant dense<0.000000e+00> : vector<1xf32>
    %338 = vector.multi_reduction <add>, %337, %cst_151 [1] : vector<1x14xf32> to vector<1xf32>
    %339 = vector.shape_cast %338 : vector<1xf32> to vector<1x1xf32>
    %340 = tpu.reciprocal %339 {approx = true} : vector<1x1xf32> -> vector<1x1xf32>
    %341 = vector.broadcast %340 : vector<1x1xf32> to vector<1x14xf32>
    %342 = arith.mulf %337, %341 : vector<1x14xf32>
    %343 = arith.truncf %342 : vector<1x14xf32> to vector<1x14xbf16>
    %344 = vector.extract_strided_slice %327 {offsets = [0, 0], sizes = [14, 16], strides = [1, 1]} : vector<14x32xbf16> to vector<14x16xbf16>
    %cst_152 = arith.constant dense<0.000000e+00> : vector<1x16xf32>
    %345 = tpu.matmul %343, %344, %cst_152 {dimension_numbers = #tpu.dot_dimension_numbers<[1], [0], [0], [1], [0, 0, 1, 1], [], []>} : vector<1x14xbf16>, vector<14x16xbf16>, vector<1x16xf32> -> vector<1x16xf32>
    %346 = arith.truncf %345 : vector<1x16xf32> to vector<1x16xbf16>
    %347 = vector.extract_strided_slice %324 {offsets = [0, 0], sizes = [16, 32], strides = [1, 1]} : vector<32x32xbf16> to vector<16x32xbf16>
    %cst_153 = arith.constant dense<0.000000e+00> : vector<1x32xf32>
    %348 = tpu.matmul %346, %347, %cst_153 {dimension_numbers = #tpu.dot_dimension_numbers<[1], [0], [0], [1], [0, 0, 1, 1], [], []>} : vector<1x16xbf16>, vector<16x32xbf16>, vector<1x32xf32> -> vector<1x32xf32>
    %349 = vector.extract_strided_slice %325 {offsets = [0, 16], sizes = [1, 16], strides = [1, 1]} : vector<1x32xbf16> to vector<1x16xbf16>
    %350 = vector.extract_strided_slice %326 {offsets = [0, 16], sizes = [14, 16], strides = [1, 1]} : vector<14x32xbf16> to vector<14x16xbf16>
    "tpu.trace_start"() <{level = 10 : i32, message = "qd,kd->qk"}> : () -> ()
    %cst_154 = arith.constant dense<0.000000e+00> : vector<1x14xf32>
    %351 = tpu.matmul %349, %350, %cst_154 {dimension_numbers = #tpu.dot_dimension_numbers<[1], [1], [0], [0], [0, 0, 1, 0], [], []>} : vector<1x16xbf16>, vector<14x16xbf16>, vector<1x14xf32> -> vector<1x14xf32>
    "tpu.trace_stop"() : () -> ()
    %cst_155 = arith.constant 2.500000e-01 : f32
    %352 = vector.broadcast %cst_155 : f32 to vector<1x14xf32>
    %353 = arith.mulf %351, %352 : vector<1x14xf32>
    %cst_156 = arith.constant dense<0xFF800000> : vector<1xf32>
    %354 = vector.multi_reduction <maximumf>, %353, %cst_156 [1] : vector<1x14xf32> to vector<1xf32>
    %355 = vector.shape_cast %354 : vector<1xf32> to vector<1x1xf32>
    %356 = vector.broadcast %355 : vector<1x1xf32> to vector<1x14xf32>
    %357 = arith.subf %353, %356 : vector<1x14xf32>
    %358 = math.exp %357 : vector<1x14xf32>
    %cst_157 = arith.constant dense<0.000000e+00> : vector<1xf32>
    %359 = vector.multi_reduction <add>, %358, %cst_157 [1] : vector<1x14xf32> to vector<1xf32>
    %360 = vector.shape_cast %359 : vector<1xf32> to vector<1x1xf32>
    %361 = tpu.reciprocal %360 {approx = true} : vector<1x1xf32> -> vector<1x1xf32>
    %362 = vector.broadcast %361 : vector<1x1xf32> to vector<1x14xf32>
    %363 = arith.mulf %358, %362 : vector<1x14xf32>
    %364 = arith.truncf %363 : vector<1x14xf32> to vector<1x14xbf16>
    %365 = vector.extract_strided_slice %327 {offsets = [0, 16], sizes = [14, 16], strides = [1, 1]} : vector<14x32xbf16> to vector<14x16xbf16>
    %cst_158 = arith.constant dense<0.000000e+00> : vector<1x16xf32>
    %366 = tpu.matmul %364, %365, %cst_158 {dimension_numbers = #tpu.dot_dimension_numbers<[1], [0], [0], [1], [0, 0, 1, 1], [], []>} : vector<1x14xbf16>, vector<14x16xbf16>, vector<1x16xf32> -> vector<1x16xf32>
    %367 = arith.truncf %366 : vector<1x16xf32> to vector<1x16xbf16>
    %368 = vector.extract_strided_slice %324 {offsets = [16, 0], sizes = [16, 32], strides = [1, 1]} : vector<32x32xbf16> to vector<16x32xbf16>
    %cst_159 = arith.constant dense<0.000000e+00> : vector<1x32xf32>
    %369 = tpu.matmul %367, %368, %cst_159 {dimension_numbers = #tpu.dot_dimension_numbers<[1], [0], [0], [1], [0, 0, 1, 1], [], []>} : vector<1x16xbf16>, vector<16x32xbf16>, vector<1x32xf32> -> vector<1x32xf32>
    %370 = arith.addf %348, %369 : vector<1x32xf32>
    %c0_160 = arith.constant 0 : index
    %c0_161 = arith.constant 0 : index
    %371 = vector.load %arg42[%c0_160, %c0_161] : memref<1x32xf32, #tpu.memory_space<vmem>>, vector<1x32xf32>
    %372 = arith.addf %370, %371 : vector<1x32xf32>
    %373 = arith.addf %318, %372 : vector<1x32xf32>
    %c0_162 = arith.constant 0 : index
    %c0_163 = arith.constant 0 : index
    %374 = vector.load %arg43[%c0_162, %c0_163] : memref<1x32xf32, #tpu.memory_space<vmem>>, vector<1x32xf32>
    %c0_164 = arith.constant 0 : index
    %c0_165 = arith.constant 0 : index
    %375 = vector.load %arg44[%c0_164, %c0_165] : memref<1x32xf32, #tpu.memory_space<vmem>>, vector<1x32xf32>
    %cst_166 = arith.constant dense<0.000000e+00> : vector<1xf32>
    %376 = vector.multi_reduction <add>, %373, %cst_166 [1] : vector<1x32xf32> to vector<1xf32>
    %377 = vector.shape_cast %376 : vector<1xf32> to vector<1x1xf32>
    %cst_167 = arith.constant 3.200000e+01 : f32
    %378 = vector.broadcast %cst_167 : f32 to vector<1x1xf32>
    %379 = arith.divf %377, %378 : vector<1x1xf32>
    %380 = vector.broadcast %379 : vector<1x1xf32> to vector<1x32xf32>
    %381 = arith.subf %373, %380 : vector<1x32xf32>
    %382 = arith.mulf %381, %381 : vector<1x32xf32>
    %cst_168 = arith.constant dense<0.000000e+00> : vector<1xf32>
    %383 = vector.multi_reduction <add>, %382, %cst_168 [1] : vector<1x32xf32> to vector<1xf32>
    %384 = vector.shape_cast %383 : vector<1xf32> to vector<1x1xf32>
    %cst_169 = arith.constant 3.200000e+01 : f32
    %385 = vector.broadcast %cst_169 : f32 to vector<1x1xf32>
    %386 = arith.divf %384, %385 : vector<1x1xf32>
    %387 = vector.broadcast %379 : vector<1x1xf32> to vector<1x32xf32>
    %388 = arith.subf %373, %387 : vector<1x32xf32>
    %cst_170 = arith.constant 9.99999997E-7 : f32
    %389 = vector.broadcast %cst_170 : f32 to vector<1x1xf32>
    %390 = arith.addf %386, %389 : vector<1x1xf32>
    %391 = math.rsqrt %390 : vector<1x1xf32>
    %392 = vector.broadcast %391 : vector<1x1xf32> to vector<1x32xf32>
    %393 = arith.mulf %388, %392 : vector<1x32xf32>
    %394 = arith.mulf %393, %374 : vector<1x32xf32>
    %395 = arith.addf %394, %375 : vector<1x32xf32>
    %c0_171 = arith.constant 0 : index
    %c0_172 = arith.constant 0 : index
    %396 = vector.load %arg36[%c0_171, %c0_172] : memref<32x64xbf16, #tpu.memory_space<vmem>>, vector<32x64xbf16>
    %397 = arith.truncf %395 : vector<1x32xf32> to vector<1x32xbf16>
    %cst_173 = arith.constant dense<0.000000e+00> : vector<1x64xf32>
    %398 = tpu.matmul %397, %396, %cst_173 {dimension_numbers = #tpu.dot_dimension_numbers<[1], [0], [0], [1], [0, 0, 1, 1], [], []>} : vector<1x32xbf16>, vector<32x64xbf16>, vector<1x64xf32> -> vector<1x64xf32>
    %cst_174 = arith.constant dense<0xFF800000> : vector<1xf32>
    %399 = vector.multi_reduction <maximumf>, %398, %cst_174 [1] : vector<1x64xf32> to vector<1xf32>
    %400 = vector.shape_cast %399 : vector<1xf32> to vector<1x1xf32>
    %401 = vector.broadcast %400 : vector<1x1xf32> to vector<1x64xf32>
    %402 = arith.cmpf oeq, %398, %401 : vector<1x64xf32>
    %c64_i32 = arith.constant 64 : i32
    %403 = vector.broadcast %c64_i32 : i32 to vector<1x64xi32>
    %404 = arith.select %402, %309, %403 : vector<1x64xi1>, vector<1x64xi32>
    %cst_175 = arith.constant dense<2147483647> : vector<1xi32>
    %405 = vector.multi_reduction <minsi>, %404, %cst_175 [1] : vector<1x64xi32> to vector<1xi32>
    %406 = vector.shape_cast %405 : vector<1xi32> to vector<1x1xi32>
    %407 = vector.broadcast %406 : vector<1x1xi32> to vector<1x64xi32>
    %408 = arith.cmpi eq, %309, %407 : vector<1x64xi32>
    %409 = arith.extui %408 : vector<1x64xi1> to vector<1x64xi32>
    %410 = arith.sitofp %409 : vector<1x64xi32> to vector<1x64xf32>
    %c0_i32_176 = arith.constant 0 : i32
    %411 = vector.broadcast %c0_i32_176 : i32 to vector<1x3xi32>
    %412 = arith.cmpi eq, %310, %411 : vector<1x3xi32>
    %413 = vector.shape_cast %406 : vector<1x1xi32> to vector<1x1xi32>
    %414 = vector.broadcast %413 : vector<1x1xi32> to vector<1x3xi32>
    %415 = arith.select %412, %414, %315 : vector<1x3xi1>, vector<1x3xi32>
    %c0_177 = arith.constant 0 : index
    %c0_178 = arith.constant 0 : index
    %416 = vector.load %arg35[%c0_177, %c0_178] : memref<64x32xbf16, #tpu.memory_space<vmem>>, vector<64x32xbf16>
    %417 = arith.truncf %410 : vector<1x64xf32> to vector<1x64xbf16>
    %cst_179 = arith.constant dense<0.000000e+00> : vector<1x32xf32>
    %418 = tpu.matmul %417, %416, %cst_179 {dimension_numbers = #tpu.dot_dimension_numbers<[1], [0], [0], [1], [0, 0, 1, 1], [], []>} : vector<1x64xbf16>, vector<64x32xbf16>, vector<1x32xf32> -> vector<1x32xf32>
    %c0_180 = arith.constant 0 : index
    %c0_181 = arith.constant 0 : index
    %419 = vector.load %arg37[%c0_180, %c0_181] : memref<32x32xbf16, #tpu.memory_space<vmem>>, vector<32x32xbf16>
    %420 = arith.truncf %418 : vector<1x32xf32> to vector<1x32xbf16>
    %cst_182 = arith.constant dense<0.000000e+00> : vector<1x32xf32>
    %421 = tpu.matmul %420, %419, %cst_182 {dimension_numbers = #tpu.dot_dimension_numbers<[1], [0], [0], [1], [0, 0, 1, 1], [], []>} : vector<1x32xbf16>, vector<32x32xbf16>, vector<1x32xf32> -> vector<1x32xf32>
    %c0_183 = arith.constant 0 : index
    %c0_184 = arith.constant 0 : index
    %422 = vector.load %arg38[%c0_183, %c0_184] : memref<1x32xf32, #tpu.memory_space<vmem>>, vector<1x32xf32>
    %423 = arith.addf %421, %422 : vector<1x32xf32>
    %c0_185 = arith.constant 0 : index
    %c0_186 = arith.constant 0 : index
    %424 = vector.load %arg41[%c0_185, %c0_186] : memref<32x32xbf16, #tpu.memory_space<vmem>>, vector<32x32xbf16>
    %425 = arith.truncf %423 : vector<1x32xf32> to vector<1x32xbf16>
    %426 = arith.truncf %307 : vector<14x32xf32> to vector<14x32xbf16>
    %427 = arith.truncf %308 : vector<14x32xf32> to vector<14x32xbf16>
    %428 = vector.extract_strided_slice %425 {offsets = [0, 0], sizes = [1, 16], strides = [1, 1]} : vector<1x32xbf16> to vector<1x16xbf16>
    %429 = vector.extract_strided_slice %426 {offsets = [0, 0], sizes = [14, 16], strides = [1, 1]} : vector<14x32xbf16> to vector<14x16xbf16>
    "tpu.trace_start"() <{level = 10 : i32, message = "qd,kd->qk"}> : () -> ()
    %cst_187 = arith.constant dense<0.000000e+00> : vector<1x14xf32>
    %430 = tpu.matmul %428, %429, %cst_187 {dimension_numbers = #tpu.dot_dimension_numbers<[1], [1], [0], [0], [0, 0, 1, 0], [], []>} : vector<1x16xbf16>, vector<14x16xbf16>, vector<1x14xf32> -> vector<1x14xf32>
    "tpu.trace_stop"() : () -> ()
    %cst_188 = arith.constant 2.500000e-01 : f32
    %431 = vector.broadcast %cst_188 : f32 to vector<1x14xf32>
    %432 = arith.mulf %430, %431 : vector<1x14xf32>
    %cst_189 = arith.constant dense<0xFF800000> : vector<1xf32>
    %433 = vector.multi_reduction <maximumf>, %432, %cst_189 [1] : vector<1x14xf32> to vector<1xf32>
    %434 = vector.shape_cast %433 : vector<1xf32> to vector<1x1xf32>
    %435 = vector.broadcast %434 : vector<1x1xf32> to vector<1x14xf32>
    %436 = arith.subf %432, %435 : vector<1x14xf32>
    %437 = math.exp %436 : vector<1x14xf32>
    %cst_190 = arith.constant dense<0.000000e+00> : vector<1xf32>
    %438 = vector.multi_reduction <add>, %437, %cst_190 [1] : vector<1x14xf32> to vector<1xf32>
    %439 = vector.shape_cast %438 : vector<1xf32> to vector<1x1xf32>
    %440 = tpu.reciprocal %439 {approx = true} : vector<1x1xf32> -> vector<1x1xf32>
    %441 = vector.broadcast %440 : vector<1x1xf32> to vector<1x14xf32>
    %442 = arith.mulf %437, %441 : vector<1x14xf32>
    %443 = arith.truncf %442 : vector<1x14xf32> to vector<1x14xbf16>
    %444 = vector.extract_strided_slice %427 {offsets = [0, 0], sizes = [14, 16], strides = [1, 1]} : vector<14x32xbf16> to vector<14x16xbf16>
    %cst_191 = arith.constant dense<0.000000e+00> : vector<1x16xf32>
    %445 = tpu.matmul %443, %444, %cst_191 {dimension_numbers = #tpu.dot_dimension_numbers<[1], [0], [0], [1], [0, 0, 1, 1], [], []>} : vector<1x14xbf16>, vector<14x16xbf16>, vector<1x16xf32> -> vector<1x16xf32>
    %446 = arith.truncf %445 : vector<1x16xf32> to vector<1x16xbf16>
    %447 = vector.extract_strided_slice %424 {offsets = [0, 0], sizes = [16, 32], strides = [1, 1]} : vector<32x32xbf16> to vector<16x32xbf16>
    %cst_192 = arith.constant dense<0.000000e+00> : vector<1x32xf32>
    %448 = tpu.matmul %446, %447, %cst_192 {dimension_numbers = #tpu.dot_dimension_numbers<[1], [0], [0], [1], [0, 0, 1, 1], [], []>} : vector<1x16xbf16>, vector<16x32xbf16>, vector<1x32xf32> -> vector<1x32xf32>
    %449 = vector.extract_strided_slice %425 {offsets = [0, 16], sizes = [1, 16], strides = [1, 1]} : vector<1x32xbf16> to vector<1x16xbf16>
    %450 = vector.extract_strided_slice %426 {offsets = [0, 16], sizes = [14, 16], strides = [1, 1]} : vector<14x32xbf16> to vector<14x16xbf16>
    "tpu.trace_start"() <{level = 10 : i32, message = "qd,kd->qk"}> : () -> ()
    %cst_193 = arith.constant dense<0.000000e+00> : vector<1x14xf32>
    %451 = tpu.matmul %449, %450, %cst_193 {dimension_numbers = #tpu.dot_dimension_numbers<[1], [1], [0], [0], [0, 0, 1, 0], [], []>} : vector<1x16xbf16>, vector<14x16xbf16>, vector<1x14xf32> -> vector<1x14xf32>
    "tpu.trace_stop"() : () -> ()
    %cst_194 = arith.constant 2.500000e-01 : f32
    %452 = vector.broadcast %cst_194 : f32 to vector<1x14xf32>
    %453 = arith.mulf %451, %452 : vector<1x14xf32>
    %cst_195 = arith.constant dense<0xFF800000> : vector<1xf32>
    %454 = vector.multi_reduction <maximumf>, %453, %cst_195 [1] : vector<1x14xf32> to vector<1xf32>
    %455 = vector.shape_cast %454 : vector<1xf32> to vector<1x1xf32>
    %456 = vector.broadcast %455 : vector<1x1xf32> to vector<1x14xf32>
    %457 = arith.subf %453, %456 : vector<1x14xf32>
    %458 = math.exp %457 : vector<1x14xf32>
    %cst_196 = arith.constant dense<0.000000e+00> : vector<1xf32>
    %459 = vector.multi_reduction <add>, %458, %cst_196 [1] : vector<1x14xf32> to vector<1xf32>
    %460 = vector.shape_cast %459 : vector<1xf32> to vector<1x1xf32>
    %461 = tpu.reciprocal %460 {approx = true} : vector<1x1xf32> -> vector<1x1xf32>
    %462 = vector.broadcast %461 : vector<1x1xf32> to vector<1x14xf32>
    %463 = arith.mulf %458, %462 : vector<1x14xf32>
    %464 = arith.truncf %463 : vector<1x14xf32> to vector<1x14xbf16>
    %465 = vector.extract_strided_slice %427 {offsets = [0, 16], sizes = [14, 16], strides = [1, 1]} : vector<14x32xbf16> to vector<14x16xbf16>
    %cst_197 = arith.constant dense<0.000000e+00> : vector<1x16xf32>
    %466 = tpu.matmul %464, %465, %cst_197 {dimension_numbers = #tpu.dot_dimension_numbers<[1], [0], [0], [1], [0, 0, 1, 1], [], []>} : vector<1x14xbf16>, vector<14x16xbf16>, vector<1x16xf32> -> vector<1x16xf32>
    %467 = arith.truncf %466 : vector<1x16xf32> to vector<1x16xbf16>
    %468 = vector.extract_strided_slice %424 {offsets = [16, 0], sizes = [16, 32], strides = [1, 1]} : vector<32x32xbf16> to vector<16x32xbf16>
    %cst_198 = arith.constant dense<0.000000e+00> : vector<1x32xf32>
    %469 = tpu.matmul %467, %468, %cst_198 {dimension_numbers = #tpu.dot_dimension_numbers<[1], [0], [0], [1], [0, 0, 1, 1], [], []>} : vector<1x16xbf16>, vector<16x32xbf16>, vector<1x32xf32> -> vector<1x32xf32>
    %470 = arith.addf %448, %469 : vector<1x32xf32>
    %c0_199 = arith.constant 0 : index
    %c0_200 = arith.constant 0 : index
    %471 = vector.load %arg42[%c0_199, %c0_200] : memref<1x32xf32, #tpu.memory_space<vmem>>, vector<1x32xf32>
    %472 = arith.addf %470, %471 : vector<1x32xf32>
    %473 = arith.addf %418, %472 : vector<1x32xf32>
    %c0_201 = arith.constant 0 : index
    %c0_202 = arith.constant 0 : index
    %474 = vector.load %arg43[%c0_201, %c0_202] : memref<1x32xf32, #tpu.memory_space<vmem>>, vector<1x32xf32>
    %c0_203 = arith.constant 0 : index
    %c0_204 = arith.constant 0 : index
    %475 = vector.load %arg44[%c0_203, %c0_204] : memref<1x32xf32, #tpu.memory_space<vmem>>, vector<1x32xf32>
    %cst_205 = arith.constant dense<0.000000e+00> : vector<1xf32>
    %476 = vector.multi_reduction <add>, %473, %cst_205 [1] : vector<1x32xf32> to vector<1xf32>
    %477 = vector.shape_cast %476 : vector<1xf32> to vector<1x1xf32>
    %cst_206 = arith.constant 3.200000e+01 : f32
    %478 = vector.broadcast %cst_206 : f32 to vector<1x1xf32>
    %479 = arith.divf %477, %478 : vector<1x1xf32>
    %480 = vector.broadcast %479 : vector<1x1xf32> to vector<1x32xf32>
    %481 = arith.subf %473, %480 : vector<1x32xf32>
    %482 = arith.mulf %481, %481 : vector<1x32xf32>
    %cst_207 = arith.constant dense<0.000000e+00> : vector<1xf32>
    %483 = vector.multi_reduction <add>, %482, %cst_207 [1] : vector<1x32xf32> to vector<1xf32>
    %484 = vector.shape_cast %483 : vector<1xf32> to vector<1x1xf32>
    %cst_208 = arith.constant 3.200000e+01 : f32
    %485 = vector.broadcast %cst_208 : f32 to vector<1x1xf32>
    %486 = arith.divf %484, %485 : vector<1x1xf32>
    %487 = vector.broadcast %479 : vector<1x1xf32> to vector<1x32xf32>
    %488 = arith.subf %473, %487 : vector<1x32xf32>
    %cst_209 = arith.constant 9.99999997E-7 : f32
    %489 = vector.broadcast %cst_209 : f32 to vector<1x1xf32>
    %490 = arith.addf %486, %489 : vector<1x1xf32>
    %491 = math.rsqrt %490 : vector<1x1xf32>
    %492 = vector.broadcast %491 : vector<1x1xf32> to vector<1x32xf32>
    %493 = arith.mulf %488, %492 : vector<1x32xf32>
    %494 = arith.mulf %493, %474 : vector<1x32xf32>
    %495 = arith.addf %494, %475 : vector<1x32xf32>
    %c0_210 = arith.constant 0 : index
    %c0_211 = arith.constant 0 : index
    %496 = vector.load %arg36[%c0_210, %c0_211] : memref<32x64xbf16, #tpu.memory_space<vmem>>, vector<32x64xbf16>
    %497 = arith.truncf %495 : vector<1x32xf32> to vector<1x32xbf16>
    %cst_212 = arith.constant dense<0.000000e+00> : vector<1x64xf32>
    %498 = tpu.matmul %497, %496, %cst_212 {dimension_numbers = #tpu.dot_dimension_numbers<[1], [0], [0], [1], [0, 0, 1, 1], [], []>} : vector<1x32xbf16>, vector<32x64xbf16>, vector<1x64xf32> -> vector<1x64xf32>
    %cst_213 = arith.constant dense<0xFF800000> : vector<1xf32>
    %499 = vector.multi_reduction <maximumf>, %498, %cst_213 [1] : vector<1x64xf32> to vector<1xf32>
    %500 = vector.shape_cast %499 : vector<1xf32> to vector<1x1xf32>
    %501 = vector.broadcast %500 : vector<1x1xf32> to vector<1x64xf32>
    %502 = arith.cmpf oeq, %498, %501 : vector<1x64xf32>
    %c64_i32_214 = arith.constant 64 : i32
    %503 = vector.broadcast %c64_i32_214 : i32 to vector<1x64xi32>
    %504 = arith.select %502, %309, %503 : vector<1x64xi1>, vector<1x64xi32>
    %cst_215 = arith.constant dense<2147483647> : vector<1xi32>
    %505 = vector.multi_reduction <minsi>, %504, %cst_215 [1] : vector<1x64xi32> to vector<1xi32>
    %506 = vector.shape_cast %505 : vector<1xi32> to vector<1x1xi32>
    %507 = vector.broadcast %506 : vector<1x1xi32> to vector<1x64xi32>
    %508 = arith.cmpi eq, %309, %507 : vector<1x64xi32>
    %509 = arith.extui %508 : vector<1x64xi1> to vector<1x64xi32>
    %510 = arith.sitofp %509 : vector<1x64xi32> to vector<1x64xf32>
    %c1_i32 = arith.constant 1 : i32
    %511 = vector.broadcast %c1_i32 : i32 to vector<1x3xi32>
    %512 = arith.cmpi eq, %310, %511 : vector<1x3xi32>
    %513 = vector.shape_cast %506 : vector<1x1xi32> to vector<1x1xi32>
    %514 = vector.broadcast %513 : vector<1x1xi32> to vector<1x3xi32>
    %515 = arith.select %512, %514, %415 : vector<1x3xi1>, vector<1x3xi32>
    %c0_216 = arith.constant 0 : index
    %c0_217 = arith.constant 0 : index
    %516 = vector.load %arg35[%c0_216, %c0_217] : memref<64x32xbf16, #tpu.memory_space<vmem>>, vector<64x32xbf16>
    %517 = arith.truncf %510 : vector<1x64xf32> to vector<1x64xbf16>
    %cst_218 = arith.constant dense<0.000000e+00> : vector<1x32xf32>
    %518 = tpu.matmul %517, %516, %cst_218 {dimension_numbers = #tpu.dot_dimension_numbers<[1], [0], [0], [1], [0, 0, 1, 1], [], []>} : vector<1x64xbf16>, vector<64x32xbf16>, vector<1x32xf32> -> vector<1x32xf32>
    %c0_219 = arith.constant 0 : index
    %c0_220 = arith.constant 0 : index
    %519 = vector.load %arg37[%c0_219, %c0_220] : memref<32x32xbf16, #tpu.memory_space<vmem>>, vector<32x32xbf16>
    %520 = arith.truncf %518 : vector<1x32xf32> to vector<1x32xbf16>
    %cst_221 = arith.constant dense<0.000000e+00> : vector<1x32xf32>
    %521 = tpu.matmul %520, %519, %cst_221 {dimension_numbers = #tpu.dot_dimension_numbers<[1], [0], [0], [1], [0, 0, 1, 1], [], []>} : vector<1x32xbf16>, vector<32x32xbf16>, vector<1x32xf32> -> vector<1x32xf32>
    %c0_222 = arith.constant 0 : index
    %c0_223 = arith.constant 0 : index
    %522 = vector.load %arg38[%c0_222, %c0_223] : memref<1x32xf32, #tpu.memory_space<vmem>>, vector<1x32xf32>
    %523 = arith.addf %521, %522 : vector<1x32xf32>
    %c0_224 = arith.constant 0 : index
    %c0_225 = arith.constant 0 : index
    %524 = vector.load %arg41[%c0_224, %c0_225] : memref<32x32xbf16, #tpu.memory_space<vmem>>, vector<32x32xbf16>
    %525 = arith.truncf %523 : vector<1x32xf32> to vector<1x32xbf16>
    %526 = arith.truncf %307 : vector<14x32xf32> to vector<14x32xbf16>
    %527 = arith.truncf %308 : vector<14x32xf32> to vector<14x32xbf16>
    %528 = vector.extract_strided_slice %525 {offsets = [0, 0], sizes = [1, 16], strides = [1, 1]} : vector<1x32xbf16> to vector<1x16xbf16>
    %529 = vector.extract_strided_slice %526 {offsets = [0, 0], sizes = [14, 16], strides = [1, 1]} : vector<14x32xbf16> to vector<14x16xbf16>
    "tpu.trace_start"() <{level = 10 : i32, message = "qd,kd->qk"}> : () -> ()
    %cst_226 = arith.constant dense<0.000000e+00> : vector<1x14xf32>
    %530 = tpu.matmul %528, %529, %cst_226 {dimension_numbers = #tpu.dot_dimension_numbers<[1], [1], [0], [0], [0, 0, 1, 0], [], []>} : vector<1x16xbf16>, vector<14x16xbf16>, vector<1x14xf32> -> vector<1x14xf32>
    "tpu.trace_stop"() : () -> ()
    %cst_227 = arith.constant 2.500000e-01 : f32
    %531 = vector.broadcast %cst_227 : f32 to vector<1x14xf32>
    %532 = arith.mulf %530, %531 : vector<1x14xf32>
    %cst_228 = arith.constant dense<0xFF800000> : vector<1xf32>
    %533 = vector.multi_reduction <maximumf>, %532, %cst_228 [1] : vector<1x14xf32> to vector<1xf32>
    %534 = vector.shape_cast %533 : vector<1xf32> to vector<1x1xf32>
    %535 = vector.broadcast %534 : vector<1x1xf32> to vector<1x14xf32>
    %536 = arith.subf %532, %535 : vector<1x14xf32>
    %537 = math.exp %536 : vector<1x14xf32>
    %cst_229 = arith.constant dense<0.000000e+00> : vector<1xf32>
    %538 = vector.multi_reduction <add>, %537, %cst_229 [1] : vector<1x14xf32> to vector<1xf32>
    %539 = vector.shape_cast %538 : vector<1xf32> to vector<1x1xf32>
    %540 = tpu.reciprocal %539 {approx = true} : vector<1x1xf32> -> vector<1x1xf32>
    %541 = vector.broadcast %540 : vector<1x1xf32> to vector<1x14xf32>
    %542 = arith.mulf %537, %541 : vector<1x14xf32>
    %543 = arith.truncf %542 : vector<1x14xf32> to vector<1x14xbf16>
    %544 = vector.extract_strided_slice %527 {offsets = [0, 0], sizes = [14, 16], strides = [1, 1]} : vector<14x32xbf16> to vector<14x16xbf16>
    %cst_230 = arith.constant dense<0.000000e+00> : vector<1x16xf32>
    %545 = tpu.matmul %543, %544, %cst_230 {dimension_numbers = #tpu.dot_dimension_numbers<[1], [0], [0], [1], [0, 0, 1, 1], [], []>} : vector<1x14xbf16>, vector<14x16xbf16>, vector<1x16xf32> -> vector<1x16xf32>
    %546 = arith.truncf %545 : vector<1x16xf32> to vector<1x16xbf16>
    %547 = vector.extract_strided_slice %524 {offsets = [0, 0], sizes = [16, 32], strides = [1, 1]} : vector<32x32xbf16> to vector<16x32xbf16>
    %cst_231 = arith.constant dense<0.000000e+00> : vector<1x32xf32>
    %548 = tpu.matmul %546, %547, %cst_231 {dimension_numbers = #tpu.dot_dimension_numbers<[1], [0], [0], [1], [0, 0, 1, 1], [], []>} : vector<1x16xbf16>, vector<16x32xbf16>, vector<1x32xf32> -> vector<1x32xf32>
    %549 = vector.extract_strided_slice %525 {offsets = [0, 16], sizes = [1, 16], strides = [1, 1]} : vector<1x32xbf16> to vector<1x16xbf16>
    %550 = vector.extract_strided_slice %526 {offsets = [0, 16], sizes = [14, 16], strides = [1, 1]} : vector<14x32xbf16> to vector<14x16xbf16>
    "tpu.trace_start"() <{level = 10 : i32, message = "qd,kd->qk"}> : () -> ()
    %cst_232 = arith.constant dense<0.000000e+00> : vector<1x14xf32>
    %551 = tpu.matmul %549, %550, %cst_232 {dimension_numbers = #tpu.dot_dimension_numbers<[1], [1], [0], [0], [0, 0, 1, 0], [], []>} : vector<1x16xbf16>, vector<14x16xbf16>, vector<1x14xf32> -> vector<1x14xf32>
    "tpu.trace_stop"() : () -> ()
    %cst_233 = arith.constant 2.500000e-01 : f32
    %552 = vector.broadcast %cst_233 : f32 to vector<1x14xf32>
    %553 = arith.mulf %551, %552 : vector<1x14xf32>
    %cst_234 = arith.constant dense<0xFF800000> : vector<1xf32>
    %554 = vector.multi_reduction <maximumf>, %553, %cst_234 [1] : vector<1x14xf32> to vector<1xf32>
    %555 = vector.shape_cast %554 : vector<1xf32> to vector<1x1xf32>
    %556 = vector.broadcast %555 : vector<1x1xf32> to vector<1x14xf32>
    %557 = arith.subf %553, %556 : vector<1x14xf32>
    %558 = math.exp %557 : vector<1x14xf32>
    %cst_235 = arith.constant dense<0.000000e+00> : vector<1xf32>
    %559 = vector.multi_reduction <add>, %558, %cst_235 [1] : vector<1x14xf32> to vector<1xf32>
    %560 = vector.shape_cast %559 : vector<1xf32> to vector<1x1xf32>
    %561 = tpu.reciprocal %560 {approx = true} : vector<1x1xf32> -> vector<1x1xf32>
    %562 = vector.broadcast %561 : vector<1x1xf32> to vector<1x14xf32>
    %563 = arith.mulf %558, %562 : vector<1x14xf32>
    %564 = arith.truncf %563 : vector<1x14xf32> to vector<1x14xbf16>
    %565 = vector.extract_strided_slice %527 {offsets = [0, 16], sizes = [14, 16], strides = [1, 1]} : vector<14x32xbf16> to vector<14x16xbf16>
    %cst_236 = arith.constant dense<0.000000e+00> : vector<1x16xf32>
    %566 = tpu.matmul %564, %565, %cst_236 {dimension_numbers = #tpu.dot_dimension_numbers<[1], [0], [0], [1], [0, 0, 1, 1], [], []>} : vector<1x14xbf16>, vector<14x16xbf16>, vector<1x16xf32> -> vector<1x16xf32>
    %567 = arith.truncf %566 : vector<1x16xf32> to vector<1x16xbf16>
    %568 = vector.extract_strided_slice %524 {offsets = [16, 0], sizes = [16, 32], strides = [1, 1]} : vector<32x32xbf16> to vector<16x32xbf16>
    %cst_237 = arith.constant dense<0.000000e+00> : vector<1x32xf32>
    %569 = tpu.matmul %567, %568, %cst_237 {dimension_numbers = #tpu.dot_dimension_numbers<[1], [0], [0], [1], [0, 0, 1, 1], [], []>} : vector<1x16xbf16>, vector<16x32xbf16>, vector<1x32xf32> -> vector<1x32xf32>
    %570 = arith.addf %548, %569 : vector<1x32xf32>
    %c0_238 = arith.constant 0 : index
    %c0_239 = arith.constant 0 : index
    %571 = vector.load %arg42[%c0_238, %c0_239] : memref<1x32xf32, #tpu.memory_space<vmem>>, vector<1x32xf32>
    %572 = arith.addf %570, %571 : vector<1x32xf32>
    %573 = arith.addf %518, %572 : vector<1x32xf32>
    %c0_240 = arith.constant 0 : index
    %c0_241 = arith.constant 0 : index
    %574 = vector.load %arg43[%c0_240, %c0_241] : memref<1x32xf32, #tpu.memory_space<vmem>>, vector<1x32xf32>
    %c0_242 = arith.constant 0 : index
    %c0_243 = arith.constant 0 : index
    %575 = vector.load %arg44[%c0_242, %c0_243] : memref<1x32xf32, #tpu.memory_space<vmem>>, vector<1x32xf32>
    %cst_244 = arith.constant dense<0.000000e+00> : vector<1xf32>
    %576 = vector.multi_reduction <add>, %573, %cst_244 [1] : vector<1x32xf32> to vector<1xf32>
    %577 = vector.shape_cast %576 : vector<1xf32> to vector<1x1xf32>
    %cst_245 = arith.constant 3.200000e+01 : f32
    %578 = vector.broadcast %cst_245 : f32 to vector<1x1xf32>
    %579 = arith.divf %577, %578 : vector<1x1xf32>
    %580 = vector.broadcast %579 : vector<1x1xf32> to vector<1x32xf32>
    %581 = arith.subf %573, %580 : vector<1x32xf32>
    %582 = arith.mulf %581, %581 : vector<1x32xf32>
    %cst_246 = arith.constant dense<0.000000e+00> : vector<1xf32>
    %583 = vector.multi_reduction <add>, %582, %cst_246 [1] : vector<1x32xf32> to vector<1xf32>
    %584 = vector.shape_cast %583 : vector<1xf32> to vector<1x1xf32>
    %cst_247 = arith.constant 3.200000e+01 : f32
    %585 = vector.broadcast %cst_247 : f32 to vector<1x1xf32>
    %586 = arith.divf %584, %585 : vector<1x1xf32>
    %587 = vector.broadcast %579 : vector<1x1xf32> to vector<1x32xf32>
    %588 = arith.subf %573, %587 : vector<1x32xf32>
    %cst_248 = arith.constant 9.99999997E-7 : f32
    %589 = vector.broadcast %cst_248 : f32 to vector<1x1xf32>
    %590 = arith.addf %586, %589 : vector<1x1xf32>
    %591 = math.rsqrt %590 : vector<1x1xf32>
    %592 = vector.broadcast %591 : vector<1x1xf32> to vector<1x32xf32>
    %593 = arith.mulf %588, %592 : vector<1x32xf32>
    %594 = arith.mulf %593, %574 : vector<1x32xf32>
    %595 = arith.addf %594, %575 : vector<1x32xf32>
    %c0_249 = arith.constant 0 : index
    %c0_250 = arith.constant 0 : index
    %596 = vector.load %arg36[%c0_249, %c0_250] : memref<32x64xbf16, #tpu.memory_space<vmem>>, vector<32x64xbf16>
    %597 = arith.truncf %595 : vector<1x32xf32> to vector<1x32xbf16>
    %cst_251 = arith.constant dense<0.000000e+00> : vector<1x64xf32>
    %598 = tpu.matmul %597, %596, %cst_251 {dimension_numbers = #tpu.dot_dimension_numbers<[1], [0], [0], [1], [0, 0, 1, 1], [], []>} : vector<1x32xbf16>, vector<32x64xbf16>, vector<1x64xf32> -> vector<1x64xf32>
    %cst_252 = arith.constant dense<0xFF800000> : vector<1xf32>
    %599 = vector.multi_reduction <maximumf>, %598, %cst_252 [1] : vector<1x64xf32> to vector<1xf32>
    %600 = vector.shape_cast %599 : vector<1xf32> to vector<1x1xf32>
    %601 = vector.broadcast %600 : vector<1x1xf32> to vector<1x64xf32>
    %602 = arith.cmpf oeq, %598, %601 : vector<1x64xf32>
    %c64_i32_253 = arith.constant 64 : i32
    %603 = vector.broadcast %c64_i32_253 : i32 to vector<1x64xi32>
    %604 = arith.select %602, %309, %603 : vector<1x64xi1>, vector<1x64xi32>
    %cst_254 = arith.constant dense<2147483647> : vector<1xi32>
    %605 = vector.multi_reduction <minsi>, %604, %cst_254 [1] : vector<1x64xi32> to vector<1xi32>
    %606 = vector.shape_cast %605 : vector<1xi32> to vector<1x1xi32>
    %c2_i32 = arith.constant 2 : i32
    %607 = vector.broadcast %c2_i32 : i32 to vector<1x3xi32>
    %608 = arith.cmpi eq, %310, %607 : vector<1x3xi32>
    %609 = vector.shape_cast %606 : vector<1x1xi32> to vector<1x1xi32>
    %610 = vector.broadcast %609 : vector<1x1xi32> to vector<1x3xi32>
    %611 = arith.select %608, %610, %515 : vector<1x3xi1>, vector<1x3xi32>
    %c0_255 = arith.constant 0 : index
    %c0_256 = arith.constant 0 : index
    %c0_257 = arith.constant 0 : index
    %612 = vector.load %arg45[%c0_255, %c0_256, %c0_257] : memref<1x1x3xi32, #tpu.memory_space<vmem>>, vector<1x1x3xi32>
    %613 = vector.shape_cast %612 : vector<1x1x3xi32> to vector<1x3xi32>
    %614 = vector.shape_cast %611 : vector<1x3xi32> to vector<1x1x3xi32>
    tpu.vector_store %arg45[%c0_255, %c0_256, %c0_257], %614 {strides = array<i32>} : memref<1x1x3xi32, #tpu.memory_space<vmem>>, vector<1x1x3xi32>,
    return
  }
  func.func @transform_0(%arg0: i32) -> (i32, i32, i32) {
    %c0_i32 = arith.constant 0 : i32
    %c0_i32_0 = arith.constant 0 : i32
    %c0_i32_1 = arith.constant 0 : i32
    return %arg0, %c0_i32, %c0_i32_0 : i32, i32, i32
  }
  func.func @transform_1(%arg0: i32) -> (i32, i32, i32) {
    %c0_i32 = arith.constant 0 : i32
    %c0_i32_0 = arith.constant 0 : i32
    %c0_i32_1 = arith.constant 0 : i32
    return %arg0, %c0_i32, %c0_i32_0 : i32, i32, i32
  }
  func.func @transform_2(%arg0: i32) -> (i32, i32) {
    %c0_i32 = arith.constant 0 : i32
    %c0_i32_0 = arith.constant 0 : i32
    %c0_i32_1 = arith.constant 0 : i32
    return %c0_i32, %c0_i32_0 : i32, i32
  }
  func.func @transform_3(%arg0: i32) -> (i32, i32) {
    %c0_i32 = arith.constant 0 : i32
    %c0_i32_0 = arith.constant 0 : i32
    %c0_i32_1 = arith.constant 0 : i32
    return %c0_i32, %c0_i32_0 : i32, i32
  }
  func.func @transform_4(%arg0: i32) -> (i32, i32) {
    %c0_i32 = arith.constant 0 : i32
    %c0_i32_0 = arith.constant 0 : i32
    %c0_i32_1 = arith.constant 0 : i32
    return %c0_i32, %c0_i32_0 : i32, i32
  }
  func.func @transform_5(%arg0: i32) -> (i32, i32) {
    %c0_i32 = arith.constant 0 : i32
    %c0_i32_0 = arith.constant 0 : i32
    %c0_i32_1 = arith.constant 0 : i32
    return %c0_i32, %c0_i32_0 : i32, i32
  }
  func.func @transform_6(%arg0: i32) -> (i32, i32) {
    %c0_i32 = arith.constant 0 : i32
    %c0_i32_0 = arith.constant 0 : i32
    %c0_i32_1 = arith.constant 0 : i32
    return %c0_i32, %c0_i32_0 : i32, i32
  }
  func.func @transform_7(%arg0: i32) -> (i32, i32) {
    %c0_i32 = arith.constant 0 : i32
    %c0_i32_0 = arith.constant 0 : i32
    %c0_i32_1 = arith.constant 0 : i32
    return %c0_i32, %c0_i32_0 : i32, i32
  }
  func.func @transform_8(%arg0: i32) -> (i32, i32) {
    %c0_i32 = arith.constant 0 : i32
    %c0_i32_0 = arith.constant 0 : i32
    %c0_i32_1 = arith.constant 0 : i32
    return %c0_i32, %c0_i32_0 : i32, i32
  }
  func.func @transform_9(%arg0: i32) -> (i32, i32) {
    %c0_i32 = arith.constant 0 : i32
    %c0_i32_0 = arith.constant 0 : i32
    %c0_i32_1 = arith.constant 0 : i32
    return %c0_i32, %c0_i32_0 : i32, i32
  }
  func.func @transform_10(%arg0: i32) -> (i32, i32) {
    %c0_i32 = arith.constant 0 : i32
    %c0_i32_0 = arith.constant 0 : i32
    %c0_i32_1 = arith.constant 0 : i32
    return %c0_i32, %c0_i32_0 : i32, i32
  }
  func.func @transform_11(%arg0: i32) -> (i32, i32) {
    %c0_i32 = arith.constant 0 : i32
    %c0_i32_0 = arith.constant 0 : i32
    %c0_i32_1 = arith.constant 0 : i32
    return %c0_i32, %c0_i32_0 : i32, i32
  }
  func.func @transform_12(%arg0: i32) -> (i32, i32) {
    %c0_i32 = arith.constant 0 : i32
    %c0_i32_0 = arith.constant 0 : i32
    %c0_i32_1 = arith.constant 0 : i32
    return %c0_i32, %c0_i32_0 : i32, i32
  }
  func.func @transform_13(%arg0: i32) -> (i32, i32) {
    %c0_i32 = arith.constant 0 : i32
    %c0_i32_0 = arith.constant 0 : i32
    %c0_i32_1 = arith.constant 0 : i32
    return %c0_i32, %c0_i32_0 : i32, i32
  }
  func.func @transform_14(%arg0: i32) -> (i32, i32) {
    %c0_i32 = arith.constant 0 : i32
    %c0_i32_0 = arith.constant 0 : i32
    %c0_i32_1 = arith.constant 0 : i32
    return %c0_i32, %c0_i32_0 : i32, i32
  }
  func.func @transform_15(%arg0: i32) -> (i32, i32) {
    %c0_i32 = arith.constant 0 : i32
    %c0_i32_0 = arith.constant 0 : i32
    %c0_i32_1 = arith.constant 0 : i32
    return %c0_i32, %c0_i32_0 : i32, i32
  }
  func.func @transform_16(%arg0: i32) -> (i32, i32) {
    %c0_i32 = arith.constant 0 : i32
    %c0_i32_0 = arith.constant 0 : i32
    %c0_i32_1 = arith.constant 0 : i32
    return %c0_i32, %c0_i32_0 : i32, i32
  }
  func.func @transform_17(%arg0: i32) -> (i32, i32) {
    %c0_i32 = arith.constant 0 : i32
    %c0_i32_0 = arith.constant 0 : i32
    %c0_i32_1 = arith.constant 0 : i32
    return %c0_i32, %c0_i32_0 : i32, i32
  }
  func.func @transform_18(%arg0: i32) -> (i32, i32) {
    %c0_i32 = arith.constant 0 : i32
    %c0_i32_0 = arith.constant 0 : i32
    %c0_i32_1 = arith.constant 0 : i32
    return %c0_i32, %c0_i32_0 : i32, i32
  }
  func.func @transform_19(%arg0: i32) -> (i32, i32) {
    %c0_i32 = arith.constant 0 : i32
    %c0_i32_0 = arith.constant 0 : i32
    %c0_i32_1 = arith.constant 0 : i32
    return %c0_i32, %c0_i32_0 : i32, i32
  }
  func.func @transform_20(%arg0: i32) -> (i32, i32) {
    %c0_i32 = arith.constant 0 : i32
    %c0_i32_0 = arith.constant 0 : i32
    %c0_i32_1 = arith.constant 0 : i32
    return %c0_i32, %c0_i32_0 : i32, i32
  }
  func.func @transform_21(%arg0: i32) -> (i32, i32) {
    %c0_i32 = arith.constant 0 : i32
    %c0_i32_0 = arith.constant 0 : i32
    %c0_i32_1 = arith.constant 0 : i32
    return %c0_i32, %c0_i32_0 : i32, i32
  }
  func.func @transform_22(%arg0: i32) -> (i32, i32) {
    %c0_i32 = arith.constant 0 : i32
    %c0_i32_0 = arith.constant 0 : i32
    %c0_i32_1 = arith.constant 0 : i32
    return %c0_i32, %c0_i32_0 : i32, i32
  }
  func.func @transform_23(%arg0: i32) -> (i32, i32) {
    %c0_i32 = arith.constant 0 : i32
    %c0_i32_0 = arith.constant 0 : i32
    %c0_i32_1 = arith.constant 0 : i32
    return %c0_i32, %c0_i32_0 : i32, i32
  }
  func.func @transform_24(%arg0: i32) -> (i32, i32) {
    %c0_i32 = arith.constant 0 : i32
    %c0_i32_0 = arith.constant 0 : i32
    %c0_i32_1 = arith.constant 0 : i32
    return %c0_i32, %c0_i32_0 : i32, i32
  }
  func.func @transform_25(%arg0: i32) -> (i32, i32) {
    %c0_i32 = arith.constant 0 : i32
    %c0_i32_0 = arith.constant 0 : i32
    %c0_i32_1 = arith.constant 0 : i32
    return %c0_i32, %c0_i32_0 : i32, i32
  }
  func.func @transform_26(%arg0: i32) -> (i32, i32) {
    %c0_i32 = arith.constant 0 : i32
    %c0_i32_0 = arith.constant 0 : i32
    %c0_i32_1 = arith.constant 0 : i32
    return %c0_i32, %c0_i32_0 : i32, i32
  }
  func.func @transform_27(%arg0: i32) -> (i32, i32) {
    %c0_i32 = arith.constant 0 : i32
    %c0_i32_0 = arith.constant 0 : i32
    %c0_i32_1 = arith.constant 0 : i32
    return %c0_i32, %c0_i32_0 : i32, i32
  }
  func.func @transform_28(%arg0: i32) -> (i32, i32) {
    %c0_i32 = arith.constant 0 : i32
    %c0_i32_0 = arith.constant 0 : i32
    %c0_i32_1 = arith.constant 0 : i32
    return %c0_i32, %c0_i32_0 : i32, i32
  }
  func.func @transform_29(%arg0: i32) -> (i32, i32) {
    %c0_i32 = arith.constant 0 : i32
    %c0_i32_0 = arith.constant 0 : i32
    %c0_i32_1 = arith.constant 0 : i32
    return %c0_i32, %c0_i32_0 : i32, i32
  }
  func.func @transform_30(%arg0: i32) -> (i32, i32) {
    %c0_i32 = arith.constant 0 : i32
    %c0_i32_0 = arith.constant 0 : i32
    %c0_i32_1 = arith.constant 0 : i32
    return %c0_i32, %c0_i32_0 : i32, i32
  }
  func.func @transform_31(%arg0: i32) -> (i32, i32) {
    %c0_i32 = arith.constant 0 : i32
    %c0_i32_0 = arith.constant 0 : i32
    %c0_i32_1 = arith.constant 0 : i32
    return %c0_i32, %c0_i32_0 : i32, i32
  }
  func.func @transform_32(%arg0: i32) -> (i32, i32) {
    %c0_i32 = arith.constant 0 : i32
    %c0_i32_0 = arith.constant 0 : i32
    %c0_i32_1 = arith.constant 0 : i32
    return %c0_i32, %c0_i32_0 : i32, i32
  }
  func.func @transform_33(%arg0: i32) -> (i32, i32) {
    %c0_i32 = arith.constant 0 : i32
    %c0_i32_0 = arith.constant 0 : i32
    %c0_i32_1 = arith.constant 0 : i32
    return %c0_i32, %c0_i32_0 : i32, i32
  }
  func.func @transform_34(%arg0: i32) -> (i32, i32) {
    %c0_i32 = arith.constant 0 : i32
    %c0_i32_0 = arith.constant 0 : i32
    %c0_i32_1 = arith.constant 0 : i32
    return %c0_i32, %c0_i32_0 : i32, i32
  }
  func.func @transform_35(%arg0: i32) -> (i32, i32) {
    %c0_i32 = arith.constant 0 : i32
    %c0_i32_0 = arith.constant 0 : i32
    %c0_i32_1 = arith.constant 0 : i32
    return %c0_i32, %c0_i32_0 : i32, i32
  }
  func.func @transform_36(%arg0: i32) -> (i32, i32) {
    %c0_i32 = arith.constant 0 : i32
    %c0_i32_0 = arith.constant 0 : i32
    %c0_i32_1 = arith.constant 0 : i32
    return %c0_i32, %c0_i32_0 : i32, i32
  }
  func.func @transform_37(%arg0: i32) -> (i32, i32) {
    %c0_i32 = arith.constant 0 : i32
    %c0_i32_0 = arith.constant 0 : i32
    %c0_i32_1 = arith.constant 0 : i32
    return %c0_i32, %c0_i32_0 : i32, i32
  }
  func.func @transform_38(%arg0: i32) -> (i32, i32) {
    %c0_i32 = arith.constant 0 : i32
    %c0_i32_0 = arith.constant 0 : i32
    %c0_i32_1 = arith.constant 0 : i32
    return %c0_i32, %c0_i32_0 : i32, i32
  }
  func.func @transform_39(%arg0: i32) -> (i32, i32) {
    %c0_i32 = arith.constant 0 : i32
    %c0_i32_0 = arith.constant 0 : i32
    %c0_i32_1 = arith.constant 0 : i32
    return %c0_i32, %c0_i32_0 : i32, i32
  }
  func.func @transform_40(%arg0: i32) -> (i32, i32) {
    %c0_i32 = arith.constant 0 : i32
    %c0_i32_0 = arith.constant 0 : i32
    %c0_i32_1 = arith.constant 0 : i32
    return %c0_i32, %c0_i32_0 : i32, i32
  }
  func.func @transform_41(%arg0: i32) -> (i32, i32) {
    %c0_i32 = arith.constant 0 : i32
    %c0_i32_0 = arith.constant 0 : i32
    %c0_i32_1 = arith.constant 0 : i32
    return %c0_i32, %c0_i32_0 : i32, i32
  }
  func.func @transform_42(%arg0: i32) -> (i32, i32) {
    %c0_i32 = arith.constant 0 : i32
    %c0_i32_0 = arith.constant 0 : i32
    %c0_i32_1 = arith.constant 0 : i32
    return %c0_i32, %c0_i32_0 : i32, i32
  }
  func.func @transform_43(%arg0: i32) -> (i32, i32) {
    %c0_i32 = arith.constant 0 : i32
    %c0_i32_0 = arith.constant 0 : i32
    %c0_i32_1 = arith.constant 0 : i32
    return %c0_i32, %c0_i32_0 : i32, i32
  }
  func.func @transform_44(%arg0: i32) -> (i32, i32, i32) {
    %c0_i32 = arith.constant 0 : i32
    %c0_i32_0 = arith.constant 0 : i32
    %c0_i32_1 = arith.constant 0 : i32
    return %arg0, %c0_i32, %c0_i32_0 : i32, i32, i32
  }
}

</mosaic_0001>

<llo_original>
// kernel: flan_super_xl_vqa_forward.1
$region0: #{flan_super_xl_vqa_forward.1}
  #allocation0 [shape = 'u32[]', space=smem, size = 0x4, offset = 0x4, fixed_abs, tag = 'smem constant byte address 0x4 - core index']
  #allocation1 [shape = 'u32[144,128]{1,0:T(1,128)}', space=vmem, size = 0x12000, scoped, tag = 'internal scratch']
  %s0 = inlined_call_operand.smem [shape: u32[45], index: -1, kind: input, shape index: {}]
  %s1 = sld [smem:[%s0]]
  %s2 = scalar_lea.smem %s0, 1
  %s3 = sld [smem:[%s2]]
  %s4 = scalar_lea.smem %s0, 2
  %s5 = sld [smem:[%s4]]
  %s6 = scalar_lea.smem %s0, 3
  %s7 = sld [smem:[%s6]]
  %s8 = scalar_lea.smem %s0, 4
  %s9 = sld [smem:[%s8]]
  %s10 = scalar_lea.smem %s0, 5
  %s11 = sld [smem:[%s10]]
  %s12 = scalar_lea.smem %s0, 6
  %s13 = sld [smem:[%s12]]
  %s14 = scalar_lea.smem %s0, 7
  %s15 = sld [smem:[%s14]]
  %s16 = scalar_lea.smem %s0, 8
  %s17 = sld [smem:[%s16]]
  %s18 = scalar_lea.smem %s0, 9
  %s19 = sld [smem:[%s18]]
  %s20 = scalar_lea.smem %s0, 10
  %s21 = sld [smem:[%s20]]
  %s22 = scalar_lea.smem %s0, 11
  %s23 = sld [smem:[%s22]]
  %s24 = scalar_lea.smem %s0, 12
  %s25 = sld [smem:[%s24]]
  %s26 = scalar_lea.smem %s0, 13
  %s27 = sld [smem:[%s26]]
  %s28 = scalar_lea.smem %s0, 14
  %s29 = sld [smem:[%s28]]
  %s30 = scalar_lea.smem %s0, 15
  %s31 = sld [smem:[%s30]]
  %s32 = scalar_lea.smem %s0, 16
  %s33 = sld [smem:[%s32]]
  %s34 = scalar_lea.smem %s0, 17
  %s35 = sld [smem:[%s34]]
  %s36 = scalar_lea.smem %s0, 18
  %s37 = sld [smem:[%s36]]
  %s38 = scalar_lea.smem %s0, 19
  %s39 = sld [smem:[%s38]]
  %s40 = scalar_lea.smem %s0, 20
  %s41 = sld [smem:[%s40]]
  %s42 = scalar_lea.smem %s0, 21
  %s43 = sld [smem:[%s42]]
  %s44 = scalar_lea.smem %s0, 22
  %s45 = sld [smem:[%s44]]
  %s46 = scalar_lea.smem %s0, 23
  %s47 = sld [smem:[%s46]]
  %s48 = scalar_lea.smem %s0, 24
  %s49 = sld [smem:[%s48]]
  %s50 = scalar_lea.smem %s0, 25
  %s51 = sld [smem:[%s50]]
  %s52 = scalar_lea.smem %s0, 26
  %s53 = sld [smem:[%s52]]
  %s54 = scalar_lea.smem %s0, 27
  %s55 = sld [smem:[%s54]]
  %s56 = scalar_lea.smem %s0, 28
  %s57 = sld [smem:[%s56]]
  %s58 = scalar_lea.smem %s0, 29
  %s59 = sld [smem:[%s58]]
  %s60 = scalar_lea.smem %s0, 30
  %s61 = sld [smem:[%s60]]
  %s62 = scalar_lea.smem %s0, 31
  %s63 = sld [smem:[%s62]]
  %s64 = scalar_lea.smem %s0, 32
  %s65 = sld [smem:[%s64]]
  %s66 = scalar_lea.smem %s0, 33
  %s67 = sld [smem:[%s66]]
  %s68 = scalar_lea.smem %s0, 34
  %s69 = sld [smem:[%s68]]
  %s70 = scalar_lea.smem %s0, 35
  %s71 = sld [smem:[%s70]]
  %s72 = scalar_lea.smem %s0, 36
  %s73 = sld [smem:[%s72]]
  %s74 = scalar_lea.smem %s0, 37
  %s75 = sld [smem:[%s74]]
  %s76 = scalar_lea.smem %s0, 38
  %s77 = sld [smem:[%s76]]
  %s78 = scalar_lea.smem %s0, 39
  %s79 = sld [smem:[%s78]]
  %s80 = scalar_lea.smem %s0, 40
  %s81 = sld [smem:[%s80]]
  %s82 = scalar_lea.smem %s0, 41
  %s83 = sld [smem:[%s82]]
  %s84 = scalar_lea.smem %s0, 42
  %s85 = sld [smem:[%s84]]
  %s86 = scalar_lea.smem %s0, 43
  %s87 = sld [smem:[%s86]]
  %s88 = scalar_lea.smem %s0, 44
  %s89 = sld [smem:[%s88]]
  %s90 = sld [smem:[#allocation0]]
  $region221: #{flan_super_xl_vqa_forward.1} parent=0
    _
  %s92 = ssub.s32 1, %s90
  %s93 = scalar_select 0, %s92, %s90
  $region1: #{flan_super_xl_vqa_forward.1} parent=0
    #allocation2 [shape = 'u8[512]{0}', space=vmem, size = 0x400, scoped, tag = 'input window, operand 41, single buffered']
    #allocation3 [shape = 's32[2]{0}', space=sflag, size = 0x8, scoped, tag = 'scoped memory for flan_super_xl_vqa_forward.1']
    #allocation4 [shape = 's32[2]{0}', space=sflag, size = 0x8, scoped, tag = 'scoped memory for flan_super_xl_vqa_forward.1']
    #allocation5 [shape = 'u8[512]{0}', space=vmem, size = 0x400, scoped, tag = 'input window, operand 42, single buffered']
    #allocation6 [shape = 's32[1]{0}', space=sflag, size = 0x4, scoped, tag = 'scoped memory for flan_super_xl_vqa_forward.1']
    #allocation7 [shape = 'u8[512]{0}', space=vmem, size = 0x400, scoped, tag = 'input window, operand 43, single buffered']
    #allocation8 [shape = 'u8[1024]{0}', space=vmem, size = 0x400, scoped, tag = 'output window, operand 0']
    %94 = vsyncpa [#allocation3], 0
    %95 = vsyncpa [#allocation6], 0
    %96 = vsyncpa [#allocation4], 0
    %s97 = scalar_lea.sflag [#allocation4], 1
    %98 = vsyncpa %s97, 0
    loop: start=0, step=1, limit=4
    $region2: #{flan_super_xl_vqa_forward.1} parent=1 // loop_pre_header
      _
    $region3: #{flan_super_xl_vqa_forward.1} parent=1 // loop_header
      %s100 = sphi 0, %s104
      %p101 = scmp.ge.s32.totalorder %s100, 4
      %s110 = sphi 0, %s112
      %s113 = sphi 0, %s110
      %s114 = sphi 0, %s113
      %s130 = sphi 0, %s114
      %s136 = sphi 0, %s138
      %s139 = sphi 0, %s136
      %s140 = sphi 0, %s139
      %s156 = sphi 0, %s140
      %s160 = sphi 0, %s160
      %s162 = sphi 0, %s160
      %s163 = sphi 0, %s162
      %s177 = sphi 0, %s163
      %s181 = sphi 0, %s181
      %s183 = sphi 0, %s181
      %s184 = sphi 0, %s183
      %s198 = sphi 0, %s184
      %s202 = sphi 0, %s202
      %s204 = sphi 0, %s202
      %s205 = sphi 0, %s204
      %s219 = sphi 0, %s205
      %s223 = sphi 0, %s223
      %s225 = sphi 0, %s223
      %s226 = sphi 0, %s225
      %s240 = sphi 0, %s226
      %s244 = sphi 0, %s244
      %s246 = sphi 0, %s244
      %s247 = sphi 0, %s246
      %s261 = sphi 0, %s247
      %s265 = sphi 0, %s265
      %s267 = sphi 0, %s265
      %s268 = sphi 0, %s267
      %s282 = sphi 0, %s268
      %s286 = sphi 0, %s286
      %s288 = sphi 0, %s286
      %s289 = sphi 0, %s288
      %s303 = sphi 0, %s289
      %s307 = sphi 0, %s307
      %s309 = sphi 0, %s307
      %s310 = sphi 0, %s309
      %s324 = sphi 0, %s310
      %s328 = sphi 0, %s328
      %s330 = sphi 0, %s328
      %s331 = sphi 0, %s330
      %s345 = sphi 0, %s331
      %s349 = sphi 0, %s349
      %s351 = sphi 0, %s349
      %s352 = sphi 0, %s351
      %s366 = sphi 0, %s352
      %s370 = sphi 0, %s370
      %s372 = sphi 0, %s370
      %s373 = sphi 0, %s372
      %s387 = sphi 0, %s373
      %s391 = sphi 0, %s391
      %s393 = sphi 0, %s391
      %s394 = sphi 0, %s393
      %s408 = sphi 0, %s394
      %s412 = sphi 0, %s412
      %s414 = sphi 0, %s412
      %s415 = sphi 0, %s414
      %s429 = sphi 0, %s415
      %s433 = sphi 0, %s433
      %s435 = sphi 0, %s433
      %s436 = sphi 0, %s435
      %s450 = sphi 0, %s436
      %s454 = sphi 0, %s454
      %s456 = sphi 0, %s454
      %s457 = sphi 0, %s456
      %s471 = sphi 0, %s457
      %s475 = sphi 0, %s475
      %s477 = sphi 0, %s475
      %s478 = sphi 0, %s477
      %s492 = sphi 0, %s478
      %s496 = sphi 0, %s496
      %s498 = sphi 0, %s496
      %s499 = sphi 0, %s498
      %s513 = sphi 0, %s499
      %s517 = sphi 0, %s517
      %s519 = sphi 0, %s517
      %s520 = sphi 0, %s519
      %s534 = sphi 0, %s520
      %s538 = sphi 0, %s538
      %s540 = sphi 0, %s538
      %s541 = sphi 0, %s540
      %s555 = sphi 0, %s541
      %s559 = sphi 0, %s559
      %s561 = sphi 0, %s559
      %s562 = sphi 0, %s561
      %s576 = sphi 0, %s562
      %s580 = sphi 0, %s580
      %s582 = sphi 0, %s580
      %s583 = sphi 0, %s582
      %s597 = sphi 0, %s583
      %s601 = sphi 0, %s601
      %s603 = sphi 0, %s601
      %s604 = sphi 0, %s603
      %s618 = sphi 0, %s604
      %s622 = sphi 0, %s622
      %s624 = sphi 0, %s622
      %s625 = sphi 0, %s624
      %s639 = sphi 0, %s625
      %s643 = sphi 0, %s643
      %s645 = sphi 0, %s643
      %s646 = sphi 0, %s645
      %s660 = sphi 0, %s646
      %s664 = sphi 0, %s664
      %s666 = sphi 0, %s664
      %s667 = sphi 0, %s666
      %s681 = sphi 0, %s667
      %s685 = sphi 0, %s685
      %s687 = sphi 0, %s685
      %s688 = sphi 0, %s687
      %s702 = sphi 0, %s688
      %s706 = sphi 0, %s706
      %s708 = sphi 0, %s706
      %s709 = sphi 0, %s708
      %s723 = sphi 0, %s709
      %s727 = sphi 0, %s727
      %s729 = sphi 0, %s727
      %s730 = sphi 0, %s729
      %s744 = sphi 0, %s730
      %s748 = sphi 0, %s748
      %s750 = sphi 0, %s748
      %s751 = sphi 0, %s750
      %s765 = sphi 0, %s751
      %s769 = sphi 0, %s769
      %s771 = sphi 0, %s769
      %s772 = sphi 0, %s771
      %s786 = sphi 0, %s772
      %s790 = sphi 0, %s790
      %s792 = sphi 0, %s790
      %s793 = sphi 0, %s792
      %s807 = sphi 0, %s793
      %s811 = sphi 0, %s811
      %s813 = sphi 0, %s811
      %s814 = sphi 0, %s813
      %s828 = sphi 0, %s814
      %s832 = sphi 0, %s832
      %s834 = sphi 0, %s832
      %s835 = sphi 0, %s834
      %s849 = sphi 0, %s835
      %s853 = sphi 0, %s853
      %s855 = sphi 0, %s853
      %s856 = sphi 0, %s855
      %s870 = sphi 0, %s856
      %s874 = sphi 0, %s874
      %s876 = sphi 0, %s874
      %s877 = sphi 0, %s876
      %s891 = sphi 0, %s877
      %s895 = sphi 0, %s895
      %s897 = sphi 0, %s895
      %s898 = sphi 0, %s897
      %s912 = sphi 0, %s898
      %s916 = sphi 0, %s916
      %s918 = sphi 0, %s916
      %s919 = sphi 0, %s918
      %s933 = sphi 0, %s919
      %s937 = sphi 0, %s937
      %s939 = sphi 0, %s937
      %s940 = sphi 0, %s939
      %s954 = sphi 0, %s940
      %s958 = sphi 0, %s958
      %s960 = sphi 0, %s958
      %s961 = sphi 0, %s960
      %s975 = sphi 0, %s961
      %s979 = sphi 0, %s979
      %s981 = sphi 0, %s979
      %s982 = sphi 0, %s981
      %s996 = sphi 0, %s982
      %s1000 = sphi 0, %s1000
      %s1002 = sphi 0, %s1000
      %s1003 = sphi 0, %s1002
      %s1017 = sphi 0, %s1003
      %s1021 = sphi 0, %s1021
      %s1023 = sphi 0, %s1021
      %s1024 = sphi 0, %s1023
      %s1038 = sphi 0, %s1024
      %s1044 = sphi 0, %s1046
      %s1047 = sphi 0, %s1044
      %s1048 = sphi 0, %s1047
      %s1064 = sphi 0, %s1048
    $region4: #{flan_super_xl_vqa_forward.1} parent=1 // loop_header_branch
      %103 = sbr.rel (%p101) target = $region8
    $region5: #{flan_super_xl_vqa_forward.1} parent=1 // loop_body
      %s105 = ssub.s32 %s100, 1
      %s106 = ssub.s32 %s100, 2
      %s107 = sadd.s32 %s100, 1
      %s108 = ssub.s32 %s100, %s107
      %p109 = scmp.eq.s32.totalorder %s108, 0
      %s111 = sadd.s32 %s110, 1
      %s112 = scalar_select %p109, %s110, %s111
      %p115 = pneg %p109
      %p116 = scmp.eq.s32.totalorder %s100, 1
      %p117 = por %p115, %p116
      %p118 = scmp.ne.s32.totalorder %s110, %s113
      %p119 = scmp.eq.s32.totalorder %s100, 0
      %p120 = por %p118, %p119
      %p121 = scmp.ne.s32.totalorder %s110, %s113
      %p122 = scmp.eq.s32.totalorder %s105, 1
      %p123 = por %p121, %p122
      %p124 = scmp.ne.s32.totalorder %s113, %s114
      %p125 = scmp.eq.s32.totalorder %s105, 0
      %p126 = por %p124, %p125
      %p127 = scmp.ne.s32.totalorder %s113, %s114
      %p128 = scmp.eq.s32.totalorder %s106, 1
      %p129 = por %p127, %p128
      %p131 = scmp.ne.s32.totalorder %s114, %s130
      %p132 = scmp.eq.s32.totalorder %s106, 0
      %p133 = por %p131, %p132
      %s134 = ssub.s32 %s100, %s107
      %p135 = scmp.eq.s32.totalorder %s134, 0
      %s137 = sadd.s32 %s136, 1
      %s138 = scalar_select %p135, %s136, %s137
      %p141 = pneg %p135
      %p142 = scmp.eq.s32.totalorder %s100, 1
      %p143 = por %p141, %p142
      %p144 = scmp.ne.s32.totalorder %s136, %s139
      %p145 = scmp.eq.s32.totalorder %s100, 0
      %p146 = por %p144, %p145
      %p147 = scmp.ne.s32.totalorder %s136, %s139
      %p148 = scmp.eq.s32.totalorder %s105, 1
      %p149 = por %p147, %p148
      %p150 = scmp.ne.s32.totalorder %s139, %s140
      %p151 = scmp.eq.s32.totalorder %s105, 0
      %p152 = por %p150, %p151
      %p153 = scmp.ne.s32.totalorder %s139, %s140
      %p154 = scmp.eq.s32.totalorder %s106, 1
      %p155 = por %p153, %p154
      %p157 = scmp.ne.s32.totalorder %s140, %s156
      %p158 = scmp.eq.s32.totalorder %s106, 0
      %p159 = por %p157, %p158
      %s161 = sadd.s32 %s160, 1
      %p164 = scmp.eq.s32.totalorder %s100, 1
      %p165 = scmp.ne.s32.totalorder %s160, %s162
      %p166 = scmp.eq.s32.totalorder %s100, 0
      %p167 = por %p165, %p166
      %p168 = scmp.ne.s32.totalorder %s160, %s162
      %p169 = scmp.eq.s32.totalorder %s105, 1
      %p170 = por %p168, %p169
      %p171 = scmp.ne.s32.totalorder %s162, %s163
      %p172 = scmp.eq.s32.totalorder %s105, 0
      %p173 = por %p171, %p172
      %p174 = scmp.ne.s32.totalorder %s162, %s163
      %p175 = scmp.eq.s32.totalorder %s106, 1
      %p176 = por %p174, %p175
      %p178 = scmp.ne.s32.totalorder %s163, %s177
      %p179 = scmp.eq.s32.totalorder %s106, 0
      %p180 = por %p178, %p179
      %s182 = sadd.s32 %s181, 1
      %p185 = scmp.eq.s32.totalorder %s100, 1
      %p186 = scmp.ne.s32.totalorder %s181, %s183
      %p187 = scmp.eq.s32.totalorder %s100, 0
      %p188 = por %p186, %p187
      %p189 = scmp.ne.s32.totalorder %s181, %s183
      %p190 = scmp.eq.s32.totalorder %s105, 1
      %p191 = por %p189, %p190
      %p192 = scmp.ne.s32.totalorder %s183, %s184
      %p193 = scmp.eq.s32.totalorder %s105, 0
      %p194 = por %p192, %p193
      %p195 = scmp.ne.s32.totalorder %s183, %s184
      %p196 = scmp.eq.s32.totalorder %s106, 1
      %p197 = por %p195, %p196
      %p199 = scmp.ne.s32.totalorder %s184, %s198
      %p200 = scmp.eq.s32.totalorder %s106, 0
      %p201 = por %p199, %p200
      %s203 = sadd.s32 %s202, 1
      %p206 = scmp.eq.s32.totalorder %s100, 1
      %p207 = scmp.ne.s32.totalorder %s202, %s204
      %p208 = scmp.eq.s32.totalorder %s100, 0
      %p209 = por %p207, %p208
      %p210 = scmp.ne.s32.totalorder %s202, %s204
      %p211 = scmp.eq.s32.totalorder %s105, 1
      %p212 = por %p210, %p211
      %p213 = scmp.ne.s32.totalorder %s204, %s205
      %p214 = scmp.eq.s32.totalorder %s105, 0
      %p215 = por %p213, %p214
      %p216 = scmp.ne.s32.totalorder %s204, %s205
      %p217 = scmp.eq.s32.totalorder %s106, 1
      %p218 = por %p216, %p217
      %p220 = scmp.ne.s32.totalorder %s205, %s219
      %p221 = scmp.eq.s32.totalorder %s106, 0
      %p222 = por %p220, %p221
      %s224 = sadd.s32 %s223, 1
      %p227 = scmp.eq.s32.totalorder %s100, 1
      %p228 = scmp.ne.s32.totalorder %s223, %s225
      %p229 = scmp.eq.s32.totalorder %s100, 0
      %p230 = por %p228, %p229
      %p231 = scmp.ne.s32.totalorder %s223, %s225
      %p232 = scmp.eq.s32.totalorder %s105, 1
      %p233 = por %p231, %p232
      %p234 = scmp.ne.s32.totalorder %s225, %s226
      %p235 = scmp.eq.s32.totalorder %s105, 0
      %p236 = por %p234, %p235
      %p237 = scmp.ne.s32.totalorder %s225, %s226
      %p238 = scmp.eq.s32.totalorder %s106, 1
      %p239 = por %p237, %p238
      %p241 = scmp.ne.s32.totalorder %s226, %s240
      %p242 = scmp.eq.s32.totalorder %s106, 0
      %p243 = por %p241, %p242
      %s245 = sadd.s32 %s244, 1
      %p248 = scmp.eq.s32.totalorder %s100, 1
      %p249 = scmp.ne.s32.totalorder %s244, %s246
      %p250 = scmp.eq.s32.totalorder %s100, 0
      %p251 = por %p249, %p250
      %p252 = scmp.ne.s32.totalorder %s244, %s246
      %p253 = scmp.eq.s32.totalorder %s105, 1
      %p254 = por %p252, %p253
      %p255 = scmp.ne.s32.totalorder %s246, %s247
      %p256 = scmp.eq.s32.totalorder %s105, 0
      %p257 = por %p255, %p256
      %p258 = scmp.ne.s32.totalorder %s246, %s247
      %p259 = scmp.eq.s32.totalorder %s106, 1
      %p260 = por %p258, %p259
      %p262 = scmp.ne.s32.totalorder %s247, %s261
      %p263 = scmp.eq.s32.totalorder %s106, 0
      %p264 = por %p262, %p263
      %s266 = sadd.s32 %s265, 1
      %p269 = scmp.eq.s32.totalorder %s100, 1
      %p270 = scmp.ne.s32.totalorder %s265, %s267
      %p271 = scmp.eq.s32.totalorder %s100, 0
      %p272 = por %p270, %p271
      %p273 = scmp.ne.s32.totalorder %s265, %s267
      %p274 = scmp.eq.s32.totalorder %s105, 1
      %p275 = por %p273, %p274
      %p276 = scmp.ne.s32.totalorder %s267, %s268
      %p277 = scmp.eq.s32.totalorder %s105, 0
      %p278 = por %p276, %p277
      %p279 = scmp.ne.s32.totalorder %s267, %s268
      %p280 = scmp.eq.s32.totalorder %s106, 1
      %p281 = por %p279, %p280
      %p283 = scmp.ne.s32.totalorder %s268, %s282
      %p284 = scmp.eq.s32.totalorder %s106, 0
      %p285 = por %p283, %p284
      %s287 = sadd.s32 %s286, 1
      %p290 = scmp.eq.s32.totalorder %s100, 1
      %p291 = scmp.ne.s32.totalorder %s286, %s288
      %p292 = scmp.eq.s32.totalorder %s100, 0
      %p293 = por %p291, %p292
      %p294 = scmp.ne.s32.totalorder %s286, %s288
      %p295 = scmp.eq.s32.totalorder %s105, 1
      %p296 = por %p294, %p295
      %p297 = scmp.ne.s32.totalorder %s288, %s289
      %p298 = scmp.eq.s32.totalorder %s105, 0
      %p299 = por %p297, %p298
      %p300 = scmp.ne.s32.totalorder %s288, %s289
      %p301 = scmp.eq.s32.totalorder %s106, 1
      %p302 = por %p300, %p301
      %p304 = scmp.ne.s32.totalorder %s289, %s303
      %p305 = scmp.eq.s32.totalorder %s106, 0
      %p306 = por %p304, %p305
      %s308 = sadd.s32 %s307, 1
      %p311 = scmp.eq.s32.totalorder %s100, 1
      %p312 = scmp.ne.s32.totalorder %s307, %s309
      %p313 = scmp.eq.s32.totalorder %s100, 0
      %p314 = por %p312, %p313
      %p315 = scmp.ne.s32.totalorder %s307, %s309
      %p316 = scmp.eq.s32.totalorder %s105, 1
      %p317 = por %p315, %p316
      %p318 = scmp.ne.s32.totalorder %s309, %s310
      %p319 = scmp.eq.s32.totalorder %s105, 0
      %p320 = por %p318, %p319
      %p321 = scmp.ne.s32.totalorder %s309, %s310
      %p322 = scmp.eq.s32.totalorder %s106, 1
      %p323 = por %p321, %p322
      %p325 = scmp.ne.s32.totalorder %s310, %s324
      %p326 = scmp.eq.s32.totalorder %s106, 0
      %p327 = por %p325, %p326
      %s329 = sadd.s32 %s328, 1
      %p332 = scmp.eq.s32.totalorder %s100, 1
      %p333 = scmp.ne.s32.totalorder %s328, %s330
      %p334 = scmp.eq.s32.totalorder %s100, 0
      %p335 = por %p333, %p334
      %p336 = scmp.ne.s32.totalorder %s328, %s330
      %p337 = scmp.eq.s32.totalorder %s105, 1
      %p338 = por %p336, %p337
      %p339 = scmp.ne.s32.totalorder %s330, %s331
      %p340 = scmp.eq.s32.totalorder %s105, 0
      %p341 = por %p339, %p340
      %p342 = scmp.ne.s32.totalorder %s330, %s331
      %p343 = scmp.eq.s32.totalorder %s106, 1
      %p344 = por %p342, %p343
      %p346 = scmp.ne.s32.totalorder %s331, %s345
      %p347 = scmp.eq.s32.totalorder %s106, 0
      %p348 = por %p346, %p347
      %s350 = sadd.s32 %s349, 1
      %p353 = scmp.eq.s32.totalorder %s100, 1
      %p354 = scmp.ne.s32.totalorder %s349, %s351
      %p355 = scmp.eq.s32.totalorder %s100, 0
      %p356 = por %p354, %p355
      %p357 = scmp.ne.s32.totalorder %s349, %s351
      %p358 = scmp.eq.s32.totalorder %s105, 1
      %p359 = por %p357, %p358
      %p360 = scmp.ne.s32.totalorder %s351, %s352
      %p361 = scmp.eq.s32.totalorder %s105, 0
      %p362 = por %p360, %p361
      %p363 = scmp.ne.s32.totalorder %s351, %s352
      %p364 = scmp.eq.s32.totalorder %s106, 1
      %p365 = por %p363, %p364
      %p367 = scmp.ne.s32.totalorder %s352, %s366
      %p368 = scmp.eq.s32.totalorder %s106, 0
      %p369 = por %p367, %p368
      %s371 = sadd.s32 %s370, 1
      %p374 = scmp.eq.s32.totalorder %s100, 1
      %p375 = scmp.ne.s32.totalorder %s370, %s372
      %p376 = scmp.eq.s32.totalorder %s100, 0
      %p377 = por %p375, %p376
      %p378 = scmp.ne.s32.totalorder %s370, %s372
      %p379 = scmp.eq.s32.totalorder %s105, 1
      %p380 = por %p378, %p379
      %p381 = scmp.ne.s32.totalorder %s372, %s373
      %p382 = scmp.eq.s32.totalorder %s105, 0
      %p383 = por %p381, %p382
      %p384 = scmp.ne.s32.totalorder %s372, %s373
      %p385 = scmp.eq.s32.totalorder %s106, 1
      %p386 = por %p384, %p385
      %p388 = scmp.ne.s32.totalorder %s373, %s387
      %p389 = scmp.eq.s32.totalorder %s106, 0
      %p390 = por %p388, %p389
      %s392 = sadd.s32 %s391, 1
      %p395 = scmp.eq.s32.totalorder %s100, 1
      %p396 = scmp.ne.s32.totalorder %s391, %s393
      %p397 = scmp.eq.s32.totalorder %s100, 0
      %p398 = por %p396, %p397
      %p399 = scmp.ne.s32.totalorder %s391, %s393
      %p400 = scmp.eq.s32.totalorder %s105, 1
      %p401 = por %p399, %p400
      %p402 = scmp.ne.s32.totalorder %s393, %s394
      %p403 = scmp.eq.s32.totalorder %s105, 0
      %p404 = por %p402, %p403
      %p405 = scmp.ne.s32.totalorder %s393, %s394
      %p406 = scmp.eq.s32.totalorder %s106, 1
      %p407 = por %p405, %p406
      %p409 = scmp.ne.s32.totalorder %s394, %s408
      %p410 = scmp.eq.s32.totalorder %s106, 0
      %p411 = por %p409, %p410
      %s413 = sadd.s32 %s412, 1
      %p416 = scmp.eq.s32.totalorder %s100, 1
      %p417 = scmp.ne.s32.totalorder %s412, %s414
      %p418 = scmp.eq.s32.totalorder %s100, 0
      %p419 = por %p417, %p418
      %p420 = scmp.ne.s32.totalorder %s412, %s414
      %p421 = scmp.eq.s32.totalorder %s105, 1
      %p422 = por %p420, %p421
      %p423 = scmp.ne.s32.totalorder %s414, %s415
      %p424 = scmp.eq.s32.totalorder %s105, 0
      %p425 = por %p423, %p424
      %p426 = scmp.ne.s32.totalorder %s414, %s415
      %p427 = scmp.eq.s32.totalorder %s106, 1
      %p428 = por %p426, %p427
      %p430 = scmp.ne.s32.totalorder %s415, %s429
      %p431 = scmp.eq.s32.totalorder %s106, 0
      %p432 = por %p430, %p431
      %s434 = sadd.s32 %s433, 1
      %p437 = scmp.eq.s32.totalorder %s100, 1
      %p438 = scmp.ne.s32.totalorder %s433, %s435
      %p439 = scmp.eq.s32.totalorder %s100, 0
      %p440 = por %p438, %p439
      %p441 = scmp.ne.s32.totalorder %s433, %s435
      %p442 = scmp.eq.s32.totalorder %s105, 1
      %p443 = por %p441, %p442
      %p444 = scmp.ne.s32.totalorder %s435, %s436
      %p445 = scmp.eq.s32.totalorder %s105, 0
      %p446 = por %p444, %p445
      %p447 = scmp.ne.s32.totalorder %s435, %s436
      %p448 = scmp.eq.s32.totalorder %s106, 1
      %p449 = por %p447, %p448
      %p451 = scmp.ne.s32.totalorder %s436, %s450
      %p452 = scmp.eq.s32.totalorder %s106, 0
      %p453 = por %p451, %p452
      %s455 = sadd.s32 %s454, 1
      %p458 = scmp.eq.s32.totalorder %s100, 1
      %p459 = scmp.ne.s32.totalorder %s454, %s456
      %p460 = scmp.eq.s32.totalorder %s100, 0
      %p461 = por %p459, %p460
      %p462 = scmp.ne.s32.totalorder %s454, %s456
      %p463 = scmp.eq.s32.totalorder %s105, 1
      %p464 = por %p462, %p463
      %p465 = scmp.ne.s32.totalorder %s456, %s457
      %p466 = scmp.eq.s32.totalorder %s105, 0
      %p467 = por %p465, %p466
      %p468 = scmp.ne.s32.totalorder %s456, %s457
      %p469 = scmp.eq.s32.totalorder %s106, 1
      %p470 = por %p468, %p469
      %p472 = scmp.ne.s32.totalorder %s457, %s471
      %p473 = scmp.eq.s32.totalorder %s106, 0
      %p474 = por %p472, %p473
      %s476 = sadd.s32 %s475, 1
      %p479 = scmp.eq.s32.totalorder %s100, 1
      %p480 = scmp.ne.s32.totalorder %s475, %s477
      %p481 = scmp.eq.s32.totalorder %s100, 0
      %p482 = por %p480, %p481
      %p483 = scmp.ne.s32.totalorder %s475, %s477
      %p484 = scmp.eq.s32.totalorder %s105, 1
      %p485 = por %p483, %p484
      %p486 = scmp.ne.s32.totalorder %s477, %s478
      %p487 = scmp.eq.s32.totalorder %s105, 0
      %p488 = por %p486, %p487
      %p489 = scmp.ne.s32.totalorder %s477, %s478
      %p490 = scmp.eq.s32.totalorder %s106, 1
      %p491 = por %p489, %p490
      %p493 = scmp.ne.s32.totalorder %s478, %s492
      %p494 = scmp.eq.s32.totalorder %s106, 0
      %p495 = por %p493, %p494
      %s497 = sadd.s32 %s496, 1
      %p500 = scmp.eq.s32.totalorder %s100, 1
      %p501 = scmp.ne.s32.totalorder %s496, %s498
      %p502 = scmp.eq.s32.totalorder %s100, 0
      %p503 = por %p501, %p502
      %p504 = scmp.ne.s32.totalorder %s496, %s498
      %p505 = scmp.eq.s32.totalorder %s105, 1
      %p506 = por %p504, %p505
      %p507 = scmp.ne.s32.totalorder %s498, %s499
      %p508 = scmp.eq.s32.totalorder %s105, 0
      %p509 = por %p507, %p508
      %p510 = scmp.ne.s32.totalorder %s498, %s499
      %p511 = scmp.eq.s32.totalorder %s106, 1
      %p512 = por %p510, %p511
      %p514 = scmp.ne.s32.totalorder %s499, %s513
      %p515 = scmp.eq.s32.totalorder %s106, 0
      %p516 = por %p514, %p515
      %s518 = sadd.s32 %s517, 1
      %p521 = scmp.eq.s32.totalorder %s100, 1
      %p522 = scmp.ne.s32.totalorder %s517, %s519
      %p523 = scmp.eq.s32.totalorder %s100, 0
      %p524 = por %p522, %p523
      %p525 = scmp.ne.s32.totalorder %s517, %s519
      %p526 = scmp.eq.s32.totalorder %s105, 1
      %p527 = por %p525, %p526
      %p528 = scmp.ne.s32.totalorder %s519, %s520
      %p529 = scmp.eq.s32.totalorder %s105, 0
      %p530 = por %p528, %p529
      %p531 = scmp.ne.s32.totalorder %s519, %s520
      %p532 = scmp.eq.s32.totalorder %s106, 1
      %p533 = por %p531, %p532
      %p535 = scmp.ne.s32.totalorder %s520, %s534
      %p536 = scmp.eq.s32.totalorder %s106, 0
      %p537 = por %p535, %p536
      %s539 = sadd.s32 %s538, 1
      %p542 = scmp.eq.s32.totalorder %s100, 1
      %p543 = scmp.ne.s32.totalorder %s538, %s540
      %p544 = scmp.eq.s32.totalorder %s100, 0
      %p545 = por %p543, %p544
      %p546 = scmp.ne.s32.totalorder %s538, %s540
      %p547 = scmp.eq.s32.totalorder %s105, 1
      %p548 = por %p546, %p547
      %p549 = scmp.ne.s32.totalorder %s540, %s541
      %p550 = scmp.eq.s32.totalorder %s105, 0
      %p551 = por %p549, %p550
      %p552 = scmp.ne.s32.totalorder %s540, %s541
      %p553 = scmp.eq.s32.totalorder %s106, 1
      %p554 = por %p552, %p553
      %p556 = scmp.ne.s32.totalorder %s541, %s555
      %p557 = scmp.eq.s32.totalorder %s106, 0
      %p558 = por %p556, %p557
      %s560 = sadd.s32 %s559, 1
      %p563 = scmp.eq.s32.totalorder %s100, 1
      %p564 = scmp.ne.s32.totalorder %s559, %s561
      %p565 = scmp.eq.s32.totalorder %s100, 0
      %p566 = por %p564, %p565
      %p567 = scmp.ne.s32.totalorder %s559, %s561
      %p568 = scmp.eq.s32.totalorder %s105, 1
      %p569 = por %p567, %p568
      %p570 = scmp.ne.s32.totalorder %s561, %s562
      %p571 = scmp.eq.s32.totalorder %s105, 0
      %p572 = por %p570, %p571
      %p573 = scmp.ne.s32.totalorder %s561, %s562
      %p574 = scmp.eq.s32.totalorder %s106, 1
      %p575 = por %p573, %p574
      %p577 = scmp.ne.s32.totalorder %s562, %s576
      %p578 = scmp.eq.s32.totalorder %s106, 0
      %p579 = por %p577, %p578
      %s581 = sadd.s32 %s580, 1
      %p584 = scmp.eq.s32.totalorder %s100, 1
      %p585 = scmp.ne.s32.totalorder %s580, %s582
      %p586 = scmp.eq.s32.totalorder %s100, 0
      %p587 = por %p585, %p586
      %p588 = scmp.ne.s32.totalorder %s580, %s582
      %p589 = scmp.eq.s32.totalorder %s105, 1
      %p590 = por %p588, %p589
      %p591 = scmp.ne.s32.totalorder %s582, %s583
      %p592 = scmp.eq.s32.totalorder %s105, 0
      %p593 = por %p591, %p592
      %p594 = scmp.ne.s32.totalorder %s582, %s583
      %p595 = scmp.eq.s32.totalorder %s106, 1
      %p596 = por %p594, %p595
      %p598 = scmp.ne.s32.totalorder %s583, %s597
      %p599 = scmp.eq.s32.totalorder %s106, 0
      %p600 = por %p598, %p599
      %s602 = sadd.s32 %s601, 1
      %p605 = scmp.eq.s32.totalorder %s100, 1
      %p606 = scmp.ne.s32.totalorder %s601, %s603
      %p607 = scmp.eq.s32.totalorder %s100, 0
      %p608 = por %p606, %p607
      %p609 = scmp.ne.s32.totalorder %s601, %s603
      %p610 = scmp.eq.s32.totalorder %s105, 1
      %p611 = por %p609, %p610
      %p612 = scmp.ne.s32.totalorder %s603, %s604
      %p613 = scmp.eq.s32.totalorder %s105, 0
      %p614 = por %p612, %p613
      %p615 = scmp.ne.s32.totalorder %s603, %s604
      %p616 = scmp.eq.s32.totalorder %s106, 1
      %p617 = por %p615, %p616
      %p619 = scmp.ne.s32.totalorder %s604, %s618
      %p620 = scmp.eq.s32.totalorder %s106, 0
      %p621 = por %p619, %p620
      %s623 = sadd.s32 %s622, 1
      %p626 = scmp.eq.s32.totalorder %s100, 1
      %p627 = scmp.ne.s32.totalorder %s622, %s624
      %p628 = scmp.eq.s32.totalorder %s100, 0
      %p629 = por %p627, %p628
      %p630 = scmp.ne.s32.totalorder %s622, %s624
      %p631 = scmp.eq.s32.totalorder %s105, 1
      %p632 = por %p630, %p631
      %p633 = scmp.ne.s32.totalorder %s624, %s625
      %p634 = scmp.eq.s32.totalorder %s105, 0
      %p635 = por %p633, %p634
      %p636 = scmp.ne.s32.totalorder %s624, %s625
      %p637 = scmp.eq.s32.totalorder %s106, 1
      %p638 = por %p636, %p637
      %p640 = scmp.ne.s32.totalorder %s625, %s639
      %p641 = scmp.eq.s32.totalorder %s106, 0
      %p642 = por %p640, %p641
      %s644 = sadd.s32 %s643, 1
      %p647 = scmp.eq.s32.totalorder %s100, 1
      %p648 = scmp.ne.s32.totalorder %s643, %s645
      %p649 = scmp.eq.s32.totalorder %s100, 0
      %p650 = por %p648, %p649
      %p651 = scmp.ne.s32.totalorder %s643, %s645
      %p652 = scmp.eq.s32.totalorder %s105, 1
      %p653 = por %p651, %p652
      %p654 = scmp.ne.s32.totalorder %s645, %s646
      %p655 = scmp.eq.s32.totalorder %s105, 0
      %p656 = por %p654, %p655
      %p657 = scmp.ne.s32.totalorder %s645, %s646
      %p658 = scmp.eq.s32.totalorder %s106, 1
      %p659 = por %p657, %p658
      %p661 = scmp.ne.s32.totalorder %s646, %s660
      %p662 = scmp.eq.s32.totalorder %s106, 0
      %p663 = por %p661, %p662
      %s665 = sadd.s32 %s664, 1
      %p668 = scmp.eq.s32.totalorder %s100, 1
      %p669 = scmp.ne.s32.totalorder %s664, %s666
      %p670 = scmp.eq.s32.totalorder %s100, 0
      %p671 = por %p669, %p670
      %p672 = scmp.ne.s32.totalorder %s664, %s666
      %p673 = scmp.eq.s32.totalorder %s105, 1
      %p674 = por %p672, %p673
      %p675 = scmp.ne.s32.totalorder %s666, %s667
      %p676 = scmp.eq.s32.totalorder %s105, 0
      %p677 = por %p675, %p676
      %p678 = scmp.ne.s32.totalorder %s666, %s667
      %p679 = scmp.eq.s32.totalorder %s106, 1
      %p680 = por %p678, %p679
      %p682 = scmp.ne.s32.totalorder %s667, %s681
      %p683 = scmp.eq.s32.totalorder %s106, 0
      %p684 = por %p682, %p683
      %s686 = sadd.s32 %s685, 1
      %p689 = scmp.eq.s32.totalorder %s100, 1
      %p690 = scmp.ne.s32.totalorder %s685, %s687
      %p691 = scmp.eq.s32.totalorder %s100, 0
      %p692 = por %p690, %p691
      %p693 = scmp.ne.s32.totalorder %s685, %s687
      %p694 = scmp.eq.s32.totalorder %s105, 1
      %p695 = por %p693, %p694
      %p696 = scmp.ne.s32.totalorder %s687, %s688
      %p697 = scmp.eq.s32.totalorder %s105, 0
      %p698 = por %p696, %p697
      %p699 = scmp.ne.s32.totalorder %s687, %s688
      %p700 = scmp.eq.s32.totalorder %s106, 1
      %p701 = por %p699, %p700
      %p703 = scmp.ne.s32.totalorder %s688, %s702
      %p704 = scmp.eq.s32.totalorder %s106, 0
      %p705 = por %p703, %p704
      %s707 = sadd.s32 %s706, 1
      %p710 = scmp.eq.s32.totalorder %s100, 1
      %p711 = scmp.ne.s32.totalorder %s706, %s708
      %p712 = scmp.eq.s32.totalorder %s100, 0
      %p713 = por %p711, %p712
      %p714 = scmp.ne.s32.totalorder %s706, %s708
      %p715 = scmp.eq.s32.totalorder %s105, 1
      %p716 = por %p714, %p715
      %p717 = scmp.ne.s32.totalorder %s708, %s709
      %p718 = scmp.eq.s32.totalorder %s105, 0
      %p719 = por %p717, %p718
      %p720 = scmp.ne.s32.totalorder %s708, %s709
      %p721 = scmp.eq.s32.totalorder %s106, 1
      %p722 = por %p720, %p721
      %p724 = scmp.ne.s32.totalorder %s709, %s723
      %p725 = scmp.eq.s32.totalorder %s106, 0
      %p726 = por %p724, %p725
      %s728 = sadd.s32 %s727, 1
      %p731 = scmp.eq.s32.totalorder %s100, 1
      %p732 = scmp.ne.s32.totalorder %s727, %s729
      %p733 = scmp.eq.s32.totalorder %s100, 0
      %p734 = por %p732, %p733
      %p735 = scmp.ne.s32.totalorder %s727, %s729
      %p736 = scmp.eq.s32.totalorder %s105, 1
      %p737 = por %p735, %p736
      %p738 = scmp.ne.s32.totalorder %s729, %s730
      %p739 = scmp.eq.s32.totalorder %s105, 0
      %p740 = por %p738, %p739
      %p741 = scmp.ne.s32.totalorder %s729, %s730
      %p742 = scmp.eq.s32.totalorder %s106, 1
      %p743 = por %p741, %p742
      %p745 = scmp.ne.s32.totalorder %s730, %s744
      %p746 = scmp.eq.s32.totalorder %s106, 0
      %p747 = por %p745, %p746
      %s749 = sadd.s32 %s748, 1
      %p752 = scmp.eq.s32.totalorder %s100, 1
      %p753 = scmp.ne.s32.totalorder %s748, %s750
      %p754 = scmp.eq.s32.totalorder %s100, 0
      %p755 = por %p753, %p754
      %p756 = scmp.ne.s32.totalorder %s748, %s750
      %p757 = scmp.eq.s32.totalorder %s105, 1
      %p758 = por %p756, %p757
      %p759 = scmp.ne.s32.totalorder %s750, %s751
      %p760 = scmp.eq.s32.totalorder %s105, 0
      %p761 = por %p759, %p760
      %p762 = scmp.ne.s32.totalorder %s750, %s751
      %p763 = scmp.eq.s32.totalorder %s106, 1
      %p764 = por %p762, %p763
      %p766 = scmp.ne.s32.totalorder %s751, %s765
      %p767 = scmp.eq.s32.totalorder %s106, 0
      %p768 = por %p766, %p767
      %s770 = sadd.s32 %s769, 1
      %p773 = scmp.eq.s32.totalorder %s100, 1
      %p774 = scmp.ne.s32.totalorder %s769, %s771
      %p775 = scmp.eq.s32.totalorder %s100, 0
      %p776 = por %p774, %p775
      %p777 = scmp.ne.s32.totalorder %s769, %s771
      %p778 = scmp.eq.s32.totalorder %s105, 1
      %p779 = por %p777, %p778
      %p780 = scmp.ne.s32.totalorder %s771, %s772
      %p781 = scmp.eq.s32.totalorder %s105, 0
      %p782 = por %p780, %p781
      %p783 = scmp.ne.s32.totalorder %s771, %s772
      %p784 = scmp.eq.s32.totalorder %s106, 1
      %p785 = por %p783, %p784
      %p787 = scmp.ne.s32.totalorder %s772, %s786
      %p788 = scmp.eq.s32.totalorder %s106, 0
      %p789 = por %p787, %p788
      %s791 = sadd.s32 %s790, 1
      %p794 = scmp.eq.s32.totalorder %s100, 1
      %p795 = scmp.ne.s32.totalorder %s790, %s792
      %p796 = scmp.eq.s32.totalorder %s100, 0
      %p797 = por %p795, %p796
      %p798 = scmp.ne.s32.totalorder %s790, %s792
      %p799 = scmp.eq.s32.totalorder %s105, 1
      %p800 = por %p798, %p799
      %p801 = scmp.ne.s32.totalorder %s792, %s793
      %p802 = scmp.eq.s32.totalorder %s105, 0
      %p803 = por %p801, %p802
      %p804 = scmp.ne.s32.totalorder %s792, %s793
      %p805 = scmp.eq.s32.totalorder %s106, 1
      %p806 = por %p804, %p805
      %p808 = scmp.ne.s32.totalorder %s793, %s807
      %p809 = scmp.eq.s32.totalorder %s106, 0
      %p810 = por %p808, %p809
      %s812 = sadd.s32 %s811, 1
      %p815 = scmp.eq.s32.totalorder %s100, 1
      %p816 = scmp.ne.s32.totalorder %s811, %s813
      %p817 = scmp.eq.s32.totalorder %s100, 0
      %p818 = por %p816, %p817
      %p819 = scmp.ne.s32.totalorder %s811, %s813
      %p820 = scmp.eq.s32.totalorder %s105, 1
      %p821 = por %p819, %p820
      %p822 = scmp.ne.s32.totalorder %s813, %s814
      %p823 = scmp.eq.s32.totalorder %s105, 0
      %p824 = por %p822, %p823
      %p825 = scmp.ne.s32.totalorder %s813, %s814
      %p826 = scmp.eq.s32.totalorder %s106, 1
      %p827 = por %p825, %p826
      %p829 = scmp.ne.s32.totalorder %s814, %s828
      %p830 = scmp.eq.s32.totalorder %s106, 0
      %p831 = por %p829, %p830
      %s833 = sadd.s32 %s832, 1
      %p836 = scmp.eq.s32.totalorder %s100, 1
      %p837 = scmp.ne.s32.totalorder %s832, %s834
      %p838 = scmp.eq.s32.totalorder %s100, 0
      %p839 = por %p837, %p838
      %p840 = scmp.ne.s32.totalorder %s832, %s834
      %p841 = scmp.eq.s32.totalorder %s105, 1
      %p842 = por %p840, %p841
      %p843 = scmp.ne.s32.totalorder %s834, %s835
      %p844 = scmp.eq.s32.totalorder %s105, 0
      %p845 = por %p843, %p844
      %p846 = scmp.ne.s32.totalorder %s834, %s835
      %p847 = scmp.eq.s32.totalorder %s106, 1
      %p848 = por %p846, %p847
      %p850 = scmp.ne.s32.totalorder %s835, %s849
      %p851 = scmp.eq.s32.totalorder %s106, 0
      %p852 = por %p850, %p851
      %s854 = sadd.s32 %s853, 1
      %p857 = scmp.eq.s32.totalorder %s100, 1
      %p858 = scmp.ne.s32.totalorder %s853, %s855
      %p859 = scmp.eq.s32.totalorder %s100, 0
      %p860 = por %p858, %p859
      %p861 = scmp.ne.s32.totalorder %s853, %s855
      %p862 = scmp.eq.s32.totalorder %s105, 1
      %p863 = por %p861, %p862
      %p864 = scmp.ne.s32.totalorder %s855, %s856
      %p865 = scmp.eq.s32.totalorder %s105, 0
      %p866 = por %p864, %p865
      %p867 = scmp.ne.s32.totalorder %s855, %s856
      %p868 = scmp.eq.s32.totalorder %s106, 1
      %p869 = por %p867, %p868
      %p871 = scmp.ne.s32.totalorder %s856, %s870
      %p872 = scmp.eq.s32.totalorder %s106, 0
      %p873 = por %p871, %p872
      %s875 = sadd.s32 %s874, 1
      %p878 = scmp.eq.s32.totalorder %s100, 1
      %p879 = scmp.ne.s32.totalorder %s874, %s876
      %p880 = scmp.eq.s32.totalorder %s100, 0
      %p881 = por %p879, %p880
      %p882 = scmp.ne.s32.totalorder %s874, %s876
      %p883 = scmp.eq.s32.totalorder %s105, 1
      %p884 = por %p882, %p883
      %p885 = scmp.ne.s32.totalorder %s876, %s877
      %p886 = scmp.eq.s32.totalorder %s105, 0
      %p887 = por %p885, %p886
      %p888 = scmp.ne.s32.totalorder %s876, %s877
      %p889 = scmp.eq.s32.totalorder %s106, 1
      %p890 = por %p888, %p889
      %p892 = scmp.ne.s32.totalorder %s877, %s891
      %p893 = scmp.eq.s32.totalorder %s106, 0
      %p894 = por %p892, %p893
      %s896 = sadd.s32 %s895, 1
      %p899 = scmp.eq.s32.totalorder %s100, 1
      %p900 = scmp.ne.s32.totalorder %s895, %s897
      %p901 = scmp.eq.s32.totalorder %s100, 0
      %p902 = por %p900, %p901
      %p903 = scmp.ne.s32.totalorder %s895, %s897
      %p904 = scmp.eq.s32.totalorder %s105, 1
      %p905 = por %p903, %p904
      %p906 = scmp.ne.s32.totalorder %s897, %s898
      %p907 = scmp.eq.s32.totalorder %s105, 0
      %p908 = por %p906, %p907
      %p909 = scmp.ne.s32.totalorder %s897, %s898
      %p910 = scmp.eq.s32.totalorder %s106, 1
      %p911 = por %p909, %p910
      %p913 = scmp.ne.s32.totalorder %s898, %s912
      %p914 = scmp.eq.s32.totalorder %s106, 0
      %p915 = por %p913, %p914
      %s917 = sadd.s32 %s916, 1
      %p920 = scmp.eq.s32.totalorder %s100, 1
      %p921 = scmp.ne.s32.totalorder %s916, %s918
      %p922 = scmp.eq.s32.totalorder %s100, 0
      %p923 = por %p921, %p922
      %p924 = scmp.ne.s32.totalorder %s916, %s918
      %p925 = scmp.eq.s32.totalorder %s105, 1
      %p926 = por %p924, %p925
      %p927 = scmp.ne.s32.totalorder %s918, %s919
      %p928 = scmp.eq.s32.totalorder %s105, 0
      %p929 = por %p927, %p928
      %p930 = scmp.ne.s32.totalorder %s918, %s919
      %p931 = scmp.eq.s32.totalorder %s106, 1
      %p932 = por %p930, %p931
      %p934 = scmp.ne.s32.totalorder %s919, %s933
      %p935 = scmp.eq.s32.totalorder %s106, 0
      %p936 = por %p934, %p935
      %s938 = sadd.s32 %s937, 1
      %p941 = scmp.eq.s32.totalorder %s100, 1
      %p942 = scmp.ne.s32.totalorder %s937, %s939
      %p943 = scmp.eq.s32.totalorder %s100, 0
      %p944 = por %p942, %p943
      %p945 = scmp.ne.s32.totalorder %s937, %s939
      %p946 = scmp.eq.s32.totalorder %s105, 1
      %p947 = por %p945, %p946
      %p948 = scmp.ne.s32.totalorder %s939, %s940
      %p949 = scmp.eq.s32.totalorder %s105, 0
      %p950 = por %p948, %p949
      %p951 = scmp.ne.s32.totalorder %s939, %s940
      %p952 = scmp.eq.s32.totalorder %s106, 1
      %p953 = por %p951, %p952
      %p955 = scmp.ne.s32.totalorder %s940, %s954
      %p956 = scmp.eq.s32.totalorder %s106, 0
      %p957 = por %p955, %p956
      %s959 = sadd.s32 %s958, 1
      %p962 = scmp.eq.s32.totalorder %s100, 1
      %p963 = scmp.ne.s32.totalorder %s958, %s960
      %p964 = scmp.eq.s32.totalorder %s100, 0
      %p965 = por %p963, %p964
      %p966 = scmp.ne.s32.totalorder %s958, %s960
      %p967 = scmp.eq.s32.totalorder %s105, 1
      %p968 = por %p966, %p967
      %p969 = scmp.ne.s32.totalorder %s960, %s961
      %p970 = scmp.eq.s32.totalorder %s105, 0
      %p971 = por %p969, %p970
      %p972 = scmp.ne.s32.totalorder %s960, %s961
      %p973 = scmp.eq.s32.totalorder %s106, 1
      %p974 = por %p972, %p973
      %p976 = scmp.ne.s32.totalorder %s961, %s975
      %p977 = scmp.eq.s32.totalorder %s106, 0
      %p978 = por %p976, %p977
      %s980 = sadd.s32 %s979, 1
      %p983 = scmp.eq.s32.totalorder %s100, 1
      %p984 = scmp.ne.s32.totalorder %s979, %s981
      %p985 = scmp.eq.s32.totalorder %s100, 0
      %p986 = por %p984, %p985
      %p987 = scmp.ne.s32.totalorder %s979, %s981
      %p988 = scmp.eq.s32.totalorder %s105, 1
      %p989 = por %p987, %p988
      %p990 = scmp.ne.s32.totalorder %s981, %s982
      %p991 = scmp.eq.s32.totalorder %s105, 0
      %p992 = por %p990, %p991
      %p993 = scmp.ne.s32.totalorder %s981, %s982
      %p994 = scmp.eq.s32.totalorder %s106, 1
      %p995 = por %p993, %p994
      %p997 = scmp.ne.s32.totalorder %s982, %s996
      %p998 = scmp.eq.s32.totalorder %s106, 0
      %p999 = por %p997, %p998
      %s1001 = sadd.s32 %s1000, 1
      %p1004 = scmp.eq.s32.totalorder %s100, 1
      %p1005 = scmp.ne.s32.totalorder %s1000, %s1002
      %p1006 = scmp.eq.s32.totalorder %s100, 0
      %p1007 = por %p1005, %p1006
      %p1008 = scmp.ne.s32.totalorder %s1000, %s1002
      %p1009 = scmp.eq.s32.totalorder %s105, 1
      %p1010 = por %p1008, %p1009
      %p1011 = scmp.ne.s32.totalorder %s1002, %s1003
      %p1012 = scmp.eq.s32.totalorder %s105, 0
      %p1013 = por %p1011, %p1012
      %p1014 = scmp.ne.s32.totalorder %s1002, %s1003
      %p1015 = scmp.eq.s32.totalorder %s106, 1
      %p1016 = por %p1014, %p1015
      %p1018 = scmp.ne.s32.totalorder %s1003, %s1017
      %p1019 = scmp.eq.s32.totalorder %s106, 0
      %p1020 = por %p1018, %p1019
      %s1022 = sadd.s32 %s1021, 1
      %p1025 = scmp.eq.s32.totalorder %s100, 1
      %p1026 = scmp.ne.s32.totalorder %s1021, %s1023
      %p1027 = scmp.eq.s32.totalorder %s100, 0
      %p1028 = por %p1026, %p1027
      %p1029 = scmp.ne.s32.totalorder %s1021, %s1023
      %p1030 = scmp.eq.s32.totalorder %s105, 1
      %p1031 = por %p1029, %p1030
      %p1032 = scmp.ne.s32.totalorder %s1023, %s1024
      %p1033 = scmp.eq.s32.totalorder %s105, 0
      %p1034 = por %p1032, %p1033
      %p1035 = scmp.ne.s32.totalorder %s1023, %s1024
      %p1036 = scmp.eq.s32.totalorder %s106, 1
      %p1037 = por %p1035, %p1036
      %p1039 = scmp.ne.s32.totalorder %s1024, %s1038
      %p1040 = scmp.eq.s32.totalorder %s106, 0
      %p1041 = por %p1039, %p1040
      %s1042 = ssub.s32 %s100, %s107
      %p1043 = scmp.eq.s32.totalorder %s1042, 0
      %s1045 = sadd.s32 %s1044, 1
      %s1046 = scalar_select %p1043, %s1044, %s1045
      %p1049 = pneg %p1043
      %p1050 = scmp.eq.s32.totalorder %s100, 1
      %p1051 = por %p1049, %p1050
      %p1052 = scmp.ne.s32.totalorder %s1044, %s1047
      %p1053 = scmp.eq.s32.totalorder %s100, 0
      %p1054 = por %p1052, %p1053
      %p1055 = scmp.ne.s32.totalorder %s1044, %s1047
      %p1056 = scmp.eq.s32.totalorder %s105, 1
      %p1057 = por %p1055, %p1056
      %p1058 = scmp.ne.s32.totalorder %s1047, %s1048
      %p1059 = scmp.eq.s32.totalorder %s105, 0
      %p1060 = por %p1058, %p1059
      %p1061 = scmp.ne.s32.totalorder %s1047, %s1048
      %p1062 = scmp.eq.s32.totalorder %s106, 1
      %p1063 = por %p1061, %p1062
      %p1065 = scmp.ne.s32.totalorder %s1048, %s1064
      %p1066 = scmp.eq.s32.totalorder %s106, 0
      %p1067 = por %p1065, %p1066
      %p1068 = scmp.le.s32.totalorder 1, %s100
      %p1069 = scmp.lt.s32.totalorder %s100, 3
      %p1070 = pnand %p1068, %p1069
      %p1071 = pneg %p1070
      // Predicated region
      $region9: #{flan_super_xl_vqa_forward.1} parent=5 // pred_check
        _
      $region10: #{flan_super_xl_vqa_forward.1} parent=5 // pred_check_branch
        %1073 = sbr.rel (%p1070) target = $region12
      $region11: #{flan_super_xl_vqa_forward.1} parent=5 // pred_region
        %s1074 = ssub.s32 %s100, 1
        // Predicated region
        $region13: #{flan_super_xl_vqa_forward.1} parent=11 // pred_check
          %p1075 = pneg %p173
        $region14: #{flan_super_xl_vqa_forward.1} parent=11 // pred_check_branch
          %1077 = sbr.rel (%p1075) target = $region16
        $region15: #{flan_super_xl_vqa_forward.1} parent=11 // pred_region
          _
        $region16: #{flan_super_xl_vqa_forward.1} parent=11 // pred_fallthru
          _
        // Predicated region
        $region17: #{flan_super_xl_vqa_forward.1} parent=11 // pred_check
          %p1078 = pneg %p194
        $region18: #{flan_super_xl_vqa_forward.1} parent=11 // pred_check_branch
          %1080 = sbr.rel (%p1078) target = $region20
        $region19: #{flan_super_xl_vqa_forward.1} parent=11 // pred_region
          _
        $region20: #{flan_super_xl_vqa_forward.1} parent=11 // pred_fallthru
          _
        // Predicated region
        $region21: #{flan_super_xl_vqa_forward.1} parent=11 // pred_check
          %p1081 = pneg %p215
        $region22: #{flan_super_xl_vqa_forward.1} parent=11 // pred_check_branch
          %1083 = sbr.rel (%p1081) target = $region24
        $region23: #{flan_super_xl_vqa_forward.1} parent=11 // pred_region
          _
        $region24: #{flan_super_xl_vqa_forward.1} parent=11 // pred_fallthru
          _
        // Predicated region
        $region25: #{flan_super_xl_vqa_forward.1} parent=11 // pred_check
          %p1084 = pneg %p236
        $region26: #{flan_super_xl_vqa_forward.1} parent=11 // pred_check_branch
          %1086 = sbr.rel (%p1084) target = $region28
        $region27: #{flan_super_xl_vqa_forward.1} parent=11 // pred_region
          _
        $region28: #{flan_super_xl_vqa_forward.1} parent=11 // pred_fallthru
          _
        // Predicated region
        $region29: #{flan_super_xl_vqa_forward.1} parent=11 // pred_check
          %p1087 = pneg %p257
        $region30: #{flan_super_xl_vqa_forward.1} parent=11 // pred_check_branch
          %1089 = sbr.rel (%p1087) target = $region32
        $region31: #{flan_super_xl_vqa_forward.1} parent=11 // pred_region
          _
        $region32: #{flan_super_xl_vqa_forward.1} parent=11 // pred_fallthru
          _
        // Predicated region
        $region33: #{flan_super_xl_vqa_forward.1} parent=11 // pred_check
          %p1090 = pneg %p278
        $region34: #{flan_super_xl_vqa_forward.1} parent=11 // pred_check_branch
          %1092 = sbr.rel (%p1090) target = $region36
        $region35: #{flan_super_xl_vqa_forward.1} parent=11 // pred_region
          _
        $region36: #{flan_super_xl_vqa_forward.1} parent=11 // pred_fallthru
          _
        // Predicated region
        $region37: #{flan_super_xl_vqa_forward.1} parent=11 // pred_check
          %p1093 = pneg %p299
        $region38: #{flan_super_xl_vqa_forward.1} parent=11 // pred_check_branch
          %1095 = sbr.rel (%p1093) target = $region40
        $region39: #{flan_super_xl_vqa_forward.1} parent=11 // pred_region
          _
        $region40: #{flan_super_xl_vqa_forward.1} parent=11 // pred_fallthru
          _
        // Predicated region
        $region41: #{flan_super_xl_vqa_forward.1} parent=11 // pred_check
          %p1096 = pneg %p320
        $region42: #{flan_super_xl_vqa_forward.1} parent=11 // pred_check_branch
          %1098 = sbr.rel (%p1096) target = $region44
        $region43: #{flan_super_xl_vqa_forward.1} parent=11 // pred_region
          _
        $region44: #{flan_super_xl_vqa_forward.1} parent=11 // pred_fallthru
          _
        // Predicated region
        $region45: #{flan_super_xl_vqa_forward.1} parent=11 // pred_check
          %p1099 = pneg %p341
        $region46: #{flan_super_xl_vqa_forward.1} parent=11 // pred_check_branch
          %1101 = sbr.rel (%p1099) target = $region48
        $region47: #{flan_super_xl_vqa_forward.1} parent=11 // pred_region
          _
        $region48: #{flan_super_xl_vqa_forward.1} parent=11 // pred_fallthru
          _
        // Predicated region
        $region49: #{flan_super_xl_vqa_forward.1} parent=11 // pred_check
          %p1102 = pneg %p362
        $region50: #{flan_super_xl_vqa_forward.1} parent=11 // pred_check_branch
          %1104 = sbr.rel (%p1102) target = $region52
        $region51: #{flan_super_xl_vqa_forward.1} parent=11 // pred_region
          _
        $region52: #{flan_super_xl_vqa_forward.1} parent=11 // pred_fallthru
          _
        // Predicated region
        $region53: #{flan_super_xl_vqa_forward.1} parent=11 // pred_check
          %p1105 = pneg %p383
        $region54: #{flan_super_xl_vqa_forward.1} parent=11 // pred_check_branch
          %1107 = sbr.rel (%p1105) target = $region56
        $region55: #{flan_super_xl_vqa_forward.1} parent=11 // pred_region
          _
        $region56: #{flan_super_xl_vqa_forward.1} parent=11 // pred_fallthru
          _
        // Predicated region
        $region57: #{flan_super_xl_vqa_forward.1} parent=11 // pred_check
          %p1108 = pneg %p404
        $region58: #{flan_super_xl_vqa_forward.1} parent=11 // pred_check_branch
          %1110 = sbr.rel (%p1108) target = $region60
        $region59: #{flan_super_xl_vqa_forward.1} parent=11 // pred_region
          _
        $region60: #{flan_super_xl_vqa_forward.1} parent=11 // pred_fallthru
          _
        // Predicated region
        $region61: #{flan_super_xl_vqa_forward.1} parent=11 // pred_check
          %p1111 = pneg %p425
        $region62: #{flan_super_xl_vqa_forward.1} parent=11 // pred_check_branch
          %1113 = sbr.rel (%p1111) target = $region64
        $region63: #{flan_super_xl_vqa_forward.1} parent=11 // pred_region
          _
        $region64: #{flan_super_xl_vqa_forward.1} parent=11 // pred_fallthru
          _
        // Predicated region
        $region65: #{flan_super_xl_vqa_forward.1} parent=11 // pred_check
          %p1114 = pneg %p446
        $region66: #{flan_super_xl_vqa_forward.1} parent=11 // pred_check_branch
          %1116 = sbr.rel (%p1114) target = $region68
        $region67: #{flan_super_xl_vqa_forward.1} parent=11 // pred_region
          _
        $region68: #{flan_super_xl_vqa_forward.1} parent=11 // pred_fallthru
          _
        // Predicated region
        $region69: #{flan_super_xl_vqa_forward.1} parent=11 // pred_check
          %p1117 = pneg %p467
        $region70: #{flan_super_xl_vqa_forward.1} parent=11 // pred_check_branch
          %1119 = sbr.rel (%p1117) target = $region72
        $region71: #{flan_super_xl_vqa_forward.1} parent=11 // pred_region
          _
        $region72: #{flan_super_xl_vqa_forward.1} parent=11 // pred_fallthru
          _
        // Predicated region
        $region73: #{flan_super_xl_vqa_forward.1} parent=11 // pred_check
          %p1120 = pneg %p488
        $region74: #{flan_super_xl_vqa_forward.1} parent=11 // pred_check_branch
          %1122 = sbr.rel (%p1120) target = $region76
        $region75: #{flan_super_xl_vqa_forward.1} parent=11 // pred_region
          _
        $region76: #{flan_super_xl_vqa_forward.1} parent=11 // pred_fallthru
          _
        // Predicated region
        $region77: #{flan_super_xl_vqa_forward.1} parent=11 // pred_check
          %p1123 = pneg %p509
        $region78: #{flan_super_xl_vqa_forward.1} parent=11 // pred_check_branch
          %1125 = sbr.rel (%p1123) target = $region80
        $region79: #{flan_super_xl_vqa_forward.1} parent=11 // pred_region
          _
        $region80: #{flan_super_xl_vqa_forward.1} parent=11 // pred_fallthru
          _
        // Predicated region
        $region81: #{flan_super_xl_vqa_forward.1} parent=11 // pred_check
          %p1126 = pneg %p530
        $region82: #{flan_super_xl_vqa_forward.1} parent=11 // pred_check_branch
          %1128 = sbr.rel (%p1126) target = $region84
        $region83: #{flan_super_xl_vqa_forward.1} parent=11 // pred_region
          _
        $region84: #{flan_super_xl_vqa_forward.1} parent=11 // pred_fallthru
          _
        // Predicated region
        $region85: #{flan_super_xl_vqa_forward.1} parent=11 // pred_check
          %p1129 = pneg %p551
        $region86: #{flan_super_xl_vqa_forward.1} parent=11 // pred_check_branch
          %1131 = sbr.rel (%p1129) target = $region88
        $region87: #{flan_super_xl_vqa_forward.1} parent=11 // pred_region
          _
        $region88: #{flan_super_xl_vqa_forward.1} parent=11 // pred_fallthru
          _
        // Predicated region
        $region89: #{flan_super_xl_vqa_forward.1} parent=11 // pred_check
          %p1132 = pneg %p572
        $region90: #{flan_super_xl_vqa_forward.1} parent=11 // pred_check_branch
          %1134 = sbr.rel (%p1132) target = $region92
        $region91: #{flan_super_xl_vqa_forward.1} parent=11 // pred_region
          _
        $region92: #{flan_super_xl_vqa_forward.1} parent=11 // pred_fallthru
          _
        // Predicated region
        $region93: #{flan_super_xl_vqa_forward.1} parent=11 // pred_check
          %p1135 = pneg %p593
        $region94: #{flan_super_xl_vqa_forward.1} parent=11 // pred_check_branch
          %1137 = sbr.rel (%p1135) target = $region96
        $region95: #{flan_super_xl_vqa_forward.1} parent=11 // pred_region
          _
        $region96: #{flan_super_xl_vqa_forward.1} parent=11 // pred_fallthru
          _
        // Predicated region
        $region97: #{flan_super_xl_vqa_forward.1} parent=11 // pred_check
          %p1138 = pneg %p614
        $region98: #{flan_super_xl_vqa_forward.1} parent=11 // pred_check_branch
          %1140 = sbr.rel (%p1138) target = $region100
        $region99: #{flan_super_xl_vqa_forward.1} parent=11 // pred_region
          _
        $region100: #{flan_super_xl_vqa_forward.1} parent=11 // pred_fallthru
          _
        // Predicated region
        $region101: #{flan_super_xl_vqa_forward.1} parent=11 // pred_check
          %p1141 = pneg %p635
        $region102: #{flan_super_xl_vqa_forward.1} parent=11 // pred_check_branch
          %1143 = sbr.rel (%p1141) target = $region104
        $region103: #{flan_super_xl_vqa_forward.1} parent=11 // pred_region
          _
        $region104: #{flan_super_xl_vqa_forward.1} parent=11 // pred_fallthru
          _
        // Predicated region
        $region105: #{flan_super_xl_vqa_forward.1} parent=11 // pred_check
          %p1144 = pneg %p656
        $region106: #{flan_super_xl_vqa_forward.1} parent=11 // pred_check_branch
          %1146 = sbr.rel (%p1144) target = $region108
        $region107: #{flan_super_xl_vqa_forward.1} parent=11 // pred_region
          _
        $region108: #{flan_super_xl_vqa_forward.1} parent=11 // pred_fallthru
          _
        // Predicated region
        $region109: #{flan_super_xl_vqa_forward.1} parent=11 // pred_check
          %p1147 = pneg %p677
        $region110: #{flan_super_xl_vqa_forward.1} parent=11 // pred_check_branch
          %1149 = sbr.rel (%p1147) target = $region112
        $region111: #{flan_super_xl_vqa_forward.1} parent=11 // pred_region
          _
        $region112: #{flan_super_xl_vqa_forward.1} parent=11 // pred_fallthru
          _
        // Predicated region
        $region113: #{flan_super_xl_vqa_forward.1} parent=11 // pred_check
          %p1150 = pneg %p698
        $region114: #{flan_super_xl_vqa_forward.1} parent=11 // pred_check_branch
          %1152 = sbr.rel (%p1150) target = $region116
        $region115: #{flan_super_xl_vqa_forward.1} parent=11 // pred_region
          _
        $region116: #{flan_super_xl_vqa_forward.1} parent=11 // pred_fallthru
          _
        // Predicated region
        $region117: #{flan_super_xl_vqa_forward.1} parent=11 // pred_check
          %p1153 = pneg %p719
        $region118: #{flan_super_xl_vqa_forward.1} parent=11 // pred_check_branch
          %1155 = sbr.rel (%p1153) target = $region120
        $region119: #{flan_super_xl_vqa_forward.1} parent=11 // pred_region
          _
        $region120: #{flan_super_xl_vqa_forward.1} parent=11 // pred_fallthru
          _
        // Predicated region
        $region121: #{flan_super_xl_vqa_forward.1} parent=11 // pred_check
          %p1156 = pneg %p740
        $region122: #{flan_super_xl_vqa_forward.1} parent=11 // pred_check_branch
          %1158 = sbr.rel (%p1156) target = $region124
        $region123: #{flan_super_xl_vqa_forward.1} parent=11 // pred_region
          _
        $region124: #{flan_super_xl_vqa_forward.1} parent=11 // pred_fallthru
          _
        // Predicated region
        $region125: #{flan_super_xl_vqa_forward.1} parent=11 // pred_check
          %p1159 = pneg %p761
        $region126: #{flan_super_xl_vqa_forward.1} parent=11 // pred_check_branch
          %1161 = sbr.rel (%p1159) target = $region128
        $region127: #{flan_super_xl_vqa_forward.1} parent=11 // pred_region
          _
        $region128: #{flan_super_xl_vqa_forward.1} parent=11 // pred_fallthru
          _
        // Predicated region
        $region129: #{flan_super_xl_vqa_forward.1} parent=11 // pred_check
          %p1162 = pneg %p782
        $region130: #{flan_super_xl_vqa_forward.1} parent=11 // pred_check_branch
          %1164 = sbr.rel (%p1162) target = $region132
        $region131: #{flan_super_xl_vqa_forward.1} parent=11 // pred_region
          _
        $region132: #{flan_super_xl_vqa_forward.1} parent=11 // pred_fallthru
          _
        // Predicated region
        $region133: #{flan_super_xl_vqa_forward.1} parent=11 // pred_check
          %p1165 = pneg %p803
        $region134: #{flan_super_xl_vqa_forward.1} parent=11 // pred_check_branch
          %1167 = sbr.rel (%p1165) target = $region136
        $region135: #{flan_super_xl_vqa_forward.1} parent=11 // pred_region
          _
        $region136: #{flan_super_xl_vqa_forward.1} parent=11 // pred_fallthru
          _
        // Predicated region
        $region137: #{flan_super_xl_vqa_forward.1} parent=11 // pred_check
          %p1168 = pneg %p824
        $region138: #{flan_super_xl_vqa_forward.1} parent=11 // pred_check_branch
          %1170 = sbr.rel (%p1168) target = $region140
        $region139: #{flan_super_xl_vqa_forward.1} parent=11 // pred_region
          _
        $region140: #{flan_super_xl_vqa_forward.1} parent=11 // pred_fallthru
          _
        // Predicated region
        $region141: #{flan_super_xl_vqa_forward.1} parent=11 // pred_check
          %p1171 = pneg %p845
        $region142: #{flan_super_xl_vqa_forward.1} parent=11 // pred_check_branch
          %1173 = sbr.rel (%p1171) target = $region144
        $region143: #{flan_super_xl_vqa_forward.1} parent=11 // pred_region
          _
        $region144: #{flan_super_xl_vqa_forward.1} parent=11 // pred_fallthru
          _
        // Predicated region
        $region145: #{flan_super_xl_vqa_forward.1} parent=11 // pred_check
          %p1174 = pneg %p866
        $region146: #{flan_super_xl_vqa_forward.1} parent=11 // pred_check_branch
          %1176 = sbr.rel (%p1174) target = $region148
        $region147: #{flan_super_xl_vqa_forward.1} parent=11 // pred_region
          _
        $region148: #{flan_super_xl_vqa_forward.1} parent=11 // pred_fallthru
          _
        // Predicated region
        $region149: #{flan_super_xl_vqa_forward.1} parent=11 // pred_check
          %p1177 = pneg %p887
        $region150: #{flan_super_xl_vqa_forward.1} parent=11 // pred_check_branch
          %1179 = sbr.rel (%p1177) target = $region152
        $region151: #{flan_super_xl_vqa_forward.1} parent=11 // pred_region
          _
        $region152: #{flan_super_xl_vqa_forward.1} parent=11 // pred_fallthru
          _
        // Predicated region
        $region153: #{flan_super_xl_vqa_forward.1} parent=11 // pred_check
          %p1180 = pneg %p908
        $region154: #{flan_super_xl_vqa_forward.1} parent=11 // pred_check_branch
          %1182 = sbr.rel (%p1180) target = $region156
        $region155: #{flan_super_xl_vqa_forward.1} parent=11 // pred_region
          _
        $region156: #{flan_super_xl_vqa_forward.1} parent=11 // pred_fallthru
          _
        // Predicated region
        $region157: #{flan_super_xl_vqa_forward.1} parent=11 // pred_check
          %p1183 = pneg %p929
        $region158: #{flan_super_xl_vqa_forward.1} parent=11 // pred_check_branch
          %1185 = sbr.rel (%p1183) target = $region160
        $region159: #{flan_super_xl_vqa_forward.1} parent=11 // pred_region
          _
        $region160: #{flan_super_xl_vqa_forward.1} parent=11 // pred_fallthru
          _
        // Predicated region
        $region161: #{flan_super_xl_vqa_forward.1} parent=11 // pred_check
          %p1186 = pneg %p950
        $region162: #{flan_super_xl_vqa_forward.1} parent=11 // pred_check_branch
          %1188 = sbr.rel (%p1186) target = $region164
        $region163: #{flan_super_xl_vqa_forward.1} parent=11 // pred_region
          _
        $region164: #{flan_super_xl_vqa_forward.1} parent=11 // pred_fallthru
          _
        // Predicated region
        $region165: #{flan_super_xl_vqa_forward.1} parent=11 // pred_check
          %p1189 = pneg %p971
        $region166: #{flan_super_xl_vqa_forward.1} parent=11 // pred_check_branch
          %1191 = sbr.rel (%p1189) target = $region168
        $region167: #{flan_super_xl_vqa_forward.1} parent=11 // pred_region
          _
        $region168: #{flan_super_xl_vqa_forward.1} parent=11 // pred_fallthru
          _
        // Predicated region
        $region169: #{flan_super_xl_vqa_forward.1} parent=11 // pred_check
          %p1192 = pneg %p992
        $region170: #{flan_super_xl_vqa_forward.1} parent=11 // pred_check_branch
          %1194 = sbr.rel (%p1192) target = $region172
        $region171: #{flan_super_xl_vqa_forward.1} parent=11 // pred_region
          %s1196 = ssub.s32 16, 16
          %1197 = vsyncadd [#allocation3], %s1196
          %s1199 = sshll.u32 [#allocation2], 4
          %s1200 = int_to_ptr.vmem [resolvable:$true] %s1199
          %1202 = dma.hbm_to_vmem [thread:$0]  %s83, 16, %s1200, [#allocation3]
        $region172: #{flan_super_xl_vqa_forward.1} parent=11 // pred_fallthru
          _
        // Predicated region
        $region173: #{flan_super_xl_vqa_forward.1} parent=11 // pred_check
          %p1203 = pneg %p1013
        $region174: #{flan_super_xl_vqa_forward.1} parent=11 // pred_check_branch
          %1205 = sbr.rel (%p1203) target = $region176
        $region175: #{flan_super_xl_vqa_forward.1} parent=11 // pred_region
          %s1207 = ssub.s32 16, 16
          %1208 = vsyncadd [#allocation6], %s1207
          %s1210 = sshll.u32 [#allocation5], 4
          %s1211 = int_to_ptr.vmem [resolvable:$true] %s1210
          %1213 = dma.hbm_to_vmem [thread:$0]  %s85, 16, %s1211, [#allocation6]
        $region176: #{flan_super_xl_vqa_forward.1} parent=11 // pred_fallthru
          _
        // Predicated region
        $region177: #{flan_super_xl_vqa_forward.1} parent=11 // pred_check
          %p1214 = pneg %p1034
        $region178: #{flan_super_xl_vqa_forward.1} parent=11 // pred_check_branch
          %1216 = sbr.rel (%p1214) target = $region180
        $region179: #{flan_super_xl_vqa_forward.1} parent=11 // pred_region
          %s1218 = ssub.s32 16, 16
          %1219 = vsyncadd [#allocation6], %s1218
          %s1221 = sshll.u32 [#allocation7], 4
          %s1222 = int_to_ptr.vmem [resolvable:$true] %s1221
          %1224 = dma.hbm_to_vmem [thread:$0]  %s87, 16, %s1222, [#allocation6]
        $region180: #{flan_super_xl_vqa_forward.1} parent=11 // pred_fallthru
          _
      $region12: #{flan_super_xl_vqa_forward.1} parent=5 // pred_fallthru
        _
      %p1225 = scmp.lt.s32.totalorder %s100, 2
      // Predicated region
      $region181: #{flan_super_xl_vqa_forward.1} parent=5 // pred_check
        %p1226 = pneg %p1225
      $region182: #{flan_super_xl_vqa_forward.1} parent=5 // pred_check_branch
        %1228 = sbr.rel (%p1226) target = $region184
      $region183: #{flan_super_xl_vqa_forward.1} parent=5 // pred_region
        // Predicated region
        $region185: #{flan_super_xl_vqa_forward.1} parent=183 // pred_check
          %p1229 = pneg %p120
        $region186: #{flan_super_xl_vqa_forward.1} parent=183 // pred_check_branch
          %1231 = sbr.rel (%p1229) target = $region188
        $region187: #{flan_super_xl_vqa_forward.1} parent=183 // pred_region
          %p1232 = scmp.lt.s32.totalorder %s100, 1
          %s1233 = scalar_select %p1232, %s100, 1
          %s1234 = smul.addr %s1233, 2
          %s1235 = smul.addr %s1234, 4
          %s1236 = scalar_lea.vmem %s1, %s1235
        $region188: #{flan_super_xl_vqa_forward.1} parent=183 // pred_fallthru
          _
        // Predicated region
        $region189: #{flan_super_xl_vqa_forward.1} parent=183 // pred_check
          %p1237 = pneg %p146
        $region190: #{flan_super_xl_vqa_forward.1} parent=183 // pred_check_branch
          %1239 = sbr.rel (%p1237) target = $region192
        $region191: #{flan_super_xl_vqa_forward.1} parent=183 // pred_region
          %p1240 = scmp.lt.s32.totalorder %s100, 1
          %s1241 = scalar_select %p1240, %s100, 1
          %s1242 = smul.addr %s1241, 8
          %s1243 = scalar_lea.vmem %s3, %s1242
        $region192: #{flan_super_xl_vqa_forward.1} parent=183 // pred_fallthru
          _
      $region184: #{flan_super_xl_vqa_forward.1} parent=5 // pred_fallthru
        _
      %p1244 = scmp.le.s32.totalorder 1, %s100
      %p1245 = scmp.lt.s32.totalorder %s100, 3
      %p1246 = pnand %p1244, %p1245
      %p1247 = pneg %p1246
      // Predicated region
      $region193: #{flan_super_xl_vqa_forward.1} parent=5 // pred_check
        _
      $region194: #{flan_super_xl_vqa_forward.1} parent=5 // pred_check_branch
        %1249 = sbr.rel (%p1246) target = $region196
      $region195: #{flan_super_xl_vqa_forward.1} parent=5 // pred_region
        %s1250 = ssub.s32 %s100, 1
        // Predicated region
        $region197: #{flan_super_xl_vqa_forward.1} parent=195 // pred_check
          %p1251 = pneg %p992
        $region198: #{flan_super_xl_vqa_forward.1} parent=195 // pred_check_branch
          %1253 = sbr.rel (%p1251) target = $region200
        $region199: #{flan_super_xl_vqa_forward.1} parent=195 // pred_region
          %1254 = dma.done [#allocation3], 16
        $region200: #{flan_super_xl_vqa_forward.1} parent=195 // pred_fallthru
          _
        // Predicated region
        $region201: #{flan_super_xl_vqa_forward.1} parent=195 // pred_check
          %p1255 = pneg %p1013
        $region202: #{flan_super_xl_vqa_forward.1} parent=195 // pred_check_branch
          %1257 = sbr.rel (%p1255) target = $region204
        $region203: #{flan_super_xl_vqa_forward.1} parent=195 // pred_region
          %1258 = dma.done [#allocation6], 16
        $region204: #{flan_super_xl_vqa_forward.1} parent=195 // pred_fallthru
          _
        // Predicated region
        $region205: #{flan_super_xl_vqa_forward.1} parent=195 // pred_check
          %p1259 = pneg %p1034
        $region206: #{flan_super_xl_vqa_forward.1} parent=195 // pred_check_branch
          %1261 = sbr.rel (%p1259) target = $region208
        $region207: #{flan_super_xl_vqa_forward.1} parent=195 // pred_region
          %1262 = dma.done [#allocation6], 16
        $region208: #{flan_super_xl_vqa_forward.1} parent=195 // pred_fallthru
          _
        %p1263 = scmp.lt.s32.totalorder %s105, 1
        %s1264 = scalar_select %p1263, %s105, 1
        %s1265 = smul.addr %s1264, 2
        %s1266 = smul.addr %s1265, 4
        %s1267 = scalar_lea.vmem %s1, %s1266
        %p1268 = pneg %p126
        %p1269 = pneg %p123
        %p1270 = scmp.lt.s32.totalorder %s105, 1
        %s1271 = scalar_select %p1270, %s105, 1
        %s1272 = smul.addr %s1271, 8
        %s1273 = scalar_lea.vmem %s3, %s1272
        %p1274 = pneg %p152
        %p1275 = pneg %p149
        %p1276 = pneg %p173
        %p1277 = pneg %p170
        %p1278 = pneg %p194
        %p1279 = pneg %p191
        %p1280 = pneg %p215
        %p1281 = pneg %p212
        %p1282 = pneg %p236
        %p1283 = pneg %p233
        %p1284 = pneg %p257
        %p1285 = pneg %p254
        %p1286 = pneg %p278
        %p1287 = pneg %p275
        %p1288 = pneg %p299
        %p1289 = pneg %p296
        %p1290 = pneg %p320
        %p1291 = pneg %p317
        %p1292 = pneg %p341
        %p1293 = pneg %p338
        %p1294 = pneg %p362
        %p1295 = pneg %p359
        %p1296 = pneg %p383
        %p1297 = pneg %p380
        %p1298 = pneg %p404
        %p1299 = pneg %p401
        %p1300 = pneg %p425
        %p1301 = pneg %p422
        %p1302 = pneg %p446
        %p1303 = pneg %p443
        %p1304 = pneg %p467
        %p1305 = pneg %p464
        %p1306 = pneg %p488
        %p1307 = pneg %p485
        %p1308 = pneg %p509
        %p1309 = pneg %p506
        %p1310 = pneg %p530
        %p1311 = pneg %p527
        %p1312 = pneg %p551
        %p1313 = pneg %p548
        %p1314 = pneg %p572
        %p1315 = pneg %p569
        %p1316 = pneg %p593
        %p1317 = pneg %p590
        %p1318 = pneg %p614
        %p1319 = pneg %p611
        %p1320 = pneg %p635
        %p1321 = pneg %p632
        %p1322 = pneg %p656
        %p1323 = pneg %p653
        %p1324 = pneg %p677
        %p1325 = pneg %p674
        %p1326 = pneg %p698
        %p1327 = pneg %p695
        %p1328 = pneg %p719
        %p1329 = pneg %p716
        %p1330 = pneg %p740
        %p1331 = pneg %p737
        %p1332 = pneg %p761
        %p1333 = pneg %p758
        %p1334 = pneg %p782
        %p1335 = pneg %p779
        %p1336 = pneg %p803
        %p1337 = pneg %p800
        %p1338 = pneg %p824
        %p1339 = pneg %p821
        %p1340 = pneg %p845
        %p1341 = pneg %p842
        %p1342 = pneg %p866
        %p1343 = pneg %p863
        %p1344 = pneg %p887
        %p1345 = pneg %p884
        %p1346 = pneg %p908
        %p1347 = pneg %p905
        %p1348 = pneg %p929
        %p1349 = pneg %p926
        %p1350 = pneg %p950
        %p1351 = pneg %p947
        %p1352 = pneg %p971
        %p1353 = pneg %p968
        %p1354 = pneg %p992
        %p1355 = pneg %p989
        %p1356 = pneg %p1013
        %p1357 = pneg %p1010
        %p1358 = pneg %p1034
        %p1359 = pneg %p1031
        %p1360 = pneg %p1060
        %p1361 = pneg %p1057
        %s1362 = sand.u32 %s1047, 1
        %s1363 = scalar_lea.sflag [#allocation4], %s1362
        %s1364 = sand.u32 %s1047, 1
        %s1365 = scalar_lea.vmem [#allocation8], %s1364
        %p1366 = scmp.lt.s32.totalorder %s105, 1
        %s1367 = scalar_select %p1366, %s105, 1
        %s1368 = smul.addr %s1367, 2
        %s1369 = smul.addr %s1368, 4
        %s1370 = scalar_lea.vmem %s1, %s1369
        %p1371 = scmp.lt.s32.totalorder %s105, 1
        %s1372 = scalar_select %p1371, %s105, 1
        %s1373 = smul.addr %s1372, 8
        %s1374 = scalar_lea.vmem %s3, %s1373
        %v1376 = vld [vmem:[%s1370] sm:$0xff]
        %v1377 = vld [vmem:[%s5] sm:$0xf]
        %v1378 = vld [vmem:[%s5 + $0x4] sm:$0xf]
        %v1379 = vld [vmem:[%s5 + $0x8] sm:$0xf]
        %v1380 = vld [vmem:[%s5 + $0xc] sm:$0xf]
        %v1381 = vld [vmem:[%s5 + $0x10] sm:$0xf]
        %v1382 = vld [vmem:[%s5 + $0x14] sm:$0xf]
        %v1383 = vld [vmem:[%s5 + $0x18] sm:$0xf]
        %v1384 = vld [vmem:[%s5 + $0x1c] sm:$0xf]
        %v1385 = vld [vmem:[%s5 + $0x20] sm:$0xf]
        %v1386 = vld [vmem:[%s5 + $0x24] sm:$0xf]
        %v1387 = vld [vmem:[%s5 + $0x28] sm:$0xf]
        %v1388 = vld [vmem:[%s5 + $0x2c] sm:$0xf]
        %v1389 = vld [vmem:[%s5 + $0x30] sm:$0xf]
        %v1390 = vld [vmem:[%s5 + $0x34] sm:$0xf]
        %v1391 = vld [vmem:[%s5 + $0x38] sm:$0xf]
        %v1392 = vld [vmem:[%s5 + $0x3c] sm:$0xf]
        %v1393 = vld [vmem:[%s5 + $0x40] sm:$0xf]
        %v1394 = vld [vmem:[%s5 + $0x44] sm:$0xf]
        %v1395 = vld [vmem:[%s5 + $0x48] sm:$0xf]
        %v1396 = vld [vmem:[%s5 + $0x4c] sm:$0xf]
        %v1397 = vld [vmem:[%s5 + $0x50] sm:$0xf]
        %v1398 = vld [vmem:[%s5 + $0x54] sm:$0xf]
        %v1399 = vld [vmem:[%s5 + $0x58] sm:$0xf]
        %v1400 = vld [vmem:[%s5 + $0x5c] sm:$0xf]
        %v1401 = vld [vmem:[%s5 + $0x60] sm:$0xf]
        %v1402 = vld [vmem:[%s5 + $0x64] sm:$0xf]
        %v1403 = vld [vmem:[%s5 + $0x68] sm:$0xf]
        %v1404 = vld [vmem:[%s5 + $0x6c] sm:$0xf]
        %v1405 = vld [vmem:[%s5 + $0x70] sm:$0xf]
        %v1406 = vld [vmem:[%s5 + $0x74] sm:$0xf]
        %v1407 = vld [vmem:[%s5 + $0x78] sm:$0xf]
        %v1408 = vld [vmem:[%s5 + $0x7c] sm:$0xf]
        %v1410 = vcombine.high %v1376, %v1376
        %v1412 = vpack.c.bf16 %v1376, %v1376
        %v1413 = vpack.c.bf16 %v1410, %v1410
        %v1414 = vld [vmem:[%s7] sm:$0x1]
        %v1416 = vlaneseq
        %v1417 = vshrl.u32 %v1416, 7
        %v1418 = vsub.s32 0, %v1417
        %v1419 = vrot.slane %v1414, %v1418
        %v1453 = vunpack.c.l.b16 %v1377
        %v1454 = vunpack.c.l.b16 %v1378
        %v1455 = vunpack.c.l.b16 %v1379
        %v1456 = vunpack.c.l.b16 %v1380
        %v1457 = vunpack.c.l.b16 %v1381
        %v1458 = vunpack.c.l.b16 %v1382
        %v1459 = vunpack.c.l.b16 %v1383
        %v1460 = vunpack.c.l.b16 %v1384
        %v1461 = vunpack.c.l.b16 %v1385
        %v1462 = vunpack.c.l.b16 %v1386
        %v1463 = vunpack.c.l.b16 %v1387
        %v1464 = vunpack.c.l.b16 %v1388
        %v1465 = vunpack.c.l.b16 %v1389
        %v1466 = vunpack.c.l.b16 %v1390
        %v1467 = vunpack.c.l.b16 %v1391
        %v1468 = vunpack.c.l.b16 %v1392
        %v1469 = vunpack.c.l.b16 %v1393
        %v1470 = vunpack.c.l.b16 %v1394
        %v1471 = vunpack.c.l.b16 %v1395
        %v1472 = vunpack.c.l.b16 %v1396
        %v1473 = vunpack.c.l.b16 %v1397
        %v1474 = vunpack.c.l.b16 %v1398
        %v1475 = vunpack.c.l.b16 %v1399
        %v1476 = vunpack.c.l.b16 %v1400
        %v1477 = vunpack.c.l.b16 %v1401
        %v1478 = vunpack.c.l.b16 %v1402
        %v1479 = vunpack.c.l.b16 %v1403
        %v1480 = vunpack.c.l.b16 %v1404
        %v1481 = vunpack.c.l.b16 %v1405
        %v1482 = vunpack.c.l.b16 %v1406
        %v1483 = vunpack.c.l.b16 %v1407
        %v1484 = vunpack.c.l.b16 %v1408
        %v1485 = vpack.c.b16 %v1454, %v1453
        %v1486 = vpack.c.b16 %v1456, %v1455
        %v1487 = vpack.c.b16 %v1458, %v1457
        %v1488 = vpack.c.b16 %v1460, %v1459
        %v1489 = vpack.c.b16 %v1462, %v1461
        %v1490 = vpack.c.b16 %v1464, %v1463
        %v1491 = vpack.c.b16 %v1466, %v1465
        %v1492 = vpack.c.b16 %v1468, %v1467
        %v1493 = vpack.c.b16 %v1470, %v1469
        %v1494 = vpack.c.b16 %v1472, %v1471
        %v1495 = vpack.c.b16 %v1474, %v1473
        %v1496 = vpack.c.b16 %v1476, %v1475
        %v1497 = vpack.c.b16 %v1478, %v1477
        %v1498 = vpack.c.b16 %v1480, %v1479
        %v1499 = vpack.c.b16 %v1482, %v1481
        %v1500 = vpack.c.b16 %v1484, %v1483
        %1517 = vmatprep.subr.bf16.mxu0 0
        %1518 = vmatpush1.bf16.msra.mxu0 %v1485
        %1519 = vmatprep.subr.bf16.mxu0 0
        %1520 = vmatpush1.bf16.msra.mxu0 %v1486
        %1521 = vmatprep.subr.bf16.mxu0 0
        %1522 = vmatpush1.bf16.msra.mxu0 %v1487
        %1523 = vmatprep.subr.bf16.mxu0 0
        %1524 = vmatpush1.bf16.msra.mxu0 %v1488
        %1525 = vmatprep.subr.bf16.mxu0 0
        %1526 = vmatpush1.bf16.msra.mxu0 %v1489
        %1527 = vmatprep.subr.bf16.mxu0 0
        %1528 = vmatpush1.bf16.msra.mxu0 %v1490
        %1529 = vmatprep.subr.bf16.mxu0 0
        %1530 = vmatpush1.bf16.msra.mxu0 %v1491
        %1531 = vmatprep.subr.bf16.mxu0 0
        %1532 = vmatpush1.bf16.msra.mxu0 %v1492
        %1533 = vmatprep.subr.bf16.mxu0 0
        %1534 = vmatpush1.bf16.msra.mxu0 %v1493
        %1535 = vmatprep.subr.bf16.mxu0 0
        %1536 = vmatpush1.bf16.msra.mxu0 %v1494
        %1537 = vmatprep.subr.bf16.mxu0 0
        %1538 = vmatpush1.bf16.msra.mxu0 %v1495
        %1539 = vmatprep.subr.bf16.mxu0 0
        %1540 = vmatpush1.bf16.msra.mxu0 %v1496
        %1541 = vmatprep.subr.bf16.mxu0 0
        %1542 = vmatpush1.bf16.msra.mxu0 %v1497
        %1543 = vmatprep.subr.bf16.mxu0 0
        %1544 = vmatpush1.bf16.msra.mxu0 %v1498
        %1545 = vmatprep.subr.bf16.mxu0 0
        %1546 = vmatpush1.bf16.msra.mxu0 %v1499
        %1547 = vmatprep.subr.bf16.mxu0 0
        %1548 = vmatpush1.bf16.msra.mxu0 %v1500
        %1549 = vmatprep.mubr.bf16.mxu0 %v1413
        %1550 = vmatmul.mubr.bf16.gmra.mrb[0].mxu0 %v1412
        %v1551 = vpop.f32.mrb[0].mxu0
        %v1552 = vadd.f32 %v1419, %v1551
        %v1553 = vpop.f32.mrb[0].mxu0
        %v1554 = vpop.f32.mrb[0].mxu0
        %v1555 = vpop.f32.mrb[0].mxu0
        %1556 = vdwg.mxu0
        %v1557 = vld [vmem:[%s9] sm:$0xf]
        %v1558 = vadd.f32 %v1552, %v1557
        %v1559 = vld [vmem:[%s11] sm:$0x1]
        %v1560 = vld [vmem:[%s13] sm:$0x1]
        %vm1561 = vcmask 257024
        %v1562 = vsel %vm1561, %v1558, 0.0
        %1563 = vadd.xlane.f32.xlu0 %v1562
        %v1564 = vpop.xlane.xlu0 %1563
        %v1565 = vrcp.pop 32.0
        %v1566 = vmul.f32 %v1564, %v1565
        %v1567 = vsub.f32 %v1558, %v1566
        %v1568 = vmul.f32 %v1567, %v1567
        %v1569 = vsel %vm1561, %v1568, 0.0
        %1570 = vadd.xlane.f32.xlu0 %v1569
        %v1571 = vpop.xlane.xlu0 %1570
        %v1572 = vmul.f32 %v1571, %v1565
        %v1573 = vadd.f32 %v1572, 1e-06
        %v1574 = vrsqrt.pop %v1573
        %v1575 = vmul.f32 %v1567, %v1574
        %v1577 = vlaneseq
        %v1578 = vshrl.u32 %v1577, 7
        %v1579 = vsub.s32 0, %v1578
        %v1580 = vrot.slane %v1559, %v1579
        %v1582 = vmul.f32 %v1575, %v1580
        %v1584 = vlaneseq
        %v1585 = vshrl.u32 %v1584, 7
        %v1586 = vsub.s32 0, %v1585
        %v1587 = vrot.slane %v1560, %v1586
        %v1589 = vadd.f32 %v1582, %v1587
        %v1590 = vld [vmem:[%s15] sm:$0xf]
        %v1591 = vld [vmem:[%s15 + $0x4] sm:$0xf]
        %v1592 = vld [vmem:[%s15 + $0x8] sm:$0xf]
        %v1593 = vld [vmem:[%s15 + $0xc] sm:$0xf]
        %v1594 = vpack.c.bf16 %v1589, %v1589
        %v1595 = vld [vmem:[%s17] sm:$0x1]
        %v1597 = vlaneseq
        %v1598 = vshrl.u32 %v1597, 7
        %v1599 = vsub.s32 0, %v1598
        %v1600 = vrot.slane %v1595, %v1599
        %v1606 = vunpack.c.l.b16 %v1590
        %v1607 = vunpack.c.l.b16 %v1591
        %v1608 = vunpack.c.l.b16 %v1592
        %v1609 = vunpack.c.l.b16 %v1593
        %v1610 = vpack.c.b16 %v1607, %v1606
        %v1611 = vpack.c.b16 %v1609, %v1608
        %vm1614 = vcmask 261120
        %v1616 = vsel %vm1614, %v1594, 0
        %1618 = vmatprep.subr.bf16.mxu0 0
        %1619 = vmatpush1.bf16.msra.mxu0 %v1610
        %1620 = vmatprep.subr.bf16.mxu0 0
        %1621 = vmatpush1.bf16.msra.mxu0 %v1611
        %1622 = vmatprep.subr.bf16.mxu0 0
        %1623 = vmatpush1.bf16.msra.mxu0 0
        %1624 = vmatprep.subr.bf16.mxu0 0
        %1625 = vmatpush1.bf16.msra.mxu0 0
        %1626 = vmatprep.subr.bf16.mxu0 0
        %1627 = vmatpush1.bf16.msra.mxu0 0
        %1628 = vmatprep.subr.bf16.mxu0 0
        %1629 = vmatpush1.bf16.msra.mxu0 0
        %1630 = vmatprep.subr.bf16.mxu0 0
        %1631 = vmatpush1.bf16.msra.mxu0 0
        %1632 = vmatprep.subr.bf16.mxu0 0
        %1633 = vmatpush1.bf16.msra.mxu0 0
        %1634 = vmatprep.subr.bf16.mxu0 0
        %1635 = vmatpush1.bf16.msra.mxu0 0
        %1636 = vmatprep.subr.bf16.mxu0 0
        %1637 = vmatpush1.bf16.msra.mxu0 0
        %1638 = vmatprep.subr.bf16.mxu0 0
        %1639 = vmatpush1.bf16.msra.mxu0 0
        %1640 = vmatprep.subr.bf16.mxu0 0
        %1641 = vmatpush1.bf16.msra.mxu0 0
        %1642 = vmatprep.subr.bf16.mxu0 0
        %1643 = vmatpush1.bf16.msra.mxu0 0
        %1644 = vmatprep.subr.bf16.mxu0 0
        %1645 = vmatpush1.bf16.msra.mxu0 0
        %1646 = vmatprep.subr.bf16.mxu0 0
        %1647 = vmatpush1.bf16.msra.mxu0 0
        %1648 = vmatprep.subr.bf16.mxu0 0
        %1649 = vmatpush1.bf16.msra.mxu0 0
        %1650 = vmatprep.mubr.bf16.mxu0 0
        %1651 = vmatmul.mubr.bf16.gmra.mrb[0].mxu0 %v1616
        %v1652 = vpop.f32.mrb[0].mxu0
        %v1653 = vadd.f32 %v1600, %v1652
        %v1654 = vpop.f32.mrb[0].mxu0
        %v1655 = vpop.f32.mrb[0].mxu0
        %v1656 = vpop.f32.mrb[0].mxu0
        %1657 = vdwg.mxu0
        %v1658 = vld [vmem:[%s19] sm:$0xf]
        %v1659 = vld [vmem:[%s19 + $0x4] sm:$0xf]
        %v1660 = vld [vmem:[%s19 + $0x8] sm:$0xf]
        %v1661 = vld [vmem:[%s19 + $0xc] sm:$0xf]
        %v1662 = vpack.c.bf16 %v1653, %v1653
        %1664 = vrot.lane.b32.xlu0 %v1662, 96
        %v1665 = vpop.permute.xlu0 %1664
        %vm1666 = vcmask 130048
        %v1668 = vsel %vm1666, %v1662, 0
        %v1671 = vsel %vm1666, %v1665, 0
        %1673 = vmatprep.subr.bf16.mxu0 0
        %1674 = vmatpush1.bf16.xpose.msra.mxu0 %v1671
        %1675 = vmatprep.subr.bf16.mxu0 0
        %1676 = vmatpush1.bf16.xpose.msra.mxu0 0
        %1677 = vmatprep.subr.bf16.mxu0 0
        %1678 = vmatpush1.bf16.xpose.msra.mxu0 0
        %1679 = vmatprep.subr.bf16.mxu0 0
        %1680 = vmatpush1.bf16.xpose.msra.mxu0 0
        %1681 = vmatprep.subr.bf16.mxu0 0
        %1682 = vmatpush1.bf16.xpose.msra.mxu0 0
        %1683 = vmatprep.subr.bf16.mxu0 0
        %1684 = vmatpush1.bf16.xpose.msra.mxu0 0
        %1685 = vmatprep.subr.bf16.mxu0 0
        %1686 = vmatpush1.bf16.xpose.msra.mxu0 0
        %1687 = vmatprep.subr.bf16.mxu0 0
        %1688 = vmatpush1.bf16.xpose.msra.mxu0 0
        %1689 = vmatprep.subr.bf16.mxu0 0
        %1690 = vmatpush1.bf16.xpose.msra.mxu0 0
        %1691 = vmatprep.subr.bf16.mxu0 0
        %1692 = vmatpush1.bf16.xpose.msra.mxu0 0
        %1693 = vmatprep.subr.bf16.mxu0 0
        %1694 = vmatpush1.bf16.xpose.msra.mxu0 0
        %1695 = vmatprep.subr.bf16.mxu0 0
        %1696 = vmatpush1.bf16.xpose.msra.mxu0 0
        %1697 = vmatprep.subr.bf16.mxu0 0
        %1698 = vmatpush1.bf16.xpose.msra.mxu0 0
        %1699 = vmatprep.subr.bf16.mxu0 0
        %1700 = vmatpush1.bf16.xpose.msra.mxu0 0
        %1701 = vmatprep.subr.bf16.mxu0 0
        %1702 = vmatpush1.bf16.xpose.msra.mxu0 0
        %1703 = vmatprep.subr.bf16.mxu0 0
        %1704 = vmatpush1.bf16.xpose.msra.mxu0 0
        %1705 = vmatprep.mubr.bf16.mxu0 0
        %1706 = vmatmul.mubr.bf16.gmra.mrb[0].mxu0 %v1668
        %v1707 = vpop.f32.mrb[0].mxu0
        %v1708 = vadd.f32 0.0, %v1707
        %v1709 = vpop.f32.mrb[0].mxu0
        %v1710 = vpop.f32.mrb[0].mxu0
        %v1711 = vpop.f32.mrb[0].mxu0
        %1712 = vdwg.mxu0
        %v1713 = vmul.f32 %v1708, 0.25
        %vm1714 = vcmask 27648
        %v1715 = vsel %vm1714, %v1713, -inf
        %1716 = vmax.xlane.f32.xlu0 %v1715
        %v1717 = vpop.xlane.xlu0 %1716
        %v1718 = vsub.f32 %v1713, %v1717
        %v1719 = vmul.f32 %v1718, 1.442695
        %v1720 = vpow.pop %v1719
        %v1721 = vsel %vm1714, %v1720, 0.0
        %1722 = vadd.xlane.f32.xlu0 %v1721
        %v1723 = vpop.xlane.xlu0 %1722
        %v1724 = vrcp.pop %v1723
        %v1725 = vmul.f32 %v1720, %v1724
        %v1726 = vpack.c.bf16 %v1725, %v1725
        %1727 = vrot.lane.b32.xlu0 %v1662, 64
        %v1728 = vpop.permute.xlu0 %1727
        %vm1729 = vcmask 31744
        %v1731 = vsel %vm1729, %v1726, 0
        %vm1733 = vcmask 1041408
        %v1735 = vsel %vm1733, %v1728, 0
        %1737 = vmatprep.subr.bf16.mxu0 0
        %1738 = vmatpush1.bf16.msra.mxu0 %v1735
        %1739 = vmatprep.subr.bf16.mxu0 0
        %1740 = vmatpush1.bf16.msra.mxu0 0
        %1741 = vmatprep.subr.bf16.mxu0 0
        %1742 = vmatpush1.bf16.msra.mxu0 0
        %1743 = vmatprep.subr.bf16.mxu0 0
        %1744 = vmatpush1.bf16.msra.mxu0 0
        %1745 = vmatprep.subr.bf16.mxu0 0
        %1746 = vmatpush1.bf16.msra.mxu0 0
        %1747 = vmatprep.subr.bf16.mxu0 0
        %1748 = vmatpush1.bf16.msra.mxu0 0
        %1749 = vmatprep.subr.bf16.mxu0 0
        %1750 = vmatpush1.bf16.msra.mxu0 0
        %1751 = vmatprep.subr.bf16.mxu0 0
        %1752 = vmatpush1.bf16.msra.mxu0 0
        %1753 = vmatprep.subr.bf16.mxu0 0
        %1754 = vmatpush1.bf16.msra.mxu0 0
        %1755 = vmatprep.subr.bf16.mxu0 0
        %1756 = vmatpush1.bf16.msra.mxu0 0
        %1757 = vmatprep.subr.bf16.mxu0 0
        %1758 = vmatpush1.bf16.msra.mxu0 0
        %1759 = vmatprep.subr.bf16.mxu0 0
        %1760 = vmatpush1.bf16.msra.mxu0 0
        %1761 = vmatprep.subr.bf16.mxu0 0
        %1762 = vmatpush1.bf16.msra.mxu0 0
        %1763 = vmatprep.subr.bf16.mxu0 0
        %1764 = vmatpush1.bf16.msra.mxu0 0
        %1765 = vmatprep.subr.bf16.mxu0 0
        %1766 = vmatpush1.bf16.msra.mxu0 0
        %1767 = vmatprep.subr.bf16.mxu0 0
        %1768 = vmatpush1.bf16.msra.mxu0 0
        %1769 = vmatprep.mubr.bf16.mxu0 0
        %1770 = vmatmul.mubr.bf16.gmra.mrb[0].mxu0 %v1731
        %v1771 = vpop.f32.mrb[0].mxu0
        %v1772 = vadd.f32 0.0, %v1771
        %v1773 = vpop.f32.mrb[0].mxu0
        %v1774 = vpop.f32.mrb[0].mxu0
        %v1775 = vpop.f32.mrb[0].mxu0
        %1776 = vdwg.mxu0
        %v1777 = vpack.c.bf16 %v1772, %v1772
        %1778 = vrot.lane.b32.xlu0 %v1662, 112
        %v1779 = vpop.permute.xlu0 %1778
        %1780 = vrot.lane.b32.xlu0 %v1662, 80
        %v1781 = vpop.permute.xlu0 %1780
        %v1783 = vsel %vm1666, %v1779, 0
        %v1786 = vsel %vm1666, %v1781, 0
        %1788 = vmatprep.subr.bf16.mxu0 0
        %1789 = vmatpush1.bf16.xpose.msra.mxu0 %v1786
        %1790 = vmatprep.subr.bf16.mxu0 0
        %1791 = vmatpush1.bf16.xpose.msra.mxu0 0
        %1792 = vmatprep.subr.bf16.mxu0 0
        %1793 = vmatpush1.bf16.xpose.msra.mxu0 0
        %1794 = vmatprep.subr.bf16.mxu0 0
        %1795 = vmatpush1.bf16.xpose.msra.mxu0 0
        %1796 = vmatprep.subr.bf16.mxu0 0
        %1797 = vmatpush1.bf16.xpose.msra.mxu0 0
        %1798 = vmatprep.subr.bf16.mxu0 0
        %1799 = vmatpush1.bf16.xpose.msra.mxu0 0
        %1800 = vmatprep.subr.bf16.mxu0 0
        %1801 = vmatpush1.bf16.xpose.msra.mxu0 0
        %1802 = vmatprep.subr.bf16.mxu0 0
        %1803 = vmatpush1.bf16.xpose.msra.mxu0 0
        %1804 = vmatprep.subr.bf16.mxu0 0
        %1805 = vmatpush1.bf16.xpose.msra.mxu0 0
        %1806 = vmatprep.subr.bf16.mxu0 0
        %1807 = vmatpush1.bf16.xpose.msra.mxu0 0
        %1808 = vmatprep.subr.bf16.mxu0 0
        %1809 = vmatpush1.bf16.xpose.msra.mxu0 0
        %1810 = vmatprep.subr.bf16.mxu0 0
        %1811 = vmatpush1.bf16.xpose.msra.mxu0 0
        %1812 = vmatprep.subr.bf16.mxu0 0
        %1813 = vmatpush1.bf16.xpose.msra.mxu0 0
        %1814 = vmatprep.subr.bf16.mxu0 0
        %1815 = vmatpush1.bf16.xpose.msra.mxu0 0
        %1816 = vmatprep.subr.bf16.mxu0 0
        %1817 = vmatpush1.bf16.xpose.msra.mxu0 0
        %1818 = vmatprep.subr.bf16.mxu0 0
        %1819 = vmatpush1.bf16.xpose.msra.mxu0 0
        %1820 = vmatprep.mubr.bf16.mxu0 0
        %1821 = vmatmul.mubr.bf16.gmra.mrb[0].mxu0 %v1783
        %v1822 = vpop.f32.mrb[0].mxu0
        %v1823 = vadd.f32 0.0, %v1822
        %v1824 = vpop.f32.mrb[0].mxu0
        %v1825 = vpop.f32.mrb[0].mxu0
        %v1826 = vpop.f32.mrb[0].mxu0
        %1827 = vdwg.mxu0
        %v1828 = vmul.f32 %v1823, 0.25
        %v1829 = vsel %vm1714, %v1828, -inf
        %1830 = vmax.xlane.f32.xlu0 %v1829
        %v1831 = vpop.xlane.xlu0 %1830
        %v1832 = vsub.f32 %v1828, %v1831
        %v1833 = vmul.f32 %v1832, 1.442695
        %v1834 = vpow.pop %v1833
        %v1835 = vsel %vm1714, %v1834, 0.0
        %1836 = vadd.xlane.f32.xlu0 %v1835
        %v1837 = vpop.xlane.xlu0 %1836
        %v1838 = vrcp.pop %v1837
        %v1839 = vmul.f32 %v1834, %v1838
        %v1840 = vpack.c.bf16 %v1839, %v1839
        %1841 = vrot.lane.b32.xlu0 %v1662, 48
        %v1842 = vpop.permute.xlu0 %1841
        %v1844 = vsel %vm1729, %v1840, 0
        %v1847 = vsel %vm1733, %v1842, 0
        %1849 = vmatprep.subr.bf16.mxu0 0
        %1850 = vmatpush1.bf16.msra.mxu0 %v1847
        %1851 = vmatprep.subr.bf16.mxu0 0
        %1852 = vmatpush1.bf16.msra.mxu0 0
        %1853 = vmatprep.subr.bf16.mxu0 0
        %1854 = vmatpush1.bf16.msra.mxu0 0
        %1855 = vmatprep.subr.bf16.mxu0 0
        %1856 = vmatpush1.bf16.msra.mxu0 0
        %1857 = vmatprep.subr.bf16.mxu0 0
        %1858 = vmatpush1.bf16.msra.mxu0 0
        %1859 = vmatprep.subr.bf16.mxu0 0
        %1860 = vmatpush1.bf16.msra.mxu0 0
        %1861 = vmatprep.subr.bf16.mxu0 0
        %1862 = vmatpush1.bf16.msra.mxu0 0
        %1863 = vmatprep.subr.bf16.mxu0 0
        %1864 = vmatpush1.bf16.msra.mxu0 0
        %1865 = vmatprep.subr.bf16.mxu0 0
        %1866 = vmatpush1.bf16.msra.mxu0 0
        %1867 = vmatprep.subr.bf16.mxu0 0
        %1868 = vmatpush1.bf16.msra.mxu0 0
        %1869 = vmatprep.subr.bf16.mxu0 0
        %1870 = vmatpush1.bf16.msra.mxu0 0
        %1871 = vmatprep.subr.bf16.mxu0 0
        %1872 = vmatpush1.bf16.msra.mxu0 0
        %1873 = vmatprep.subr.bf16.mxu0 0
        %1874 = vmatpush1.bf16.msra.mxu0 0
        %1875 = vmatprep.subr.bf16.mxu0 0
        %1876 = vmatpush1.bf16.msra.mxu0 0
        %1877 = vmatprep.subr.bf16.mxu0 0
        %1878 = vmatpush1.bf16.msra.mxu0 0
        %1879 = vmatprep.subr.bf16.mxu0 0
        %1880 = vmatpush1.bf16.msra.mxu0 0
        %1881 = vmatprep.mubr.bf16.mxu0 0
        %1882 = vmatmul.mubr.bf16.gmra.mrb[0].mxu0 %v1844
        %v1883 = vpop.f32.mrb[0].mxu0
        %v1884 = vadd.f32 0.0, %v1883
        %v1885 = vpop.f32.mrb[0].mxu0
        %v1886 = vpop.f32.mrb[0].mxu0
        %v1887 = vpop.f32.mrb[0].mxu0
        %1888 = vdwg.mxu0
        %v1889 = vpack.c.bf16 %v1884, %v1884
        %v1892 = vunpack.c.l.b16 %v1660
        %v1893 = vunpack.c.l.b16 %v1661
        %v1894 = vpack.c.b16 %v1893, %v1892
        %v1897 = vsel %vm1666, %v1889, 0
        %1899 = vmatprep.subr.bf16.mxu0 0
        %1900 = vmatpush1.bf16.msra.mxu0 %v1894
        %1901 = vmatprep.subr.bf16.mxu0 0
        %1902 = vmatpush1.bf16.msra.mxu0 0
        %1903 = vmatprep.subr.bf16.mxu0 0
        %1904 = vmatpush1.bf16.msra.mxu0 0
        %1905 = vmatprep.subr.bf16.mxu0 0
        %1906 = vmatpush1.bf16.msra.mxu0 0
        %1907 = vmatprep.subr.bf16.mxu0 0
        %1908 = vmatpush1.bf16.msra.mxu0 0
        %1909 = vmatprep.subr.bf16.mxu0 0
        %1910 = vmatpush1.bf16.msra.mxu0 0
        %1911 = vmatprep.subr.bf16.mxu0 0
        %1912 = vmatpush1.bf16.msra.mxu0 0
        %1913 = vmatprep.subr.bf16.mxu0 0
        %1914 = vmatpush1.bf16.msra.mxu0 0
        %1915 = vmatprep.subr.bf16.mxu0 0
        %1916 = vmatpush1.bf16.msra.mxu0 0
        %1917 = vmatprep.subr.bf16.mxu0 0
        %1918 = vmatpush1.bf16.msra.mxu0 0
        %1919 = vmatprep.subr.bf16.mxu0 0
        %1920 = vmatpush1.bf16.msra.mxu0 0
        %1921 = vmatprep.subr.bf16.mxu0 0
        %1922 = vmatpush1.bf16.msra.mxu0 0
        %1923 = vmatprep.subr.bf16.mxu0 0
        %1924 = vmatpush1.bf16.msra.mxu0 0
        %1925 = vmatprep.subr.bf16.mxu0 0
        %1926 = vmatpush1.bf16.msra.mxu0 0
        %1927 = vmatprep.subr.bf16.mxu0 0
        %1928 = vmatpush1.bf16.msra.mxu0 0
        %1929 = vmatprep.subr.bf16.mxu0 0
        %1930 = vmatpush1.bf16.msra.mxu0 0
        %1931 = vmatprep.mubr.bf16.mxu0 0
        %1932 = vmatmul.mubr.bf16.gmra.mrb[0].mxu0 %v1897
        %v1933 = vpop.f32.mrb[0].mxu0
        %v1934 = vadd.f32 0.0, %v1933
        %v1935 = vpop.f32.mrb[0].mxu0
        %v1936 = vpop.f32.mrb[0].mxu0
        %v1937 = vpop.f32.mrb[0].mxu0
        %1938 = vdwg.mxu0
        %v1941 = vunpack.c.l.b16 %v1658
        %v1942 = vunpack.c.l.b16 %v1659
        %v1943 = vpack.c.b16 %v1942, %v1941
        %v1946 = vsel %vm1666, %v1777, 0
        %1948 = vmatprep.subr.bf16.mxu0 0
        %1949 = vmatpush1.bf16.msra.mxu0 %v1943
        %1950 = vmatprep.subr.bf16.mxu0 0
        %1951 = vmatpush1.bf16.msra.mxu0 0
        %1952 = vmatprep.subr.bf16.mxu0 0
        %1953 = vmatpush1.bf16.msra.mxu0 0
        %1954 = vmatprep.subr.bf16.mxu0 0
        %1955 = vmatpush1.bf16.msra.mxu0 0
        %1956 = vmatprep.subr.bf16.mxu0 0
        %1957 = vmatpush1.bf16.msra.mxu0 0
        %1958 = vmatprep.subr.bf16.mxu0 0
        %1959 = vmatpush1.bf16.msra.mxu0 0
        %1960 = vmatprep.subr.bf16.mxu0 0
        %1961 = vmatpush1.bf16.msra.mxu0 0
        %1962 = vmatprep.subr.bf16.mxu0 0
        %1963 = vmatpush1.bf16.msra.mxu0 0
        %1964 = vmatprep.subr.bf16.mxu0 0
        %1965 = vmatpush1.bf16.msra.mxu0 0
        %1966 = vmatprep.subr.bf16.mxu0 0
        %1967 = vmatpush1.bf16.msra.mxu0 0
        %1968 = vmatprep.subr.bf16.mxu0 0
        %1969 = vmatpush1.bf16.msra.mxu0 0
        %1970 = vmatprep.subr.bf16.mxu0 0
        %1971 = vmatpush1.bf16.msra.mxu0 0
        %1972 = vmatprep.subr.bf16.mxu0 0
        %1973 = vmatpush1.bf16.msra.mxu0 0
        %1974 = vmatprep.subr.bf16.mxu0 0
        %1975 = vmatpush1.bf16.msra.mxu0 0
        %1976 = vmatprep.subr.bf16.mxu0 0
        %1977 = vmatpush1.bf16.msra.mxu0 0
        %1978 = vmatprep.subr.bf16.mxu0 0
        %1979 = vmatpush1.bf16.msra.mxu0 0
        %1980 = vmatprep.mubr.bf16.mxu0 0
        %1981 = vmatmul.mubr.bf16.gmra.mrb[0].mxu0 %v1946
        %v1982 = vpop.f32.mrb[0].mxu0
        %v1983 = vadd.f32 %v1934, %v1982
        %v1984 = vpop.f32.mrb[0].mxu0
        %v1985 = vpop.f32.mrb[0].mxu0
        %v1986 = vpop.f32.mrb[0].mxu0
        %1987 = vdwg.mxu0
        %v1988 = vld [vmem:[%s21] sm:$0x1]
        %v1990 = vlaneseq
        %v1991 = vshrl.u32 %v1990, 7
        %v1992 = vsub.s32 0, %v1991
        %v1993 = vrot.slane %v1988, %v1992
        %v1995 = vadd.f32 %v1983, %v1993
        %v1996 = vadd.f32 %v1558, %v1995
        %v1997 = vld [vmem:[%s23] sm:$0x1]
        %v1998 = vld [vmem:[%s25] sm:$0x1]
        %v1999 = vsel %vm1561, %v1996, 0.0
        %2000 = vadd.xlane.f32.xlu0 %v1999
        %v2001 = vpop.xlane.xlu0 %2000
        %v2002 = vmul.f32 %v2001, %v1565
        %v2003 = vsub.f32 %v1996, %v2002
        %v2004 = vmul.f32 %v2003, %v2003
        %v2005 = vsel %vm1561, %v2004, 0.0
        %2006 = vadd.xlane.f32.xlu0 %v2005
        %v2007 = vpop.xlane.xlu0 %2006
        %v2008 = vmul.f32 %v2007, %v1565
        %v2009 = vadd.f32 %v2008, 1e-06
        %v2010 = vrsqrt.pop %v2009
        %v2011 = vmul.f32 %v2003, %v2010
        %v2013 = vlaneseq
        %v2014 = vshrl.u32 %v2013, 7
        %v2015 = vsub.s32 0, %v2014
        %v2016 = vrot.slane %v1997, %v2015
        %v2018 = vmul.f32 %v2011, %v2016
        %v2020 = vlaneseq
        %v2021 = vshrl.u32 %v2020, 7
        %v2022 = vsub.s32 0, %v2021
        %v2023 = vrot.slane %v1998, %v2022
        %v2025 = vadd.f32 %v2018, %v2023
        %v2026 = vld [vmem:[%s27] sm:$0xf]
        %v2027 = vld [vmem:[%s27 + $0x4] sm:$0xf]
        %v2028 = vld [vmem:[%s27 + $0x8] sm:$0xf]
        %v2029 = vld [vmem:[%s27 + $0xc] sm:$0xf]
        %v2030 = vpack.c.bf16 %v2025, %v2025
        %v2031 = vld [vmem:[%s29] sm:$0x1]
        %v2033 = vlaneseq
        %v2034 = vshrl.u32 %v2033, 7
        %v2035 = vsub.s32 0, %v2034
        %v2036 = vrot.slane %v2031, %v2035
        %v2042 = vunpack.c.l.b16 %v2026
        %v2043 = vunpack.c.l.b16 %v2027
        %v2044 = vunpack.c.l.b16 %v2028
        %v2045 = vunpack.c.l.b16 %v2029
        %v2046 = vpack.c.b16 %v2043, %v2042
        %v2047 = vpack.c.b16 %v2045, %v2044
        %v2051 = vsel %vm1614, %v2030, 0
        %2053 = vmatprep.subr.bf16.mxu0 0
        %2054 = vmatpush1.bf16.msra.mxu0 %v2046
        %2055 = vmatprep.subr.bf16.mxu0 0
        %2056 = vmatpush1.bf16.msra.mxu0 %v2047
        %2057 = vmatprep.subr.bf16.mxu0 0
        %2058 = vmatpush1.bf16.msra.mxu0 0
        %2059 = vmatprep.subr.bf16.mxu0 0
        %2060 = vmatpush1.bf16.msra.mxu0 0
        %2061 = vmatprep.subr.bf16.mxu0 0
        %2062 = vmatpush1.bf16.msra.mxu0 0
        %2063 = vmatprep.subr.bf16.mxu0 0
        %2064 = vmatpush1.bf16.msra.mxu0 0
        %2065 = vmatprep.subr.bf16.mxu0 0
        %2066 = vmatpush1.bf16.msra.mxu0 0
        %2067 = vmatprep.subr.bf16.mxu0 0
        %2068 = vmatpush1.bf16.msra.mxu0 0
        %2069 = vmatprep.subr.bf16.mxu0 0
        %2070 = vmatpush1.bf16.msra.mxu0 0
        %2071 = vmatprep.subr.bf16.mxu0 0
        %2072 = vmatpush1.bf16.msra.mxu0 0
        %2073 = vmatprep.subr.bf16.mxu0 0
        %2074 = vmatpush1.bf16.msra.mxu0 0
        %2075 = vmatprep.subr.bf16.mxu0 0
        %2076 = vmatpush1.bf16.msra.mxu0 0
        %2077 = vmatprep.subr.bf16.mxu0 0
        %2078 = vmatpush1.bf16.msra.mxu0 0
        %2079 = vmatprep.subr.bf16.mxu0 0
        %2080 = vmatpush1.bf16.msra.mxu0 0
        %2081 = vmatprep.subr.bf16.mxu0 0
        %2082 = vmatpush1.bf16.msra.mxu0 0
        %2083 = vmatprep.subr.bf16.mxu0 0
        %2084 = vmatpush1.bf16.msra.mxu0 0
        %2085 = vmatprep.mubr.bf16.mxu0 0
        %2086 = vmatmul.mubr.bf16.gmra.mrb[0].mxu0 %v2051
        %v2087 = vpop.f32.mrb[0].mxu0
        %v2088 = vadd.f32 %v2036, %v2087
        %v2089 = vpop.f32.mrb[0].mxu0
        %v2090 = vpop.f32.mrb[0].mxu0
        %v2091 = vpop.f32.mrb[0].mxu0
        %2092 = vdwg.mxu0
        %v2093 = vmul.f32 %v2088, %v2088
        %v2094 = vmul.f32 %v2088, %v2093
        %v2095 = vmul.f32 %v2094, 0.044715
        %v2096 = vadd.f32 %v2088, %v2095
        %v2097 = vmul.f32 %v2096, 0.7978846
        %v2098 = vtanh.pop %v2097
        %v2099 = vadd.f32 %v2098, 1.0
        %v2100 = vmul.f32 %v2099, 0.5
        %v2101 = vmul.f32 %v2088, %v2100
        %v2102 = vld [vmem:[%s31] sm:$0xf]
        %v2103 = vld [vmem:[%s31 + $0x4] sm:$0xf]
        %v2104 = vld [vmem:[%s31 + $0x8] sm:$0xf]
        %v2105 = vld [vmem:[%s31 + $0xc] sm:$0xf]
        %v2106 = vld [vmem:[%s31 + $0x10] sm:$0xf]
        %v2107 = vld [vmem:[%s31 + $0x14] sm:$0xf]
        %v2108 = vld [vmem:[%s31 + $0x18] sm:$0xf]
        %v2109 = vld [vmem:[%s31 + $0x1c] sm:$0xf]
        %v2110 = vpack.c.bf16 %v2101, %v2101
        %v2111 = vld [vmem:[%s33] sm:$0x1]
        %v2113 = vlaneseq
        %v2114 = vshrl.u32 %v2113, 7
        %v2115 = vsub.s32 0, %v2114
        %v2116 = vrot.slane %v2111, %v2115
        %v2126 = vunpack.c.l.b16 %v2102
        %v2127 = vunpack.c.l.b16 %v2103
        %v2128 = vunpack.c.l.b16 %v2104
        %v2129 = vunpack.c.l.b16 %v2105
        %v2130 = vunpack.c.l.b16 %v2106
        %v2131 = vunpack.c.l.b16 %v2107
        %v2132 = vunpack.c.l.b16 %v2108
        %v2133 = vunpack.c.l.b16 %v2109
        %v2134 = vpack.c.b16 %v2127, %v2126
        %v2135 = vpack.c.b16 %v2129, %v2128
        %v2136 = vpack.c.b16 %v2131, %v2130
        %v2137 = vpack.c.b16 %v2133, %v2132
        %vm2142 = vcmask 523264
        %v2144 = vsel %vm2142, %v2110, 0
        %2146 = vmatprep.subr.bf16.mxu0 0
        %2147 = vmatpush1.bf16.msra.mxu0 %v2134
        %2148 = vmatprep.subr.bf16.mxu0 0
        %2149 = vmatpush1.bf16.msra.mxu0 %v2135
        %2150 = vmatprep.subr.bf16.mxu0 0
        %2151 = vmatpush1.bf16.msra.mxu0 %v2136
        %2152 = vmatprep.subr.bf16.mxu0 0
        %2153 = vmatpush1.bf16.msra.mxu0 %v2137
        %2154 = vmatprep.subr.bf16.mxu0 0
        %2155 = vmatpush1.bf16.msra.mxu0 0
        %2156 = vmatprep.subr.bf16.mxu0 0
        %2157 = vmatpush1.bf16.msra.mxu0 0
        %2158 = vmatprep.subr.bf16.mxu0 0
        %2159 = vmatpush1.bf16.msra.mxu0 0
        %2160 = vmatprep.subr.bf16.mxu0 0
        %2161 = vmatpush1.bf16.msra.mxu0 0
        %2162 = vmatprep.subr.bf16.mxu0 0
        %2163 = vmatpush1.bf16.msra.mxu0 0
        %2164 = vmatprep.subr.bf16.mxu0 0
        %2165 = vmatpush1.bf16.msra.mxu0 0
        %2166 = vmatprep.subr.bf16.mxu0 0
        %2167 = vmatpush1.bf16.msra.mxu0 0
        %2168 = vmatprep.subr.bf16.mxu0 0
        %2169 = vmatpush1.bf16.msra.mxu0 0
        %2170 = vmatprep.subr.bf16.mxu0 0
        %2171 = vmatpush1.bf16.msra.mxu0 0
        %2172 = vmatprep.subr.bf16.mxu0 0
        %2173 = vmatpush1.bf16.msra.mxu0 0
        %2174 = vmatprep.subr.bf16.mxu0 0
        %2175 = vmatpush1.bf16.msra.mxu0 0
        %2176 = vmatprep.subr.bf16.mxu0 0
        %2177 = vmatpush1.bf16.msra.mxu0 0
        %2178 = vmatprep.mubr.bf16.mxu0 0
        %2179 = vmatmul.mubr.bf16.gmra.mrb[0].mxu0 %v2144
        %v2180 = vpop.f32.mrb[0].mxu0
        %v2181 = vadd.f32 %v2116, %v2180
        %v2182 = vpop.f32.mrb[0].mxu0
        %v2183 = vpop.f32.mrb[0].mxu0
        %v2184 = vpop.f32.mrb[0].mxu0
        %2185 = vdwg.mxu0
        %v2186 = vadd.f32 %v1996, %v2181
        %v2187 = vld [vmem:[%s35] sm:$0x1]
        %v2188 = vld [vmem:[%s37] sm:$0x1]
        %v2189 = vsel %vm1561, %v2186, 0.0
        %2190 = vadd.xlane.f32.xlu0 %v2189
        %v2191 = vpop.xlane.xlu0 %2190
        %v2192 = vmul.f32 %v2191, %v1565
        %v2193 = vsub.f32 %v2186, %v2192
        %v2194 = vmul.f32 %v2193, %v2193
        %v2195 = vsel %vm1561, %v2194, 0.0
        %2196 = vadd.xlane.f32.xlu0 %v2195
        %v2197 = vpop.xlane.xlu0 %2196
        %v2198 = vmul.f32 %v2197, %v1565
        %v2199 = vadd.f32 %v2198, 1e-06
        %v2200 = vrsqrt.pop %v2199
        %v2201 = vmul.f32 %v2193, %v2200
        %v2203 = vlaneseq
        %v2204 = vshrl.u32 %v2203, 7
        %v2205 = vsub.s32 0, %v2204
        %v2206 = vrot.slane %v2187, %v2205
        %v2208 = vmul.f32 %v2201, %v2206
        %v2210 = vlaneseq
        %v2211 = vshrl.u32 %v2210, 7
        %v2212 = vsub.s32 0, %v2211
        %v2213 = vrot.slane %v2188, %v2212
        %v2215 = vadd.f32 %v2208, %v2213
        %v2216 = vld [vmem:[%s39] sm:$0xff]
        %v2217 = vld [vmem:[%s41] sm:$0xf]
        %v2218 = vld [vmem:[%s41 + $0x4] sm:$0xf]
        %v2219 = vld [vmem:[%s41 + $0x8] sm:$0xf]
        %v2220 = vld [vmem:[%s41 + $0xc] sm:$0xf]
        %v2221 = vpack.c.bf16 %v2216, %v2216
        %v2222 = vld [vmem:[%s43] sm:$0x1]
        %v2224 = vlaneseq
        %v2225 = vshrl.u32 %v2224, 7
        %v2226 = vsub.s32 0, %v2225
        %v2227 = vrot.slane %v2222, %v2226
        %v2233 = vunpack.c.l.b16 %v2217
        %v2234 = vunpack.c.l.b16 %v2218
        %v2235 = vunpack.c.l.b16 %v2219
        %v2236 = vunpack.c.l.b16 %v2220
        %v2237 = vpack.c.b16 %v2234, %v2233
        %v2238 = vpack.c.b16 %v2236, %v2235
        %v2242 = vsel %vm1614, %v2221, 0
        %2244 = vmatprep.subr.bf16.mxu0 0
        %2245 = vmatpush1.bf16.msra.mxu0 %v2237
        %2246 = vmatprep.subr.bf16.mxu0 0
        %2247 = vmatpush1.bf16.msra.mxu0 %v2238
        %2248 = vmatprep.subr.bf16.mxu0 0
        %2249 = vmatpush1.bf16.msra.mxu0 0
        %2250 = vmatprep.subr.bf16.mxu0 0
        %2251 = vmatpush1.bf16.msra.mxu0 0
        %2252 = vmatprep.subr.bf16.mxu0 0
        %2253 = vmatpush1.bf16.msra.mxu0 0
        %2254 = vmatprep.subr.bf16.mxu0 0
        %2255 = vmatpush1.bf16.msra.mxu0 0
        %2256 = vmatprep.subr.bf16.mxu0 0
        %2257 = vmatpush1.bf16.msra.mxu0 0
        %2258 = vmatprep.subr.bf16.mxu0 0
        %2259 = vmatpush1.bf16.msra.mxu0 0
        %2260 = vmatprep.subr.bf16.mxu0 0
        %2261 = vmatpush1.bf16.msra.mxu0 0
        %2262 = vmatprep.subr.bf16.mxu0 0
        %2263 = vmatpush1.bf16.msra.mxu0 0
        %2264 = vmatprep.subr.bf16.mxu0 0
        %2265 = vmatpush1.bf16.msra.mxu0 0
        %2266 = vmatprep.subr.bf16.mxu0 0
        %2267 = vmatpush1.bf16.msra.mxu0 0
        %2268 = vmatprep.subr.bf16.mxu0 0
        %2269 = vmatpush1.bf16.msra.mxu0 0
        %2270 = vmatprep.subr.bf16.mxu0 0
        %2271 = vmatpush1.bf16.msra.mxu0 0
        %2272 = vmatprep.subr.bf16.mxu0 0
        %2273 = vmatpush1.bf16.msra.mxu0 0
        %2274 = vmatprep.subr.bf16.mxu0 0
        %2275 = vmatpush1.bf16.msra.mxu0 0
        %2276 = vmatprep.mubr.bf16.mxu0 0
        %2277 = vmatmul.mubr.bf16.gmra.mrb[0].mxu0 %v2242
        %v2278 = vpop.f32.mrb[0].mxu0
        %v2279 = vadd.f32 %v2227, %v2278
        %v2280 = vpop.f32.mrb[0].mxu0
        %v2281 = vpop.f32.mrb[0].mxu0
        %v2282 = vpop.f32.mrb[0].mxu0
        %2283 = vdwg.mxu0
        %v2284 = vld [vmem:[%s45] sm:$0xf]
        %v2285 = vld [vmem:[%s45 + $0x4] sm:$0xf]
        %v2286 = vld [vmem:[%s45 + $0x8] sm:$0xf]
        %v2287 = vld [vmem:[%s45 + $0xc] sm:$0xf]
        %v2288 = vpack.c.bf16 %v2215, %v2215
        %v2289 = vld [vmem:[%s47] sm:$0x1]
        %v2291 = vlaneseq
        %v2292 = vshrl.u32 %v2291, 7
        %v2293 = vsub.s32 0, %v2292
        %v2294 = vrot.slane %v2289, %v2293
        %v2300 = vunpack.c.l.b16 %v2284
        %v2301 = vunpack.c.l.b16 %v2285
        %v2302 = vunpack.c.l.b16 %v2286
        %v2303 = vunpack.c.l.b16 %v2287
        %v2304 = vpack.c.b16 %v2301, %v2300
        %v2305 = vpack.c.b16 %v2303, %v2302
        %v2309 = vsel %vm1614, %v2288, 0
        %2311 = vmatprep.subr.bf16.mxu0 0
        %2312 = vmatpush1.bf16.msra.mxu0 %v2304
        %2313 = vmatprep.subr.bf16.mxu0 0
        %2314 = vmatpush1.bf16.msra.mxu0 %v2305
        %2315 = vmatprep.subr.bf16.mxu0 0
        %2316 = vmatpush1.bf16.msra.mxu0 0
        %2317 = vmatprep.subr.bf16.mxu0 0
        %2318 = vmatpush1.bf16.msra.mxu0 0
        %2319 = vmatprep.subr.bf16.mxu0 0
        %2320 = vmatpush1.bf16.msra.mxu0 0
        %2321 = vmatprep.subr.bf16.mxu0 0
        %2322 = vmatpush1.bf16.msra.mxu0 0
        %2323 = vmatprep.subr.bf16.mxu0 0
        %2324 = vmatpush1.bf16.msra.mxu0 0
        %2325 = vmatprep.subr.bf16.mxu0 0
        %2326 = vmatpush1.bf16.msra.mxu0 0
        %2327 = vmatprep.subr.bf16.mxu0 0
        %2328 = vmatpush1.bf16.msra.mxu0 0
        %2329 = vmatprep.subr.bf16.mxu0 0
        %2330 = vmatpush1.bf16.msra.mxu0 0
        %2331 = vmatprep.subr.bf16.mxu0 0
        %2332 = vmatpush1.bf16.msra.mxu0 0
        %2333 = vmatprep.subr.bf16.mxu0 0
        %2334 = vmatpush1.bf16.msra.mxu0 0
        %2335 = vmatprep.subr.bf16.mxu0 0
        %2336 = vmatpush1.bf16.msra.mxu0 0
        %2337 = vmatprep.subr.bf16.mxu0 0
        %2338 = vmatpush1.bf16.msra.mxu0 0
        %2339 = vmatprep.subr.bf16.mxu0 0
        %2340 = vmatpush1.bf16.msra.mxu0 0
        %2341 = vmatprep.subr.bf16.mxu0 0
        %2342 = vmatpush1.bf16.msra.mxu0 0
        %2343 = vmatprep.mubr.bf16.mxu0 0
        %2344 = vmatmul.mubr.bf16.gmra.mrb[0].mxu0 %v2309
        %v2345 = vpop.f32.mrb[0].mxu0
        %v2346 = vadd.f32 %v2294, %v2345
        %v2347 = vpop.f32.mrb[0].mxu0
        %v2348 = vpop.f32.mrb[0].mxu0
        %v2349 = vpop.f32.mrb[0].mxu0
        %2350 = vdwg.mxu0
        %v2351 = vld [vmem:[%s49] sm:$0xf]
        %v2352 = vld [vmem:[%s49 + $0x4] sm:$0xf]
        %v2353 = vld [vmem:[%s49 + $0x8] sm:$0xf]
        %v2354 = vld [vmem:[%s49 + $0xc] sm:$0xf]
        %v2355 = vpack.c.bf16 %v2279, %v2279
        %v2356 = vpack.c.bf16 %v2346, %v2346
        %v2358 = vsel %vm1666, %v2355, 0
        %v2361 = vsel %vm1666, %v2356, 0
        %2363 = vmatprep.subr.bf16.mxu0 0
        %2364 = vmatpush1.bf16.xpose.msra.mxu0 %v2361
        %2365 = vmatprep.subr.bf16.mxu0 0
        %2366 = vmatpush1.bf16.xpose.msra.mxu0 0
        %2367 = vmatprep.subr.bf16.mxu0 0
        %2368 = vmatpush1.bf16.xpose.msra.mxu0 0
        %2369 = vmatprep.subr.bf16.mxu0 0
        %2370 = vmatpush1.bf16.xpose.msra.mxu0 0
        %2371 = vmatprep.subr.bf16.mxu0 0
        %2372 = vmatpush1.bf16.xpose.msra.mxu0 0
        %2373 = vmatprep.subr.bf16.mxu0 0
        %2374 = vmatpush1.bf16.xpose.msra.mxu0 0
        %2375 = vmatprep.subr.bf16.mxu0 0
        %2376 = vmatpush1.bf16.xpose.msra.mxu0 0
        %2377 = vmatprep.subr.bf16.mxu0 0
        %2378 = vmatpush1.bf16.xpose.msra.mxu0 0
        %2379 = vmatprep.subr.bf16.mxu0 0
        %2380 = vmatpush1.bf16.xpose.msra.mxu0 0
        %2381 = vmatprep.subr.bf16.mxu0 0
        %2382 = vmatpush1.bf16.xpose.msra.mxu0 0
        %2383 = vmatprep.subr.bf16.mxu0 0
        %2384 = vmatpush1.bf16.xpose.msra.mxu0 0
        %2385 = vmatprep.subr.bf16.mxu0 0
        %2386 = vmatpush1.bf16.xpose.msra.mxu0 0
        %2387 = vmatprep.subr.bf16.mxu0 0
        %2388 = vmatpush1.bf16.xpose.msra.mxu0 0
        %2389 = vmatprep.subr.bf16.mxu0 0
        %2390 = vmatpush1.bf16.xpose.msra.mxu0 0
        %2391 = vmatprep.subr.bf16.mxu0 0
        %2392 = vmatpush1.bf16.xpose.msra.mxu0 0
        %2393 = vmatprep.subr.bf16.mxu0 0
        %2394 = vmatpush1.bf16.xpose.msra.mxu0 0
        %2395 = vmatprep.mubr.bf16.mxu0 0
        %2396 = vmatmul.mubr.bf16.gmra.mrb[0].mxu0 %v2358
        %v2397 = vpop.f32.mrb[0].mxu0
        %v2398 = vadd.f32 0.0, %v2397
        %v2399 = vpop.f32.mrb[0].mxu0
        %v2400 = vpop.f32.mrb[0].mxu0
        %v2401 = vpop.f32.mrb[0].mxu0
        %2402 = vdwg.mxu0
        %v2403 = vmul.f32 %v2398, 0.25
        %v2404 = vsel %vm1729, %v2403, -inf
        %2405 = vmax.xlane.f32.xlu0 %v2404
        %v2406 = vpop.xlane.xlu0 %2405
        %v2407 = vsub.f32 %v2403, %v2406
        %v2408 = vmul.f32 %v2407, 1.442695
        %v2409 = vpow.pop %v2408
        %v2410 = vsel %vm1729, %v2409, 0.0
        %2411 = vadd.xlane.f32.xlu0 %v2410
        %v2412 = vpop.xlane.xlu0 %2411
        %v2413 = vrcp.pop %v2412
        %v2414 = vmul.f32 %v2409, %v2413
        %v2415 = vpack.c.bf16 %v2414, %v2414
        %2417 = vrot.lane.b32.xlu0 %v2356, 96
        %v2418 = vpop.permute.xlu0 %2417
        %v2420 = vsel %vm1729, %v2415, 0
        %v2423 = vsel %vm1733, %v2418, 0
        %2425 = vmatprep.subr.bf16.mxu0 0
        %2426 = vmatpush1.bf16.msra.mxu0 %v2423
        %2427 = vmatprep.subr.bf16.mxu0 0
        %2428 = vmatpush1.bf16.msra.mxu0 0
        %2429 = vmatprep.subr.bf16.mxu0 0
        %2430 = vmatpush1.bf16.msra.mxu0 0
        %2431 = vmatprep.subr.bf16.mxu0 0
        %2432 = vmatpush1.bf16.msra.mxu0 0
        %2433 = vmatprep.subr.bf16.mxu0 0
        %2434 = vmatpush1.bf16.msra.mxu0 0
        %2435 = vmatprep.subr.bf16.mxu0 0
        %2436 = vmatpush1.bf16.msra.mxu0 0
        %2437 = vmatprep.subr.bf16.mxu0 0
        %2438 = vmatpush1.bf16.msra.mxu0 0
        %2439 = vmatprep.subr.bf16.mxu0 0
        %2440 = vmatpush1.bf16.msra.mxu0 0
        %2441 = vmatprep.subr.bf16.mxu0 0
        %2442 = vmatpush1.bf16.msra.mxu0 0
        %2443 = vmatprep.subr.bf16.mxu0 0
        %2444 = vmatpush1.bf16.msra.mxu0 0
        %2445 = vmatprep.subr.bf16.mxu0 0
        %2446 = vmatpush1.bf16.msra.mxu0 0
        %2447 = vmatprep.subr.bf16.mxu0 0
        %2448 = vmatpush1.bf16.msra.mxu0 0
        %2449 = vmatprep.subr.bf16.mxu0 0
        %2450 = vmatpush1.bf16.msra.mxu0 0
        %2451 = vmatprep.subr.bf16.mxu0 0
        %2452 = vmatpush1.bf16.msra.mxu0 0
        %2453 = vmatprep.subr.bf16.mxu0 0
        %2454 = vmatpush1.bf16.msra.mxu0 0
        %2455 = vmatprep.subr.bf16.mxu0 0
        %2456 = vmatpush1.bf16.msra.mxu0 0
        %2457 = vmatprep.mubr.bf16.mxu0 0
        %2458 = vmatmul.mubr.bf16.gmra.mrb[0].mxu0 %v2420
        %v2459 = vpop.f32.mrb[0].mxu0
        %v2460 = vadd.f32 0.0, %v2459
        %v2461 = vpop.f32.mrb[0].mxu0
        %v2462 = vpop.f32.mrb[0].mxu0
        %v2463 = vpop.f32.mrb[0].mxu0
        %2464 = vdwg.mxu0
        %v2465 = vpack.c.bf16 %v2460, %v2460
        %2467 = vrot.lane.b32.xlu0 %v2355, 112
        %v2468 = vpop.permute.xlu0 %2467
        %2469 = vrot.lane.b32.xlu0 %v2356, 112
        %v2470 = vpop.permute.xlu0 %2469
        %v2472 = vsel %vm1666, %v2468, 0
        %v2475 = vsel %vm1666, %v2470, 0
        %2477 = vmatprep.subr.bf16.mxu0 0
        %2478 = vmatpush1.bf16.xpose.msra.mxu0 %v2475
        %2479 = vmatprep.subr.bf16.mxu0 0
        %2480 = vmatpush1.bf16.xpose.msra.mxu0 0
        %2481 = vmatprep.subr.bf16.mxu0 0
        %2482 = vmatpush1.bf16.xpose.msra.mxu0 0
        %2483 = vmatprep.subr.bf16.mxu0 0
        %2484 = vmatpush1.bf16.xpose.msra.mxu0 0
        %2485 = vmatprep.subr.bf16.mxu0 0
        %2486 = vmatpush1.bf16.xpose.msra.mxu0 0
        %2487 = vmatprep.subr.bf16.mxu0 0
        %2488 = vmatpush1.bf16.xpose.msra.mxu0 0
        %2489 = vmatprep.subr.bf16.mxu0 0
        %2490 = vmatpush1.bf16.xpose.msra.mxu0 0
        %2491 = vmatprep.subr.bf16.mxu0 0
        %2492 = vmatpush1.bf16.xpose.msra.mxu0 0
        %2493 = vmatprep.subr.bf16.mxu0 0
        %2494 = vmatpush1.bf16.xpose.msra.mxu0 0
        %2495 = vmatprep.subr.bf16.mxu0 0
        %2496 = vmatpush1.bf16.xpose.msra.mxu0 0
        %2497 = vmatprep.subr.bf16.mxu0 0
        %2498 = vmatpush1.bf16.xpose.msra.mxu0 0
        %2499 = vmatprep.subr.bf16.mxu0 0
        %2500 = vmatpush1.bf16.xpose.msra.mxu0 0
        %2501 = vmatprep.subr.bf16.mxu0 0
        %2502 = vmatpush1.bf16.xpose.msra.mxu0 0
        %2503 = vmatprep.subr.bf16.mxu0 0
        %2504 = vmatpush1.bf16.xpose.msra.mxu0 0
        %2505 = vmatprep.subr.bf16.mxu0 0
        %2506 = vmatpush1.bf16.xpose.msra.mxu0 0
        %2507 = vmatprep.subr.bf16.mxu0 0
        %2508 = vmatpush1.bf16.xpose.msra.mxu0 0
        %2509 = vmatprep.mubr.bf16.mxu0 0
        %2510 = vmatmul.mubr.bf16.gmra.mrb[0].mxu0 %v2472
        %v2511 = vpop.f32.mrb[0].mxu0
        %v2512 = vadd.f32 0.0, %v2511
        %v2513 = vpop.f32.mrb[0].mxu0
        %v2514 = vpop.f32.mrb[0].mxu0
        %v2515 = vpop.f32.mrb[0].mxu0
        %2516 = vdwg.mxu0
        %v2517 = vmul.f32 %v2512, 0.25
        %v2518 = vsel %vm1729, %v2517, -inf
        %2519 = vmax.xlane.f32.xlu0 %v2518
        %v2520 = vpop.xlane.xlu0 %2519
        %v2521 = vsub.f32 %v2517, %v2520
        %v2522 = vmul.f32 %v2521, 1.442695
        %v2523 = vpow.pop %v2522
        %v2524 = vsel %vm1729, %v2523, 0.0
        %2525 = vadd.xlane.f32.xlu0 %v2524
        %v2526 = vpop.xlane.xlu0 %2525
        %v2527 = vrcp.pop %v2526
        %v2528 = vmul.f32 %v2523, %v2527
        %v2529 = vpack.c.bf16 %v2528, %v2528
        %2530 = vrot.lane.b32.xlu0 %v2356, 80
        %v2531 = vpop.permute.xlu0 %2530
        %v2533 = vsel %vm1729, %v2529, 0
        %v2536 = vsel %vm1733, %v2531, 0
        %2538 = vmatprep.subr.bf16.mxu0 0
        %2539 = vmatpush1.bf16.msra.mxu0 %v2536
        %2540 = vmatprep.subr.bf16.mxu0 0
        %2541 = vmatpush1.bf16.msra.mxu0 0
        %2542 = vmatprep.subr.bf16.mxu0 0
        %2543 = vmatpush1.bf16.msra.mxu0 0
        %2544 = vmatprep.subr.bf16.mxu0 0
        %2545 = vmatpush1.bf16.msra.mxu0 0
        %2546 = vmatprep.subr.bf16.mxu0 0
        %2547 = vmatpush1.bf16.msra.mxu0 0
        %2548 = vmatprep.subr.bf16.mxu0 0
        %2549 = vmatpush1.bf16.msra.mxu0 0
        %2550 = vmatprep.subr.bf16.mxu0 0
        %2551 = vmatpush1.bf16.msra.mxu0 0
        %2552 = vmatprep.subr.bf16.mxu0 0
        %2553 = vmatpush1.bf16.msra.mxu0 0
        %2554 = vmatprep.subr.bf16.mxu0 0
        %2555 = vmatpush1.bf16.msra.mxu0 0
        %2556 = vmatprep.subr.bf16.mxu0 0
        %2557 = vmatpush1.bf16.msra.mxu0 0
        %2558 = vmatprep.subr.bf16.mxu0 0
        %2559 = vmatpush1.bf16.msra.mxu0 0
        %2560 = vmatprep.subr.bf16.mxu0 0
        %2561 = vmatpush1.bf16.msra.mxu0 0
        %2562 = vmatprep.subr.bf16.mxu0 0
        %2563 = vmatpush1.bf16.msra.mxu0 0
        %2564 = vmatprep.subr.bf16.mxu0 0
        %2565 = vmatpush1.bf16.msra.mxu0 0
        %2566 = vmatprep.subr.bf16.mxu0 0
        %2567 = vmatpush1.bf16.msra.mxu0 0
        %2568 = vmatprep.subr.bf16.mxu0 0
        %2569 = vmatpush1.bf16.msra.mxu0 0
        %2570 = vmatprep.mubr.bf16.mxu0 0
        %2571 = vmatmul.mubr.bf16.gmra.mrb[0].mxu0 %v2533
        %v2572 = vpop.f32.mrb[0].mxu0
        %v2573 = vadd.f32 0.0, %v2572
        %v2574 = vpop.f32.mrb[0].mxu0
        %v2575 = vpop.f32.mrb[0].mxu0
        %v2576 = vpop.f32.mrb[0].mxu0
        %2577 = vdwg.mxu0
        %v2578 = vpack.c.bf16 %v2573, %v2573
        %v2581 = vunpack.c.l.b16 %v2353
        %v2582 = vunpack.c.l.b16 %v2354
        %v2583 = vpack.c.b16 %v2582, %v2581
        %v2586 = vsel %vm1666, %v2578, 0
        %2588 = vmatprep.subr.bf16.mxu0 0
        %2589 = vmatpush1.bf16.msra.mxu0 %v2583
        %2590 = vmatprep.subr.bf16.mxu0 0
        %2591 = vmatpush1.bf16.msra.mxu0 0
        %2592 = vmatprep.subr.bf16.mxu0 0
        %2593 = vmatpush1.bf16.msra.mxu0 0
        %2594 = vmatprep.subr.bf16.mxu0 0
        %2595 = vmatpush1.bf16.msra.mxu0 0
        %2596 = vmatprep.subr.bf16.mxu0 0
        %2597 = vmatpush1.bf16.msra.mxu0 0
        %2598 = vmatprep.subr.bf16.mxu0 0
        %2599 = vmatpush1.bf16.msra.mxu0 0
        %2600 = vmatprep.subr.bf16.mxu0 0
        %2601 = vmatpush1.bf16.msra.mxu0 0
        %2602 = vmatprep.subr.bf16.mxu0 0
        %2603 = vmatpush1.bf16.msra.mxu0 0
        %2604 = vmatprep.subr.bf16.mxu0 0
        %2605 = vmatpush1.bf16.msra.mxu0 0
        %2606 = vmatprep.subr.bf16.mxu0 0
        %2607 = vmatpush1.bf16.msra.mxu0 0
        %2608 = vmatprep.subr.bf16.mxu0 0
        %2609 = vmatpush1.bf16.msra.mxu0 0
        %2610 = vmatprep.subr.bf16.mxu0 0
        %2611 = vmatpush1.bf16.msra.mxu0 0
        %2612 = vmatprep.subr.bf16.mxu0 0
        %2613 = vmatpush1.bf16.msra.mxu0 0
        %2614 = vmatprep.subr.bf16.mxu0 0
        %2615 = vmatpush1.bf16.msra.mxu0 0
        %2616 = vmatprep.subr.bf16.mxu0 0
        %2617 = vmatpush1.bf16.msra.mxu0 0
        %2618 = vmatprep.subr.bf16.mxu0 0
        %2619 = vmatpush1.bf16.msra.mxu0 0
        %2620 = vmatprep.mubr.bf16.mxu0 0
        %2621 = vmatmul.mubr.bf16.gmra.mrb[0].mxu0 %v2586
        %v2622 = vpop.f32.mrb[0].mxu0
        %v2623 = vadd.f32 0.0, %v2622
        %v2624 = vpop.f32.mrb[0].mxu0
        %v2625 = vpop.f32.mrb[0].mxu0
        %v2626 = vpop.f32.mrb[0].mxu0
        %2627 = vdwg.mxu0
        %v2630 = vunpack.c.l.b16 %v2351
        %v2631 = vunpack.c.l.b16 %v2352
        %v2632 = vpack.c.b16 %v2631, %v2630
        %v2635 = vsel %vm1666, %v2465, 0
        %2637 = vmatprep.subr.bf16.mxu0 0
        %2638 = vmatpush1.bf16.msra.mxu0 %v2632
        %2639 = vmatprep.subr.bf16.mxu0 0
        %2640 = vmatpush1.bf16.msra.mxu0 0
        %2641 = vmatprep.subr.bf16.mxu0 0
        %2642 = vmatpush1.bf16.msra.mxu0 0
        %2643 = vmatprep.subr.bf16.mxu0 0
        %2644 = vmatpush1.bf16.msra.mxu0 0
        %2645 = vmatprep.subr.bf16.mxu0 0
        %2646 = vmatpush1.bf16.msra.mxu0 0
        %2647 = vmatprep.subr.bf16.mxu0 0
        %2648 = vmatpush1.bf16.msra.mxu0 0
        %2649 = vmatprep.subr.bf16.mxu0 0
        %2650 = vmatpush1.bf16.msra.mxu0 0
        %2651 = vmatprep.subr.bf16.mxu0 0
        %2652 = vmatpush1.bf16.msra.mxu0 0
        %2653 = vmatprep.subr.bf16.mxu0 0
        %2654 = vmatpush1.bf16.msra.mxu0 0
        %2655 = vmatprep.subr.bf16.mxu0 0
        %2656 = vmatpush1.bf16.msra.mxu0 0
        %2657 = vmatprep.subr.bf16.mxu0 0
        %2658 = vmatpush1.bf16.msra.mxu0 0
        %2659 = vmatprep.subr.bf16.mxu0 0
        %2660 = vmatpush1.bf16.msra.mxu0 0
        %2661 = vmatprep.subr.bf16.mxu0 0
        %2662 = vmatpush1.bf16.msra.mxu0 0
        %2663 = vmatprep.subr.bf16.mxu0 0
        %2664 = vmatpush1.bf16.msra.mxu0 0
        %2665 = vmatprep.subr.bf16.mxu0 0
        %2666 = vmatpush1.bf16.msra.mxu0 0
        %2667 = vmatprep.subr.bf16.mxu0 0
        %2668 = vmatpush1.bf16.msra.mxu0 0
        %2669 = vmatprep.mubr.bf16.mxu0 0
        %2670 = vmatmul.mubr.bf16.gmra.mrb[0].mxu0 %v2635
        %v2671 = vpop.f32.mrb[0].mxu0
        %v2672 = vadd.f32 %v2623, %v2671
        %v2673 = vpop.f32.mrb[0].mxu0
        %v2674 = vpop.f32.mrb[0].mxu0
        %v2675 = vpop.f32.mrb[0].mxu0
        %2676 = vdwg.mxu0
        %v2677 = vld [vmem:[%s51] sm:$0x1]
        %v2679 = vlaneseq
        %v2680 = vshrl.u32 %v2679, 7
        %v2681 = vsub.s32 0, %v2680
        %v2682 = vrot.slane %v2677, %v2681
        %v2684 = vadd.f32 %v2672, %v2682
        %v2685 = vadd.f32 %v2216, %v2684
        %v2686 = vld [vmem:[%s53] sm:$0x1]
        %v2687 = vld [vmem:[%s55] sm:$0x1]
        %v2688 = vsel %vm1614, %v2685, 0.0
        %2689 = vadd.xlane.f32.xlu0 %v2688
        %v2690 = vpop.xlane.xlu0 %2689
        %v2691 = vmul.f32 %v2690, %v1565
        %v2692 = vsub.f32 %v2685, %v2691
        %v2693 = vmul.f32 %v2692, %v2692
        %v2694 = vsel %vm1614, %v2693, 0.0
        %2695 = vadd.xlane.f32.xlu0 %v2694
        %v2696 = vpop.xlane.xlu0 %2695
        %v2697 = vmul.f32 %v2696, %v1565
        %v2698 = vadd.f32 %v2697, 1e-06
        %v2699 = vrsqrt.pop %v2698
        %v2700 = vmul.f32 %v2692, %v2699
        %v2702 = vlaneseq
        %v2703 = vshrl.u32 %v2702, 7
        %v2704 = vsub.s32 0, %v2703
        %v2705 = vrot.slane %v2686, %v2704
        %v2707 = vmul.f32 %v2700, %v2705
        %v2709 = vlaneseq
        %v2710 = vshrl.u32 %v2709, 7
        %v2711 = vsub.s32 0, %v2710
        %v2712 = vrot.slane %v2687, %v2711
        %v2714 = vadd.f32 %v2707, %v2712
        %v2715 = vld [vmem:[%s57] sm:$0xf]
        %v2716 = vld [vmem:[%s57 + $0x4] sm:$0xf]
        %v2717 = vld [vmem:[%s57 + $0x8] sm:$0xf]
        %v2718 = vld [vmem:[%s57 + $0xc] sm:$0xf]
        %v2719 = vpack.c.bf16 %v2714, %v2714
        %v2720 = vld [vmem:[%s59] sm:$0x1]
        %v2722 = vlaneseq
        %v2723 = vshrl.u32 %v2722, 7
        %v2724 = vsub.s32 0, %v2723
        %v2725 = vrot.slane %v2720, %v2724
        %v2731 = vunpack.c.l.b16 %v2715
        %v2732 = vunpack.c.l.b16 %v2716
        %v2733 = vunpack.c.l.b16 %v2717
        %v2734 = vunpack.c.l.b16 %v2718
        %v2735 = vpack.c.b16 %v2732, %v2731
        %v2736 = vpack.c.b16 %v2734, %v2733
        %v2740 = vsel %vm1614, %v2719, 0
        %2742 = vmatprep.subr.bf16.mxu0 0
        %2743 = vmatpush1.bf16.msra.mxu0 %v2735
        %2744 = vmatprep.subr.bf16.mxu0 0
        %2745 = vmatpush1.bf16.msra.mxu0 %v2736
        %2746 = vmatprep.subr.bf16.mxu0 0
        %2747 = vmatpush1.bf16.msra.mxu0 0
        %2748 = vmatprep.subr.bf16.mxu0 0
        %2749 = vmatpush1.bf16.msra.mxu0 0
        %2750 = vmatprep.subr.bf16.mxu0 0
        %2751 = vmatpush1.bf16.msra.mxu0 0
        %2752 = vmatprep.subr.bf16.mxu0 0
        %2753 = vmatpush1.bf16.msra.mxu0 0
        %2754 = vmatprep.subr.bf16.mxu0 0
        %2755 = vmatpush1.bf16.msra.mxu0 0
        %2756 = vmatprep.subr.bf16.mxu0 0
        %2757 = vmatpush1.bf16.msra.mxu0 0
        %2758 = vmatprep.subr.bf16.mxu0 0
        %2759 = vmatpush1.bf16.msra.mxu0 0
        %2760 = vmatprep.subr.bf16.mxu0 0
        %2761 = vmatpush1.bf16.msra.mxu0 0
        %2762 = vmatprep.subr.bf16.mxu0 0
        %2763 = vmatpush1.bf16.msra.mxu0 0
        %2764 = vmatprep.subr.bf16.mxu0 0
        %2765 = vmatpush1.bf16.msra.mxu0 0
        %2766 = vmatprep.subr.bf16.mxu0 0
        %2767 = vmatpush1.bf16.msra.mxu0 0
        %2768 = vmatprep.subr.bf16.mxu0 0
        %2769 = vmatpush1.bf16.msra.mxu0 0
        %2770 = vmatprep.subr.bf16.mxu0 0
        %2771 = vmatpush1.bf16.msra.mxu0 0
        %2772 = vmatprep.subr.bf16.mxu0 0
        %2773 = vmatpush1.bf16.msra.mxu0 0
        %2774 = vmatprep.mubr.bf16.mxu0 0
        %2775 = vmatmul.mubr.bf16.gmra.mrb[0].mxu0 %v2740
        %v2776 = vpop.f32.mrb[0].mxu0
        %v2777 = vadd.f32 %v2725, %v2776
        %v2778 = vpop.f32.mrb[0].mxu0
        %v2779 = vpop.f32.mrb[0].mxu0
        %v2780 = vpop.f32.mrb[0].mxu0
        %2781 = vdwg.mxu0
        %v2782 = vmul.f32 %v2777, %v2777
        %v2783 = vmul.f32 %v2777, %v2782
        %v2784 = vmul.f32 %v2783, 0.044715
        %v2785 = vadd.f32 %v2777, %v2784
        %v2786 = vmul.f32 %v2785, 0.7978846
        %v2787 = vtanh.pop %v2786
        %v2788 = vadd.f32 %v2787, 1.0
        %v2789 = vmul.f32 %v2788, 0.5
        %v2790 = vmul.f32 %v2777, %v2789
        %v2791 = vld [vmem:[%s61] sm:$0xf]
        %v2792 = vld [vmem:[%s61 + $0x4] sm:$0xf]
        %v2793 = vld [vmem:[%s61 + $0x8] sm:$0xf]
        %v2794 = vld [vmem:[%s61 + $0xc] sm:$0xf]
        %v2795 = vld [vmem:[%s61 + $0x10] sm:$0xf]
        %v2796 = vld [vmem:[%s61 + $0x14] sm:$0xf]
        %v2797 = vld [vmem:[%s61 + $0x18] sm:$0xf]
        %v2798 = vld [vmem:[%s61 + $0x1c] sm:$0xf]
        %v2799 = vpack.c.bf16 %v2790, %v2790
        %v2800 = vld [vmem:[%s63] sm:$0x1]
        %v2802 = vlaneseq
        %v2803 = vshrl.u32 %v2802, 7
        %v2804 = vsub.s32 0, %v2803
        %v2805 = vrot.slane %v2800, %v2804
        %v2815 = vunpack.c.l.b16 %v2791
        %v2816 = vunpack.c.l.b16 %v2792
        %v2817 = vunpack.c.l.b16 %v2793
        %v2818 = vunpack.c.l.b16 %v2794
        %v2819 = vunpack.c.l.b16 %v2795
        %v2820 = vunpack.c.l.b16 %v2796
        %v2821 = vunpack.c.l.b16 %v2797
        %v2822 = vunpack.c.l.b16 %v2798
        %v2823 = vpack.c.b16 %v2816, %v2815
        %v2824 = vpack.c.b16 %v2818, %v2817
        %v2825 = vpack.c.b16 %v2820, %v2819
        %v2826 = vpack.c.b16 %v2822, %v2821
        %v2832 = vsel %vm2142, %v2799, 0
        %2834 = vmatprep.subr.bf16.mxu0 0
        %2835 = vmatpush1.bf16.msra.mxu0 %v2823
        %2836 = vmatprep.subr.bf16.mxu0 0
        %2837 = vmatpush1.bf16.msra.mxu0 %v2824
        %2838 = vmatprep.subr.bf16.mxu0 0
        %2839 = vmatpush1.bf16.msra.mxu0 %v2825
        %2840 = vmatprep.subr.bf16.mxu0 0
        %2841 = vmatpush1.bf16.msra.mxu0 %v2826
        %2842 = vmatprep.subr.bf16.mxu0 0
        %2843 = vmatpush1.bf16.msra.mxu0 0
        %2844 = vmatprep.subr.bf16.mxu0 0
        %2845 = vmatpush1.bf16.msra.mxu0 0
        %2846 = vmatprep.subr.bf16.mxu0 0
        %2847 = vmatpush1.bf16.msra.mxu0 0
        %2848 = vmatprep.subr.bf16.mxu0 0
        %2849 = vmatpush1.bf16.msra.mxu0 0
        %2850 = vmatprep.subr.bf16.mxu0 0
        %2851 = vmatpush1.bf16.msra.mxu0 0
        %2852 = vmatprep.subr.bf16.mxu0 0
        %2853 = vmatpush1.bf16.msra.mxu0 0
        %2854 = vmatprep.subr.bf16.mxu0 0
        %2855 = vmatpush1.bf16.msra.mxu0 0
        %2856 = vmatprep.subr.bf16.mxu0 0
        %2857 = vmatpush1.bf16.msra.mxu0 0
        %2858 = vmatprep.subr.bf16.mxu0 0
        %2859 = vmatpush1.bf16.msra.mxu0 0
        %2860 = vmatprep.subr.bf16.mxu0 0
        %2861 = vmatpush1.bf16.msra.mxu0 0
        %2862 = vmatprep.subr.bf16.mxu0 0
        %2863 = vmatpush1.bf16.msra.mxu0 0
        %2864 = vmatprep.subr.bf16.mxu0 0
        %2865 = vmatpush1.bf16.msra.mxu0 0
        %2866 = vmatprep.mubr.bf16.mxu0 0
        %2867 = vmatmul.mubr.bf16.gmra.mrb[0].mxu0 %v2832
        %v2868 = vpop.f32.mrb[0].mxu0
        %v2869 = vadd.f32 %v2805, %v2868
        %v2870 = vpop.f32.mrb[0].mxu0
        %v2871 = vpop.f32.mrb[0].mxu0
        %v2872 = vpop.f32.mrb[0].mxu0
        %2873 = vdwg.mxu0
        %v2874 = vadd.f32 %v2685, %v2869
        %v2875 = vld [vmem:[%s65] sm:$0xf]
        %v2876 = vld [vmem:[%s65 + $0x4] sm:$0xf]
        %v2877 = vld [vmem:[%s65 + $0x8] sm:$0xf]
        %v2878 = vld [vmem:[%s65 + $0xc] sm:$0xf]
        %v2879 = vpack.c.bf16 %v2874, %v2874
        %v2880 = vld [vmem:[%s67] sm:$0x1]
        %v2882 = vlaneseq
        %v2883 = vshrl.u32 %v2882, 7
        %v2884 = vsub.s32 0, %v2883
        %v2885 = vrot.slane %v2880, %v2884
        %v2891 = vunpack.c.l.b16 %v2875
        %v2892 = vunpack.c.l.b16 %v2876
        %v2893 = vunpack.c.l.b16 %v2877
        %v2894 = vunpack.c.l.b16 %v2878
        %v2895 = vpack.c.b16 %v2892, %v2891
        %v2896 = vpack.c.b16 %v2894, %v2893
        %v2900 = vsel %vm1614, %v2879, 0
        %2902 = vmatprep.subr.bf16.mxu0 0
        %2903 = vmatpush1.bf16.msra.mxu0 %v2895
        %2904 = vmatprep.subr.bf16.mxu0 0
        %2905 = vmatpush1.bf16.msra.mxu0 %v2896
        %2906 = vmatprep.subr.bf16.mxu0 0
        %2907 = vmatpush1.bf16.msra.mxu0 0
        %2908 = vmatprep.subr.bf16.mxu0 0
        %2909 = vmatpush1.bf16.msra.mxu0 0
        %2910 = vmatprep.subr.bf16.mxu0 0
        %2911 = vmatpush1.bf16.msra.mxu0 0
        %2912 = vmatprep.subr.bf16.mxu0 0
        %2913 = vmatpush1.bf16.msra.mxu0 0
        %2914 = vmatprep.subr.bf16.mxu0 0
        %2915 = vmatpush1.bf16.msra.mxu0 0
        %2916 = vmatprep.subr.bf16.mxu0 0
        %2917 = vmatpush1.bf16.msra.mxu0 0
        %2918 = vmatprep.subr.bf16.mxu0 0
        %2919 = vmatpush1.bf16.msra.mxu0 0
        %2920 = vmatprep.subr.bf16.mxu0 0
        %2921 = vmatpush1.bf16.msra.mxu0 0
        %2922 = vmatprep.subr.bf16.mxu0 0
        %2923 = vmatpush1.bf16.msra.mxu0 0
        %2924 = vmatprep.subr.bf16.mxu0 0
        %2925 = vmatpush1.bf16.msra.mxu0 0
        %2926 = vmatprep.subr.bf16.mxu0 0
        %2927 = vmatpush1.bf16.msra.mxu0 0
        %2928 = vmatprep.subr.bf16.mxu0 0
        %2929 = vmatpush1.bf16.msra.mxu0 0
        %2930 = vmatprep.subr.bf16.mxu0 0
        %2931 = vmatpush1.bf16.msra.mxu0 0
        %2932 = vmatprep.subr.bf16.mxu0 0
        %2933 = vmatpush1.bf16.msra.mxu0 0
        %2934 = vmatprep.mubr.bf16.mxu0 0
        %2935 = vmatmul.mubr.bf16.gmra.mrb[0].mxu0 %v2900
        %v2936 = vpop.f32.mrb[0].mxu0
        %v2937 = vadd.f32 %v2885, %v2936
        %v2938 = vpop.f32.mrb[0].mxu0
        %v2939 = vpop.f32.mrb[0].mxu0
        %v2940 = vpop.f32.mrb[0].mxu0
        %2941 = vdwg.mxu0
        %v2942 = vld [vmem:[%s1374] sm:$0x3f]
        %v2943 = vlaneseq
        %v2944 = vand.u32 %v2943, 127
        %2945 = vset.pattern.permute.xlu0 0
        %2946 = vperm.xlu0 %2945, %v2942
        %v2947 = vpop.permute.xlu0 %2946
        %vm2948 = vcmp.eq.s32.totalorder %v2944, %v2947
        %v2949 = vld [vmem:[%s69] sm:$0xf]
        %v2950 = vld [vmem:[%s69 + $0x4] sm:$0xf]
        %v2951 = vld [vmem:[%s69 + $0x8] sm:$0xf]
        %v2952 = vld [vmem:[%s69 + $0xc] sm:$0xf]
        %v2953 = vld [vmem:[%s69 + $0x10] sm:$0xf]
        %v2954 = vld [vmem:[%s69 + $0x14] sm:$0xf]
        %v2955 = vld [vmem:[%s69 + $0x18] sm:$0xf]
        %v2956 = vld [vmem:[%s69 + $0x1c] sm:$0xf]
        %v2957 = vsel %vm2948, 1, 0
        %v2958 = vcvt.s32.f32 %v2957
        %v2959 = vpack.c.bf16 %v2958, %v2958
        %v2968 = vunpack.c.l.b16 %v2949
        %v2969 = vunpack.c.l.b16 %v2950
        %v2970 = vunpack.c.l.b16 %v2951
        %v2971 = vunpack.c.l.b16 %v2952
        %v2972 = vunpack.c.l.b16 %v2953
        %v2973 = vunpack.c.l.b16 %v2954
        %v2974 = vunpack.c.l.b16 %v2955
        %v2975 = vunpack.c.l.b16 %v2956
        %v2976 = vpack.c.b16 %v2969, %v2968
        %v2977 = vpack.c.b16 %v2971, %v2970
        %v2978 = vpack.c.b16 %v2973, %v2972
        %v2979 = vpack.c.b16 %v2975, %v2974
        %v2985 = vsel %vm2142, %v2959, 0
        %2987 = vmatprep.subr.bf16.mxu0 0
        %2988 = vmatpush1.bf16.msra.mxu0 %v2976
        %2989 = vmatprep.subr.bf16.mxu0 0
        %2990 = vmatpush1.bf16.msra.mxu0 %v2977
        %2991 = vmatprep.subr.bf16.mxu0 0
        %2992 = vmatpush1.bf16.msra.mxu0 %v2978
        %2993 = vmatprep.subr.bf16.mxu0 0
        %2994 = vmatpush1.bf16.msra.mxu0 %v2979
        %2995 = vmatprep.subr.bf16.mxu0 0
        %2996 = vmatpush1.bf16.msra.mxu0 0
        %2997 = vmatprep.subr.bf16.mxu0 0
        %2998 = vmatpush1.bf16.msra.mxu0 0
        %2999 = vmatprep.subr.bf16.mxu0 0
        %3000 = vmatpush1.bf16.msra.mxu0 0
        %3001 = vmatprep.subr.bf16.mxu0 0
        %3002 = vmatpush1.bf16.msra.mxu0 0
        %3003 = vmatprep.subr.bf16.mxu0 0
        %3004 = vmatpush1.bf16.msra.mxu0 0
        %3005 = vmatprep.subr.bf16.mxu0 0
        %3006 = vmatpush1.bf16.msra.mxu0 0
        %3007 = vmatprep.subr.bf16.mxu0 0
        %3008 = vmatpush1.bf16.msra.mxu0 0
        %3009 = vmatprep.subr.bf16.mxu0 0
        %3010 = vmatpush1.bf16.msra.mxu0 0
        %3011 = vmatprep.subr.bf16.mxu0 0
        %3012 = vmatpush1.bf16.msra.mxu0 0
        %3013 = vmatprep.subr.bf16.mxu0 0
        %3014 = vmatpush1.bf16.msra.mxu0 0
        %3015 = vmatprep.subr.bf16.mxu0 0
        %3016 = vmatpush1.bf16.msra.mxu0 0
        %3017 = vmatprep.subr.bf16.mxu0 0
        %3018 = vmatpush1.bf16.msra.mxu0 0
        %3019 = vmatprep.mubr.bf16.mxu0 0
        %3020 = vmatmul.mubr.bf16.gmra.mrb[0].mxu0 %v2985
        %v3021 = vpop.f32.mrb[0].mxu0
        %v3022 = vadd.f32 0.0, %v3021
        %v3023 = vpop.f32.mrb[0].mxu0
        %v3024 = vpop.f32.mrb[0].mxu0
        %v3025 = vpop.f32.mrb[0].mxu0
        %3026 = vdwg.mxu0
        %v3027 = vld [vmem:[%s77] sm:$0xf]
        %v3028 = vld [vmem:[%s77 + $0x4] sm:$0xf]
        %v3029 = vld [vmem:[%s77 + $0x8] sm:$0xf]
        %v3030 = vld [vmem:[%s77 + $0xc] sm:$0xf]
        %v3031 = vpack.c.bf16 %v3022, %v2937
        %v3032 = vld [vmem:[%s79] sm:$0x1]
        %v3034 = vlaneseq
        %v3035 = vshrl.u32 %v3034, 7
        %v3036 = vsub.s32 0, %v3035
        %v3037 = vrot.slane %v3032, %v3036
        %v3043 = vunpack.c.l.b16 %v3027
        %v3044 = vunpack.c.l.b16 %v3028
        %v3045 = vunpack.c.l.b16 %v3029
        %v3046 = vunpack.c.l.b16 %v3030
        %v3047 = vpack.c.b16 %v3044, %v3043
        %v3048 = vpack.c.b16 %v3046, %v3045
        %v3052 = vsel %vm1614, %v3031, 0
        %3054 = vmatprep.subr.bf16.mxu0 0
        %3055 = vmatpush1.bf16.msra.mxu0 %v3047
        %3056 = vmatprep.subr.bf16.mxu0 0
        %3057 = vmatpush1.bf16.msra.mxu0 %v3048
        %3058 = vmatprep.subr.bf16.mxu0 0
        %3059 = vmatpush1.bf16.msra.mxu0 0
        %3060 = vmatprep.subr.bf16.mxu0 0
        %3061 = vmatpush1.bf16.msra.mxu0 0
        %3062 = vmatprep.subr.bf16.mxu0 0
        %3063 = vmatpush1.bf16.msra.mxu0 0
        %3064 = vmatprep.subr.bf16.mxu0 0
        %3065 = vmatpush1.bf16.msra.mxu0 0
        %3066 = vmatprep.subr.bf16.mxu0 0
        %3067 = vmatpush1.bf16.msra.mxu0 0
        %3068 = vmatprep.subr.bf16.mxu0 0
        %3069 = vmatpush1.bf16.msra.mxu0 0
        %3070 = vmatprep.subr.bf16.mxu0 0
        %3071 = vmatpush1.bf16.msra.mxu0 0
        %3072 = vmatprep.subr.bf16.mxu0 0
        %3073 = vmatpush1.bf16.msra.mxu0 0
        %3074 = vmatprep.subr.bf16.mxu0 0
        %3075 = vmatpush1.bf16.msra.mxu0 0
        %3076 = vmatprep.subr.bf16.mxu0 0
        %3077 = vmatpush1.bf16.msra.mxu0 0
        %3078 = vmatprep.subr.bf16.mxu0 0
        %3079 = vmatpush1.bf16.msra.mxu0 0
        %3080 = vmatprep.subr.bf16.mxu0 0
        %3081 = vmatpush1.bf16.msra.mxu0 0
        %3082 = vmatprep.subr.bf16.mxu0 0
        %3083 = vmatpush1.bf16.msra.mxu0 0
        %3084 = vmatprep.subr.bf16.mxu0 0
        %3085 = vmatpush1.bf16.msra.mxu0 0
        %3086 = vmatprep.mubr.bf16.mxu0 0
        %3087 = vmatmul.mubr.bf16.gmra.mrb[0].mxu0 %v3052
        %v3088 = vpop.f32.mrb[0].mxu0
        %v3089 = vadd.f32 %v3037, %v3088
        %v3090 = vpop.f32.mrb[0].mxu0
        %v3091 = vpop.f32.mrb[0].mxu0
        %v3092 = vadd.f32 %v3037, %v3091
        %v3093 = vpop.f32.mrb[0].mxu0
        %3094 = vdwg.mxu0
        %vm3095 = vcmp.eq.s32.totalorder %v2944, 0
        %v3096 = vsel %vm3095, 1, 0
        %v3097 = vcvt.s32.f32 %v3096
        %v3098 = vpack.c.bf16 %v3097, %v3097
        %v3100 = vsel %vm2142, %v3098, 0
        %3102 = vmatprep.subr.bf16.mxu0 0
        %3103 = vmatpush1.bf16.msra.mxu0 %v2976
        %3104 = vmatprep.subr.bf16.mxu0 0
        %3105 = vmatpush1.bf16.msra.mxu0 %v2977
        %3106 = vmatprep.subr.bf16.mxu0 0
        %3107 = vmatpush1.bf16.msra.mxu0 %v2978
        %3108 = vmatprep.subr.bf16.mxu0 0
        %3109 = vmatpush1.bf16.msra.mxu0 %v2979
        %3110 = vmatprep.subr.bf16.mxu0 0
        %3111 = vmatpush1.bf16.msra.mxu0 0
        %3112 = vmatprep.subr.bf16.mxu0 0
        %3113 = vmatpush1.bf16.msra.mxu0 0
        %3114 = vmatprep.subr.bf16.mxu0 0
        %3115 = vmatpush1.bf16.msra.mxu0 0
        %3116 = vmatprep.subr.bf16.mxu0 0
        %3117 = vmatpush1.bf16.msra.mxu0 0
        %3118 = vmatprep.subr.bf16.mxu0 0
        %3119 = vmatpush1.bf16.msra.mxu0 0
        %3120 = vmatprep.subr.bf16.mxu0 0
        %3121 = vmatpush1.bf16.msra.mxu0 0
        %3122 = vmatprep.subr.bf16.mxu0 0
        %3123 = vmatpush1.bf16.msra.mxu0 0
        %3124 = vmatprep.subr.bf16.mxu0 0
        %3125 = vmatpush1.bf16.msra.mxu0 0
        %3126 = vmatprep.subr.bf16.mxu0 0
        %3127 = vmatpush1.bf16.msra.mxu0 0
        %3128 = vmatprep.subr.bf16.mxu0 0
        %3129 = vmatpush1.bf16.msra.mxu0 0
        %3130 = vmatprep.subr.bf16.mxu0 0
        %3131 = vmatpush1.bf16.msra.mxu0 0
        %3132 = vmatprep.subr.bf16.mxu0 0
        %3133 = vmatpush1.bf16.msra.mxu0 0
        %3134 = vmatprep.mubr.bf16.mxu0 0
        %3135 = vmatmul.mubr.bf16.gmra.mrb[0].mxu0 %v3100
        %v3136 = vpop.f32.mrb[0].mxu0
        %v3137 = vadd.f32 0.0, %v3136
        %v3138 = vpop.f32.mrb[0].mxu0
        %v3139 = vpop.f32.mrb[0].mxu0
        %v3140 = vpop.f32.mrb[0].mxu0
        %3141 = vdwg.mxu0
        %v3142 = vld [vmem:[%s73] sm:$0xf]
        %v3143 = vld [vmem:[%s73 + $0x4] sm:$0xf]
        %v3144 = vld [vmem:[%s73 + $0x8] sm:$0xf]
        %v3145 = vld [vmem:[%s73 + $0xc] sm:$0xf]
        %v3146 = vpack.c.bf16 %v3137, %v3137
        %v3147 = vld [vmem:[%s75] sm:$0x1]
        %v3152 = vunpack.c.l.b16 %v3142
        %v3153 = vunpack.c.l.b16 %v3143
        %v3154 = vunpack.c.l.b16 %v3144
        %v3155 = vunpack.c.l.b16 %v3145
        %v3156 = vpack.c.b16 %v3153, %v3152
        %v3157 = vpack.c.b16 %v3155, %v3154
        %v3161 = vsel %vm1614, %v3146, 0
        %3163 = vmatprep.subr.bf16.mxu0 0
        %3164 = vmatpush1.bf16.msra.mxu0 %v3156
        %3165 = vmatprep.subr.bf16.mxu0 0
        %3166 = vmatpush1.bf16.msra.mxu0 %v3157
        %3167 = vmatprep.subr.bf16.mxu0 0
        %3168 = vmatpush1.bf16.msra.mxu0 0
        %3169 = vmatprep.subr.bf16.mxu0 0
        %3170 = vmatpush1.bf16.msra.mxu0 0
        %3171 = vmatprep.subr.bf16.mxu0 0
        %3172 = vmatpush1.bf16.msra.mxu0 0
        %3173 = vmatprep.subr.bf16.mxu0 0
        %3174 = vmatpush1.bf16.msra.mxu0 0
        %3175 = vmatprep.subr.bf16.mxu0 0
        %3176 = vmatpush1.bf16.msra.mxu0 0
        %3177 = vmatprep.subr.bf16.mxu0 0
        %3178 = vmatpush1.bf16.msra.mxu0 0
        %3179 = vmatprep.subr.bf16.mxu0 0
        %3180 = vmatpush1.bf16.msra.mxu0 0
        %3181 = vmatprep.subr.bf16.mxu0 0
        %3182 = vmatpush1.bf16.msra.mxu0 0
        %3183 = vmatprep.subr.bf16.mxu0 0
        %3184 = vmatpush1.bf16.msra.mxu0 0
        %3185 = vmatprep.subr.bf16.mxu0 0
        %3186 = vmatpush1.bf16.msra.mxu0 0
        %3187 = vmatprep.subr.bf16.mxu0 0
        %3188 = vmatpush1.bf16.msra.mxu0 0
        %3189 = vmatprep.subr.bf16.mxu0 0
        %3190 = vmatpush1.bf16.msra.mxu0 0
        %3191 = vmatprep.subr.bf16.mxu0 0
        %3192 = vmatpush1.bf16.msra.mxu0 0
        %3193 = vmatprep.subr.bf16.mxu0 0
        %3194 = vmatpush1.bf16.msra.mxu0 0
        %3195 = vmatprep.mubr.bf16.mxu0 0
        %3196 = vmatmul.mubr.bf16.gmra.mrb[0].mxu0 %v3161
        %v3197 = vpop.f32.mrb[0].mxu0
        %v3198 = vadd.f32 %v3147, %v3197
        %v3199 = vpop.f32.mrb[0].mxu0
        %v3200 = vpop.f32.mrb[0].mxu0
        %v3201 = vpop.f32.mrb[0].mxu0
        %3202 = vdwg.mxu0
        %v3203 = vld [vmem:[%s81] sm:$0xf]
        %v3204 = vld [vmem:[%s81 + $0x4] sm:$0xf]
        %v3205 = vld [vmem:[%s81 + $0x8] sm:$0xf]
        %v3206 = vld [vmem:[%s81 + $0xc] sm:$0xf]
        %v3207 = vpack.c.bf16 %v3198, %v3198
        %v3208 = vpack.c.bf16 %v3092, %v3089
        %v3210 = vsel %vm1666, %v3207, 0
        %v3213 = vsel %vm1666, %v3208, 0
        %3215 = vmatprep.subr.bf16.mxu0 0
        %3216 = vmatpush1.bf16.xpose.msra.mxu0 %v3213
        %3217 = vmatprep.subr.bf16.mxu0 0
        %3218 = vmatpush1.bf16.xpose.msra.mxu0 0
        %3219 = vmatprep.subr.bf16.mxu0 0
        %3220 = vmatpush1.bf16.xpose.msra.mxu0 0
        %3221 = vmatprep.subr.bf16.mxu0 0
        %3222 = vmatpush1.bf16.xpose.msra.mxu0 0
        %3223 = vmatprep.subr.bf16.mxu0 0
        %3224 = vmatpush1.bf16.xpose.msra.mxu0 0
        %3225 = vmatprep.subr.bf16.mxu0 0
        %3226 = vmatpush1.bf16.xpose.msra.mxu0 0
        %3227 = vmatprep.subr.bf16.mxu0 0
        %3228 = vmatpush1.bf16.xpose.msra.mxu0 0
        %3229 = vmatprep.subr.bf16.mxu0 0
        %3230 = vmatpush1.bf16.xpose.msra.mxu0 0
        %3231 = vmatprep.subr.bf16.mxu0 0
        %3232 = vmatpush1.bf16.xpose.msra.mxu0 0
        %3233 = vmatprep.subr.bf16.mxu0 0
        %3234 = vmatpush1.bf16.xpose.msra.mxu0 0
        %3235 = vmatprep.subr.bf16.mxu0 0
        %3236 = vmatpush1.bf16.xpose.msra.mxu0 0
        %3237 = vmatprep.subr.bf16.mxu0 0
        %3238 = vmatpush1.bf16.xpose.msra.mxu0 0
        %3239 = vmatprep.subr.bf16.mxu0 0
        %3240 = vmatpush1.bf16.xpose.msra.mxu0 0
        %3241 = vmatprep.subr.bf16.mxu0 0
        %3242 = vmatpush1.bf16.xpose.msra.mxu0 0
        %3243 = vmatprep.subr.bf16.mxu0 0
        %3244 = vmatpush1.bf16.xpose.msra.mxu0 0
        %3245 = vmatprep.subr.bf16.mxu0 0
        %3246 = vmatpush1.bf16.xpose.msra.mxu0 0
        %3247 = vmatprep.mubr.bf16.mxu0 0
        %3248 = vmatmul.mubr.bf16.gmra.mrb[0].mxu0 %v3210
        %v3249 = vpop.f32.mrb[0].mxu0
        %v3250 = vadd.f32 0.0, %v3249
        %v3251 = vpop.f32.mrb[0].mxu0
        %v3252 = vpop.f32.mrb[0].mxu0
        %v3253 = vpop.f32.mrb[0].mxu0
        %3254 = vdwg.mxu0
        %v3255 = vmul.f32 %v3250, 0.25
        %vm3256 = vcmask 106496
        %v3257 = vsel %vm3256, %v3255, -inf
        %3258 = vmax.xlane.f32.xlu0 %v3257
        %v3259 = vpop.xlane.xlu0 %3258
        %v3260 = vsub.f32 %v3255, %v3259
        %v3261 = vmul.f32 %v3260, 1.442695
        %v3262 = vpow.pop %v3261
        %v3263 = vsel %vm3256, %v3262, 0.0
        %3264 = vadd.xlane.f32.xlu0 %v3263
        %v3265 = vpop.xlane.xlu0 %3264
        %v3266 = vrcp.pop %v3265
        %v3267 = vmul.f32 %v3262, %v3266
        %v3268 = vpack.c.bf16 %v3267, %v3267
        %3270 = vrot.lane.b32.xlu0 %v3208, 96
        %v3271 = vpop.permute.xlu0 %3270
        %vm3272 = vcmask 113664
        %v3274 = vsel %vm3272, %v3268, 0
        %vm3276 = vcmask 1046528
        %v3278 = vsel %vm3276, %v3271, 0
        %3280 = vmatprep.subr.bf16.mxu0 0
        %3281 = vmatpush1.bf16.msra.mxu0 %v3278
        %3282 = vmatprep.subr.bf16.mxu0 0
        %3283 = vmatpush1.bf16.msra.mxu0 0
        %3284 = vmatprep.subr.bf16.mxu0 0
        %3285 = vmatpush1.bf16.msra.mxu0 0
        %3286 = vmatprep.subr.bf16.mxu0 0
        %3287 = vmatpush1.bf16.msra.mxu0 0
        %3288 = vmatprep.subr.bf16.mxu0 0
        %3289 = vmatpush1.bf16.msra.mxu0 0
        %3290 = vmatprep.subr.bf16.mxu0 0
        %3291 = vmatpush1.bf16.msra.mxu0 0
        %3292 = vmatprep.subr.bf16.mxu0 0
        %3293 = vmatpush1.bf16.msra.mxu0 0
        %3294 = vmatprep.subr.bf16.mxu0 0
        %3295 = vmatpush1.bf16.msra.mxu0 0
        %3296 = vmatprep.subr.bf16.mxu0 0
        %3297 = vmatpush1.bf16.msra.mxu0 0
        %3298 = vmatprep.subr.bf16.mxu0 0
        %3299 = vmatpush1.bf16.msra.mxu0 0
        %3300 = vmatprep.subr.bf16.mxu0 0
        %3301 = vmatpush1.bf16.msra.mxu0 0
        %3302 = vmatprep.subr.bf16.mxu0 0
        %3303 = vmatpush1.bf16.msra.mxu0 0
        %3304 = vmatprep.subr.bf16.mxu0 0
        %3305 = vmatpush1.bf16.msra.mxu0 0
        %3306 = vmatprep.subr.bf16.mxu0 0
        %3307 = vmatpush1.bf16.msra.mxu0 0
        %3308 = vmatprep.subr.bf16.mxu0 0
        %3309 = vmatpush1.bf16.msra.mxu0 0
        %3310 = vmatprep.subr.bf16.mxu0 0
        %3311 = vmatpush1.bf16.msra.mxu0 0
        %3312 = vmatprep.mubr.bf16.mxu0 0
        %3313 = vmatmul.mubr.bf16.gmra.mrb[0].mxu0 %v3274
        %v3314 = vpop.f32.mrb[0].mxu0
        %v3315 = vadd.f32 0.0, %v3314
        %v3316 = vpop.f32.mrb[0].mxu0
        %v3317 = vpop.f32.mrb[0].mxu0
        %v3318 = vpop.f32.mrb[0].mxu0
        %3319 = vdwg.mxu0
        %v3320 = vpack.c.bf16 %v3315, %v3315
        %3322 = vrot.lane.b32.xlu0 %v3207, 112
        %v3323 = vpop.permute.xlu0 %3322
        %3324 = vrot.lane.b32.xlu0 %v3208, 112
        %v3325 = vpop.permute.xlu0 %3324
        %v3327 = vsel %vm1666, %v3323, 0
        %v3330 = vsel %vm1666, %v3325, 0
        %3332 = vmatprep.subr.bf16.mxu0 0
        %3333 = vmatpush1.bf16.xpose.msra.mxu0 %v3330
        %3334 = vmatprep.subr.bf16.mxu0 0
        %3335 = vmatpush1.bf16.xpose.msra.mxu0 0
        %3336 = vmatprep.subr.bf16.mxu0 0
        %3337 = vmatpush1.bf16.xpose.msra.mxu0 0
        %3338 = vmatprep.subr.bf16.mxu0 0
        %3339 = vmatpush1.bf16.xpose.msra.mxu0 0
        %3340 = vmatprep.subr.bf16.mxu0 0
        %3341 = vmatpush1.bf16.xpose.msra.mxu0 0
        %3342 = vmatprep.subr.bf16.mxu0 0
        %3343 = vmatpush1.bf16.xpose.msra.mxu0 0
        %3344 = vmatprep.subr.bf16.mxu0 0
        %3345 = vmatpush1.bf16.xpose.msra.mxu0 0
        %3346 = vmatprep.subr.bf16.mxu0 0
        %3347 = vmatpush1.bf16.xpose.msra.mxu0 0
        %3348 = vmatprep.subr.bf16.mxu0 0
        %3349 = vmatpush1.bf16.xpose.msra.mxu0 0
        %3350 = vmatprep.subr.bf16.mxu0 0
        %3351 = vmatpush1.bf16.xpose.msra.mxu0 0
        %3352 = vmatprep.subr.bf16.mxu0 0
        %3353 = vmatpush1.bf16.xpose.msra.mxu0 0
        %3354 = vmatprep.subr.bf16.mxu0 0
        %3355 = vmatpush1.bf16.xpose.msra.mxu0 0
        %3356 = vmatprep.subr.bf16.mxu0 0
        %3357 = vmatpush1.bf16.xpose.msra.mxu0 0
        %3358 = vmatprep.subr.bf16.mxu0 0
        %3359 = vmatpush1.bf16.xpose.msra.mxu0 0
        %3360 = vmatprep.subr.bf16.mxu0 0
        %3361 = vmatpush1.bf16.xpose.msra.mxu0 0
        %3362 = vmatprep.subr.bf16.mxu0 0
        %3363 = vmatpush1.bf16.xpose.msra.mxu0 0
        %3364 = vmatprep.mubr.bf16.mxu0 0
        %3365 = vmatmul.mubr.bf16.gmra.mrb[0].mxu0 %v3327
        %v3366 = vpop.f32.mrb[0].mxu0
        %v3367 = vadd.f32 0.0, %v3366
        %v3368 = vpop.f32.mrb[0].mxu0
        %v3369 = vpop.f32.mrb[0].mxu0
        %v3370 = vpop.f32.mrb[0].mxu0
        %3371 = vdwg.mxu0
        %v3372 = vmul.f32 %v3367, 0.25
        %v3373 = vsel %vm3256, %v3372, -inf
        %3374 = vmax.xlane.f32.xlu0 %v3373
        %v3375 = vpop.xlane.xlu0 %3374
        %v3376 = vsub.f32 %v3372, %v3375
        %v3377 = vmul.f32 %v3376, 1.442695
        %v3378 = vpow.pop %v3377
        %v3379 = vsel %vm3256, %v3378, 0.0
        %3380 = vadd.xlane.f32.xlu0 %v3379
        %v3381 = vpop.xlane.xlu0 %3380
        %v3382 = vrcp.pop %v3381
        %v3383 = vmul.f32 %v3378, %v3382
        %v3384 = vpack.c.bf16 %v3383, %v3383
        %3385 = vrot.lane.b32.xlu0 %v3208, 80
        %v3386 = vpop.permute.xlu0 %3385
        %v3388 = vsel %vm3272, %v3384, 0
        %v3391 = vsel %vm3276, %v3386, 0
        %3393 = vmatprep.subr.bf16.mxu0 0
        %3394 = vmatpush1.bf16.msra.mxu0 %v3391
        %3395 = vmatprep.subr.bf16.mxu0 0
        %3396 = vmatpush1.bf16.msra.mxu0 0
        %3397 = vmatprep.subr.bf16.mxu0 0
        %3398 = vmatpush1.bf16.msra.mxu0 0
        %3399 = vmatprep.subr.bf16.mxu0 0
        %3400 = vmatpush1.bf16.msra.mxu0 0
        %3401 = vmatprep.subr.bf16.mxu0 0
        %3402 = vmatpush1.bf16.msra.mxu0 0
        %3403 = vmatprep.subr.bf16.mxu0 0
        %3404 = vmatpush1.bf16.msra.mxu0 0
        %3405 = vmatprep.subr.bf16.mxu0 0
        %3406 = vmatpush1.bf16.msra.mxu0 0
        %3407 = vmatprep.subr.bf16.mxu0 0
        %3408 = vmatpush1.bf16.msra.mxu0 0
        %3409 = vmatprep.subr.bf16.mxu0 0
        %3410 = vmatpush1.bf16.msra.mxu0 0
        %3411 = vmatprep.subr.bf16.mxu0 0
        %3412 = vmatpush1.bf16.msra.mxu0 0
        %3413 = vmatprep.subr.bf16.mxu0 0
        %3414 = vmatpush1.bf16.msra.mxu0 0
        %3415 = vmatprep.subr.bf16.mxu0 0
        %3416 = vmatpush1.bf16.msra.mxu0 0
        %3417 = vmatprep.subr.bf16.mxu0 0
        %3418 = vmatpush1.bf16.msra.mxu0 0
        %3419 = vmatprep.subr.bf16.mxu0 0
        %3420 = vmatpush1.bf16.msra.mxu0 0
        %3421 = vmatprep.subr.bf16.mxu0 0
        %3422 = vmatpush1.bf16.msra.mxu0 0
        %3423 = vmatprep.subr.bf16.mxu0 0
        %3424 = vmatpush1.bf16.msra.mxu0 0
        %3425 = vmatprep.mubr.bf16.mxu0 0
        %3426 = vmatmul.mubr.bf16.gmra.mrb[0].mxu0 %v3388
        %v3427 = vpop.f32.mrb[0].mxu0
        %v3428 = vadd.f32 0.0, %v3427
        %v3429 = vpop.f32.mrb[0].mxu0
        %v3430 = vpop.f32.mrb[0].mxu0
        %v3431 = vpop.f32.mrb[0].mxu0
        %3432 = vdwg.mxu0
        %v3433 = vpack.c.bf16 %v3428, %v3428
        %v3436 = vunpack.c.l.b16 %v3205
        %v3437 = vunpack.c.l.b16 %v3206
        %v3438 = vpack.c.b16 %v3437, %v3436
        %v3441 = vsel %vm1666, %v3433, 0
        %3443 = vmatprep.subr.bf16.mxu0 0
        %3444 = vmatpush1.bf16.msra.mxu0 %v3438
        %3445 = vmatprep.subr.bf16.mxu0 0
        %3446 = vmatpush1.bf16.msra.mxu0 0
        %3447 = vmatprep.subr.bf16.mxu0 0
        %3448 = vmatpush1.bf16.msra.mxu0 0
        %3449 = vmatprep.subr.bf16.mxu0 0
        %3450 = vmatpush1.bf16.msra.mxu0 0
        %3451 = vmatprep.subr.bf16.mxu0 0
        %3452 = vmatpush1.bf16.msra.mxu0 0
        %3453 = vmatprep.subr.bf16.mxu0 0
        %3454 = vmatpush1.bf16.msra.mxu0 0
        %3455 = vmatprep.subr.bf16.mxu0 0
        %3456 = vmatpush1.bf16.msra.mxu0 0
        %3457 = vmatprep.subr.bf16.mxu0 0
        %3458 = vmatpush1.bf16.msra.mxu0 0
        %3459 = vmatprep.subr.bf16.mxu0 0
        %3460 = vmatpush1.bf16.msra.mxu0 0
        %3461 = vmatprep.subr.bf16.mxu0 0
        %3462 = vmatpush1.bf16.msra.mxu0 0
        %3463 = vmatprep.subr.bf16.mxu0 0
        %3464 = vmatpush1.bf16.msra.mxu0 0
        %3465 = vmatprep.subr.bf16.mxu0 0
        %3466 = vmatpush1.bf16.msra.mxu0 0
        %3467 = vmatprep.subr.bf16.mxu0 0
        %3468 = vmatpush1.bf16.msra.mxu0 0
        %3469 = vmatprep.subr.bf16.mxu0 0
        %3470 = vmatpush1.bf16.msra.mxu0 0
        %3471 = vmatprep.subr.bf16.mxu0 0
        %3472 = vmatpush1.bf16.msra.mxu0 0
        %3473 = vmatprep.subr.bf16.mxu0 0
        %3474 = vmatpush1.bf16.msra.mxu0 0
        %3475 = vmatprep.mubr.bf16.mxu0 0
        %3476 = vmatmul.mubr.bf16.gmra.mrb[0].mxu0 %v3441
        %v3477 = vpop.f32.mrb[0].mxu0
        %v3478 = vadd.f32 0.0, %v3477
        %v3479 = vpop.f32.mrb[0].mxu0
        %v3480 = vpop.f32.mrb[0].mxu0
        %v3481 = vpop.f32.mrb[0].mxu0
        %3482 = vdwg.mxu0
        %v3485 = vunpack.c.l.b16 %v3203
        %v3486 = vunpack.c.l.b16 %v3204
        %v3487 = vpack.c.b16 %v3486, %v3485
        %v3490 = vsel %vm1666, %v3320, 0
        %3492 = vmatprep.subr.bf16.mxu0 0
        %3493 = vmatpush1.bf16.msra.mxu0 %v3487
        %3494 = vmatprep.subr.bf16.mxu0 0
        %3495 = vmatpush1.bf16.msra.mxu0 0
        %3496 = vmatprep.subr.bf16.mxu0 0
        %3497 = vmatpush1.bf16.msra.mxu0 0
        %3498 = vmatprep.subr.bf16.mxu0 0
        %3499 = vmatpush1.bf16.msra.mxu0 0
        %3500 = vmatprep.subr.bf16.mxu0 0
        %3501 = vmatpush1.bf16.msra.mxu0 0
        %3502 = vmatprep.subr.bf16.mxu0 0
        %3503 = vmatpush1.bf16.msra.mxu0 0
        %3504 = vmatprep.subr.bf16.mxu0 0
        %3505 = vmatpush1.bf16.msra.mxu0 0
        %3506 = vmatprep.subr.bf16.mxu0 0
        %3507 = vmatpush1.bf16.msra.mxu0 0
        %3508 = vmatprep.subr.bf16.mxu0 0
        %3509 = vmatpush1.bf16.msra.mxu0 0
        %3510 = vmatprep.subr.bf16.mxu0 0
        %3511 = vmatpush1.bf16.msra.mxu0 0
        %3512 = vmatprep.subr.bf16.mxu0 0
        %3513 = vmatpush1.bf16.msra.mxu0 0
        %3514 = vmatprep.subr.bf16.mxu0 0
        %3515 = vmatpush1.bf16.msra.mxu0 0
        %3516 = vmatprep.subr.bf16.mxu0 0
        %3517 = vmatpush1.bf16.msra.mxu0 0
        %3518 = vmatprep.subr.bf16.mxu0 0
        %3519 = vmatpush1.bf16.msra.mxu0 0
        %3520 = vmatprep.subr.bf16.mxu0 0
        %3521 = vmatpush1.bf16.msra.mxu0 0
        %3522 = vmatprep.subr.bf16.mxu0 0
        %3523 = vmatpush1.bf16.msra.mxu0 0
        %3524 = vmatprep.mubr.bf16.mxu0 0
        %3525 = vmatmul.mubr.bf16.gmra.mrb[0].mxu0 %v3490
        %v3526 = vpop.f32.mrb[0].mxu0
        %v3527 = vadd.f32 %v3478, %v3526
        %v3528 = vpop.f32.mrb[0].mxu0
        %v3529 = vpop.f32.mrb[0].mxu0
        %v3530 = vpop.f32.mrb[0].mxu0
        %3531 = vdwg.mxu0
        %v3532 = vld [vmem:[#allocation2] sm:$0x1]
        %v3533 = vadd.f32 %v3527, %v3532
        %v3534 = vadd.f32 %v3137, %v3533
        %v3535 = vld [vmem:[#allocation5] sm:$0x1]
        %v3536 = vld [vmem:[#allocation7] sm:$0x1]
        %vm3537 = vcmask 253952
        %v3538 = vsel %vm3537, %v3534, 0.0
        %3539 = vadd.xlane.f32.xlu0 %v3538
        %v3540 = vpop.xlane.xlu0 %3539
        %v3541 = vmul.f32 %v3540, %v1565
        %v3542 = vsub.f32 %v3534, %v3541
        %v3543 = vmul.f32 %v3542, %v3542
        %v3544 = vsel %vm3537, %v3543, 0.0
        %3545 = vadd.xlane.f32.xlu0 %v3544
        %v3546 = vpop.xlane.xlu0 %3545
        %v3547 = vmul.f32 %v3546, %v1565
        %v3548 = vadd.f32 %v3547, 1e-06
        %v3549 = vrsqrt.pop %v3548
        %v3550 = vmul.f32 %v3542, %v3549
        %v3551 = vmul.f32 %v3550, %v3535
        %v3552 = vadd.f32 %v3551, %v3536
        %v3553 = vld [vmem:[%s71] sm:$0xf]
        %v3554 = vld [vmem:[%s71 + $0x4] sm:$0xf]
        %v3555 = vld [vmem:[%s71 + $0x8] sm:$0xf]
        %v3556 = vld [vmem:[%s71 + $0xc] sm:$0xf]
        %v3557 = vpack.c.bf16 %v3552, %v3552
        %v3562 = vunpack.c.l.b16 %v3553
        %v3563 = vunpack.c.l.b16 %v3554
        %v3564 = vunpack.c.l.b16 %v3555
        %v3565 = vunpack.c.l.b16 %v3556
        %v3566 = vpack.c.b16 %v3563, %v3562
        %v3567 = vpack.c.b16 %v3565, %v3564
        %v3571 = vsel %vm1614, %v3557, 0
        %3573 = vmatprep.subr.bf16.mxu0 0
        %3574 = vmatpush1.bf16.msra.mxu0 %v3566
        %3575 = vmatprep.subr.bf16.mxu0 0
        %3576 = vmatpush1.bf16.msra.mxu0 %v3567
        %3577 = vmatprep.subr.bf16.mxu0 0
        %3578 = vmatpush1.bf16.msra.mxu0 0
        %3579 = vmatprep.subr.bf16.mxu0 0
        %3580 = vmatpush1.bf16.msra.mxu0 0
        %3581 = vmatprep.subr.bf16.mxu0 0
        %3582 = vmatpush1.bf16.msra.mxu0 0
        %3583 = vmatprep.subr.bf16.mxu0 0
        %3584 = vmatpush1.bf16.msra.mxu0 0
        %3585 = vmatprep.subr.bf16.mxu0 0
        %3586 = vmatpush1.bf16.msra.mxu0 0
        %3587 = vmatprep.subr.bf16.mxu0 0
        %3588 = vmatpush1.bf16.msra.mxu0 0
        %3589 = vmatprep.subr.bf16.mxu0 0
        %3590 = vmatpush1.bf16.msra.mxu0 0
        %3591 = vmatprep.subr.bf16.mxu0 0
        %3592 = vmatpush1.bf16.msra.mxu0 0
        %3593 = vmatprep.subr.bf16.mxu0 0
        %3594 = vmatpush1.bf16.msra.mxu0 0
        %3595 = vmatprep.subr.bf16.mxu0 0
        %3596 = vmatpush1.bf16.msra.mxu0 0
        %3597 = vmatprep.subr.bf16.mxu0 0
        %3598 = vmatpush1.bf16.msra.mxu0 0
        %3599 = vmatprep.subr.bf16.mxu0 0
        %3600 = vmatpush1.bf16.msra.mxu0 0
        %3601 = vmatprep.subr.bf16.mxu0 0
        %3602 = vmatpush1.bf16.msra.mxu0 0
        %3603 = vmatprep.subr.bf16.mxu0 0
        %3604 = vmatpush1.bf16.msra.mxu0 0
        %3605 = vmatprep.mubr.bf16.mxu0 0
        %3606 = vmatmul.mubr.bf16.gmra.mrb[0].mxu0 %v3571
        %v3607 = vpop.f32.mrb[0].mxu0
        %v3608 = vadd.f32 0.0, %v3607
        %v3609 = vpop.f32.mrb[0].mxu0
        %v3610 = vpop.f32.mrb[0].mxu0
        %v3611 = vpop.f32.mrb[0].mxu0
        %3612 = vdwg.mxu0
        %vm3613 = vcmask 516096
        %v3614 = vsel %vm3613, %v3608, -inf
        %3615 = vmax.xlane.f32.xlu0 %v3614
        %v3616 = vpop.xlane.xlu0 %3615
        %vm3617 = vcmp.eq.f32.partialorder %v3608, %v3616
        %v3618 = vsel %vm3617, %v2944, 64
        %v3619 = vsel %vm3613, %v3618, 2147483647
        %v3620 = vand.u32 %v3619, 65535
        %v3621 = vshra.s32 %v3619, 16
        %v3622 = vcvt.s32.f32 %v3620
        %v3623 = vcvt.s32.f32 %v3621
        %3624 = vmin.xlane.f32.xlu0 %v3623
        %v3625 = vpop.xlane.xlu0 %3624
        %vm3626 = vcmp.eq.f32.partialorder %v3623, %v3625
        %v3627 = vsel %vm3626, %v3622, inf
        %3628 = vmin.xlane.f32.xlu0 %v3627
        %v3629 = vpop.xlane.xlu0 %3628
        %v3630 = vcvt.f32.s32 %v3629
        %v3631 = vcvt.f32.s32 %v3625
        %v3632 = vshll.u32 %v3631, 16
        %v3633 = vadd.s32 %v3632, %v3630
        %vm3634 = vcmp.eq.s32.totalorder %v2944, %v3633
        %v3635 = vsel %vm3095, %v3633, 0
        %v3636 = vld [vmem:[%s69] sm:$0xf]
        %v3637 = vld [vmem:[%s69 + $0x4] sm:$0xf]
        %v3638 = vld [vmem:[%s69 + $0x8] sm:$0xf]
        %v3639 = vld [vmem:[%s69 + $0xc] sm:$0xf]
        %v3640 = vld [vmem:[%s69 + $0x10] sm:$0xf]
        %v3641 = vld [vmem:[%s69 + $0x14] sm:$0xf]
        %v3642 = vld [vmem:[%s69 + $0x18] sm:$0xf]
        %v3643 = vld [vmem:[%s69 + $0x1c] sm:$0xf]
        %v3644 = vsel %vm3634, 1, 0
        %v3645 = vcvt.s32.f32 %v3644
        %v3646 = vpack.c.bf16 %v3645, %v3645
        %v3655 = vunpack.c.l.b16 %v3636
        %v3656 = vunpack.c.l.b16 %v3637
        %v3657 = vunpack.c.l.b16 %v3638
        %v3658 = vunpack.c.l.b16 %v3639
        %v3659 = vunpack.c.l.b16 %v3640
        %v3660 = vunpack.c.l.b16 %v3641
        %v3661 = vunpack.c.l.b16 %v3642
        %v3662 = vunpack.c.l.b16 %v3643
        %v3663 = vpack.c.b16 %v3656, %v3655
        %v3664 = vpack.c.b16 %v3658, %v3657
        %v3665 = vpack.c.b16 %v3660, %v3659
        %v3666 = vpack.c.b16 %v3662, %v3661
        %v3672 = vsel %vm2142, %v3646, 0
        %3674 = vmatprep.subr.bf16.mxu0 0
        %3675 = vmatpush1.bf16.msra.mxu0 %v3663
        %3676 = vmatprep.subr.bf16.mxu0 0
        %3677 = vmatpush1.bf16.msra.mxu0 %v3664
        %3678 = vmatprep.subr.bf16.mxu0 0
        %3679 = vmatpush1.bf16.msra.mxu0 %v3665
        %3680 = vmatprep.subr.bf16.mxu0 0
        %3681 = vmatpush1.bf16.msra.mxu0 %v3666
        %3682 = vmatprep.subr.bf16.mxu0 0
        %3683 = vmatpush1.bf16.msra.mxu0 0
        %3684 = vmatprep.subr.bf16.mxu0 0
        %3685 = vmatpush1.bf16.msra.mxu0 0
        %3686 = vmatprep.subr.bf16.mxu0 0
        %3687 = vmatpush1.bf16.msra.mxu0 0
        %3688 = vmatprep.subr.bf16.mxu0 0
        %3689 = vmatpush1.bf16.msra.mxu0 0
        %3690 = vmatprep.subr.bf16.mxu0 0
        %3691 = vmatpush1.bf16.msra.mxu0 0
        %3692 = vmatprep.subr.bf16.mxu0 0
        %3693 = vmatpush1.bf16.msra.mxu0 0
        %3694 = vmatprep.subr.bf16.mxu0 0
        %3695 = vmatpush1.bf16.msra.mxu0 0
        %3696 = vmatprep.subr.bf16.mxu0 0
        %3697 = vmatpush1.bf16.msra.mxu0 0
        %3698 = vmatprep.subr.bf16.mxu0 0
        %3699 = vmatpush1.bf16.msra.mxu0 0
        %3700 = vmatprep.subr.bf16.mxu0 0
        %3701 = vmatpush1.bf16.msra.mxu0 0
        %3702 = vmatprep.subr.bf16.mxu0 0
        %3703 = vmatpush1.bf16.msra.mxu0 0
        %3704 = vmatprep.subr.bf16.mxu0 0
        %3705 = vmatpush1.bf16.msra.mxu0 0
        %3706 = vmatprep.mubr.bf16.mxu0 0
        %3707 = vmatmul.mubr.bf16.gmra.mrb[0].mxu0 %v3672
        %v3708 = vpop.f32.mrb[0].mxu0
        %v3709 = vadd.f32 0.0, %v3708
        %v3710 = vpop.f32.mrb[0].mxu0
        %v3711 = vpop.f32.mrb[0].mxu0
        %v3712 = vpop.f32.mrb[0].mxu0
        %3713 = vdwg.mxu0
        %v3714 = vld [vmem:[%s73] sm:$0xf]
        %v3715 = vld [vmem:[%s73 + $0x4] sm:$0xf]
        %v3716 = vld [vmem:[%s73 + $0x8] sm:$0xf]
        %v3717 = vld [vmem:[%s73 + $0xc] sm:$0xf]
        %v3718 = vpack.c.bf16 %v3709, %v3709
        %v3719 = vld [vmem:[%s75] sm:$0x1]
        %v3724 = vunpack.c.l.b16 %v3714
        %v3725 = vunpack.c.l.b16 %v3715
        %v3726 = vunpack.c.l.b16 %v3716
        %v3727 = vunpack.c.l.b16 %v3717
        %v3728 = vpack.c.b16 %v3725, %v3724
        %v3729 = vpack.c.b16 %v3727, %v3726
        %v3733 = vsel %vm1614, %v3718, 0
        %3735 = vmatprep.subr.bf16.mxu0 0
        %3736 = vmatpush1.bf16.msra.mxu0 %v3728
        %3737 = vmatprep.subr.bf16.mxu0 0
        %3738 = vmatpush1.bf16.msra.mxu0 %v3729
        %3739 = vmatprep.subr.bf16.mxu0 0
        %3740 = vmatpush1.bf16.msra.mxu0 0
        %3741 = vmatprep.subr.bf16.mxu0 0
        %3742 = vmatpush1.bf16.msra.mxu0 0
        %3743 = vmatprep.subr.bf16.mxu0 0
        %3744 = vmatpush1.bf16.msra.mxu0 0
        %3745 = vmatprep.subr.bf16.mxu0 0
        %3746 = vmatpush1.bf16.msra.mxu0 0
        %3747 = vmatprep.subr.bf16.mxu0 0
        %3748 = vmatpush1.bf16.msra.mxu0 0
        %3749 = vmatprep.subr.bf16.mxu0 0
        %3750 = vmatpush1.bf16.msra.mxu0 0
        %3751 = vmatprep.subr.bf16.mxu0 0
        %3752 = vmatpush1.bf16.msra.mxu0 0
        %3753 = vmatprep.subr.bf16.mxu0 0
        %3754 = vmatpush1.bf16.msra.mxu0 0
        %3755 = vmatprep.subr.bf16.mxu0 0
        %3756 = vmatpush1.bf16.msra.mxu0 0
        %3757 = vmatprep.subr.bf16.mxu0 0
        %3758 = vmatpush1.bf16.msra.mxu0 0
        %3759 = vmatprep.subr.bf16.mxu0 0
        %3760 = vmatpush1.bf16.msra.mxu0 0
        %3761 = vmatprep.subr.bf16.mxu0 0
        %3762 = vmatpush1.bf16.msra.mxu0 0
        %3763 = vmatprep.subr.bf16.mxu0 0
        %3764 = vmatpush1.bf16.msra.mxu0 0
        %3765 = vmatprep.subr.bf16.mxu0 0
        %3766 = vmatpush1.bf16.msra.mxu0 0
        %3767 = vmatprep.mubr.bf16.mxu0 0
        %3768 = vmatmul.mubr.bf16.gmra.mrb[0].mxu0 %v3733
        %v3769 = vpop.f32.mrb[0].mxu0
        %v3770 = vadd.f32 %v3719, %v3769
        %v3771 = vpop.f32.mrb[0].mxu0
        %v3772 = vpop.f32.mrb[0].mxu0
        %v3773 = vpop.f32.mrb[0].mxu0
        %3774 = vdwg.mxu0
        %v3775 = vld [vmem:[%s81] sm:$0xf]
        %v3776 = vld [vmem:[%s81 + $0x4] sm:$0xf]
        %v3777 = vld [vmem:[%s81 + $0x8] sm:$0xf]
        %v3778 = vld [vmem:[%s81 + $0xc] sm:$0xf]
        %v3779 = vpack.c.bf16 %v3770, %v3770
        %v3781 = vsel %vm1666, %v3779, 0
        %3783 = vmatprep.subr.bf16.mxu0 0
        %3784 = vmatpush1.bf16.xpose.msra.mxu0 %v3213
        %3785 = vmatprep.subr.bf16.mxu0 0
        %3786 = vmatpush1.bf16.xpose.msra.mxu0 0
        %3787 = vmatprep.subr.bf16.mxu0 0
        %3788 = vmatpush1.bf16.xpose.msra.mxu0 0
        %3789 = vmatprep.subr.bf16.mxu0 0
        %3790 = vmatpush1.bf16.xpose.msra.mxu0 0
        %3791 = vmatprep.subr.bf16.mxu0 0
        %3792 = vmatpush1.bf16.xpose.msra.mxu0 0
        %3793 = vmatprep.subr.bf16.mxu0 0
        %3794 = vmatpush1.bf16.xpose.msra.mxu0 0
        %3795 = vmatprep.subr.bf16.mxu0 0
        %3796 = vmatpush1.bf16.xpose.msra.mxu0 0
        %3797 = vmatprep.subr.bf16.mxu0 0
        %3798 = vmatpush1.bf16.xpose.msra.mxu0 0
        %3799 = vmatprep.subr.bf16.mxu0 0
        %3800 = vmatpush1.bf16.xpose.msra.mxu0 0
        %3801 = vmatprep.subr.bf16.mxu0 0
        %3802 = vmatpush1.bf16.xpose.msra.mxu0 0
        %3803 = vmatprep.subr.bf16.mxu0 0
        %3804 = vmatpush1.bf16.xpose.msra.mxu0 0
        %3805 = vmatprep.subr.bf16.mxu0 0
        %3806 = vmatpush1.bf16.xpose.msra.mxu0 0
        %3807 = vmatprep.subr.bf16.mxu0 0
        %3808 = vmatpush1.bf16.xpose.msra.mxu0 0
        %3809 = vmatprep.subr.bf16.mxu0 0
        %3810 = vmatpush1.bf16.xpose.msra.mxu0 0
        %3811 = vmatprep.subr.bf16.mxu0 0
        %3812 = vmatpush1.bf16.xpose.msra.mxu0 0
        %3813 = vmatprep.subr.bf16.mxu0 0
        %3814 = vmatpush1.bf16.xpose.msra.mxu0 0
        %3815 = vmatprep.mubr.bf16.mxu0 0
        %3816 = vmatmul.mubr.bf16.gmra.mrb[0].mxu0 %v3781
        %v3817 = vpop.f32.mrb[0].mxu0
        %v3818 = vadd.f32 0.0, %v3817
        %v3819 = vpop.f32.mrb[0].mxu0
        %v3820 = vpop.f32.mrb[0].mxu0
        %v3821 = vpop.f32.mrb[0].mxu0
        %3822 = vdwg.mxu0
        %v3823 = vmul.f32 %v3818, 0.25
        %v3824 = vsel %vm3256, %v3823, -inf
        %3825 = vmax.xlane.f32.xlu0 %v3824
        %v3826 = vpop.xlane.xlu0 %3825
        %v3827 = vsub.f32 %v3823, %v3826
        %v3828 = vmul.f32 %v3827, 1.442695
        %v3829 = vpow.pop %v3828
        %v3830 = vsel %vm3256, %v3829, 0.0
        %3831 = vadd.xlane.f32.xlu0 %v3830
        %v3832 = vpop.xlane.xlu0 %3831
        %v3833 = vrcp.pop %v3832
        %v3834 = vmul.f32 %v3829, %v3833
        %v3835 = vpack.c.bf16 %v3834, %v3834
        %v3837 = vsel %vm3272, %v3835, 0
        %3839 = vmatprep.subr.bf16.mxu0 0
        %3840 = vmatpush1.bf16.msra.mxu0 %v3278
        %3841 = vmatprep.subr.bf16.mxu0 0
        %3842 = vmatpush1.bf16.msra.mxu0 0
        %3843 = vmatprep.subr.bf16.mxu0 0
        %3844 = vmatpush1.bf16.msra.mxu0 0
        %3845 = vmatprep.subr.bf16.mxu0 0
        %3846 = vmatpush1.bf16.msra.mxu0 0
        %3847 = vmatprep.subr.bf16.mxu0 0
        %3848 = vmatpush1.bf16.msra.mxu0 0
        %3849 = vmatprep.subr.bf16.mxu0 0
        %3850 = vmatpush1.bf16.msra.mxu0 0
        %3851 = vmatprep.subr.bf16.mxu0 0
        %3852 = vmatpush1.bf16.msra.mxu0 0
        %3853 = vmatprep.subr.bf16.mxu0 0
        %3854 = vmatpush1.bf16.msra.mxu0 0
        %3855 = vmatprep.subr.bf16.mxu0 0
        %3856 = vmatpush1.bf16.msra.mxu0 0
        %3857 = vmatprep.subr.bf16.mxu0 0
        %3858 = vmatpush1.bf16.msra.mxu0 0
        %3859 = vmatprep.subr.bf16.mxu0 0
        %3860 = vmatpush1.bf16.msra.mxu0 0
        %3861 = vmatprep.subr.bf16.mxu0 0
        %3862 = vmatpush1.bf16.msra.mxu0 0
        %3863 = vmatprep.subr.bf16.mxu0 0
        %3864 = vmatpush1.bf16.msra.mxu0 0
        %3865 = vmatprep.subr.bf16.mxu0 0
        %3866 = vmatpush1.bf16.msra.mxu0 0
        %3867 = vmatprep.subr.bf16.mxu0 0
        %3868 = vmatpush1.bf16.msra.mxu0 0
        %3869 = vmatprep.subr.bf16.mxu0 0
        %3870 = vmatpush1.bf16.msra.mxu0 0
        %3871 = vmatprep.mubr.bf16.mxu0 0
        %3872 = vmatmul.mubr.bf16.gmra.mrb[0].mxu0 %v3837
        %v3873 = vpop.f32.mrb[0].mxu0
        %v3874 = vadd.f32 0.0, %v3873
        %v3875 = vpop.f32.mrb[0].mxu0
        %v3876 = vpop.f32.mrb[0].mxu0
        %v3877 = vpop.f32.mrb[0].mxu0
        %3878 = vdwg.mxu0
        %v3879 = vpack.c.bf16 %v3874, %v3874
        %3881 = vrot.lane.b32.xlu0 %v3779, 112
        %v3882 = vpop.permute.xlu0 %3881
        %v3884 = vsel %vm1666, %v3882, 0
        %3886 = vmatprep.subr.bf16.mxu0 0
        %3887 = vmatpush1.bf16.xpose.msra.mxu0 %v3330
        %3888 = vmatprep.subr.bf16.mxu0 0
        %3889 = vmatpush1.bf16.xpose.msra.mxu0 0
        %3890 = vmatprep.subr.bf16.mxu0 0
        %3891 = vmatpush1.bf16.xpose.msra.mxu0 0
        %3892 = vmatprep.subr.bf16.mxu0 0
        %3893 = vmatpush1.bf16.xpose.msra.mxu0 0
        %3894 = vmatprep.subr.bf16.mxu0 0
        %3895 = vmatpush1.bf16.xpose.msra.mxu0 0
        %3896 = vmatprep.subr.bf16.mxu0 0
        %3897 = vmatpush1.bf16.xpose.msra.mxu0 0
        %3898 = vmatprep.subr.bf16.mxu0 0
        %3899 = vmatpush1.bf16.xpose.msra.mxu0 0
        %3900 = vmatprep.subr.bf16.mxu0 0
        %3901 = vmatpush1.bf16.xpose.msra.mxu0 0
        %3902 = vmatprep.subr.bf16.mxu0 0
        %3903 = vmatpush1.bf16.xpose.msra.mxu0 0
        %3904 = vmatprep.subr.bf16.mxu0 0
        %3905 = vmatpush1.bf16.xpose.msra.mxu0 0
        %3906 = vmatprep.subr.bf16.mxu0 0
        %3907 = vmatpush1.bf16.xpose.msra.mxu0 0
        %3908 = vmatprep.subr.bf16.mxu0 0
        %3909 = vmatpush1.bf16.xpose.msra.mxu0 0
        %3910 = vmatprep.subr.bf16.mxu0 0
        %3911 = vmatpush1.bf16.xpose.msra.mxu0 0
        %3912 = vmatprep.subr.bf16.mxu0 0
        %3913 = vmatpush1.bf16.xpose.msra.mxu0 0
        %3914 = vmatprep.subr.bf16.mxu0 0
        %3915 = vmatpush1.bf16.xpose.msra.mxu0 0
        %3916 = vmatprep.subr.bf16.mxu0 0
        %3917 = vmatpush1.bf16.xpose.msra.mxu0 0
        %3918 = vmatprep.mubr.bf16.mxu0 0
        %3919 = vmatmul.mubr.bf16.gmra.mrb[0].mxu0 %v3884
        %v3920 = vpop.f32.mrb[0].mxu0
        %v3921 = vadd.f32 0.0, %v3920
        %v3922 = vpop.f32.mrb[0].mxu0
        %v3923 = vpop.f32.mrb[0].mxu0
        %v3924 = vpop.f32.mrb[0].mxu0
        %3925 = vdwg.mxu0
        %v3926 = vmul.f32 %v3921, 0.25
        %v3927 = vsel %vm3256, %v3926, -inf
        %3928 = vmax.xlane.f32.xlu0 %v3927
        %v3929 = vpop.xlane.xlu0 %3928
        %v3930 = vsub.f32 %v3926, %v3929
        %v3931 = vmul.f32 %v3930, 1.442695
        %v3932 = vpow.pop %v3931
        %v3933 = vsel %vm3256, %v3932, 0.0
        %3934 = vadd.xlane.f32.xlu0 %v3933
        %v3935 = vpop.xlane.xlu0 %3934
        %v3936 = vrcp.pop %v3935
        %v3937 = vmul.f32 %v3932, %v3936
        %v3938 = vpack.c.bf16 %v3937, %v3937
        %v3940 = vsel %vm3272, %v3938, 0
        %3942 = vmatprep.subr.bf16.mxu0 0
        %3943 = vmatpush1.bf16.msra.mxu0 %v3391
        %3944 = vmatprep.subr.bf16.mxu0 0
        %3945 = vmatpush1.bf16.msra.mxu0 0
        %3946 = vmatprep.subr.bf16.mxu0 0
        %3947 = vmatpush1.bf16.msra.mxu0 0
        %3948 = vmatprep.subr.bf16.mxu0 0
        %3949 = vmatpush1.bf16.msra.mxu0 0
        %3950 = vmatprep.subr.bf16.mxu0 0
        %3951 = vmatpush1.bf16.msra.mxu0 0
        %3952 = vmatprep.subr.bf16.mxu0 0
        %3953 = vmatpush1.bf16.msra.mxu0 0
        %3954 = vmatprep.subr.bf16.mxu0 0
        %3955 = vmatpush1.bf16.msra.mxu0 0
        %3956 = vmatprep.subr.bf16.mxu0 0
        %3957 = vmatpush1.bf16.msra.mxu0 0
        %3958 = vmatprep.subr.bf16.mxu0 0
        %3959 = vmatpush1.bf16.msra.mxu0 0
        %3960 = vmatprep.subr.bf16.mxu0 0
        %3961 = vmatpush1.bf16.msra.mxu0 0
        %3962 = vmatprep.subr.bf16.mxu0 0
        %3963 = vmatpush1.bf16.msra.mxu0 0
        %3964 = vmatprep.subr.bf16.mxu0 0
        %3965 = vmatpush1.bf16.msra.mxu0 0
        %3966 = vmatprep.subr.bf16.mxu0 0
        %3967 = vmatpush1.bf16.msra.mxu0 0
        %3968 = vmatprep.subr.bf16.mxu0 0
        %3969 = vmatpush1.bf16.msra.mxu0 0
        %3970 = vmatprep.subr.bf16.mxu0 0
        %3971 = vmatpush1.bf16.msra.mxu0 0
        %3972 = vmatprep.subr.bf16.mxu0 0
        %3973 = vmatpush1.bf16.msra.mxu0 0
        %3974 = vmatprep.mubr.bf16.mxu0 0
        %3975 = vmatmul.mubr.bf16.gmra.mrb[0].mxu0 %v3940
        %v3976 = vpop.f32.mrb[0].mxu0
        %v3977 = vadd.f32 0.0, %v3976
        %v3978 = vpop.f32.mrb[0].mxu0
        %v3979 = vpop.f32.mrb[0].mxu0
        %v3980 = vpop.f32.mrb[0].mxu0
        %3981 = vdwg.mxu0
        %v3982 = vpack.c.bf16 %v3977, %v3977
        %v3985 = vunpack.c.l.b16 %v3777
        %v3986 = vunpack.c.l.b16 %v3778
        %v3987 = vpack.c.b16 %v3986, %v3985
        %v3990 = vsel %vm1666, %v3982, 0
        %3992 = vmatprep.subr.bf16.mxu0 0
        %3993 = vmatpush1.bf16.msra.mxu0 %v3987
        %3994 = vmatprep.subr.bf16.mxu0 0
        %3995 = vmatpush1.bf16.msra.mxu0 0
        %3996 = vmatprep.subr.bf16.mxu0 0
        %3997 = vmatpush1.bf16.msra.mxu0 0
        %3998 = vmatprep.subr.bf16.mxu0 0
        %3999 = vmatpush1.bf16.msra.mxu0 0
        %4000 = vmatprep.subr.bf16.mxu0 0
        %4001 = vmatpush1.bf16.msra.mxu0 0
        %4002 = vmatprep.subr.bf16.mxu0 0
        %4003 = vmatpush1.bf16.msra.mxu0 0
        %4004 = vmatprep.subr.bf16.mxu0 0
        %4005 = vmatpush1.bf16.msra.mxu0 0
        %4006 = vmatprep.subr.bf16.mxu0 0
        %4007 = vmatpush1.bf16.msra.mxu0 0
        %4008 = vmatprep.subr.bf16.mxu0 0
        %4009 = vmatpush1.bf16.msra.mxu0 0
        %4010 = vmatprep.subr.bf16.mxu0 0
        %4011 = vmatpush1.bf16.msra.mxu0 0
        %4012 = vmatprep.subr.bf16.mxu0 0
        %4013 = vmatpush1.bf16.msra.mxu0 0
        %4014 = vmatprep.subr.bf16.mxu0 0
        %4015 = vmatpush1.bf16.msra.mxu0 0
        %4016 = vmatprep.subr.bf16.mxu0 0
        %4017 = vmatpush1.bf16.msra.mxu0 0
        %4018 = vmatprep.subr.bf16.mxu0 0
        %4019 = vmatpush1.bf16.msra.mxu0 0
        %4020 = vmatprep.subr.bf16.mxu0 0
        %4021 = vmatpush1.bf16.msra.mxu0 0
        %4022 = vmatprep.subr.bf16.mxu0 0
        %4023 = vmatpush1.bf16.msra.mxu0 0
        %4024 = vmatprep.mubr.bf16.mxu0 0
        %4025 = vmatmul.mubr.bf16.gmra.mrb[0].mxu0 %v3990
        %v4026 = vpop.f32.mrb[0].mxu0
        %v4027 = vadd.f32 0.0, %v4026
        %v4028 = vpop.f32.mrb[0].mxu0
        %v4029 = vpop.f32.mrb[0].mxu0
        %v4030 = vpop.f32.mrb[0].mxu0
        %4031 = vdwg.mxu0
        %v4034 = vunpack.c.l.b16 %v3775
        %v4035 = vunpack.c.l.b16 %v3776
        %v4036 = vpack.c.b16 %v4035, %v4034
        %v4039 = vsel %vm1666, %v3879, 0
        %4041 = vmatprep.subr.bf16.mxu0 0
        %4042 = vmatpush1.bf16.msra.mxu0 %v4036
        %4043 = vmatprep.subr.bf16.mxu0 0
        %4044 = vmatpush1.bf16.msra.mxu0 0
        %4045 = vmatprep.subr.bf16.mxu0 0
        %4046 = vmatpush1.bf16.msra.mxu0 0
        %4047 = vmatprep.subr.bf16.mxu0 0
        %4048 = vmatpush1.bf16.msra.mxu0 0
        %4049 = vmatprep.subr.bf16.mxu0 0
        %4050 = vmatpush1.bf16.msra.mxu0 0
        %4051 = vmatprep.subr.bf16.mxu0 0
        %4052 = vmatpush1.bf16.msra.mxu0 0
        %4053 = vmatprep.subr.bf16.mxu0 0
        %4054 = vmatpush1.bf16.msra.mxu0 0
        %4055 = vmatprep.subr.bf16.mxu0 0
        %4056 = vmatpush1.bf16.msra.mxu0 0
        %4057 = vmatprep.subr.bf16.mxu0 0
        %4058 = vmatpush1.bf16.msra.mxu0 0
        %4059 = vmatprep.subr.bf16.mxu0 0
        %4060 = vmatpush1.bf16.msra.mxu0 0
        %4061 = vmatprep.subr.bf16.mxu0 0
        %4062 = vmatpush1.bf16.msra.mxu0 0
        %4063 = vmatprep.subr.bf16.mxu0 0
        %4064 = vmatpush1.bf16.msra.mxu0 0
        %4065 = vmatprep.subr.bf16.mxu0 0
        %4066 = vmatpush1.bf16.msra.mxu0 0
        %4067 = vmatprep.subr.bf16.mxu0 0
        %4068 = vmatpush1.bf16.msra.mxu0 0
        %4069 = vmatprep.subr.bf16.mxu0 0
        %4070 = vmatpush1.bf16.msra.mxu0 0
        %4071 = vmatprep.subr.bf16.mxu0 0
        %4072 = vmatpush1.bf16.msra.mxu0 0
        %4073 = vmatprep.mubr.bf16.mxu0 0
        %4074 = vmatmul.mubr.bf16.gmra.mrb[0].mxu0 %v4039
        %v4075 = vpop.f32.mrb[0].mxu0
        %v4076 = vadd.f32 %v4027, %v4075
        %v4077 = vpop.f32.mrb[0].mxu0
        %v4078 = vpop.f32.mrb[0].mxu0
        %v4079 = vpop.f32.mrb[0].mxu0
        %4080 = vdwg.mxu0
        %v4081 = vld [vmem:[#allocation2] sm:$0x1]
        %v4082 = vadd.f32 %v4076, %v4081
        %v4083 = vadd.f32 %v3709, %v4082
        %v4084 = vld [vmem:[#allocation5] sm:$0x1]
        %v4085 = vld [vmem:[#allocation7] sm:$0x1]
        %v4086 = vsel %vm3537, %v4083, 0.0
        %4087 = vadd.xlane.f32.xlu0 %v4086
        %v4088 = vpop.xlane.xlu0 %4087
        %v4089 = vmul.f32 %v4088, %v1565
        %v4090 = vsub.f32 %v4083, %v4089
        %v4091 = vmul.f32 %v4090, %v4090
        %v4092 = vsel %vm3537, %v4091, 0.0
        %4093 = vadd.xlane.f32.xlu0 %v4092
        %v4094 = vpop.xlane.xlu0 %4093
        %v4095 = vmul.f32 %v4094, %v1565
        %v4096 = vadd.f32 %v4095, 1e-06
        %v4097 = vrsqrt.pop %v4096
        %v4098 = vmul.f32 %v4090, %v4097
        %v4099 = vmul.f32 %v4098, %v4084
        %v4100 = vadd.f32 %v4099, %v4085
        %v4101 = vld [vmem:[%s71] sm:$0xf]
        %v4102 = vld [vmem:[%s71 + $0x4] sm:$0xf]
        %v4103 = vld [vmem:[%s71 + $0x8] sm:$0xf]
        %v4104 = vld [vmem:[%s71 + $0xc] sm:$0xf]
        %v4105 = vpack.c.bf16 %v4100, %v4100
        %v4110 = vunpack.c.l.b16 %v4101
        %v4111 = vunpack.c.l.b16 %v4102
        %v4112 = vunpack.c.l.b16 %v4103
        %v4113 = vunpack.c.l.b16 %v4104
        %v4114 = vpack.c.b16 %v4111, %v4110
        %v4115 = vpack.c.b16 %v4113, %v4112
        %v4119 = vsel %vm1614, %v4105, 0
        %4121 = vmatprep.subr.bf16.mxu0 0
        %4122 = vmatpush1.bf16.msra.mxu0 %v4114
        %4123 = vmatprep.subr.bf16.mxu0 0
        %4124 = vmatpush1.bf16.msra.mxu0 %v4115
        %4125 = vmatprep.subr.bf16.mxu0 0
        %4126 = vmatpush1.bf16.msra.mxu0 0
        %4127 = vmatprep.subr.bf16.mxu0 0
        %4128 = vmatpush1.bf16.msra.mxu0 0
        %4129 = vmatprep.subr.bf16.mxu0 0
        %4130 = vmatpush1.bf16.msra.mxu0 0
        %4131 = vmatprep.subr.bf16.mxu0 0
        %4132 = vmatpush1.bf16.msra.mxu0 0
        %4133 = vmatprep.subr.bf16.mxu0 0
        %4134 = vmatpush1.bf16.msra.mxu0 0
        %4135 = vmatprep.subr.bf16.mxu0 0
        %4136 = vmatpush1.bf16.msra.mxu0 0
        %4137 = vmatprep.subr.bf16.mxu0 0
        %4138 = vmatpush1.bf16.msra.mxu0 0
        %4139 = vmatprep.subr.bf16.mxu0 0
        %4140 = vmatpush1.bf16.msra.mxu0 0
        %4141 = vmatprep.subr.bf16.mxu0 0
        %4142 = vmatpush1.bf16.msra.mxu0 0
        %4143 = vmatprep.subr.bf16.mxu0 0
        %4144 = vmatpush1.bf16.msra.mxu0 0
        %4145 = vmatprep.subr.bf16.mxu0 0
        %4146 = vmatpush1.bf16.msra.mxu0 0
        %4147 = vmatprep.subr.bf16.mxu0 0
        %4148 = vmatpush1.bf16.msra.mxu0 0
        %4149 = vmatprep.subr.bf16.mxu0 0
        %4150 = vmatpush1.bf16.msra.mxu0 0
        %4151 = vmatprep.subr.bf16.mxu0 0
        %4152 = vmatpush1.bf16.msra.mxu0 0
        %4153 = vmatprep.mubr.bf16.mxu0 0
        %4154 = vmatmul.mubr.bf16.gmra.mrb[0].mxu0 %v4119
        %v4155 = vpop.f32.mrb[0].mxu0
        %v4156 = vadd.f32 0.0, %v4155
        %v4157 = vpop.f32.mrb[0].mxu0
        %v4158 = vpop.f32.mrb[0].mxu0
        %v4159 = vpop.f32.mrb[0].mxu0
        %4160 = vdwg.mxu0
        %v4161 = vsel %vm3613, %v4156, -inf
        %4162 = vmax.xlane.f32.xlu0 %v4161
        %v4163 = vpop.xlane.xlu0 %4162
        %vm4164 = vcmp.eq.f32.partialorder %v4156, %v4163
        %v4165 = vsel %vm4164, %v2944, 64
        %v4166 = vsel %vm3613, %v4165, 2147483647
        %v4167 = vand.u32 %v4166, 65535
        %v4168 = vshra.s32 %v4166, 16
        %v4169 = vcvt.s32.f32 %v4167
        %v4170 = vcvt.s32.f32 %v4168
        %4171 = vmin.xlane.f32.xlu0 %v4170
        %v4172 = vpop.xlane.xlu0 %4171
        %vm4173 = vcmp.eq.f32.partialorder %v4170, %v4172
        %v4174 = vsel %vm4173, %v4169, inf
        %4175 = vmin.xlane.f32.xlu0 %v4174
        %v4176 = vpop.xlane.xlu0 %4175
        %v4177 = vcvt.f32.s32 %v4176
        %v4178 = vcvt.f32.s32 %v4172
        %v4179 = vshll.u32 %v4178, 16
        %v4180 = vadd.s32 %v4179, %v4177
        %vm4181 = vcmp.eq.s32.totalorder %v2944, %v4180
        %vm4182 = vcmp.eq.s32.totalorder %v2944, 1
        %v4183 = vsel %vm4182, %v4180, %v3635
        %v4184 = vld [vmem:[%s69] sm:$0xf]
        %v4185 = vld [vmem:[%s69 + $0x4] sm:$0xf]
        %v4186 = vld [vmem:[%s69 + $0x8] sm:$0xf]
        %v4187 = vld [vmem:[%s69 + $0xc] sm:$0xf]
        %v4188 = vld [vmem:[%s69 + $0x10] sm:$0xf]
        %v4189 = vld [vmem:[%s69 + $0x14] sm:$0xf]
        %v4190 = vld [vmem:[%s69 + $0x18] sm:$0xf]
        %v4191 = vld [vmem:[%s69 + $0x1c] sm:$0xf]
        %v4192 = vsel %vm4181, 1, 0
        %v4193 = vcvt.s32.f32 %v4192
        %v4194 = vpack.c.bf16 %v4193, %v4193
        %v4203 = vunpack.c.l.b16 %v4184
        %v4204 = vunpack.c.l.b16 %v4185
        %v4205 = vunpack.c.l.b16 %v4186
        %v4206 = vunpack.c.l.b16 %v4187
        %v4207 = vunpack.c.l.b16 %v4188
        %v4208 = vunpack.c.l.b16 %v4189
        %v4209 = vunpack.c.l.b16 %v4190
        %v4210 = vunpack.c.l.b16 %v4191
        %v4211 = vpack.c.b16 %v4204, %v4203
        %v4212 = vpack.c.b16 %v4206, %v4205
        %v4213 = vpack.c.b16 %v4208, %v4207
        %v4214 = vpack.c.b16 %v4210, %v4209
        %v4220 = vsel %vm2142, %v4194, 0
        %4222 = vmatprep.subr.bf16.mxu0 0
        %4223 = vmatpush1.bf16.msra.mxu0 %v4211
        %4224 = vmatprep.subr.bf16.mxu0 0
        %4225 = vmatpush1.bf16.msra.mxu0 %v4212
        %4226 = vmatprep.subr.bf16.mxu0 0
        %4227 = vmatpush1.bf16.msra.mxu0 %v4213
        %4228 = vmatprep.subr.bf16.mxu0 0
        %4229 = vmatpush1.bf16.msra.mxu0 %v4214
        %4230 = vmatprep.subr.bf16.mxu0 0
        %4231 = vmatpush1.bf16.msra.mxu0 0
        %4232 = vmatprep.subr.bf16.mxu0 0
        %4233 = vmatpush1.bf16.msra.mxu0 0
        %4234 = vmatprep.subr.bf16.mxu0 0
        %4235 = vmatpush1.bf16.msra.mxu0 0
        %4236 = vmatprep.subr.bf16.mxu0 0
        %4237 = vmatpush1.bf16.msra.mxu0 0
        %4238 = vmatprep.subr.bf16.mxu0 0
        %4239 = vmatpush1.bf16.msra.mxu0 0
        %4240 = vmatprep.subr.bf16.mxu0 0
        %4241 = vmatpush1.bf16.msra.mxu0 0
        %4242 = vmatprep.subr.bf16.mxu0 0
        %4243 = vmatpush1.bf16.msra.mxu0 0
        %4244 = vmatprep.subr.bf16.mxu0 0
        %4245 = vmatpush1.bf16.msra.mxu0 0
        %4246 = vmatprep.subr.bf16.mxu0 0
        %4247 = vmatpush1.bf16.msra.mxu0 0
        %4248 = vmatprep.subr.bf16.mxu0 0
        %4249 = vmatpush1.bf16.msra.mxu0 0
        %4250 = vmatprep.subr.bf16.mxu0 0
        %4251 = vmatpush1.bf16.msra.mxu0 0
        %4252 = vmatprep.subr.bf16.mxu0 0
        %4253 = vmatpush1.bf16.msra.mxu0 0
        %4254 = vmatprep.mubr.bf16.mxu0 0
        %4255 = vmatmul.mubr.bf16.gmra.mrb[0].mxu0 %v4220
        %v4256 = vpop.f32.mrb[0].mxu0
        %v4257 = vadd.f32 0.0, %v4256
        %v4258 = vpop.f32.mrb[0].mxu0
        %v4259 = vpop.f32.mrb[0].mxu0
        %v4260 = vpop.f32.mrb[0].mxu0
        %4261 = vdwg.mxu0
        %v4262 = vld [vmem:[%s73] sm:$0xf]
        %v4263 = vld [vmem:[%s73 + $0x4] sm:$0xf]
        %v4264 = vld [vmem:[%s73 + $0x8] sm:$0xf]
        %v4265 = vld [vmem:[%s73 + $0xc] sm:$0xf]
        %v4266 = vpack.c.bf16 %v4257, %v4257
        %v4267 = vld [vmem:[%s75] sm:$0x1]
        %v4272 = vunpack.c.l.b16 %v4262
        %v4273 = vunpack.c.l.b16 %v4263
        %v4274 = vunpack.c.l.b16 %v4264
        %v4275 = vunpack.c.l.b16 %v4265
        %v4276 = vpack.c.b16 %v4273, %v4272
        %v4277 = vpack.c.b16 %v4275, %v4274
        %v4281 = vsel %vm1614, %v4266, 0
        %4283 = vmatprep.subr.bf16.mxu0 0
        %4284 = vmatpush1.bf16.msra.mxu0 %v4276
        %4285 = vmatprep.subr.bf16.mxu0 0
        %4286 = vmatpush1.bf16.msra.mxu0 %v4277
        %4287 = vmatprep.subr.bf16.mxu0 0
        %4288 = vmatpush1.bf16.msra.mxu0 0
        %4289 = vmatprep.subr.bf16.mxu0 0
        %4290 = vmatpush1.bf16.msra.mxu0 0
        %4291 = vmatprep.subr.bf16.mxu0 0
        %4292 = vmatpush1.bf16.msra.mxu0 0
        %4293 = vmatprep.subr.bf16.mxu0 0
        %4294 = vmatpush1.bf16.msra.mxu0 0
        %4295 = vmatprep.subr.bf16.mxu0 0
        %4296 = vmatpush1.bf16.msra.mxu0 0
        %4297 = vmatprep.subr.bf16.mxu0 0
        %4298 = vmatpush1.bf16.msra.mxu0 0
        %4299 = vmatprep.subr.bf16.mxu0 0
        %4300 = vmatpush1.bf16.msra.mxu0 0
        %4301 = vmatprep.subr.bf16.mxu0 0
        %4302 = vmatpush1.bf16.msra.mxu0 0
        %4303 = vmatprep.subr.bf16.mxu0 0
        %4304 = vmatpush1.bf16.msra.mxu0 0
        %4305 = vmatprep.subr.bf16.mxu0 0
        %4306 = vmatpush1.bf16.msra.mxu0 0
        %4307 = vmatprep.subr.bf16.mxu0 0
        %4308 = vmatpush1.bf16.msra.mxu0 0
        %4309 = vmatprep.subr.bf16.mxu0 0
        %4310 = vmatpush1.bf16.msra.mxu0 0
        %4311 = vmatprep.subr.bf16.mxu0 0
        %4312 = vmatpush1.bf16.msra.mxu0 0
        %4313 = vmatprep.subr.bf16.mxu0 0
        %4314 = vmatpush1.bf16.msra.mxu0 0
        %4315 = vmatprep.mubr.bf16.mxu0 0
        %4316 = vmatmul.mubr.bf16.gmra.mrb[0].mxu0 %v4281
        %v4317 = vpop.f32.mrb[0].mxu0
        %v4318 = vadd.f32 %v4267, %v4317
        %v4319 = vpop.f32.mrb[0].mxu0
        %v4320 = vpop.f32.mrb[0].mxu0
        %v4321 = vpop.f32.mrb[0].mxu0
        %4322 = vdwg.mxu0
        %v4323 = vld [vmem:[%s81] sm:$0xf]
        %v4324 = vld [vmem:[%s81 + $0x4] sm:$0xf]
        %v4325 = vld [vmem:[%s81 + $0x8] sm:$0xf]
        %v4326 = vld [vmem:[%s81 + $0xc] sm:$0xf]
        %v4327 = vpack.c.bf16 %v4318, %v4318
        %v4329 = vsel %vm1666, %v4327, 0
        %4331 = vmatprep.subr.bf16.mxu0 0
        %4332 = vmatpush1.bf16.xpose.msra.mxu0 %v3213
        %4333 = vmatprep.subr.bf16.mxu0 0
        %4334 = vmatpush1.bf16.xpose.msra.mxu0 0
        %4335 = vmatprep.subr.bf16.mxu0 0
        %4336 = vmatpush1.bf16.xpose.msra.mxu0 0
        %4337 = vmatprep.subr.bf16.mxu0 0
        %4338 = vmatpush1.bf16.xpose.msra.mxu0 0
        %4339 = vmatprep.subr.bf16.mxu0 0
        %4340 = vmatpush1.bf16.xpose.msra.mxu0 0
        %4341 = vmatprep.subr.bf16.mxu0 0
        %4342 = vmatpush1.bf16.xpose.msra.mxu0 0
        %4343 = vmatprep.subr.bf16.mxu0 0
        %4344 = vmatpush1.bf16.xpose.msra.mxu0 0
        %4345 = vmatprep.subr.bf16.mxu0 0
        %4346 = vmatpush1.bf16.xpose.msra.mxu0 0
        %4347 = vmatprep.subr.bf16.mxu0 0
        %4348 = vmatpush1.bf16.xpose.msra.mxu0 0
        %4349 = vmatprep.subr.bf16.mxu0 0
        %4350 = vmatpush1.bf16.xpose.msra.mxu0 0
        %4351 = vmatprep.subr.bf16.mxu0 0
        %4352 = vmatpush1.bf16.xpose.msra.mxu0 0
        %4353 = vmatprep.subr.bf16.mxu0 0
        %4354 = vmatpush1.bf16.xpose.msra.mxu0 0
        %4355 = vmatprep.subr.bf16.mxu0 0
        %4356 = vmatpush1.bf16.xpose.msra.mxu0 0
        %4357 = vmatprep.subr.bf16.mxu0 0
        %4358 = vmatpush1.bf16.xpose.msra.mxu0 0
        %4359 = vmatprep.subr.bf16.mxu0 0
        %4360 = vmatpush1.bf16.xpose.msra.mxu0 0
        %4361 = vmatprep.subr.bf16.mxu0 0
        %4362 = vmatpush1.bf16.xpose.msra.mxu0 0
        %4363 = vmatprep.mubr.bf16.mxu0 0
        %4364 = vmatmul.mubr.bf16.gmra.mrb[0].mxu0 %v4329
        %v4365 = vpop.f32.mrb[0].mxu0
        %v4366 = vadd.f32 0.0, %v4365
        %v4367 = vpop.f32.mrb[0].mxu0
        %v4368 = vpop.f32.mrb[0].mxu0
        %v4369 = vpop.f32.mrb[0].mxu0
        %4370 = vdwg.mxu0
        %v4371 = vmul.f32 %v4366, 0.25
        %v4372 = vsel %vm3256, %v4371, -inf
        %4373 = vmax.xlane.f32.xlu0 %v4372
        %v4374 = vpop.xlane.xlu0 %4373
        %v4375 = vsub.f32 %v4371, %v4374
        %v4376 = vmul.f32 %v4375, 1.442695
        %v4377 = vpow.pop %v4376
        %v4378 = vsel %vm3256, %v4377, 0.0
        %4379 = vadd.xlane.f32.xlu0 %v4378
        %v4380 = vpop.xlane.xlu0 %4379
        %v4381 = vrcp.pop %v4380
        %v4382 = vmul.f32 %v4377, %v4381
        %v4383 = vpack.c.bf16 %v4382, %v4382
        %v4385 = vsel %vm3272, %v4383, 0
        %4387 = vmatprep.subr.bf16.mxu0 0
        %4388 = vmatpush1.bf16.msra.mxu0 %v3278
        %4389 = vmatprep.subr.bf16.mxu0 0
        %4390 = vmatpush1.bf16.msra.mxu0 0
        %4391 = vmatprep.subr.bf16.mxu0 0
        %4392 = vmatpush1.bf16.msra.mxu0 0
        %4393 = vmatprep.subr.bf16.mxu0 0
        %4394 = vmatpush1.bf16.msra.mxu0 0
        %4395 = vmatprep.subr.bf16.mxu0 0
        %4396 = vmatpush1.bf16.msra.mxu0 0
        %4397 = vmatprep.subr.bf16.mxu0 0
        %4398 = vmatpush1.bf16.msra.mxu0 0
        %4399 = vmatprep.subr.bf16.mxu0 0
        %4400 = vmatpush1.bf16.msra.mxu0 0
        %4401 = vmatprep.subr.bf16.mxu0 0
        %4402 = vmatpush1.bf16.msra.mxu0 0
        %4403 = vmatprep.subr.bf16.mxu0 0
        %4404 = vmatpush1.bf16.msra.mxu0 0
        %4405 = vmatprep.subr.bf16.mxu0 0
        %4406 = vmatpush1.bf16.msra.mxu0 0
        %4407 = vmatprep.subr.bf16.mxu0 0
        %4408 = vmatpush1.bf16.msra.mxu0 0
        %4409 = vmatprep.subr.bf16.mxu0 0
        %4410 = vmatpush1.bf16.msra.mxu0 0
        %4411 = vmatprep.subr.bf16.mxu0 0
        %4412 = vmatpush1.bf16.msra.mxu0 0
        %4413 = vmatprep.subr.bf16.mxu0 0
        %4414 = vmatpush1.bf16.msra.mxu0 0
        %4415 = vmatprep.subr.bf16.mxu0 0
        %4416 = vmatpush1.bf16.msra.mxu0 0
        %4417 = vmatprep.subr.bf16.mxu0 0
        %4418 = vmatpush1.bf16.msra.mxu0 0
        %4419 = vmatprep.mubr.bf16.mxu0 0
        %4420 = vmatmul.mubr.bf16.gmra.mrb[0].mxu0 %v4385
        %v4421 = vpop.f32.mrb[0].mxu0
        %v4422 = vadd.f32 0.0, %v4421
        %v4423 = vpop.f32.mrb[0].mxu0
        %v4424 = vpop.f32.mrb[0].mxu0
        %v4425 = vpop.f32.mrb[0].mxu0
        %4426 = vdwg.mxu0
        %v4427 = vpack.c.bf16 %v4422, %v4422
        %4429 = vrot.lane.b32.xlu0 %v4327, 112
        %v4430 = vpop.permute.xlu0 %4429
        %v4432 = vsel %vm1666, %v4430, 0
        %4434 = vmatprep.subr.bf16.mxu0 0
        %4435 = vmatpush1.bf16.xpose.msra.mxu0 %v3330
        %4436 = vmatprep.subr.bf16.mxu0 0
        %4437 = vmatpush1.bf16.xpose.msra.mxu0 0
        %4438 = vmatprep.subr.bf16.mxu0 0
        %4439 = vmatpush1.bf16.xpose.msra.mxu0 0
        %4440 = vmatprep.subr.bf16.mxu0 0
        %4441 = vmatpush1.bf16.xpose.msra.mxu0 0
        %4442 = vmatprep.subr.bf16.mxu0 0
        %4443 = vmatpush1.bf16.xpose.msra.mxu0 0
        %4444 = vmatprep.subr.bf16.mxu0 0
        %4445 = vmatpush1.bf16.xpose.msra.mxu0 0
        %4446 = vmatprep.subr.bf16.mxu0 0
        %4447 = vmatpush1.bf16.xpose.msra.mxu0 0
        %4448 = vmatprep.subr.bf16.mxu0 0
        %4449 = vmatpush1.bf16.xpose.msra.mxu0 0
        %4450 = vmatprep.subr.bf16.mxu0 0
        %4451 = vmatpush1.bf16.xpose.msra.mxu0 0
        %4452 = vmatprep.subr.bf16.mxu0 0
        %4453 = vmatpush1.bf16.xpose.msra.mxu0 0
        %4454 = vmatprep.subr.bf16.mxu0 0
        %4455 = vmatpush1.bf16.xpose.msra.mxu0 0
        %4456 = vmatprep.subr.bf16.mxu0 0
        %4457 = vmatpush1.bf16.xpose.msra.mxu0 0
        %4458 = vmatprep.subr.bf16.mxu0 0
        %4459 = vmatpush1.bf16.xpose.msra.mxu0 0
        %4460 = vmatprep.subr.bf16.mxu0 0
        %4461 = vmatpush1.bf16.xpose.msra.mxu0 0
        %4462 = vmatprep.subr.bf16.mxu0 0
        %4463 = vmatpush1.bf16.xpose.msra.mxu0 0
        %4464 = vmatprep.subr.bf16.mxu0 0
        %4465 = vmatpush1.bf16.xpose.msra.mxu0 0
        %4466 = vmatprep.mubr.bf16.mxu0 0
        %4467 = vmatmul.mubr.bf16.gmra.mrb[0].mxu0 %v4432
        %v4468 = vpop.f32.mrb[0].mxu0
        %v4469 = vadd.f32 0.0, %v4468
        %v4470 = vpop.f32.mrb[0].mxu0
        %v4471 = vpop.f32.mrb[0].mxu0
        %v4472 = vpop.f32.mrb[0].mxu0
        %4473 = vdwg.mxu0
        %v4474 = vmul.f32 %v4469, 0.25
        %v4475 = vsel %vm3256, %v4474, -inf
        %4476 = vmax.xlane.f32.xlu0 %v4475
        %v4477 = vpop.xlane.xlu0 %4476
        %v4478 = vsub.f32 %v4474, %v4477
        %v4479 = vmul.f32 %v4478, 1.442695
        %v4480 = vpow.pop %v4479
        %v4481 = vsel %vm3256, %v4480, 0.0
        %4482 = vadd.xlane.f32.xlu0 %v4481
        %v4483 = vpop.xlane.xlu0 %4482
        %v4484 = vrcp.pop %v4483
        %v4485 = vmul.f32 %v4480, %v4484
        %v4486 = vpack.c.bf16 %v4485, %v4485
        %v4488 = vsel %vm3272, %v4486, 0
        %4490 = vmatprep.subr.bf16.mxu0 0
        %4491 = vmatpush1.bf16.msra.mxu0 %v3391
        %4492 = vmatprep.subr.bf16.mxu0 0
        %4493 = vmatpush1.bf16.msra.mxu0 0
        %4494 = vmatprep.subr.bf16.mxu0 0
        %4495 = vmatpush1.bf16.msra.mxu0 0
        %4496 = vmatprep.subr.bf16.mxu0 0
        %4497 = vmatpush1.bf16.msra.mxu0 0
        %4498 = vmatprep.subr.bf16.mxu0 0
        %4499 = vmatpush1.bf16.msra.mxu0 0
        %4500 = vmatprep.subr.bf16.mxu0 0
        %4501 = vmatpush1.bf16.msra.mxu0 0
        %4502 = vmatprep.subr.bf16.mxu0 0
        %4503 = vmatpush1.bf16.msra.mxu0 0
        %4504 = vmatprep.subr.bf16.mxu0 0
        %4505 = vmatpush1.bf16.msra.mxu0 0
        %4506 = vmatprep.subr.bf16.mxu0 0
        %4507 = vmatpush1.bf16.msra.mxu0 0
        %4508 = vmatprep.subr.bf16.mxu0 0
        %4509 = vmatpush1.bf16.msra.mxu0 0
        %4510 = vmatprep.subr.bf16.mxu0 0
        %4511 = vmatpush1.bf16.msra.mxu0 0
        %4512 = vmatprep.subr.bf16.mxu0 0
        %4513 = vmatpush1.bf16.msra.mxu0 0
        %4514 = vmatprep.subr.bf16.mxu0 0
        %4515 = vmatpush1.bf16.msra.mxu0 0
        %4516 = vmatprep.subr.bf16.mxu0 0
        %4517 = vmatpush1.bf16.msra.mxu0 0
        %4518 = vmatprep.subr.bf16.mxu0 0
        %4519 = vmatpush1.bf16.msra.mxu0 0
        %4520 = vmatprep.subr.bf16.mxu0 0
        %4521 = vmatpush1.bf16.msra.mxu0 0
        %4522 = vmatprep.mubr.bf16.mxu0 0
        %4523 = vmatmul.mubr.bf16.gmra.mrb[0].mxu0 %v4488
        %v4524 = vpop.f32.mrb[0].mxu0
        %v4525 = vadd.f32 0.0, %v4524
        %v4526 = vpop.f32.mrb[0].mxu0
        %v4527 = vpop.f32.mrb[0].mxu0
        %v4528 = vpop.f32.mrb[0].mxu0
        %4529 = vdwg.mxu0
        %v4530 = vpack.c.bf16 %v4525, %v4525
        %v4533 = vunpack.c.l.b16 %v4325
        %v4534 = vunpack.c.l.b16 %v4326
        %v4535 = vpack.c.b16 %v4534, %v4533
        %v4538 = vsel %vm1666, %v4530, 0
        %4540 = vmatprep.subr.bf16.mxu0 0
        %4541 = vmatpush1.bf16.msra.mxu0 %v4535
        %4542 = vmatprep.subr.bf16.mxu0 0
        %4543 = vmatpush1.bf16.msra.mxu0 0
        %4544 = vmatprep.subr.bf16.mxu0 0
        %4545 = vmatpush1.bf16.msra.mxu0 0
        %4546 = vmatprep.subr.bf16.mxu0 0
        %4547 = vmatpush1.bf16.msra.mxu0 0
        %4548 = vmatprep.subr.bf16.mxu0 0
        %4549 = vmatpush1.bf16.msra.mxu0 0
        %4550 = vmatprep.subr.bf16.mxu0 0
        %4551 = vmatpush1.bf16.msra.mxu0 0
        %4552 = vmatprep.subr.bf16.mxu0 0
        %4553 = vmatpush1.bf16.msra.mxu0 0
        %4554 = vmatprep.subr.bf16.mxu0 0
        %4555 = vmatpush1.bf16.msra.mxu0 0
        %4556 = vmatprep.subr.bf16.mxu0 0
        %4557 = vmatpush1.bf16.msra.mxu0 0
        %4558 = vmatprep.subr.bf16.mxu0 0
        %4559 = vmatpush1.bf16.msra.mxu0 0
        %4560 = vmatprep.subr.bf16.mxu0 0
        %4561 = vmatpush1.bf16.msra.mxu0 0
        %4562 = vmatprep.subr.bf16.mxu0 0
        %4563 = vmatpush1.bf16.msra.mxu0 0
        %4564 = vmatprep.subr.bf16.mxu0 0
        %4565 = vmatpush1.bf16.msra.mxu0 0
        %4566 = vmatprep.subr.bf16.mxu0 0
        %4567 = vmatpush1.bf16.msra.mxu0 0
        %4568 = vmatprep.subr.bf16.mxu0 0
        %4569 = vmatpush1.bf16.msra.mxu0 0
        %4570 = vmatprep.subr.bf16.mxu0 0
        %4571 = vmatpush1.bf16.msra.mxu0 0
        %4572 = vmatprep.mubr.bf16.mxu0 0
        %4573 = vmatmul.mubr.bf16.gmra.mrb[0].mxu0 %v4538
        %v4574 = vpop.f32.mrb[0].mxu0
        %v4575 = vadd.f32 0.0, %v4574
        %v4576 = vpop.f32.mrb[0].mxu0
        %v4577 = vpop.f32.mrb[0].mxu0
        %v4578 = vpop.f32.mrb[0].mxu0
        %4579 = vdwg.mxu0
        %v4582 = vunpack.c.l.b16 %v4323
        %v4583 = vunpack.c.l.b16 %v4324
        %v4584 = vpack.c.b16 %v4583, %v4582
        %v4587 = vsel %vm1666, %v4427, 0
        %4589 = vmatprep.subr.bf16.mxu0 0
        %4590 = vmatpush1.bf16.msra.mxu0 %v4584
        %4591 = vmatprep.subr.bf16.mxu0 0
        %4592 = vmatpush1.bf16.msra.mxu0 0
        %4593 = vmatprep.subr.bf16.mxu0 0
        %4594 = vmatpush1.bf16.msra.mxu0 0
        %4595 = vmatprep.subr.bf16.mxu0 0
        %4596 = vmatpush1.bf16.msra.mxu0 0
        %4597 = vmatprep.subr.bf16.mxu0 0
        %4598 = vmatpush1.bf16.msra.mxu0 0
        %4599 = vmatprep.subr.bf16.mxu0 0
        %4600 = vmatpush1.bf16.msra.mxu0 0
        %4601 = vmatprep.subr.bf16.mxu0 0
        %4602 = vmatpush1.bf16.msra.mxu0 0
        %4603 = vmatprep.subr.bf16.mxu0 0
        %4604 = vmatpush1.bf16.msra.mxu0 0
        %4605 = vmatprep.subr.bf16.mxu0 0
        %4606 = vmatpush1.bf16.msra.mxu0 0
        %4607 = vmatprep.subr.bf16.mxu0 0
        %4608 = vmatpush1.bf16.msra.mxu0 0
        %4609 = vmatprep.subr.bf16.mxu0 0
        %4610 = vmatpush1.bf16.msra.mxu0 0
        %4611 = vmatprep.subr.bf16.mxu0 0
        %4612 = vmatpush1.bf16.msra.mxu0 0
        %4613 = vmatprep.subr.bf16.mxu0 0
        %4614 = vmatpush1.bf16.msra.mxu0 0
        %4615 = vmatprep.subr.bf16.mxu0 0
        %4616 = vmatpush1.bf16.msra.mxu0 0
        %4617 = vmatprep.subr.bf16.mxu0 0
        %4618 = vmatpush1.bf16.msra.mxu0 0
        %4619 = vmatprep.subr.bf16.mxu0 0
        %4620 = vmatpush1.bf16.msra.mxu0 0
        %4621 = vmatprep.mubr.bf16.mxu0 0
        %4622 = vmatmul.mubr.bf16.gmra.mrb[0].mxu0 %v4587
        %v4623 = vpop.f32.mrb[0].mxu0
        %v4624 = vadd.f32 %v4575, %v4623
        %v4625 = vpop.f32.mrb[0].mxu0
        %v4626 = vpop.f32.mrb[0].mxu0
        %v4627 = vpop.f32.mrb[0].mxu0
        %4628 = vdwg.mxu0
        %v4629 = vld [vmem:[#allocation2] sm:$0x1]
        %v4630 = vadd.f32 %v4624, %v4629
        %v4631 = vadd.f32 %v4257, %v4630
        %v4632 = vld [vmem:[#allocation5] sm:$0x1]
        %v4633 = vld [vmem:[#allocation7] sm:$0x1]
        %v4634 = vsel %vm3537, %v4631, 0.0
        %4635 = vadd.xlane.f32.xlu0 %v4634
        %v4636 = vpop.xlane.xlu0 %4635
        %v4637 = vmul.f32 %v4636, %v1565
        %v4638 = vsub.f32 %v4631, %v4637
        %v4639 = vmul.f32 %v4638, %v4638
        %v4640 = vsel %vm3537, %v4639, 0.0
        %4641 = vadd.xlane.f32.xlu0 %v4640
        %v4642 = vpop.xlane.xlu0 %4641
        %v4643 = vmul.f32 %v4642, %v1565
        %v4644 = vadd.f32 %v4643, 1e-06
        %v4645 = vrsqrt.pop %v4644
        %v4646 = vmul.f32 %v4638, %v4645
        %v4647 = vmul.f32 %v4646, %v4632
        %v4648 = vadd.f32 %v4647, %v4633
        %v4649 = vld [vmem:[%s71] sm:$0xf]
        %v4650 = vld [vmem:[%s71 + $0x4] sm:$0xf]
        %v4651 = vld [vmem:[%s71 + $0x8] sm:$0xf]
        %v4652 = vld [vmem:[%s71 + $0xc] sm:$0xf]
        %v4653 = vpack.c.bf16 %v4648, %v4648
        %v4658 = vunpack.c.l.b16 %v4649
        %v4659 = vunpack.c.l.b16 %v4650
        %v4660 = vunpack.c.l.b16 %v4651
        %v4661 = vunpack.c.l.b16 %v4652
        %v4662 = vpack.c.b16 %v4659, %v4658
        %v4663 = vpack.c.b16 %v4661, %v4660
        %v4667 = vsel %vm1614, %v4653, 0
        %4669 = vmatprep.subr.bf16.mxu0 0
        %4670 = vmatpush1.bf16.msra.mxu0 %v4662
        %4671 = vmatprep.subr.bf16.mxu0 0
        %4672 = vmatpush1.bf16.msra.mxu0 %v4663
        %4673 = vmatprep.subr.bf16.mxu0 0
        %4674 = vmatpush1.bf16.msra.mxu0 0
        %4675 = vmatprep.subr.bf16.mxu0 0
        %4676 = vmatpush1.bf16.msra.mxu0 0
        %4677 = vmatprep.subr.bf16.mxu0 0
        %4678 = vmatpush1.bf16.msra.mxu0 0
        %4679 = vmatprep.subr.bf16.mxu0 0
        %4680 = vmatpush1.bf16.msra.mxu0 0
        %4681 = vmatprep.subr.bf16.mxu0 0
        %4682 = vmatpush1.bf16.msra.mxu0 0
        %4683 = vmatprep.subr.bf16.mxu0 0
        %4684 = vmatpush1.bf16.msra.mxu0 0
        %4685 = vmatprep.subr.bf16.mxu0 0
        %4686 = vmatpush1.bf16.msra.mxu0 0
        %4687 = vmatprep.subr.bf16.mxu0 0
        %4688 = vmatpush1.bf16.msra.mxu0 0
        %4689 = vmatprep.subr.bf16.mxu0 0
        %4690 = vmatpush1.bf16.msra.mxu0 0
        %4691 = vmatprep.subr.bf16.mxu0 0
        %4692 = vmatpush1.bf16.msra.mxu0 0
        %4693 = vmatprep.subr.bf16.mxu0 0
        %4694 = vmatpush1.bf16.msra.mxu0 0
        %4695 = vmatprep.subr.bf16.mxu0 0
        %4696 = vmatpush1.bf16.msra.mxu0 0
        %4697 = vmatprep.subr.bf16.mxu0 0
        %4698 = vmatpush1.bf16.msra.mxu0 0
        %4699 = vmatprep.subr.bf16.mxu0 0
        %4700 = vmatpush1.bf16.msra.mxu0 0
        %4701 = vmatprep.mubr.bf16.mxu0 0
        %4702 = vmatmul.mubr.bf16.gmra.mrb[0].mxu0 %v4667
        %v4703 = vpop.f32.mrb[0].mxu0
        %v4704 = vadd.f32 0.0, %v4703
        %v4705 = vpop.f32.mrb[0].mxu0
        %v4706 = vpop.f32.mrb[0].mxu0
        %v4707 = vpop.f32.mrb[0].mxu0
        %4708 = vdwg.mxu0
        %v4709 = vsel %vm3613, %v4704, -inf
        %4710 = vmax.xlane.f32.xlu0 %v4709
        %v4711 = vpop.xlane.xlu0 %4710
        %vm4712 = vcmp.eq.f32.partialorder %v4704, %v4711
        %v4713 = vsel %vm4712, %v2944, 64
        %v4714 = vsel %vm3613, %v4713, 2147483647
        %v4715 = vand.u32 %v4714, 65535
        %v4716 = vshra.s32 %v4714, 16
        %v4717 = vcvt.s32.f32 %v4715
        %v4718 = vcvt.s32.f32 %v4716
        %4719 = vmin.xlane.f32.xlu0 %v4718
        %v4720 = vpop.xlane.xlu0 %4719
        %vm4721 = vcmp.eq.f32.partialorder %v4718, %v4720
        %v4722 = vsel %vm4721, %v4717, inf
        %4723 = vmin.xlane.f32.xlu0 %v4722
        %v4724 = vpop.xlane.xlu0 %4723
        %v4725 = vcvt.f32.s32 %v4724
        %v4726 = vcvt.f32.s32 %v4720
        %v4727 = vshll.u32 %v4726, 16
        %v4728 = vadd.s32 %v4727, %v4725
        %vm4729 = vcmp.eq.s32.totalorder %v2944, 2
        %v4730 = vsel %vm4729, %v4728, %v4183
        %vm4731 = vcmask 16384
        %4732 = vst.msk [vmem:[%s1365] sm:$0x1] %vm4731, %v4730
        %s4733 = sand.u32 %s1047, 1
        %s4734 = scalar_lea.sflag [#allocation4], %s4733
        %s4735 = sand.u32 %s1047, 1
        %s4736 = scalar_lea.vmem [#allocation8], %s4735
        // Predicated region
        $region209: #{flan_super_xl_vqa_forward.1} parent=195 // pred_check
          %p4737 = pneg %p1057
        $region210: #{flan_super_xl_vqa_forward.1} parent=195 // pred_check_branch
          %4739 = sbr.rel (%p4737) target = $region212
        $region211: #{flan_super_xl_vqa_forward.1} parent=195 // pred_region
          %s4741 = ssub.s32 16, 16
          %4742 = vsyncadd %s4734, %s4741
          %s4743 = smul.addr %s105, 16
          %s4744 = scalar_lea.hbm %s89, %s4743
          %s4746 = sshll.u32 %s4736, 4
          %s4747 = int_to_ptr.vmem [resolvable:$true] %s4746
          %4749 = dma.vmem_to_hbm [thread:$0]  %s4747, 16, %s4744, %s4734
        $region212: #{flan_super_xl_vqa_forward.1} parent=195 // pred_fallthru
          _
      $region196: #{flan_super_xl_vqa_forward.1} parent=5 // pred_fallthru
        _
      %p4750 = scmp.le.s32.totalorder 2, %s100
      // Predicated region
      $region213: #{flan_super_xl_vqa_forward.1} parent=5 // pred_check
        %p4751 = pneg %p4750
      $region214: #{flan_super_xl_vqa_forward.1} parent=5 // pred_check_branch
        %4753 = sbr.rel (%p4751) target = $region216
      $region215: #{flan_super_xl_vqa_forward.1} parent=5 // pred_region
        %s4754 = ssub.s32 %s100, 2
        // Predicated region
        $region217: #{flan_super_xl_vqa_forward.1} parent=215 // pred_check
          %p4755 = pneg %p1063
        $region218: #{flan_super_xl_vqa_forward.1} parent=215 // pred_check_branch
          %4757 = sbr.rel (%p4755) target = $region220
        $region219: #{flan_super_xl_vqa_forward.1} parent=215 // pred_region
          %s4758 = sand.u32 %s1048, 1
          %s4759 = scalar_lea.sflag [#allocation4], %s4758
          %s4760 = sand.u32 %s1048, 1
          %s4761 = scalar_lea.vmem [#allocation8], %s4760
          %4762 = dma.done %s4759, 16
        $region220: #{flan_super_xl_vqa_forward.1} parent=215 // pred_fallthru
          _
      $region216: #{flan_super_xl_vqa_forward.1} parent=5 // pred_fallthru
        _
    $region6: #{flan_super_xl_vqa_forward.1} parent=1 // loop_footer
      %s104 = sadd.s32 1, %s100
    $region7: #{flan_super_xl_vqa_forward.1} parent=1 // loop_footer_branch
      %99 = sbr.rel target = $region3
    $region8: #{flan_super_xl_vqa_forward.1} parent=1 // loop_exit
      _
    %4763 = vsyncpa [#allocation3], 1
    %s4764 = scalar_lea.sflag [#allocation3], 1
    %4765 = vsyncpa %s4764, 1
    %4766 = vsyncpa [#allocation6], 1
    %4767 = vsyncpa [#allocation4], 1
    %s4768 = scalar_lea.sflag [#allocation4], 1
    %4769 = vsyncpa %s4768, 1

</llo_original>
